<compile_context>
chip_gen: v7x
topology: tpu7x:2x2x1
jax: 0.10.0
libtpu: 0.0.40
codegen_flags: <defaults>
</compile_context>

<pallas_src>
import numpy as np
import jax
import jax.numpy as jnp
from jax.experimental import pallas as pl
from jax.experimental.pallas import tpu as pltpu

NEG_SLOPE = 0.01
BN_EPS = 1e-5


def _leaky(x):
    return jnp.where(x > 0, x, NEG_SLOPE * x)


# ---------------- fused Pallas kernel ----------------
#   L[(py,b), k]  with  k = u0*60 + s*30 + t*15 + v  =  x_pad[b, 2*(py+u0)+s, 2*v+t]
#   conv at pool-window position w=(wy,wx):  (L @ Wt[w])[(py,b), px*32+c]
#   2x2 max-pool == element-wise max over the 4 window results (shift/LeakyReLU
#   commute with the max since the shift is a per-channel constant).

def fused_kernel(l_ref, wt_ref, shift_ref, w1_ref, b1_ref, w2_ref, b2_ref,
                 w3_ref, b3_ref, o_ref):
    tb = l_ref.shape[1]
    # rows ordered (py, b); leading-dim merge is layout-free (tb multiple of 16)
    l = l_ref[...].reshape(14 * tb, 120)

    # conv + BN + bias + 2x2 maxpool (f32 accumulation on the MXU)
    m = jnp.dot(l, wt_ref[0], preferred_element_type=jnp.float32)
    for w in range(1, 4):
        m = jnp.maximum(m, jnp.dot(l, wt_ref[w], preferred_element_type=jnp.float32))
    y = _leaky(m + shift_ref[...]).astype(jnp.bfloat16)          # (14*tb, 448)

    # Linear(6272,256): contract over (py, px, c) as 14 aligned partial matmuls
    h = jnp.zeros((tb, 256), jnp.float32)
    for py in range(14):
        h = h + jnp.dot(y[py * tb:(py + 1) * tb, :], w1_ref[py],
                        preferred_element_type=jnp.float32)
    h = _leaky(h + b1_ref[...]).astype(jnp.bfloat16)             # Dropout = identity (eval)

    h = _leaky(jnp.dot(h, w2_ref[...], preferred_element_type=jnp.float32)
               + b2_ref[...]).astype(jnp.bfloat16)               # Dropout = identity (eval)

    o_ref[...] = jnp.dot(h, w3_ref[...], preferred_element_type=jnp.float32) + b3_ref[...]


# ---------------- parameters ----------------

def init_params(key):
    ks = jax.random.split(key, 8)
    p = {}
    p["conv_w"] = jax.random.normal(ks[0], (32, 1, 3, 3), jnp.float32) * 0.1
    p["conv_b"] = jax.random.normal(ks[1], (32,), jnp.float32) * 0.1
    # BatchNorm2d eval-mode running stats / affine defaults
    p["bn_gamma"] = jnp.ones((32,), jnp.float32)
    p["bn_beta"] = jnp.zeros((32,), jnp.float32)
    p["bn_mean"] = jnp.zeros((32,), jnp.float32)
    p["bn_var"] = jnp.ones((32,), jnp.float32)
    p["w1"] = jax.random.normal(ks[2], (6272, 256), jnp.float32) * 0.02
    p["b1"] = jax.random.normal(ks[3], (256,), jnp.float32) * 0.02
    p["w2"] = jax.random.normal(ks[4], (256, 256), jnp.float32) * 0.05
    p["b2"] = jax.random.normal(ks[5], (256,), jnp.float32) * 0.05
    p["w3"] = jax.random.normal(ks[6], (256, 10), jnp.float32) * 0.05
    p["b3"] = jax.random.normal(ks[7], (10,), jnp.float32) * 0.05
    return p


def prepare_params(p):
    """One-time prep: fold BN into the conv, build the pool-position Toeplitz conv
    weights, fold torch's NCHW flatten into w1, pad the last layer to 128 lanes."""
    scale = np.asarray(p["bn_gamma"] / jnp.sqrt(p["bn_var"] + BN_EPS))            # (32,)
    wfold = np.asarray(p["conv_w"]).reshape(32, 3, 3) * scale[:, None, None]      # [c,dy,dx]
    wfold = wfold.transpose(1, 2, 0)                                              # [dy,dx,c]
    shift_c = (np.asarray(p["bn_beta"]) - np.asarray(p["bn_mean"]) * scale
               + np.asarray(p["conv_b"]) * scale)                                 # (32,)

    # Toeplitz conv+pool weights Wt[w, k, n]:
    #   k = u0*60 + s*30 + t*15 + v   parity-deinterleaved input pixel
    #   n = px*32 + c                 (pooled x position, channel)
    #   w = wy*2 + wx                 position inside the 2x2 pool window
    wt = np.zeros((4, 120, 448), np.float32)
    for wy in range(2):
        for wx in range(2):
            for dy in range(3):
                s, u0 = (wy + dy) % 2, (wy + dy) // 2
                for dx in range(3):
                    t, v0 = (wx + dx) % 2, (wx + dx) // 2
                    for px in range(14):
                        k = u0 * 60 + s * 30 + t * 15 + (px + v0)
                        wt[wy * 2 + wx, k, px * 32:px * 32 + 32] += wfold[dy, dx]
    shift = np.tile(shift_c, 14).reshape(1, 448)          # broadcast over px (n = px*32+c)

    # torch flatten index c*196 + py*14 + px  ->  (py, px*32 + c)
    w1p = (np.asarray(p["w1"]).reshape(32, 14, 14, 256)
           .transpose(1, 2, 0, 3).reshape(14, 448, 256))
    w3p = np.zeros((256, 128), np.float32)
    w3p[:, :10] = np.asarray(p["w3"])
    b3p = np.zeros((1, 128), np.float32)
    b3p[0, :10] = np.asarray(p["b3"])

    return {
        "wt": jnp.asarray(wt, jnp.bfloat16),
        "shift": jnp.asarray(shift, jnp.float32),
        "w1": jnp.asarray(w1p, jnp.bfloat16),
        "b1": jnp.asarray(np.asarray(p["b1"]).reshape(1, 256), jnp.float32),
        "w2": jnp.asarray(np.asarray(p["w2"]), jnp.bfloat16),
        "b2": jnp.asarray(np.asarray(p["b2"]).reshape(1, 256), jnp.float32),
        "w3": jnp.asarray(w3p, jnp.bfloat16),
        "b3": jnp.asarray(b3p, jnp.float32),
    }


# ---------------- forward (Pallas) ----------------

def forward(prep, x):
    """x: (B, 784) float -- flattened 28x28 images (torch .view semantics)."""
    B = x.shape[0]
    # Batch tile: big enough to amortize per-grid-step overhead, small enough to keep
    # live VMEM ~20 MB (v7x: 64 MiB/TC) and give multiple grid steps for megacore.
    tb = 128 if B >= 128 else -(-B // 16) * 16
    Bp = -(-B // tb) * tb
    xf = x.reshape(B, 784).astype(jnp.float32)
    if Bp != B:
        xf = jnp.pad(xf, ((0, Bp - B), (0, 0)))

    # Parity-deinterleave the zero-padded image into the matmul-ready layout
    #   L[py, b, u0*60 + s*30 + t*15 + v] = x_pad[b, 2*(py+u0)+s, 2*v+t]
    # (~3.4 KB/image bf16 in HBM: no 9x im2col inflation, no pooled-activation HBM trip)
    xp = jnp.pad(xf.reshape(Bp, 28, 28), ((0, 0), (1, 1), (1, 1)))        # (Bp,30,30)
    slabs = [xp[:, 2 * u0 + s:2 * u0 + s + 28:2, t:t + 30:2]
             for u0 in range(2) for s in range(2) for t in range(2)]      # 8 x (Bp,14,15)
    lmat = (jnp.concatenate(slabs, axis=-1)                               # (Bp,14,120)
            .transpose(1, 0, 2).astype(jnp.bfloat16))                     # (14,Bp,120)

    out = pl.pallas_call(
        fused_kernel,
        out_shape=jax.ShapeDtypeStruct((Bp, 128), jnp.float32),
        grid=(Bp // tb,),
        in_specs=[
            pl.BlockSpec((14, tb, 120), lambda i: (0, i, 0)),   # per-tile image data
            pl.BlockSpec((4, 120, 448), lambda i: (0, 0, 0)),   # weights stay resident
            pl.BlockSpec((1, 448), lambda i: (0, 0)),
            pl.BlockSpec((14, 448, 256), lambda i: (0, 0, 0)),
            pl.BlockSpec((1, 256), lambda i: (0, 0)),
            pl.BlockSpec((256, 256), lambda i: (0, 0)),
            pl.BlockSpec((1, 256), lambda i: (0, 0)),
            pl.BlockSpec((256, 128), lambda i: (0, 0)),
            pl.BlockSpec((1, 128), lambda i: (0, 0)),
        ],
        out_specs=pl.BlockSpec((tb, 128), lambda i: (i, 0)),
        compiler_params=pltpu.CompilerParams(
            dimension_semantics=("parallel",),
            vmem_limit_bytes=48 * 1024 * 1024),
    )(lmat, prep["wt"], prep["shift"], prep["w1"], prep["b1"],
      prep["w2"], prep["b2"], prep["w3"], prep["b3"])
    return out[:B, :10]


# ---------------- pure-JAX f32 reference (for verification) ----------------

def forward_ref(params, x):
    B = x.shape[0]
    x_img = x.reshape(B, 1, 28, 28)
    conv = jax.lax.conv_general_dilated(
        x_img, params["conv_w"], (1, 1), ((1, 1), (1, 1)),
        dimension_numbers=("NCHW", "OIHW", "NCHW"))
    conv = conv + params["conv_b"].reshape(1, 32, 1, 1)
    scale = (params["bn_gamma"] / jnp.sqrt(params["bn_var"] + BN_EPS)).reshape(1, 32, 1, 1)
    y = (conv - params["bn_mean"].reshape(1, 32, 1, 1)) * scale + params["bn_beta"].reshape(1, 32, 1, 1)
    y = jnp.where(y > 0, y, NEG_SLOPE * y)
    y = y.reshape(B, 32, 14, 2, 14, 2).max(axis=(3, 5))
    flat = y.reshape(B, 6272)
    h1 = flat @ params["w1"] + params["b1"]
    h1 = jnp.where(h1 > 0, h1, NEG_SLOPE * h1)
    h2 = h1 @ params["w2"] + params["b2"]
    h2 = jnp.where(h2 > 0, h2, NEG_SLOPE * h2)
    return h2 @ params["w3"] + params["b3"]


if __name__ == "__main__":
    key = jax.random.PRNGKey(0)
    pkey, xkey = jax.random.split(key)
    params = init_params(pkey)
    prep = prepare_params(params)

    B = 2
    x = jax.random.normal(xkey, (B, 784), jnp.float32)   # flattened 28x28 images

    fwd = jax.jit(forward)
    out = jax.block_until_ready(fwd(prep, x))
    assert out.shape == (B, 10) and out.dtype == jnp.float32

    ref = jax.block_until_ready(forward_ref(params, x))
    max_diff = jnp.max(jnp.abs(out - ref))
    assert jnp.allclose(out, ref, atol=3e-2, rtol=3e-2), (
        f"mismatch: max abs diff = {max_diff}")

    print("KERNEL_OK")
</pallas_src>

<mosaic_0001>
module attributes {stable_mosaic.version = 11 : i64} {
  func.func @fused_kernel(%arg0: i32, %arg1: memref<14x16x120xbf16, #tpu.memory_space<vmem>>, %arg2: memref<4x120x448xbf16, #tpu.memory_space<vmem>>, %arg3: memref<1x448xf32, #tpu.memory_space<vmem>>, %arg4: memref<14x448x256xbf16, #tpu.memory_space<vmem>>, %arg5: memref<1x256xf32, #tpu.memory_space<vmem>>, %arg6: memref<256x256xbf16, #tpu.memory_space<vmem>>, %arg7: memref<1x256xf32, #tpu.memory_space<vmem>>, %arg8: memref<256x128xbf16, #tpu.memory_space<vmem>>, %arg9: memref<1x128xf32, #tpu.memory_space<vmem>>, %arg10: memref<16x128xf32, #tpu.memory_space<vmem>>) attributes {dimension_semantics = [#tpu.dimension_semantics<parallel>], iteration_bounds = array<i64: 1>, scalar_prefetch = 0 : i64, scratch_operands = 0 : i64, tpu.core_type = #tpu.core_type<tc>, window_params = [{transform_indices = @transform_0, window_bounds = array<i64: 14, 16, 120>}, {pipeline_mode = #tpu.pipeline_mode<synchronous>, transform_indices = @transform_1, window_bounds = array<i64: 4, 120, 448>}, {pipeline_mode = #tpu.pipeline_mode<synchronous>, transform_indices = @transform_2, window_bounds = array<i64: 1, 448>}, {pipeline_mode = #tpu.pipeline_mode<synchronous>, transform_indices = @transform_3, window_bounds = array<i64: 14, 448, 256>}, {pipeline_mode = #tpu.pipeline_mode<synchronous>, transform_indices = @transform_4, window_bounds = array<i64: 1, 256>}, {pipeline_mode = #tpu.pipeline_mode<synchronous>, transform_indices = @transform_5, window_bounds = array<i64: 256, 256>}, {pipeline_mode = #tpu.pipeline_mode<synchronous>, transform_indices = @transform_6, window_bounds = array<i64: 1, 256>}, {pipeline_mode = #tpu.pipeline_mode<synchronous>, transform_indices = @transform_7, window_bounds = array<i64: 256, 128>}, {pipeline_mode = #tpu.pipeline_mode<synchronous>, transform_indices = @transform_8, window_bounds = array<i64: 1, 128>}, {transform_indices = @transform_9, window_bounds = array<i64: 16, 128>}]} {
    %c0 = arith.constant 0 : index
    %c0_0 = arith.constant 0 : index
    %c0_1 = arith.constant 0 : index
    %0 = vector.load %arg1[%c0, %c0_0, %c0_1] : memref<14x16x120xbf16, #tpu.memory_space<vmem>>, vector<14x16x120xbf16>
    %1 = vector.shape_cast %0 : vector<14x16x120xbf16> to vector<224x120xbf16>
    %c0_2 = arith.constant 0 : index
    %c0_3 = arith.constant 0 : index
    %c0_4 = arith.constant 0 : index
    %2 = vector.load %arg2[%c0_2, %c0_3, %c0_4] : memref<4x120x448xbf16, #tpu.memory_space<vmem>>, vector<1x120x448xbf16>
    %3 = vector.shape_cast %2 : vector<1x120x448xbf16> to vector<120x448xbf16>
    %cst = arith.constant dense<0.000000e+00> : vector<224x448xf32>
    %4 = tpu.matmul %1, %3, %cst {dimension_numbers = #tpu.dot_dimension_numbers<[1], [0], [0], [1], [0, 0, 1, 1], [], []>} : vector<224x120xbf16>, vector<120x448xbf16>, vector<224x448xf32> -> vector<224x448xf32>
    %c1 = arith.constant 1 : index
    %c0_5 = arith.constant 0 : index
    %c0_6 = arith.constant 0 : index
    %5 = vector.load %arg2[%c1, %c0_5, %c0_6] : memref<4x120x448xbf16, #tpu.memory_space<vmem>>, vector<1x120x448xbf16>
    %6 = vector.shape_cast %5 : vector<1x120x448xbf16> to vector<120x448xbf16>
    %cst_7 = arith.constant dense<0.000000e+00> : vector<224x448xf32>
    %7 = tpu.matmul %1, %6, %cst_7 {dimension_numbers = #tpu.dot_dimension_numbers<[1], [0], [0], [1], [0, 0, 1, 1], [], []>} : vector<224x120xbf16>, vector<120x448xbf16>, vector<224x448xf32> -> vector<224x448xf32>
    %8 = arith.maximumf %4, %7 : vector<224x448xf32>
    %c2 = arith.constant 2 : index
    %c0_8 = arith.constant 0 : index
    %c0_9 = arith.constant 0 : index
    %9 = vector.load %arg2[%c2, %c0_8, %c0_9] : memref<4x120x448xbf16, #tpu.memory_space<vmem>>, vector<1x120x448xbf16>
    %10 = vector.shape_cast %9 : vector<1x120x448xbf16> to vector<120x448xbf16>
    %cst_10 = arith.constant dense<0.000000e+00> : vector<224x448xf32>
    %11 = tpu.matmul %1, %10, %cst_10 {dimension_numbers = #tpu.dot_dimension_numbers<[1], [0], [0], [1], [0, 0, 1, 1], [], []>} : vector<224x120xbf16>, vector<120x448xbf16>, vector<224x448xf32> -> vector<224x448xf32>
    %12 = arith.maximumf %8, %11 : vector<224x448xf32>
    %c3 = arith.constant 3 : index
    %c0_11 = arith.constant 0 : index
    %c0_12 = arith.constant 0 : index
    %13 = vector.load %arg2[%c3, %c0_11, %c0_12] : memref<4x120x448xbf16, #tpu.memory_space<vmem>>, vector<1x120x448xbf16>
    %14 = vector.shape_cast %13 : vector<1x120x448xbf16> to vector<120x448xbf16>
    %cst_13 = arith.constant dense<0.000000e+00> : vector<224x448xf32>
    %15 = tpu.matmul %1, %14, %cst_13 {dimension_numbers = #tpu.dot_dimension_numbers<[1], [0], [0], [1], [0, 0, 1, 1], [], []>} : vector<224x120xbf16>, vector<120x448xbf16>, vector<224x448xf32> -> vector<224x448xf32>
    %16 = arith.maximumf %12, %15 : vector<224x448xf32>
    %c0_14 = arith.constant 0 : index
    %c0_15 = arith.constant 0 : index
    %17 = vector.load %arg3[%c0_14, %c0_15] : memref<1x448xf32, #tpu.memory_space<vmem>>, vector<1x448xf32>
    %18 = vector.broadcast %17 : vector<1x448xf32> to vector<224x448xf32>
    %19 = arith.addf %16, %18 : vector<224x448xf32>
    %cst_16 = arith.constant 0.000000e+00 : f32
    %20 = vector.broadcast %cst_16 : f32 to vector<224x448xf32>
    %21 = arith.cmpf ogt, %19, %20 : vector<224x448xf32>
    %cst_17 = arith.constant 0.00999999977 : f32
    %22 = vector.broadcast %cst_17 : f32 to vector<224x448xf32>
    %23 = arith.mulf %22, %19 : vector<224x448xf32>
    %24 = arith.select %21, %19, %23 : vector<224x448xi1>, vector<224x448xf32>
    %25 = arith.truncf %24 : vector<224x448xf32> to vector<224x448xbf16>
    %cst_18 = arith.constant 0.000000e+00 : f32
    %26 = vector.broadcast %cst_18 : f32 to vector<16x256xf32>
    %27 = vector.extract_strided_slice %25 {offsets = [0, 0], sizes = [16, 448], strides = [1, 1]} : vector<224x448xbf16> to vector<16x448xbf16>
    %c0_19 = arith.constant 0 : index
    %c0_20 = arith.constant 0 : index
    %c0_21 = arith.constant 0 : index
    %28 = vector.load %arg4[%c0_19, %c0_20, %c0_21] : memref<14x448x256xbf16, #tpu.memory_space<vmem>>, vector<1x448x256xbf16>
    %29 = vector.shape_cast %28 : vector<1x448x256xbf16> to vector<448x256xbf16>
    %cst_22 = arith.constant dense<0.000000e+00> : vector<16x256xf32>
    %30 = tpu.matmul %27, %29, %cst_22 {dimension_numbers = #tpu.dot_dimension_numbers<[1], [0], [0], [1], [0, 0, 1, 1], [], []>} : vector<16x448xbf16>, vector<448x256xbf16>, vector<16x256xf32> -> vector<16x256xf32>
    %31 = arith.addf %26, %30 : vector<16x256xf32>
    %32 = vector.extract_strided_slice %25 {offsets = [16, 0], sizes = [16, 448], strides = [1, 1]} : vector<224x448xbf16> to vector<16x448xbf16>
    %c1_23 = arith.constant 1 : index
    %c0_24 = arith.constant 0 : index
    %c0_25 = arith.constant 0 : index
    %33 = vector.load %arg4[%c1_23, %c0_24, %c0_25] : memref<14x448x256xbf16, #tpu.memory_space<vmem>>, vector<1x448x256xbf16>
    %34 = vector.shape_cast %33 : vector<1x448x256xbf16> to vector<448x256xbf16>
    %cst_26 = arith.constant dense<0.000000e+00> : vector<16x256xf32>
    %35 = tpu.matmul %32, %34, %cst_26 {dimension_numbers = #tpu.dot_dimension_numbers<[1], [0], [0], [1], [0, 0, 1, 1], [], []>} : vector<16x448xbf16>, vector<448x256xbf16>, vector<16x256xf32> -> vector<16x256xf32>
    %36 = arith.addf %31, %35 : vector<16x256xf32>
    %37 = vector.extract_strided_slice %25 {offsets = [32, 0], sizes = [16, 448], strides = [1, 1]} : vector<224x448xbf16> to vector<16x448xbf16>
    %c2_27 = arith.constant 2 : index
    %c0_28 = arith.constant 0 : index
    %c0_29 = arith.constant 0 : index
    %38 = vector.load %arg4[%c2_27, %c0_28, %c0_29] : memref<14x448x256xbf16, #tpu.memory_space<vmem>>, vector<1x448x256xbf16>
    %39 = vector.shape_cast %38 : vector<1x448x256xbf16> to vector<448x256xbf16>
    %cst_30 = arith.constant dense<0.000000e+00> : vector<16x256xf32>
    %40 = tpu.matmul %37, %39, %cst_30 {dimension_numbers = #tpu.dot_dimension_numbers<[1], [0], [0], [1], [0, 0, 1, 1], [], []>} : vector<16x448xbf16>, vector<448x256xbf16>, vector<16x256xf32> -> vector<16x256xf32>
    %41 = arith.addf %36, %40 : vector<16x256xf32>
    %42 = vector.extract_strided_slice %25 {offsets = [48, 0], sizes = [16, 448], strides = [1, 1]} : vector<224x448xbf16> to vector<16x448xbf16>
    %c3_31 = arith.constant 3 : index
    %c0_32 = arith.constant 0 : index
    %c0_33 = arith.constant 0 : index
    %43 = vector.load %arg4[%c3_31, %c0_32, %c0_33] : memref<14x448x256xbf16, #tpu.memory_space<vmem>>, vector<1x448x256xbf16>
    %44 = vector.shape_cast %43 : vector<1x448x256xbf16> to vector<448x256xbf16>
    %cst_34 = arith.constant dense<0.000000e+00> : vector<16x256xf32>
    %45 = tpu.matmul %42, %44, %cst_34 {dimension_numbers = #tpu.dot_dimension_numbers<[1], [0], [0], [1], [0, 0, 1, 1], [], []>} : vector<16x448xbf16>, vector<448x256xbf16>, vector<16x256xf32> -> vector<16x256xf32>
    %46 = arith.addf %41, %45 : vector<16x256xf32>
    %47 = vector.extract_strided_slice %25 {offsets = [64, 0], sizes = [16, 448], strides = [1, 1]} : vector<224x448xbf16> to vector<16x448xbf16>
    %c4 = arith.constant 4 : index
    %c0_35 = arith.constant 0 : index
    %c0_36 = arith.constant 0 : index
    %48 = vector.load %arg4[%c4, %c0_35, %c0_36] : memref<14x448x256xbf16, #tpu.memory_space<vmem>>, vector<1x448x256xbf16>
    %49 = vector.shape_cast %48 : vector<1x448x256xbf16> to vector<448x256xbf16>
    %cst_37 = arith.constant dense<0.000000e+00> : vector<16x256xf32>
    %50 = tpu.matmul %47, %49, %cst_37 {dimension_numbers = #tpu.dot_dimension_numbers<[1], [0], [0], [1], [0, 0, 1, 1], [], []>} : vector<16x448xbf16>, vector<448x256xbf16>, vector<16x256xf32> -> vector<16x256xf32>
    %51 = arith.addf %46, %50 : vector<16x256xf32>
    %52 = vector.extract_strided_slice %25 {offsets = [80, 0], sizes = [16, 448], strides = [1, 1]} : vector<224x448xbf16> to vector<16x448xbf16>
    %c5 = arith.constant 5 : index
    %c0_38 = arith.constant 0 : index
    %c0_39 = arith.constant 0 : index
    %53 = vector.load %arg4[%c5, %c0_38, %c0_39] : memref<14x448x256xbf16, #tpu.memory_space<vmem>>, vector<1x448x256xbf16>
    %54 = vector.shape_cast %53 : vector<1x448x256xbf16> to vector<448x256xbf16>
    %cst_40 = arith.constant dense<0.000000e+00> : vector<16x256xf32>
    %55 = tpu.matmul %52, %54, %cst_40 {dimension_numbers = #tpu.dot_dimension_numbers<[1], [0], [0], [1], [0, 0, 1, 1], [], []>} : vector<16x448xbf16>, vector<448x256xbf16>, vector<16x256xf32> -> vector<16x256xf32>
    %56 = arith.addf %51, %55 : vector<16x256xf32>
    %57 = vector.extract_strided_slice %25 {offsets = [96, 0], sizes = [16, 448], strides = [1, 1]} : vector<224x448xbf16> to vector<16x448xbf16>
    %c6 = arith.constant 6 : index
    %c0_41 = arith.constant 0 : index
    %c0_42 = arith.constant 0 : index
    %58 = vector.load %arg4[%c6, %c0_41, %c0_42] : memref<14x448x256xbf16, #tpu.memory_space<vmem>>, vector<1x448x256xbf16>
    %59 = vector.shape_cast %58 : vector<1x448x256xbf16> to vector<448x256xbf16>
    %cst_43 = arith.constant dense<0.000000e+00> : vector<16x256xf32>
    %60 = tpu.matmul %57, %59, %cst_43 {dimension_numbers = #tpu.dot_dimension_numbers<[1], [0], [0], [1], [0, 0, 1, 1], [], []>} : vector<16x448xbf16>, vector<448x256xbf16>, vector<16x256xf32> -> vector<16x256xf32>
    %61 = arith.addf %56, %60 : vector<16x256xf32>
    %62 = vector.extract_strided_slice %25 {offsets = [112, 0], sizes = [16, 448], strides = [1, 1]} : vector<224x448xbf16> to vector<16x448xbf16>
    %c7 = arith.constant 7 : index
    %c0_44 = arith.constant 0 : index
    %c0_45 = arith.constant 0 : index
    %63 = vector.load %arg4[%c7, %c0_44, %c0_45] : memref<14x448x256xbf16, #tpu.memory_space<vmem>>, vector<1x448x256xbf16>
    %64 = vector.shape_cast %63 : vector<1x448x256xbf16> to vector<448x256xbf16>
    %cst_46 = arith.constant dense<0.000000e+00> : vector<16x256xf32>
    %65 = tpu.matmul %62, %64, %cst_46 {dimension_numbers = #tpu.dot_dimension_numbers<[1], [0], [0], [1], [0, 0, 1, 1], [], []>} : vector<16x448xbf16>, vector<448x256xbf16>, vector<16x256xf32> -> vector<16x256xf32>
    %66 = arith.addf %61, %65 : vector<16x256xf32>
    %67 = vector.extract_strided_slice %25 {offsets = [128, 0], sizes = [16, 448], strides = [1, 1]} : vector<224x448xbf16> to vector<16x448xbf16>
    %c8 = arith.constant 8 : index
    %c0_47 = arith.constant 0 : index
    %c0_48 = arith.constant 0 : index
    %68 = vector.load %arg4[%c8, %c0_47, %c0_48] : memref<14x448x256xbf16, #tpu.memory_space<vmem>>, vector<1x448x256xbf16>
    %69 = vector.shape_cast %68 : vector<1x448x256xbf16> to vector<448x256xbf16>
    %cst_49 = arith.constant dense<0.000000e+00> : vector<16x256xf32>
    %70 = tpu.matmul %67, %69, %cst_49 {dimension_numbers = #tpu.dot_dimension_numbers<[1], [0], [0], [1], [0, 0, 1, 1], [], []>} : vector<16x448xbf16>, vector<448x256xbf16>, vector<16x256xf32> -> vector<16x256xf32>
    %71 = arith.addf %66, %70 : vector<16x256xf32>
    %72 = vector.extract_strided_slice %25 {offsets = [144, 0], sizes = [16, 448], strides = [1, 1]} : vector<224x448xbf16> to vector<16x448xbf16>
    %c9 = arith.constant 9 : index
    %c0_50 = arith.constant 0 : index
    %c0_51 = arith.constant 0 : index
    %73 = vector.load %arg4[%c9, %c0_50, %c0_51] : memref<14x448x256xbf16, #tpu.memory_space<vmem>>, vector<1x448x256xbf16>
    %74 = vector.shape_cast %73 : vector<1x448x256xbf16> to vector<448x256xbf16>
    %cst_52 = arith.constant dense<0.000000e+00> : vector<16x256xf32>
    %75 = tpu.matmul %72, %74, %cst_52 {dimension_numbers = #tpu.dot_dimension_numbers<[1], [0], [0], [1], [0, 0, 1, 1], [], []>} : vector<16x448xbf16>, vector<448x256xbf16>, vector<16x256xf32> -> vector<16x256xf32>
    %76 = arith.addf %71, %75 : vector<16x256xf32>
    %77 = vector.extract_strided_slice %25 {offsets = [160, 0], sizes = [16, 448], strides = [1, 1]} : vector<224x448xbf16> to vector<16x448xbf16>
    %c10 = arith.constant 10 : index
    %c0_53 = arith.constant 0 : index
    %c0_54 = arith.constant 0 : index
    %78 = vector.load %arg4[%c10, %c0_53, %c0_54] : memref<14x448x256xbf16, #tpu.memory_space<vmem>>, vector<1x448x256xbf16>
    %79 = vector.shape_cast %78 : vector<1x448x256xbf16> to vector<448x256xbf16>
    %cst_55 = arith.constant dense<0.000000e+00> : vector<16x256xf32>
    %80 = tpu.matmul %77, %79, %cst_55 {dimension_numbers = #tpu.dot_dimension_numbers<[1], [0], [0], [1], [0, 0, 1, 1], [], []>} : vector<16x448xbf16>, vector<448x256xbf16>, vector<16x256xf32> -> vector<16x256xf32>
    %81 = arith.addf %76, %80 : vector<16x256xf32>
    %82 = vector.extract_strided_slice %25 {offsets = [176, 0], sizes = [16, 448], strides = [1, 1]} : vector<224x448xbf16> to vector<16x448xbf16>
    %c11 = arith.constant 11 : index
    %c0_56 = arith.constant 0 : index
    %c0_57 = arith.constant 0 : index
    %83 = vector.load %arg4[%c11, %c0_56, %c0_57] : memref<14x448x256xbf16, #tpu.memory_space<vmem>>, vector<1x448x256xbf16>
    %84 = vector.shape_cast %83 : vector<1x448x256xbf16> to vector<448x256xbf16>
    %cst_58 = arith.constant dense<0.000000e+00> : vector<16x256xf32>
    %85 = tpu.matmul %82, %84, %cst_58 {dimension_numbers = #tpu.dot_dimension_numbers<[1], [0], [0], [1], [0, 0, 1, 1], [], []>} : vector<16x448xbf16>, vector<448x256xbf16>, vector<16x256xf32> -> vector<16x256xf32>
    %86 = arith.addf %81, %85 : vector<16x256xf32>
    %87 = vector.extract_strided_slice %25 {offsets = [192, 0], sizes = [16, 448], strides = [1, 1]} : vector<224x448xbf16> to vector<16x448xbf16>
    %c12 = arith.constant 12 : index
    %c0_59 = arith.constant 0 : index
    %c0_60 = arith.constant 0 : index
    %88 = vector.load %arg4[%c12, %c0_59, %c0_60] : memref<14x448x256xbf16, #tpu.memory_space<vmem>>, vector<1x448x256xbf16>
    %89 = vector.shape_cast %88 : vector<1x448x256xbf16> to vector<448x256xbf16>
    %cst_61 = arith.constant dense<0.000000e+00> : vector<16x256xf32>
    %90 = tpu.matmul %87, %89, %cst_61 {dimension_numbers = #tpu.dot_dimension_numbers<[1], [0], [0], [1], [0, 0, 1, 1], [], []>} : vector<16x448xbf16>, vector<448x256xbf16>, vector<16x256xf32> -> vector<16x256xf32>
    %91 = arith.addf %86, %90 : vector<16x256xf32>
    %92 = vector.extract_strided_slice %25 {offsets = [208, 0], sizes = [16, 448], strides = [1, 1]} : vector<224x448xbf16> to vector<16x448xbf16>
    %c13 = arith.constant 13 : index
    %c0_62 = arith.constant 0 : index
    %c0_63 = arith.constant 0 : index
    %93 = vector.load %arg4[%c13, %c0_62, %c0_63] : memref<14x448x256xbf16, #tpu.memory_space<vmem>>, vector<1x448x256xbf16>
    %94 = vector.shape_cast %93 : vector<1x448x256xbf16> to vector<448x256xbf16>
    %cst_64 = arith.constant dense<0.000000e+00> : vector<16x256xf32>
    %95 = tpu.matmul %92, %94, %cst_64 {dimension_numbers = #tpu.dot_dimension_numbers<[1], [0], [0], [1], [0, 0, 1, 1], [], []>} : vector<16x448xbf16>, vector<448x256xbf16>, vector<16x256xf32> -> vector<16x256xf32>
    %96 = arith.addf %91, %95 : vector<16x256xf32>
    %c0_65 = arith.constant 0 : index
    %c0_66 = arith.constant 0 : index
    %97 = vector.load %arg5[%c0_65, %c0_66] : memref<1x256xf32, #tpu.memory_space<vmem>>, vector<1x256xf32>
    %98 = vector.broadcast %97 : vector<1x256xf32> to vector<16x256xf32>
    %99 = arith.addf %96, %98 : vector<16x256xf32>
    %cst_67 = arith.constant 0.000000e+00 : f32
    %100 = vector.broadcast %cst_67 : f32 to vector<16x256xf32>
    %101 = arith.cmpf ogt, %99, %100 : vector<16x256xf32>
    %cst_68 = arith.constant 0.00999999977 : f32
    %102 = vector.broadcast %cst_68 : f32 to vector<16x256xf32>
    %103 = arith.mulf %102, %99 : vector<16x256xf32>
    %104 = arith.select %101, %99, %103 : vector<16x256xi1>, vector<16x256xf32>
    %105 = arith.truncf %104 : vector<16x256xf32> to vector<16x256xbf16>
    %c0_69 = arith.constant 0 : index
    %c0_70 = arith.constant 0 : index
    %106 = vector.load %arg6[%c0_69, %c0_70] : memref<256x256xbf16, #tpu.memory_space<vmem>>, vector<256x256xbf16>
    %cst_71 = arith.constant dense<0.000000e+00> : vector<16x256xf32>
    %107 = tpu.matmul %105, %106, %cst_71 {dimension_numbers = #tpu.dot_dimension_numbers<[1], [0], [0], [1], [0, 0, 1, 1], [], []>} : vector<16x256xbf16>, vector<256x256xbf16>, vector<16x256xf32> -> vector<16x256xf32>
    %c0_72 = arith.constant 0 : index
    %c0_73 = arith.constant 0 : index
    %108 = vector.load %arg7[%c0_72, %c0_73] : memref<1x256xf32, #tpu.memory_space<vmem>>, vector<1x256xf32>
    %109 = vector.broadcast %108 : vector<1x256xf32> to vector<16x256xf32>
    %110 = arith.addf %107, %109 : vector<16x256xf32>
    %cst_74 = arith.constant 0.000000e+00 : f32
    %111 = vector.broadcast %cst_74 : f32 to vector<16x256xf32>
    %112 = arith.cmpf ogt, %110, %111 : vector<16x256xf32>
    %cst_75 = arith.constant 0.00999999977 : f32
    %113 = vector.broadcast %cst_75 : f32 to vector<16x256xf32>
    %114 = arith.mulf %113, %110 : vector<16x256xf32>
    %115 = arith.select %112, %110, %114 : vector<16x256xi1>, vector<16x256xf32>
    %116 = arith.truncf %115 : vector<16x256xf32> to vector<16x256xbf16>
    %c0_76 = arith.constant 0 : index
    %c0_77 = arith.constant 0 : index
    %117 = vector.load %arg8[%c0_76, %c0_77] : memref<256x128xbf16, #tpu.memory_space<vmem>>, vector<256x128xbf16>
    %cst_78 = arith.constant dense<0.000000e+00> : vector<16x128xf32>
    %118 = tpu.matmul %116, %117, %cst_78 {dimension_numbers = #tpu.dot_dimension_numbers<[1], [0], [0], [1], [0, 0, 1, 1], [], []>} : vector<16x256xbf16>, vector<256x128xbf16>, vector<16x128xf32> -> vector<16x128xf32>
    %c0_79 = arith.constant 0 : index
    %c0_80 = arith.constant 0 : index
    %119 = vector.load %arg9[%c0_79, %c0_80] : memref<1x128xf32, #tpu.memory_space<vmem>>, vector<1x128xf32>
    %120 = vector.broadcast %119 : vector<1x128xf32> to vector<16x128xf32>
    %121 = arith.addf %118, %120 : vector<16x128xf32>
    %c0_81 = arith.constant 0 : index
    %c0_82 = arith.constant 0 : index
    %122 = vector.load %arg10[%c0_81, %c0_82] : memref<16x128xf32, #tpu.memory_space<vmem>>, vector<16x128xf32>
    tpu.vector_store %arg10[%c0_81, %c0_82], %121 {strides = array<i32>} : memref<16x128xf32, #tpu.memory_space<vmem>>, vector<16x128xf32>,
    return
  }
  func.func @transform_0(%arg0: i32) -> (i32, i32, i32) {
    %c0_i32 = arith.constant 0 : i32
    %c0_i32_0 = arith.constant 0 : i32
    %c0_i32_1 = arith.constant 0 : i32
    return %c0_i32, %arg0, %c0_i32_0 : i32, i32, i32
  }
  func.func @transform_1(%arg0: i32) -> (i32, i32, i32) {
    %c0_i32 = arith.constant 0 : i32
    %c0_i32_0 = arith.constant 0 : i32
    %c0_i32_1 = arith.constant 0 : i32
    %c0_i32_2 = arith.constant 0 : i32
    return %c0_i32, %c0_i32_0, %c0_i32_1 : i32, i32, i32
  }
  func.func @transform_2(%arg0: i32) -> (i32, i32) {
    %c0_i32 = arith.constant 0 : i32
    %c0_i32_0 = arith.constant 0 : i32
    %c0_i32_1 = arith.constant 0 : i32
    return %c0_i32, %c0_i32_0 : i32, i32
  }
  func.func @transform_3(%arg0: i32) -> (i32, i32, i32) {
    %c0_i32 = arith.constant 0 : i32
    %c0_i32_0 = arith.constant 0 : i32
    %c0_i32_1 = arith.constant 0 : i32
    %c0_i32_2 = arith.constant 0 : i32
    return %c0_i32, %c0_i32_0, %c0_i32_1 : i32, i32, i32
  }
  func.func @transform_4(%arg0: i32) -> (i32, i32) {
    %c0_i32 = arith.constant 0 : i32
    %c0_i32_0 = arith.constant 0 : i32
    %c0_i32_1 = arith.constant 0 : i32
    return %c0_i32, %c0_i32_0 : i32, i32
  }
  func.func @transform_5(%arg0: i32) -> (i32, i32) {
    %c0_i32 = arith.constant 0 : i32
    %c0_i32_0 = arith.constant 0 : i32
    %c0_i32_1 = arith.constant 0 : i32
    return %c0_i32, %c0_i32_0 : i32, i32
  }
  func.func @transform_6(%arg0: i32) -> (i32, i32) {
    %c0_i32 = arith.constant 0 : i32
    %c0_i32_0 = arith.constant 0 : i32
    %c0_i32_1 = arith.constant 0 : i32
    return %c0_i32, %c0_i32_0 : i32, i32
  }
  func.func @transform_7(%arg0: i32) -> (i32, i32) {
    %c0_i32 = arith.constant 0 : i32
    %c0_i32_0 = arith.constant 0 : i32
    %c0_i32_1 = arith.constant 0 : i32
    return %c0_i32, %c0_i32_0 : i32, i32
  }
  func.func @transform_8(%arg0: i32) -> (i32, i32) {
    %c0_i32 = arith.constant 0 : i32
    %c0_i32_0 = arith.constant 0 : i32
    %c0_i32_1 = arith.constant 0 : i32
    return %c0_i32, %c0_i32_0 : i32, i32
  }
  func.func @transform_9(%arg0: i32) -> (i32, i32) {
    %c0_i32 = arith.constant 0 : i32
    %c0_i32_0 = arith.constant 0 : i32
    return %arg0, %c0_i32 : i32, i32
  }
}

</mosaic_0001>

<llo_original>
// kernel: forward.1
$region0: #{forward.1}
  #allocation0 [shape = 'u32[]', space=smem, size = 0x4, offset = 0x4, fixed_abs, tag = 'smem constant byte address 0x4 - core index']
  #allocation1 [shape = 'u32[144,128]{1,0:T(1,128)}', space=vmem, size = 0x12000, scoped, tag = 'internal scratch']
  %s0 = inlined_call_operand.vmem [shape: bf16[14,16,120], index: 0, kind: input, shape index: {}]
  %s1 = inlined_call_operand.vmem [shape: bf16[4,120,448], index: 1, kind: input, shape index: {}]
  %s2 = inlined_call_operand.hbm [shape: f32[1,448], index: 2, kind: input, shape index: {}]
  %s3 = inlined_call_operand.hbm [shape: bf16[14,448,256], index: 3, kind: input, shape index: {}]
  %s4 = inlined_call_operand.hbm [shape: f32[1,256], index: 4, kind: input, shape index: {}]
  %s5 = inlined_call_operand.hbm [shape: bf16[256,256], index: 5, kind: input, shape index: {}]
  %s6 = inlined_call_operand.hbm [shape: f32[1,256], index: 6, kind: input, shape index: {}]
  %s7 = inlined_call_operand.hbm [shape: bf16[256,128], index: 7, kind: input, shape index: {}]
  %s8 = inlined_call_operand.hbm [shape: f32[1,128], index: 8, kind: input, shape index: {}]
  %s9 = inlined_call_operand.vmem [shape: f32[16,128], index: 9, kind: output, shape index: {}]
  %s10 = sld [smem:[#allocation0]]
  $region74: #{forward.1} parent=0
    _
  %s12 = ssub.s32 1, %s10
  %s13 = scalar_select 0, %s12, %s10
  $region1: #{forward.1} parent=0
    #allocation2 [shape = 'u8[2048]{0}', space=vmem, size = 0x800, scoped, tag = 'input window, operand 2, single buffered']
    #allocation3 [shape = 's32[1]{0}', space=sflag, size = 0x4, scoped, tag = 'scoped memory for forward.1']
    #allocation4 [shape = 'u8[3211264]{0}', space=vmem, size = 0x310000, scoped, tag = 'input window, operand 3, single buffered']
    #allocation5 [shape = 's32[1]{0}', space=sflag, size = 0x4, scoped, tag = 'scoped memory for forward.1']
    #allocation6 [shape = 'u8[1024]{0}', space=vmem, size = 0x400, scoped, tag = 'input window, operand 4, single buffered']
    #allocation7 [shape = 'u8[131072]{0}', space=vmem, size = 0x20000, scoped, tag = 'input window, operand 5, single buffered']
    #allocation8 [shape = 's32[1]{0}', space=sflag, size = 0x4, scoped, tag = 'scoped memory for forward.1']
    #allocation9 [shape = 'u8[1024]{0}', space=vmem, size = 0x400, scoped, tag = 'input window, operand 6, single buffered']
    #allocation10 [shape = 'u8[65536]{0}', space=vmem, size = 0x10000, scoped, tag = 'input window, operand 7, single buffered']
    #allocation11 [shape = 's32[1]{0}', space=sflag, size = 0x4, scoped, tag = 'scoped memory for forward.1']
    #allocation12 [shape = 'u8[512]{0}', space=vmem, size = 0x400, scoped, tag = 'input window, operand 8, single buffered']
    %14 = vsyncpa [#allocation3], 0
    %15 = vsyncpa [#allocation5], 0
    %16 = vsyncpa [#allocation8], 0
    %17 = vsyncpa [#allocation11], 0
    // Predicated region
    $region2: #{forward.1} parent=1 // pred_check
      _
    $region3: #{forward.1} parent=1 // pred_check_branch
      %19 = sbr.rel (0) target = $region5
    $region4: #{forward.1} parent=1 // pred_region
      _
    $region5: #{forward.1} parent=1 // pred_fallthru
      _
    // Predicated region
    $region6: #{forward.1} parent=1 // pred_check
      _
    $region7: #{forward.1} parent=1 // pred_check_branch
      %21 = sbr.rel (0) target = $region9
    $region8: #{forward.1} parent=1 // pred_region
      _
    $region9: #{forward.1} parent=1 // pred_fallthru
      _
    // Predicated region
    $region10: #{forward.1} parent=1 // pred_check
      _
    $region11: #{forward.1} parent=1 // pred_check_branch
      %23 = sbr.rel (0) target = $region13
    $region12: #{forward.1} parent=1 // pred_region
      %s25 = ssub.s32 64, 64
      %26 = vsyncadd [#allocation3], %s25
      %s28 = sshll.u32 [#allocation2], 4
      %s29 = int_to_ptr.vmem [resolvable:$true] %s28
      %31 = dma.hbm_to_vmem [thread:$0]  %s2, 64, %s29, [#allocation3]
    $region13: #{forward.1} parent=1 // pred_fallthru
      _
    // Predicated region
    $region14: #{forward.1} parent=1 // pred_check
      _
    $region15: #{forward.1} parent=1 // pred_check_branch
      %33 = sbr.rel (0) target = $region17
    $region16: #{forward.1} parent=1 // pred_region
      %s35 = ssub.s32 100352, 100352
      %36 = vsyncadd [#allocation5], %s35
      %s37 = sshll.u32 [#allocation4], 4
      %s38 = int_to_ptr.vmem [resolvable:$true] %s37
      %43 = dma.hbm_to_vmem [thread:$0]  %s3, 100352, %s38, [#allocation5], 128, 128, 8
    $region17: #{forward.1} parent=1 // pred_fallthru
      _
    // Predicated region
    $region18: #{forward.1} parent=1 // pred_check
      _
    $region19: #{forward.1} parent=1 // pred_check_branch
      %45 = sbr.rel (0) target = $region21
    $region20: #{forward.1} parent=1 // pred_region
      %s47 = ssub.s32 32, 32
      %48 = vsyncadd [#allocation5], %s47
      %s50 = sshll.u32 [#allocation6], 4
      %s51 = int_to_ptr.vmem [resolvable:$true] %s50
      %53 = dma.hbm_to_vmem [thread:$0]  %s4, 32, %s51, [#allocation5]
    $region21: #{forward.1} parent=1 // pred_fallthru
      _
    // Predicated region
    $region22: #{forward.1} parent=1 // pred_check
      _
    $region23: #{forward.1} parent=1 // pred_check_branch
      %55 = sbr.rel (0) target = $region25
    $region24: #{forward.1} parent=1 // pred_region
      %s57 = ssub.s32 4096, 4096
      %58 = vsyncadd [#allocation8], %s57
      %s59 = sshll.u32 [#allocation7], 4
      %s60 = int_to_ptr.vmem [resolvable:$true] %s59
      %65 = dma.hbm_to_vmem [thread:$0]  %s5, 4096, %s60, [#allocation8], 128, 128, 8
    $region25: #{forward.1} parent=1 // pred_fallthru
      _
    // Predicated region
    $region26: #{forward.1} parent=1 // pred_check
      _
    $region27: #{forward.1} parent=1 // pred_check_branch
      %67 = sbr.rel (0) target = $region29
    $region28: #{forward.1} parent=1 // pred_region
      %s69 = ssub.s32 32, 32
      %70 = vsyncadd [#allocation8], %s69
      %s72 = sshll.u32 [#allocation9], 4
      %s73 = int_to_ptr.vmem [resolvable:$true] %s72
      %75 = dma.hbm_to_vmem [thread:$0]  %s6, 32, %s73, [#allocation8]
    $region29: #{forward.1} parent=1 // pred_fallthru
      _
    // Predicated region
    $region30: #{forward.1} parent=1 // pred_check
      _
    $region31: #{forward.1} parent=1 // pred_check_branch
      %77 = sbr.rel (0) target = $region33
    $region32: #{forward.1} parent=1 // pred_region
      %s79 = ssub.s32 2048, 2048
      %80 = vsyncadd [#allocation11], %s79
      %s81 = sshll.u32 [#allocation10], 4
      %s82 = int_to_ptr.vmem [resolvable:$true] %s81
      %87 = dma.hbm_to_vmem [thread:$0]  %s7, 2048, %s82, [#allocation11], 64, 64, 4
    $region33: #{forward.1} parent=1 // pred_fallthru
      _
    // Predicated region
    $region34: #{forward.1} parent=1 // pred_check
      _
    $region35: #{forward.1} parent=1 // pred_check_branch
      %89 = sbr.rel (0) target = $region37
    $region36: #{forward.1} parent=1 // pred_region
      %s91 = ssub.s32 16, 16
      %92 = vsyncadd [#allocation11], %s91
      %s94 = sshll.u32 [#allocation12], 4
      %s95 = int_to_ptr.vmem [resolvable:$true] %s94
      %97 = dma.hbm_to_vmem [thread:$0]  %s8, 16, %s95, [#allocation11]
    $region37: #{forward.1} parent=1 // pred_fallthru
      _
    // Predicated region
    $region38: #{forward.1} parent=1 // pred_check
      _
    $region39: #{forward.1} parent=1 // pred_check_branch
      %99 = sbr.rel (0) target = $region41
    $region40: #{forward.1} parent=1 // pred_region
      %100 = dma.done [#allocation3], 64
    $region41: #{forward.1} parent=1 // pred_fallthru
      _
    // Predicated region
    $region42: #{forward.1} parent=1 // pred_check
      _
    $region43: #{forward.1} parent=1 // pred_check_branch
      %102 = sbr.rel (0) target = $region45
    $region44: #{forward.1} parent=1 // pred_region
      %103 = dma.done [#allocation5], 100352
    $region45: #{forward.1} parent=1 // pred_fallthru
      _
    // Predicated region
    $region46: #{forward.1} parent=1 // pred_check
      _
    $region47: #{forward.1} parent=1 // pred_check_branch
      %105 = sbr.rel (0) target = $region49
    $region48: #{forward.1} parent=1 // pred_region
      %106 = dma.done [#allocation5], 32
    $region49: #{forward.1} parent=1 // pred_fallthru
      _
    // Predicated region
    $region50: #{forward.1} parent=1 // pred_check
      _
    $region51: #{forward.1} parent=1 // pred_check_branch
      %108 = sbr.rel (0) target = $region53
    $region52: #{forward.1} parent=1 // pred_region
      %109 = dma.done [#allocation8], 4096
    $region53: #{forward.1} parent=1 // pred_fallthru
      _
    // Predicated region
    $region54: #{forward.1} parent=1 // pred_check
      _
    $region55: #{forward.1} parent=1 // pred_check_branch
      %111 = sbr.rel (0) target = $region57
    $region56: #{forward.1} parent=1 // pred_region
      %112 = dma.done [#allocation8], 32
    $region57: #{forward.1} parent=1 // pred_fallthru
      _
    // Predicated region
    $region58: #{forward.1} parent=1 // pred_check
      _
    $region59: #{forward.1} parent=1 // pred_check_branch
      %114 = sbr.rel (0) target = $region61
    $region60: #{forward.1} parent=1 // pred_region
      %115 = dma.done [#allocation11], 2048
    $region61: #{forward.1} parent=1 // pred_fallthru
      _
    // Predicated region
    $region62: #{forward.1} parent=1 // pred_check
      _
    $region63: #{forward.1} parent=1 // pred_check_branch
      %117 = sbr.rel (0) target = $region65
    $region64: #{forward.1} parent=1 // pred_region
      %118 = dma.done [#allocation11], 16
    $region65: #{forward.1} parent=1 // pred_fallthru
      _
    %v120 = vld [vmem:[%s0] sm:$0xf]
    %v121 = vld [vmem:[%s0 + $0x4] sm:$0xf]
    %v122 = vld [vmem:[%s0 + $0x8] sm:$0xf]
    %v123 = vld [vmem:[%s0 + $0xc] sm:$0xf]
    %v124 = vld [vmem:[%s0 + $0x10] sm:$0xf]
    %v125 = vld [vmem:[%s0 + $0x14] sm:$0xf]
    %v126 = vld [vmem:[%s0 + $0x18] sm:$0xf]
    %v127 = vld [vmem:[%s0 + $0x1c] sm:$0xf]
    %v128 = vld [vmem:[%s0 + $0x20] sm:$0xf]
    %v129 = vld [vmem:[%s0 + $0x24] sm:$0xf]
    %v130 = vld [vmem:[%s0 + $0x28] sm:$0xf]
    %v131 = vld [vmem:[%s0 + $0x2c] sm:$0xf]
    %v132 = vld [vmem:[%s0 + $0x30] sm:$0xf]
    %v133 = vld [vmem:[%s0 + $0x34] sm:$0xf]
    %v134 = vld [vmem:[%s0 + $0x38] sm:$0xf]
    %v135 = vld [vmem:[%s0 + $0x3c] sm:$0xf]
    %v136 = vld [vmem:[%s0 + $0x40] sm:$0xf]
    %v137 = vld [vmem:[%s0 + $0x44] sm:$0xf]
    %v138 = vld [vmem:[%s0 + $0x48] sm:$0xf]
    %v139 = vld [vmem:[%s0 + $0x4c] sm:$0xf]
    %v140 = vld [vmem:[%s0 + $0x50] sm:$0xf]
    %v141 = vld [vmem:[%s0 + $0x54] sm:$0xf]
    %v142 = vld [vmem:[%s0 + $0x58] sm:$0xf]
    %v143 = vld [vmem:[%s0 + $0x5c] sm:$0xf]
    %v144 = vld [vmem:[%s0 + $0x60] sm:$0xf]
    %v145 = vld [vmem:[%s0 + $0x64] sm:$0xf]
    %v146 = vld [vmem:[%s0 + $0x68] sm:$0xf]
    %v147 = vld [vmem:[%s0 + $0x6c] sm:$0xf]
    %v148 = vld [vmem:[%s1] sm:$0xff]
    %v149 = vld [vmem:[%s1 + $0x8] sm:$0xff]
    %v150 = vld [vmem:[%s1 + $0x10] sm:$0xff]
    %v151 = vld [vmem:[%s1 + $0x18] sm:$0xff]
    %v152 = vld [vmem:[%s1 + $0x20] sm:$0xff]
    %v153 = vld [vmem:[%s1 + $0x28] sm:$0xff]
    %v154 = vld [vmem:[%s1 + $0x30] sm:$0xff]
    %v155 = vld [vmem:[%s1 + $0x38] sm:$0xff]
    %v156 = vld [vmem:[%s1 + $0x40] sm:$0xff]
    %v157 = vld [vmem:[%s1 + $0x48] sm:$0xff]
    %v158 = vld [vmem:[%s1 + $0x50] sm:$0xff]
    %v159 = vld [vmem:[%s1 + $0x58] sm:$0xff]
    %v160 = vld [vmem:[%s1 + $0x60] sm:$0xff]
    %v161 = vld [vmem:[%s1 + $0x68] sm:$0xff]
    %v162 = vld [vmem:[%s1 + $0x70] sm:$0xff]
    %v163 = vld [vmem:[%s1 + $0x78] sm:$0xff]
    %v164 = vld [vmem:[%s1 + $0x80] sm:$0xff]
    %v165 = vld [vmem:[%s1 + $0x88] sm:$0xff]
    %v166 = vld [vmem:[%s1 + $0x90] sm:$0xff]
    %v167 = vld [vmem:[%s1 + $0x98] sm:$0xff]
    %v168 = vld [vmem:[%s1 + $0xa0] sm:$0xff]
    %v169 = vld [vmem:[%s1 + $0xa8] sm:$0xff]
    %v170 = vld [vmem:[%s1 + $0xb0] sm:$0xff]
    %v171 = vld [vmem:[%s1 + $0xb8] sm:$0xff]
    %v172 = vld [vmem:[%s1 + $0xc0] sm:$0xff]
    %v173 = vld [vmem:[%s1 + $0xc8] sm:$0xff]
    %v174 = vld [vmem:[%s1 + $0xd0] sm:$0xff]
    %v175 = vld [vmem:[%s1 + $0xd8] sm:$0xff]
    %v176 = vld [vmem:[%s1 + $0xe0] sm:$0xff]
    %v177 = vld [vmem:[%s1 + $0xe8] sm:$0xff]
    %v206 = vunpack.c.l.b16 %v120
    %v207 = vunpack.c.l.b16 %v121
    %v208 = vunpack.c.l.b16 %v122
    %v209 = vunpack.c.l.b16 %v123
    %v210 = vunpack.c.l.b16 %v124
    %v211 = vunpack.c.l.b16 %v125
    %v212 = vunpack.c.l.b16 %v126
    %v213 = vunpack.c.l.b16 %v127
    %v214 = vunpack.c.l.b16 %v128
    %v215 = vunpack.c.l.b16 %v129
    %v216 = vunpack.c.l.b16 %v130
    %v217 = vunpack.c.l.b16 %v131
    %v218 = vunpack.c.l.b16 %v132
    %v219 = vunpack.c.l.b16 %v133
    %v220 = vunpack.c.l.b16 %v134
    %v221 = vunpack.c.l.b16 %v135
    %v222 = vunpack.c.l.b16 %v136
    %v223 = vunpack.c.l.b16 %v137
    %v224 = vunpack.c.l.b16 %v138
    %v225 = vunpack.c.l.b16 %v139
    %v226 = vunpack.c.l.b16 %v140
    %v227 = vunpack.c.l.b16 %v141
    %v228 = vunpack.c.l.b16 %v142
    %v229 = vunpack.c.l.b16 %v143
    %v230 = vunpack.c.l.b16 %v144
    %v231 = vunpack.c.l.b16 %v145
    %v232 = vunpack.c.l.b16 %v146
    %v233 = vunpack.c.l.b16 %v147
    %v234 = vpack.c.b16 %v207, %v206
    %v235 = vpack.c.b16 %v209, %v208
    %v236 = vpack.c.b16 %v211, %v210
    %v237 = vpack.c.b16 %v213, %v212
    %v238 = vpack.c.b16 %v215, %v214
    %v239 = vpack.c.b16 %v217, %v216
    %v240 = vpack.c.b16 %v219, %v218
    %v241 = vpack.c.b16 %v221, %v220
    %v242 = vpack.c.b16 %v223, %v222
    %v243 = vpack.c.b16 %v225, %v224
    %v244 = vpack.c.b16 %v227, %v226
    %v245 = vpack.c.b16 %v229, %v228
    %v246 = vpack.c.b16 %v231, %v230
    %v247 = vpack.c.b16 %v233, %v232
    %v278 = vunpack.c.l.b16 %v148
    %v279 = vunpack.c.h.b16 %v148
    %v280 = vunpack.c.l.b16 %v149
    %v281 = vunpack.c.h.b16 %v149
    %v282 = vunpack.c.l.b16 %v150
    %v283 = vunpack.c.h.b16 %v150
    %v284 = vunpack.c.l.b16 %v151
    %v285 = vunpack.c.h.b16 %v151
    %v286 = vunpack.c.l.b16 %v152
    %v287 = vunpack.c.h.b16 %v152
    %v288 = vunpack.c.l.b16 %v153
    %v289 = vunpack.c.h.b16 %v153
    %v290 = vunpack.c.l.b16 %v154
    %v291 = vunpack.c.h.b16 %v154
    %v292 = vunpack.c.l.b16 %v155
    %v293 = vunpack.c.h.b16 %v155
    %v294 = vunpack.c.l.b16 %v156
    %v295 = vunpack.c.h.b16 %v156
    %v296 = vunpack.c.l.b16 %v157
    %v297 = vunpack.c.h.b16 %v157
    %v298 = vunpack.c.l.b16 %v158
    %v299 = vunpack.c.h.b16 %v158
    %v300 = vunpack.c.l.b16 %v159
    %v301 = vunpack.c.h.b16 %v159
    %v302 = vunpack.c.l.b16 %v160
    %v303 = vunpack.c.h.b16 %v160
    %v304 = vunpack.c.l.b16 %v161
    %v305 = vunpack.c.h.b16 %v161
    %v306 = vunpack.c.l.b16 %v162
    %v307 = vunpack.c.h.b16 %v162
    %v308 = vunpack.c.l.b16 %v163
    %v309 = vunpack.c.h.b16 %v163
    %v310 = vunpack.c.l.b16 %v164
    %v311 = vunpack.c.h.b16 %v164
    %v312 = vunpack.c.l.b16 %v165
    %v313 = vunpack.c.h.b16 %v165
    %v314 = vunpack.c.l.b16 %v166
    %v315 = vunpack.c.h.b16 %v166
    %v316 = vunpack.c.l.b16 %v167
    %v317 = vunpack.c.h.b16 %v167
    %v318 = vunpack.c.l.b16 %v168
    %v319 = vunpack.c.h.b16 %v168
    %v320 = vunpack.c.l.b16 %v169
    %v321 = vunpack.c.h.b16 %v169
    %v322 = vunpack.c.l.b16 %v170
    %v323 = vunpack.c.h.b16 %v170
    %v324 = vunpack.c.l.b16 %v171
    %v325 = vunpack.c.h.b16 %v171
    %v326 = vunpack.c.l.b16 %v172
    %v327 = vunpack.c.h.b16 %v172
    %v328 = vunpack.c.l.b16 %v173
    %v329 = vunpack.c.h.b16 %v173
    %v330 = vunpack.c.l.b16 %v174
    %v331 = vunpack.c.h.b16 %v174
    %v332 = vunpack.c.l.b16 %v175
    %v333 = vunpack.c.h.b16 %v175
    %v334 = vunpack.c.l.b16 %v176
    %v335 = vunpack.c.h.b16 %v176
    %v336 = vunpack.c.l.b16 %v177
    %v337 = vunpack.c.h.b16 %v177
    %v338 = vpack.c.b16 %v282, %v278
    %v339 = vpack.c.b16 %v283, %v279
    %v340 = vpack.c.b16 %v284, %v280
    %v341 = vpack.c.b16 %v285, %v281
    %v342 = vpack.c.b16 %v290, %v286
    %v343 = vpack.c.b16 %v291, %v287
    %v344 = vpack.c.b16 %v292, %v288
    %v345 = vpack.c.b16 %v293, %v289
    %v346 = vpack.c.b16 %v298, %v294
    %v347 = vpack.c.b16 %v299, %v295
    %v348 = vpack.c.b16 %v300, %v296
    %v349 = vpack.c.b16 %v301, %v297
    %v350 = vpack.c.b16 %v306, %v302
    %v351 = vpack.c.b16 %v307, %v303
    %v352 = vpack.c.b16 %v308, %v304
    %v353 = vpack.c.b16 %v309, %v305
    %v354 = vpack.c.b16 %v314, %v310
    %v355 = vpack.c.b16 %v315, %v311
    %v356 = vpack.c.b16 %v316, %v312
    %v357 = vpack.c.b16 %v317, %v313
    %v358 = vpack.c.b16 %v322, %v318
    %v359 = vpack.c.b16 %v323, %v319
    %v360 = vpack.c.b16 %v324, %v320
    %v361 = vpack.c.b16 %v325, %v321
    %v362 = vpack.c.b16 %v330, %v326
    %v363 = vpack.c.b16 %v331, %v327
    %v364 = vpack.c.b16 %v332, %v328
    %v365 = vpack.c.b16 %v333, %v329
    %v366 = vpack.c.b16 %v334, %v334
    %v367 = vpack.c.b16 %v335, %v335
    %v368 = vpack.c.b16 %v336, %v336
    %v369 = vpack.c.b16 %v337, %v337
    %vm398 = vcmask 982016
    %v400 = vsel %vm398, %v234, 0
    %v403 = vsel %vm398, %v235, 0
    %v406 = vsel %vm398, %v236, 0
    %v409 = vsel %vm398, %v237, 0
    %v412 = vsel %vm398, %v238, 0
    %v415 = vsel %vm398, %v239, 0
    %v418 = vsel %vm398, %v240, 0
    %v421 = vsel %vm398, %v241, 0
    %v424 = vsel %vm398, %v242, 0
    %v427 = vsel %vm398, %v243, 0
    %v430 = vsel %vm398, %v244, 0
    %v433 = vsel %vm398, %v245, 0
    %v436 = vsel %vm398, %v246, 0
    %v439 = vsel %vm398, %v247, 0
    %vm441 = vcmask 1043456
    %v443 = vsel %vm441, %v366, 0
    %v446 = vsel %vm441, %v367, 0
    %v449 = vsel %vm441, %v368, 0
    %v452 = vsel %vm441, %v369, 0
    %454 = vmatprep.subr.bf16.mxu0 %v339
    %455 = vmatpush1.bf16.msra.mxu0 %v338
    %456 = vmatprep.subr.bf16.mxu0 %v343
    %457 = vmatpush1.bf16.msra.mxu0 %v342
    %458 = vmatprep.subr.bf16.mxu0 %v347
    %459 = vmatpush1.bf16.msra.mxu0 %v346
    %460 = vmatprep.subr.bf16.mxu0 %v351
    %461 = vmatpush1.bf16.msra.mxu0 %v350
    %462 = vmatprep.subr.bf16.mxu0 %v355
    %463 = vmatpush1.bf16.msra.mxu0 %v354
    %464 = vmatprep.subr.bf16.mxu0 %v359
    %465 = vmatpush1.bf16.msra.mxu0 %v358
    %466 = vmatprep.subr.bf16.mxu0 %v363
    %467 = vmatpush1.bf16.msra.mxu0 %v362
    %468 = vmatprep.subr.bf16.mxu0 %v446
    %469 = vmatpush1.bf16.msra.mxu0 %v443
    %470 = vmatprep.subr.bf16.mxu0 0
    %471 = vmatpush1.bf16.msra.mxu0 0
    %472 = vmatprep.subr.bf16.mxu0 0
    %473 = vmatpush1.bf16.msra.mxu0 0
    %474 = vmatprep.subr.bf16.mxu0 0
    %475 = vmatpush1.bf16.msra.mxu0 0
    %476 = vmatprep.subr.bf16.mxu0 0
    %477 = vmatpush1.bf16.msra.mxu0 0
    %478 = vmatprep.subr.bf16.mxu0 0
    %479 = vmatpush1.bf16.msra.mxu0 0
    %480 = vmatprep.subr.bf16.mxu0 0
    %481 = vmatpush1.bf16.msra.mxu0 0
    %482 = vmatprep.subr.bf16.mxu0 0
    %483 = vmatpush1.bf16.msra.mxu0 0
    %484 = vmatprep.subr.bf16.mxu0 0
    %485 = vmatpush1.bf16.msra.mxu0 0
    %486 = vmatprep.mubr.bf16.mxu0 0
    %487 = vmatmul.mubr.bf16.gmra.mrb[0].mxu0 %v400
    %v488 = vpop.f32.mrb[0].mxu0
    %v489 = vadd.f32 0.0, %v488
    %v490 = vpop.f32.mrb[0].mxu0
    %v491 = vadd.f32 0.0, %v490
    %v492 = vpop.f32.mrb[0].mxu0
    %v493 = vadd.f32 0.0, %v492
    %v494 = vpop.f32.mrb[0].mxu0
    %v495 = vadd.f32 0.0, %v494
    %496 = vmatprep.mubr.bf16.mxu0 0
    %497 = vmatmul.mubr.bf16.gmra.mrb[0].mxu0 %v403
    %v498 = vpop.f32.mrb[0].mxu0
    %v499 = vadd.f32 0.0, %v498
    %v500 = vpop.f32.mrb[0].mxu0
    %v501 = vadd.f32 0.0, %v500
    %v502 = vpop.f32.mrb[0].mxu0
    %v503 = vadd.f32 0.0, %v502
    %v504 = vpop.f32.mrb[0].mxu0
    %v505 = vadd.f32 0.0, %v504
    %506 = vmatprep.mubr.bf16.mxu0 0
    %507 = vmatmul.mubr.bf16.gmra.mrb[0].mxu0 %v406
    %v508 = vpop.f32.mrb[0].mxu0
    %v509 = vadd.f32 0.0, %v508
    %v510 = vpop.f32.mrb[0].mxu0
    %v511 = vadd.f32 0.0, %v510
    %v512 = vpop.f32.mrb[0].mxu0
    %v513 = vadd.f32 0.0, %v512
    %v514 = vpop.f32.mrb[0].mxu0
    %v515 = vadd.f32 0.0, %v514
    %516 = vmatprep.mubr.bf16.mxu0 0
    %517 = vmatmul.mubr.bf16.gmra.mrb[0].mxu0 %v409
    %v518 = vpop.f32.mrb[0].mxu0
    %v519 = vadd.f32 0.0, %v518
    %v520 = vpop.f32.mrb[0].mxu0
    %v521 = vadd.f32 0.0, %v520
    %v522 = vpop.f32.mrb[0].mxu0
    %v523 = vadd.f32 0.0, %v522
    %v524 = vpop.f32.mrb[0].mxu0
    %v525 = vadd.f32 0.0, %v524
    %526 = vmatprep.mubr.bf16.mxu0 0
    %527 = vmatmul.mubr.bf16.gmra.mrb[0].mxu0 %v412
    %v528 = vpop.f32.mrb[0].mxu0
    %v529 = vadd.f32 0.0, %v528
    %v530 = vpop.f32.mrb[0].mxu0
    %v531 = vadd.f32 0.0, %v530
    %v532 = vpop.f32.mrb[0].mxu0
    %v533 = vadd.f32 0.0, %v532
    %v534 = vpop.f32.mrb[0].mxu0
    %v535 = vadd.f32 0.0, %v534
    %536 = vmatprep.mubr.bf16.mxu0 0
    %537 = vmatmul.mubr.bf16.gmra.mrb[0].mxu0 %v415
    %v538 = vpop.f32.mrb[0].mxu0
    %v539 = vadd.f32 0.0, %v538
    %v540 = vpop.f32.mrb[0].mxu0
    %v541 = vadd.f32 0.0, %v540
    %v542 = vpop.f32.mrb[0].mxu0
    %v543 = vadd.f32 0.0, %v542
    %v544 = vpop.f32.mrb[0].mxu0
    %v545 = vadd.f32 0.0, %v544
    %546 = vmatprep.mubr.bf16.mxu0 0
    %547 = vmatmul.mubr.bf16.gmra.mrb[0].mxu0 %v418
    %v548 = vpop.f32.mrb[0].mxu0
    %v549 = vadd.f32 0.0, %v548
    %v550 = vpop.f32.mrb[0].mxu0
    %v551 = vadd.f32 0.0, %v550
    %v552 = vpop.f32.mrb[0].mxu0
    %v553 = vadd.f32 0.0, %v552
    %v554 = vpop.f32.mrb[0].mxu0
    %v555 = vadd.f32 0.0, %v554
    %556 = vmatprep.mubr.bf16.mxu0 0
    %557 = vmatmul.mubr.bf16.gmra.mrb[0].mxu0 %v421
    %v558 = vpop.f32.mrb[0].mxu0
    %v559 = vadd.f32 0.0, %v558
    %v560 = vpop.f32.mrb[0].mxu0
    %v561 = vadd.f32 0.0, %v560
    %v562 = vpop.f32.mrb[0].mxu0
    %v563 = vadd.f32 0.0, %v562
    %v564 = vpop.f32.mrb[0].mxu0
    %v565 = vadd.f32 0.0, %v564
    %566 = vmatprep.mubr.bf16.mxu0 0
    %567 = vmatmul.mubr.bf16.gmra.mrb[0].mxu0 %v424
    %v568 = vpop.f32.mrb[0].mxu0
    %v569 = vadd.f32 0.0, %v568
    %v570 = vpop.f32.mrb[0].mxu0
    %v571 = vadd.f32 0.0, %v570
    %v572 = vpop.f32.mrb[0].mxu0
    %v573 = vadd.f32 0.0, %v572
    %v574 = vpop.f32.mrb[0].mxu0
    %v575 = vadd.f32 0.0, %v574
    %576 = vmatprep.mubr.bf16.mxu0 0
    %577 = vmatmul.mubr.bf16.gmra.mrb[0].mxu0 %v427
    %v578 = vpop.f32.mrb[0].mxu0
    %v579 = vadd.f32 0.0, %v578
    %v580 = vpop.f32.mrb[0].mxu0
    %v581 = vadd.f32 0.0, %v580
    %v582 = vpop.f32.mrb[0].mxu0
    %v583 = vadd.f32 0.0, %v582
    %v584 = vpop.f32.mrb[0].mxu0
    %v585 = vadd.f32 0.0, %v584
    %586 = vmatprep.mubr.bf16.mxu0 0
    %587 = vmatmul.mubr.bf16.gmra.mrb[0].mxu0 %v430
    %v588 = vpop.f32.mrb[0].mxu0
    %v589 = vadd.f32 0.0, %v588
    %v590 = vpop.f32.mrb[0].mxu0
    %v591 = vadd.f32 0.0, %v590
    %v592 = vpop.f32.mrb[0].mxu0
    %v593 = vadd.f32 0.0, %v592
    %v594 = vpop.f32.mrb[0].mxu0
    %v595 = vadd.f32 0.0, %v594
    %596 = vmatprep.mubr.bf16.mxu0 0
    %597 = vmatmul.mubr.bf16.gmra.mrb[0].mxu0 %v433
    %v598 = vpop.f32.mrb[0].mxu0
    %v599 = vadd.f32 0.0, %v598
    %v600 = vpop.f32.mrb[0].mxu0
    %v601 = vadd.f32 0.0, %v600
    %v602 = vpop.f32.mrb[0].mxu0
    %v603 = vadd.f32 0.0, %v602
    %v604 = vpop.f32.mrb[0].mxu0
    %v605 = vadd.f32 0.0, %v604
    %606 = vmatprep.mubr.bf16.mxu0 0
    %607 = vmatmul.mubr.bf16.gmra.mrb[0].mxu0 %v436
    %v608 = vpop.f32.mrb[0].mxu0
    %v609 = vadd.f32 0.0, %v608
    %v610 = vpop.f32.mrb[0].mxu0
    %v611 = vadd.f32 0.0, %v610
    %v612 = vpop.f32.mrb[0].mxu0
    %v613 = vadd.f32 0.0, %v612
    %v614 = vpop.f32.mrb[0].mxu0
    %v615 = vadd.f32 0.0, %v614
    %616 = vmatprep.mubr.bf16.mxu0 0
    %617 = vmatmul.mubr.bf16.gmra.mrb[0].mxu0 %v439
    %v618 = vpop.f32.mrb[0].mxu0
    %v619 = vadd.f32 0.0, %v618
    %v620 = vpop.f32.mrb[0].mxu0
    %v621 = vadd.f32 0.0, %v620
    %v622 = vpop.f32.mrb[0].mxu0
    %v623 = vadd.f32 0.0, %v622
    %v624 = vpop.f32.mrb[0].mxu0
    %v625 = vadd.f32 0.0, %v624
    %626 = vdwg.mxu0
    %627 = vmatprep.subr.bf16.mxu0 %v341
    %628 = vmatpush1.bf16.msra.mxu0 %v340
    %629 = vmatprep.subr.bf16.mxu0 %v345
    %630 = vmatpush1.bf16.msra.mxu0 %v344
    %631 = vmatprep.subr.bf16.mxu0 %v349
    %632 = vmatpush1.bf16.msra.mxu0 %v348
    %633 = vmatprep.subr.bf16.mxu0 %v353
    %634 = vmatpush1.bf16.msra.mxu0 %v352
    %635 = vmatprep.subr.bf16.mxu0 %v357
    %636 = vmatpush1.bf16.msra.mxu0 %v356
    %637 = vmatprep.subr.bf16.mxu0 %v361
    %638 = vmatpush1.bf16.msra.mxu0 %v360
    %639 = vmatprep.subr.bf16.mxu0 %v365
    %640 = vmatpush1.bf16.msra.mxu0 %v364
    %641 = vmatprep.subr.bf16.mxu0 %v452
    %642 = vmatpush1.bf16.msra.mxu0 %v449
    %643 = vmatprep.subr.bf16.mxu0 0
    %644 = vmatpush1.bf16.msra.mxu0 0
    %645 = vmatprep.subr.bf16.mxu0 0
    %646 = vmatpush1.bf16.msra.mxu0 0
    %647 = vmatprep.subr.bf16.mxu0 0
    %648 = vmatpush1.bf16.msra.mxu0 0
    %649 = vmatprep.subr.bf16.mxu0 0
    %650 = vmatpush1.bf16.msra.mxu0 0
    %651 = vmatprep.subr.bf16.mxu0 0
    %652 = vmatpush1.bf16.msra.mxu0 0
    %653 = vmatprep.subr.bf16.mxu0 0
    %654 = vmatpush1.bf16.msra.mxu0 0
    %655 = vmatprep.subr.bf16.mxu0 0
    %656 = vmatpush1.bf16.msra.mxu0 0
    %657 = vmatprep.subr.bf16.mxu0 0
    %658 = vmatpush1.bf16.msra.mxu0 0
    %659 = vmatprep.mubr.bf16.mxu0 0
    %660 = vmatmul.mubr.bf16.gmra.mrb[0].mxu0 %v400
    %v661 = vpop.f32.mrb[0].mxu0
    %v662 = vadd.f32 0.0, %v661
    %v663 = vpop.f32.mrb[0].mxu0
    %v664 = vadd.f32 0.0, %v663
    %v665 = vpop.f32.mrb[0].mxu0
    %v666 = vadd.f32 0.0, %v665
    %v667 = vpop.f32.mrb[0].mxu0
    %v668 = vadd.f32 0.0, %v667
    %669 = vmatprep.mubr.bf16.mxu0 0
    %670 = vmatmul.mubr.bf16.gmra.mrb[0].mxu0 %v403
    %v671 = vpop.f32.mrb[0].mxu0
    %v672 = vadd.f32 0.0, %v671
    %v673 = vpop.f32.mrb[0].mxu0
    %v674 = vadd.f32 0.0, %v673
    %v675 = vpop.f32.mrb[0].mxu0
    %v676 = vadd.f32 0.0, %v675
    %v677 = vpop.f32.mrb[0].mxu0
    %v678 = vadd.f32 0.0, %v677
    %679 = vmatprep.mubr.bf16.mxu0 0
    %680 = vmatmul.mubr.bf16.gmra.mrb[0].mxu0 %v406
    %v681 = vpop.f32.mrb[0].mxu0
    %v682 = vadd.f32 0.0, %v681
    %v683 = vpop.f32.mrb[0].mxu0
    %v684 = vadd.f32 0.0, %v683
    %v685 = vpop.f32.mrb[0].mxu0
    %v686 = vadd.f32 0.0, %v685
    %v687 = vpop.f32.mrb[0].mxu0
    %v688 = vadd.f32 0.0, %v687
    %689 = vmatprep.mubr.bf16.mxu0 0
    %690 = vmatmul.mubr.bf16.gmra.mrb[0].mxu0 %v409
    %v691 = vpop.f32.mrb[0].mxu0
    %v692 = vadd.f32 0.0, %v691
    %v693 = vpop.f32.mrb[0].mxu0
    %v694 = vadd.f32 0.0, %v693
    %v695 = vpop.f32.mrb[0].mxu0
    %v696 = vadd.f32 0.0, %v695
    %v697 = vpop.f32.mrb[0].mxu0
    %v698 = vadd.f32 0.0, %v697
    %699 = vmatprep.mubr.bf16.mxu0 0
    %700 = vmatmul.mubr.bf16.gmra.mrb[0].mxu0 %v412
    %v701 = vpop.f32.mrb[0].mxu0
    %v702 = vadd.f32 0.0, %v701
    %v703 = vpop.f32.mrb[0].mxu0
    %v704 = vadd.f32 0.0, %v703
    %v705 = vpop.f32.mrb[0].mxu0
    %v706 = vadd.f32 0.0, %v705
    %v707 = vpop.f32.mrb[0].mxu0
    %v708 = vadd.f32 0.0, %v707
    %709 = vmatprep.mubr.bf16.mxu0 0
    %710 = vmatmul.mubr.bf16.gmra.mrb[0].mxu0 %v415
    %v711 = vpop.f32.mrb[0].mxu0
    %v712 = vadd.f32 0.0, %v711
    %v713 = vpop.f32.mrb[0].mxu0
    %v714 = vadd.f32 0.0, %v713
    %v715 = vpop.f32.mrb[0].mxu0
    %v716 = vadd.f32 0.0, %v715
    %v717 = vpop.f32.mrb[0].mxu0
    %v718 = vadd.f32 0.0, %v717
    %719 = vmatprep.mubr.bf16.mxu0 0
    %720 = vmatmul.mubr.bf16.gmra.mrb[0].mxu0 %v418
    %v721 = vpop.f32.mrb[0].mxu0
    %v722 = vadd.f32 0.0, %v721
    %v723 = vpop.f32.mrb[0].mxu0
    %v724 = vadd.f32 0.0, %v723
    %v725 = vpop.f32.mrb[0].mxu0
    %v726 = vadd.f32 0.0, %v725
    %v727 = vpop.f32.mrb[0].mxu0
    %v728 = vadd.f32 0.0, %v727
    %729 = vmatprep.mubr.bf16.mxu0 0
    %730 = vmatmul.mubr.bf16.gmra.mrb[0].mxu0 %v421
    %v731 = vpop.f32.mrb[0].mxu0
    %v732 = vadd.f32 0.0, %v731
    %v733 = vpop.f32.mrb[0].mxu0
    %v734 = vadd.f32 0.0, %v733
    %v735 = vpop.f32.mrb[0].mxu0
    %v736 = vadd.f32 0.0, %v735
    %v737 = vpop.f32.mrb[0].mxu0
    %v738 = vadd.f32 0.0, %v737
    %739 = vmatprep.mubr.bf16.mxu0 0
    %740 = vmatmul.mubr.bf16.gmra.mrb[0].mxu0 %v424
    %v741 = vpop.f32.mrb[0].mxu0
    %v742 = vadd.f32 0.0, %v741
    %v743 = vpop.f32.mrb[0].mxu0
    %v744 = vadd.f32 0.0, %v743
    %v745 = vpop.f32.mrb[0].mxu0
    %v746 = vadd.f32 0.0, %v745
    %v747 = vpop.f32.mrb[0].mxu0
    %v748 = vadd.f32 0.0, %v747
    %749 = vmatprep.mubr.bf16.mxu0 0
    %750 = vmatmul.mubr.bf16.gmra.mrb[0].mxu0 %v427
    %v751 = vpop.f32.mrb[0].mxu0
    %v752 = vadd.f32 0.0, %v751
    %v753 = vpop.f32.mrb[0].mxu0
    %v754 = vadd.f32 0.0, %v753
    %v755 = vpop.f32.mrb[0].mxu0
    %v756 = vadd.f32 0.0, %v755
    %v757 = vpop.f32.mrb[0].mxu0
    %v758 = vadd.f32 0.0, %v757
    %759 = vmatprep.mubr.bf16.mxu0 0
    %760 = vmatmul.mubr.bf16.gmra.mrb[0].mxu0 %v430
    %v761 = vpop.f32.mrb[0].mxu0
    %v762 = vadd.f32 0.0, %v761
    %v763 = vpop.f32.mrb[0].mxu0
    %v764 = vadd.f32 0.0, %v763
    %v765 = vpop.f32.mrb[0].mxu0
    %v766 = vadd.f32 0.0, %v765
    %v767 = vpop.f32.mrb[0].mxu0
    %v768 = vadd.f32 0.0, %v767
    %769 = vmatprep.mubr.bf16.mxu0 0
    %770 = vmatmul.mubr.bf16.gmra.mrb[0].mxu0 %v433
    %v771 = vpop.f32.mrb[0].mxu0
    %v772 = vadd.f32 0.0, %v771
    %v773 = vpop.f32.mrb[0].mxu0
    %v774 = vadd.f32 0.0, %v773
    %v775 = vpop.f32.mrb[0].mxu0
    %v776 = vadd.f32 0.0, %v775
    %v777 = vpop.f32.mrb[0].mxu0
    %v778 = vadd.f32 0.0, %v777
    %779 = vmatprep.mubr.bf16.mxu0 0
    %780 = vmatmul.mubr.bf16.gmra.mrb[0].mxu0 %v436
    %v781 = vpop.f32.mrb[0].mxu0
    %v782 = vadd.f32 0.0, %v781
    %v783 = vpop.f32.mrb[0].mxu0
    %v784 = vadd.f32 0.0, %v783
    %v785 = vpop.f32.mrb[0].mxu0
    %v786 = vadd.f32 0.0, %v785
    %v787 = vpop.f32.mrb[0].mxu0
    %v788 = vadd.f32 0.0, %v787
    %789 = vmatprep.mubr.bf16.mxu0 0
    %790 = vmatmul.mubr.bf16.gmra.mrb[0].mxu0 %v439
    %v791 = vpop.f32.mrb[0].mxu0
    %v792 = vadd.f32 0.0, %v791
    %v793 = vpop.f32.mrb[0].mxu0
    %v794 = vadd.f32 0.0, %v793
    %v795 = vpop.f32.mrb[0].mxu0
    %v796 = vadd.f32 0.0, %v795
    %v797 = vpop.f32.mrb[0].mxu0
    %v798 = vadd.f32 0.0, %v797
    %799 = vdwg.mxu0
    %s800 = scalar_lea.vmem %s1, 240
    %v801 = vld [vmem:[%s800] sm:$0xff]
    %v802 = vld [vmem:[%s800 + $0x8] sm:$0xff]
    %v803 = vld [vmem:[%s800 + $0x10] sm:$0xff]
    %v804 = vld [vmem:[%s800 + $0x18] sm:$0xff]
    %v805 = vld [vmem:[%s800 + $0x20] sm:$0xff]
    %v806 = vld [vmem:[%s800 + $0x28] sm:$0xff]
    %v807 = vld [vmem:[%s800 + $0x30] sm:$0xff]
    %v808 = vld [vmem:[%s800 + $0x38] sm:$0xff]
    %v809 = vld [vmem:[%s800 + $0x40] sm:$0xff]
    %v810 = vld [vmem:[%s800 + $0x48] sm:$0xff]
    %v811 = vld [vmem:[%s800 + $0x50] sm:$0xff]
    %v812 = vld [vmem:[%s800 + $0x58] sm:$0xff]
    %v813 = vld [vmem:[%s800 + $0x60] sm:$0xff]
    %v814 = vld [vmem:[%s800 + $0x68] sm:$0xff]
    %v815 = vld [vmem:[%s800 + $0x70] sm:$0xff]
    %v816 = vld [vmem:[%s800 + $0x78] sm:$0xff]
    %v817 = vld [vmem:[%s800 + $0x80] sm:$0xff]
    %v818 = vld [vmem:[%s800 + $0x88] sm:$0xff]
    %v819 = vld [vmem:[%s800 + $0x90] sm:$0xff]
    %v820 = vld [vmem:[%s800 + $0x98] sm:$0xff]
    %v821 = vld [vmem:[%s800 + $0xa0] sm:$0xff]
    %v822 = vld [vmem:[%s800 + $0xa8] sm:$0xff]
    %v823 = vld [vmem:[%s800 + $0xb0] sm:$0xff]
    %v824 = vld [vmem:[%s800 + $0xb8] sm:$0xff]
    %v825 = vld [vmem:[%s800 + $0xc0] sm:$0xff]
    %v826 = vld [vmem:[%s800 + $0xc8] sm:$0xff]
    %v827 = vld [vmem:[%s800 + $0xd0] sm:$0xff]
    %v828 = vld [vmem:[%s800 + $0xd8] sm:$0xff]
    %v829 = vld [vmem:[%s800 + $0xe0] sm:$0xff]
    %v830 = vld [vmem:[%s800 + $0xe8] sm:$0xff]
    %v861 = vunpack.c.l.b16 %v801
    %v862 = vunpack.c.h.b16 %v801
    %v863 = vunpack.c.l.b16 %v802
    %v864 = vunpack.c.h.b16 %v802
    %v865 = vunpack.c.l.b16 %v803
    %v866 = vunpack.c.h.b16 %v803
    %v867 = vunpack.c.l.b16 %v804
    %v868 = vunpack.c.h.b16 %v804
    %v869 = vunpack.c.l.b16 %v805
    %v870 = vunpack.c.h.b16 %v805
    %v871 = vunpack.c.l.b16 %v806
    %v872 = vunpack.c.h.b16 %v806
    %v873 = vunpack.c.l.b16 %v807
    %v874 = vunpack.c.h.b16 %v807
    %v875 = vunpack.c.l.b16 %v808
    %v876 = vunpack.c.h.b16 %v808
    %v877 = vunpack.c.l.b16 %v809
    %v878 = vunpack.c.h.b16 %v809
    %v879 = vunpack.c.l.b16 %v810
    %v880 = vunpack.c.h.b16 %v810
    %v881 = vunpack.c.l.b16 %v811
    %v882 = vunpack.c.h.b16 %v811
    %v883 = vunpack.c.l.b16 %v812
    %v884 = vunpack.c.h.b16 %v812
    %v885 = vunpack.c.l.b16 %v813
    %v886 = vunpack.c.h.b16 %v813
    %v887 = vunpack.c.l.b16 %v814
    %v888 = vunpack.c.h.b16 %v814
    %v889 = vunpack.c.l.b16 %v815
    %v890 = vunpack.c.h.b16 %v815
    %v891 = vunpack.c.l.b16 %v816
    %v892 = vunpack.c.h.b16 %v816
    %v893 = vunpack.c.l.b16 %v817
    %v894 = vunpack.c.h.b16 %v817
    %v895 = vunpack.c.l.b16 %v818
    %v896 = vunpack.c.h.b16 %v818
    %v897 = vunpack.c.l.b16 %v819
    %v898 = vunpack.c.h.b16 %v819
    %v899 = vunpack.c.l.b16 %v820
    %v900 = vunpack.c.h.b16 %v820
    %v901 = vunpack.c.l.b16 %v821
    %v902 = vunpack.c.h.b16 %v821
    %v903 = vunpack.c.l.b16 %v822
    %v904 = vunpack.c.h.b16 %v822
    %v905 = vunpack.c.l.b16 %v823
    %v906 = vunpack.c.h.b16 %v823
    %v907 = vunpack.c.l.b16 %v824
    %v908 = vunpack.c.h.b16 %v824
    %v909 = vunpack.c.l.b16 %v825
    %v910 = vunpack.c.h.b16 %v825
    %v911 = vunpack.c.l.b16 %v826
    %v912 = vunpack.c.h.b16 %v826
    %v913 = vunpack.c.l.b16 %v827
    %v914 = vunpack.c.h.b16 %v827
    %v915 = vunpack.c.l.b16 %v828
    %v916 = vunpack.c.h.b16 %v828
    %v917 = vunpack.c.l.b16 %v829
    %v918 = vunpack.c.h.b16 %v829
    %v919 = vunpack.c.l.b16 %v830
    %v920 = vunpack.c.h.b16 %v830
    %v921 = vpack.c.b16 %v865, %v861
    %v922 = vpack.c.b16 %v866, %v862
    %v923 = vpack.c.b16 %v867, %v863
    %v924 = vpack.c.b16 %v868, %v864
    %v925 = vpack.c.b16 %v873, %v869
    %v926 = vpack.c.b16 %v874, %v870
    %v927 = vpack.c.b16 %v875, %v871
    %v928 = vpack.c.b16 %v876, %v872
    %v929 = vpack.c.b16 %v881, %v877
    %v930 = vpack.c.b16 %v882, %v878
    %v931 = vpack.c.b16 %v883, %v879
    %v932 = vpack.c.b16 %v884, %v880
    %v933 = vpack.c.b16 %v889, %v885
    %v934 = vpack.c.b16 %v890, %v886
    %v935 = vpack.c.b16 %v891, %v887
    %v936 = vpack.c.b16 %v892, %v888
    %v937 = vpack.c.b16 %v897, %v893
    %v938 = vpack.c.b16 %v898, %v894
    %v939 = vpack.c.b16 %v899, %v895
    %v940 = vpack.c.b16 %v900, %v896
    %v941 = vpack.c.b16 %v905, %v901
    %v942 = vpack.c.b16 %v906, %v902
    %v943 = vpack.c.b16 %v907, %v903
    %v944 = vpack.c.b16 %v908, %v904
    %v945 = vpack.c.b16 %v913, %v909
    %v946 = vpack.c.b16 %v914, %v910
    %v947 = vpack.c.b16 %v915, %v911
    %v948 = vpack.c.b16 %v916, %v912
    %v949 = vpack.c.b16 %v917, %v917
    %v950 = vpack.c.b16 %v918, %v918
    %v951 = vpack.c.b16 %v919, %v919
    %v952 = vpack.c.b16 %v920, %v920
    %v982 = vsel %vm441, %v949, 0
    %v985 = vsel %vm441, %v950, 0
    %v988 = vsel %vm441, %v951, 0
    %v991 = vsel %vm441, %v952, 0
    %993 = vmatprep.subr.bf16.mxu0 %v922
    %994 = vmatpush1.bf16.msra.mxu0 %v921
    %995 = vmatprep.subr.bf16.mxu0 %v926
    %996 = vmatpush1.bf16.msra.mxu0 %v925
    %997 = vmatprep.subr.bf16.mxu0 %v930
    %998 = vmatpush1.bf16.msra.mxu0 %v929
    %999 = vmatprep.subr.bf16.mxu0 %v934
    %1000 = vmatpush1.bf16.msra.mxu0 %v933
    %1001 = vmatprep.subr.bf16.mxu0 %v938
    %1002 = vmatpush1.bf16.msra.mxu0 %v937
    %1003 = vmatprep.subr.bf16.mxu0 %v942
    %1004 = vmatpush1.bf16.msra.mxu0 %v941
    %1005 = vmatprep.subr.bf16.mxu0 %v946
    %1006 = vmatpush1.bf16.msra.mxu0 %v945
    %1007 = vmatprep.subr.bf16.mxu0 %v985
    %1008 = vmatpush1.bf16.msra.mxu0 %v982
    %1009 = vmatprep.subr.bf16.mxu0 0
    %1010 = vmatpush1.bf16.msra.mxu0 0
    %1011 = vmatprep.subr.bf16.mxu0 0
    %1012 = vmatpush1.bf16.msra.mxu0 0
    %1013 = vmatprep.subr.bf16.mxu0 0
    %1014 = vmatpush1.bf16.msra.mxu0 0
    %1015 = vmatprep.subr.bf16.mxu0 0
    %1016 = vmatpush1.bf16.msra.mxu0 0
    %1017 = vmatprep.subr.bf16.mxu0 0
    %1018 = vmatpush1.bf16.msra.mxu0 0
    %1019 = vmatprep.subr.bf16.mxu0 0
    %1020 = vmatpush1.bf16.msra.mxu0 0
    %1021 = vmatprep.subr.bf16.mxu0 0
    %1022 = vmatpush1.bf16.msra.mxu0 0
    %1023 = vmatprep.subr.bf16.mxu0 0
    %1024 = vmatpush1.bf16.msra.mxu0 0
    %1025 = vmatprep.mubr.bf16.mxu0 0
    %1026 = vmatmul.mubr.bf16.gmra.mrb[0].mxu0 %v400
    %v1027 = vpop.f32.mrb[0].mxu0
    %v1028 = vadd.f32 0.0, %v1027
    %v1029 = vpop.f32.mrb[0].mxu0
    %v1030 = vadd.f32 0.0, %v1029
    %v1031 = vpop.f32.mrb[0].mxu0
    %v1032 = vadd.f32 0.0, %v1031
    %v1033 = vpop.f32.mrb[0].mxu0
    %v1034 = vadd.f32 0.0, %v1033
    %1035 = vmatprep.mubr.bf16.mxu0 0
    %1036 = vmatmul.mubr.bf16.gmra.mrb[0].mxu0 %v403
    %v1037 = vpop.f32.mrb[0].mxu0
    %v1038 = vadd.f32 0.0, %v1037
    %v1039 = vpop.f32.mrb[0].mxu0
    %v1040 = vadd.f32 0.0, %v1039
    %v1041 = vpop.f32.mrb[0].mxu0
    %v1042 = vadd.f32 0.0, %v1041
    %v1043 = vpop.f32.mrb[0].mxu0
    %v1044 = vadd.f32 0.0, %v1043
    %1045 = vmatprep.mubr.bf16.mxu0 0
    %1046 = vmatmul.mubr.bf16.gmra.mrb[0].mxu0 %v406
    %v1047 = vpop.f32.mrb[0].mxu0
    %v1048 = vadd.f32 0.0, %v1047
    %v1049 = vpop.f32.mrb[0].mxu0
    %v1050 = vadd.f32 0.0, %v1049
    %v1051 = vpop.f32.mrb[0].mxu0
    %v1052 = vadd.f32 0.0, %v1051
    %v1053 = vpop.f32.mrb[0].mxu0
    %v1054 = vadd.f32 0.0, %v1053
    %1055 = vmatprep.mubr.bf16.mxu0 0
    %1056 = vmatmul.mubr.bf16.gmra.mrb[0].mxu0 %v409
    %v1057 = vpop.f32.mrb[0].mxu0
    %v1058 = vadd.f32 0.0, %v1057
    %v1059 = vpop.f32.mrb[0].mxu0
    %v1060 = vadd.f32 0.0, %v1059
    %v1061 = vpop.f32.mrb[0].mxu0
    %v1062 = vadd.f32 0.0, %v1061
    %v1063 = vpop.f32.mrb[0].mxu0
    %v1064 = vadd.f32 0.0, %v1063
    %1065 = vmatprep.mubr.bf16.mxu0 0
    %1066 = vmatmul.mubr.bf16.gmra.mrb[0].mxu0 %v412
    %v1067 = vpop.f32.mrb[0].mxu0
    %v1068 = vadd.f32 0.0, %v1067
    %v1069 = vpop.f32.mrb[0].mxu0
    %v1070 = vadd.f32 0.0, %v1069
    %v1071 = vpop.f32.mrb[0].mxu0
    %v1072 = vadd.f32 0.0, %v1071
    %v1073 = vpop.f32.mrb[0].mxu0
    %v1074 = vadd.f32 0.0, %v1073
    %1075 = vmatprep.mubr.bf16.mxu0 0
    %1076 = vmatmul.mubr.bf16.gmra.mrb[0].mxu0 %v415
    %v1077 = vpop.f32.mrb[0].mxu0
    %v1078 = vadd.f32 0.0, %v1077
    %v1079 = vpop.f32.mrb[0].mxu0
    %v1080 = vadd.f32 0.0, %v1079
    %v1081 = vpop.f32.mrb[0].mxu0
    %v1082 = vadd.f32 0.0, %v1081
    %v1083 = vpop.f32.mrb[0].mxu0
    %v1084 = vadd.f32 0.0, %v1083
    %1085 = vmatprep.mubr.bf16.mxu0 0
    %1086 = vmatmul.mubr.bf16.gmra.mrb[0].mxu0 %v418
    %v1087 = vpop.f32.mrb[0].mxu0
    %v1088 = vadd.f32 0.0, %v1087
    %v1089 = vpop.f32.mrb[0].mxu0
    %v1090 = vadd.f32 0.0, %v1089
    %v1091 = vpop.f32.mrb[0].mxu0
    %v1092 = vadd.f32 0.0, %v1091
    %v1093 = vpop.f32.mrb[0].mxu0
    %v1094 = vadd.f32 0.0, %v1093
    %1095 = vmatprep.mubr.bf16.mxu0 0
    %1096 = vmatmul.mubr.bf16.gmra.mrb[0].mxu0 %v421
    %v1097 = vpop.f32.mrb[0].mxu0
    %v1098 = vadd.f32 0.0, %v1097
    %v1099 = vpop.f32.mrb[0].mxu0
    %v1100 = vadd.f32 0.0, %v1099
    %v1101 = vpop.f32.mrb[0].mxu0
    %v1102 = vadd.f32 0.0, %v1101
    %v1103 = vpop.f32.mrb[0].mxu0
    %v1104 = vadd.f32 0.0, %v1103
    %1105 = vmatprep.mubr.bf16.mxu0 0
    %1106 = vmatmul.mubr.bf16.gmra.mrb[0].mxu0 %v424
    %v1107 = vpop.f32.mrb[0].mxu0
    %v1108 = vadd.f32 0.0, %v1107
    %v1109 = vpop.f32.mrb[0].mxu0
    %v1110 = vadd.f32 0.0, %v1109
    %v1111 = vpop.f32.mrb[0].mxu0
    %v1112 = vadd.f32 0.0, %v1111
    %v1113 = vpop.f32.mrb[0].mxu0
    %v1114 = vadd.f32 0.0, %v1113
    %1115 = vmatprep.mubr.bf16.mxu0 0
    %1116 = vmatmul.mubr.bf16.gmra.mrb[0].mxu0 %v427
    %v1117 = vpop.f32.mrb[0].mxu0
    %v1118 = vadd.f32 0.0, %v1117
    %v1119 = vpop.f32.mrb[0].mxu0
    %v1120 = vadd.f32 0.0, %v1119
    %v1121 = vpop.f32.mrb[0].mxu0
    %v1122 = vadd.f32 0.0, %v1121
    %v1123 = vpop.f32.mrb[0].mxu0
    %v1124 = vadd.f32 0.0, %v1123
    %1125 = vmatprep.mubr.bf16.mxu0 0
    %1126 = vmatmul.mubr.bf16.gmra.mrb[0].mxu0 %v430
    %v1127 = vpop.f32.mrb[0].mxu0
    %v1128 = vadd.f32 0.0, %v1127
    %v1129 = vpop.f32.mrb[0].mxu0
    %v1130 = vadd.f32 0.0, %v1129
    %v1131 = vpop.f32.mrb[0].mxu0
    %v1132 = vadd.f32 0.0, %v1131
    %v1133 = vpop.f32.mrb[0].mxu0
    %v1134 = vadd.f32 0.0, %v1133
    %1135 = vmatprep.mubr.bf16.mxu0 0
    %1136 = vmatmul.mubr.bf16.gmra.mrb[0].mxu0 %v433
    %v1137 = vpop.f32.mrb[0].mxu0
    %v1138 = vadd.f32 0.0, %v1137
    %v1139 = vpop.f32.mrb[0].mxu0
    %v1140 = vadd.f32 0.0, %v1139
    %v1141 = vpop.f32.mrb[0].mxu0
    %v1142 = vadd.f32 0.0, %v1141
    %v1143 = vpop.f32.mrb[0].mxu0
    %v1144 = vadd.f32 0.0, %v1143
    %1145 = vmatprep.mubr.bf16.mxu0 0
    %1146 = vmatmul.mubr.bf16.gmra.mrb[0].mxu0 %v436
    %v1147 = vpop.f32.mrb[0].mxu0
    %v1148 = vadd.f32 0.0, %v1147
    %v1149 = vpop.f32.mrb[0].mxu0
    %v1150 = vadd.f32 0.0, %v1149
    %v1151 = vpop.f32.mrb[0].mxu0
    %v1152 = vadd.f32 0.0, %v1151
    %v1153 = vpop.f32.mrb[0].mxu0
    %v1154 = vadd.f32 0.0, %v1153
    %1155 = vmatprep.mubr.bf16.mxu0 0
    %1156 = vmatmul.mubr.bf16.gmra.mrb[0].mxu0 %v439
    %v1157 = vpop.f32.mrb[0].mxu0
    %v1158 = vadd.f32 0.0, %v1157
    %v1159 = vpop.f32.mrb[0].mxu0
    %v1160 = vadd.f32 0.0, %v1159
    %v1161 = vpop.f32.mrb[0].mxu0
    %v1162 = vadd.f32 0.0, %v1161
    %v1163 = vpop.f32.mrb[0].mxu0
    %v1164 = vadd.f32 0.0, %v1163
    %1165 = vdwg.mxu0
    %1166 = vmatprep.subr.bf16.mxu0 %v924
    %1167 = vmatpush1.bf16.msra.mxu0 %v923
    %1168 = vmatprep.subr.bf16.mxu0 %v928
    %1169 = vmatpush1.bf16.msra.mxu0 %v927
    %1170 = vmatprep.subr.bf16.mxu0 %v932
    %1171 = vmatpush1.bf16.msra.mxu0 %v931
    %1172 = vmatprep.subr.bf16.mxu0 %v936
    %1173 = vmatpush1.bf16.msra.mxu0 %v935
    %1174 = vmatprep.subr.bf16.mxu0 %v940
    %1175 = vmatpush1.bf16.msra.mxu0 %v939
    %1176 = vmatprep.subr.bf16.mxu0 %v944
    %1177 = vmatpush1.bf16.msra.mxu0 %v943
    %1178 = vmatprep.subr.bf16.mxu0 %v948
    %1179 = vmatpush1.bf16.msra.mxu0 %v947
    %1180 = vmatprep.subr.bf16.mxu0 %v991
    %1181 = vmatpush1.bf16.msra.mxu0 %v988
    %1182 = vmatprep.subr.bf16.mxu0 0
    %1183 = vmatpush1.bf16.msra.mxu0 0
    %1184 = vmatprep.subr.bf16.mxu0 0
    %1185 = vmatpush1.bf16.msra.mxu0 0
    %1186 = vmatprep.subr.bf16.mxu0 0
    %1187 = vmatpush1.bf16.msra.mxu0 0
    %1188 = vmatprep.subr.bf16.mxu0 0
    %1189 = vmatpush1.bf16.msra.mxu0 0
    %1190 = vmatprep.subr.bf16.mxu0 0
    %1191 = vmatpush1.bf16.msra.mxu0 0
    %1192 = vmatprep.subr.bf16.mxu0 0
    %1193 = vmatpush1.bf16.msra.mxu0 0
    %1194 = vmatprep.subr.bf16.mxu0 0
    %1195 = vmatpush1.bf16.msra.mxu0 0
    %1196 = vmatprep.subr.bf16.mxu0 0
    %1197 = vmatpush1.bf16.msra.mxu0 0
    %1198 = vmatprep.mubr.bf16.mxu0 0
    %1199 = vmatmul.mubr.bf16.gmra.mrb[0].mxu0 %v400
    %v1200 = vpop.f32.mrb[0].mxu0
    %v1201 = vadd.f32 0.0, %v1200
    %v1202 = vpop.f32.mrb[0].mxu0
    %v1203 = vadd.f32 0.0, %v1202
    %v1204 = vpop.f32.mrb[0].mxu0
    %v1205 = vadd.f32 0.0, %v1204
    %v1206 = vpop.f32.mrb[0].mxu0
    %v1207 = vadd.f32 0.0, %v1206
    %1208 = vmatprep.mubr.bf16.mxu0 0
    %1209 = vmatmul.mubr.bf16.gmra.mrb[0].mxu0 %v403
    %v1210 = vpop.f32.mrb[0].mxu0
    %v1211 = vadd.f32 0.0, %v1210
    %v1212 = vpop.f32.mrb[0].mxu0
    %v1213 = vadd.f32 0.0, %v1212
    %v1214 = vpop.f32.mrb[0].mxu0
    %v1215 = vadd.f32 0.0, %v1214
    %v1216 = vpop.f32.mrb[0].mxu0
    %v1217 = vadd.f32 0.0, %v1216
    %1218 = vmatprep.mubr.bf16.mxu0 0
    %1219 = vmatmul.mubr.bf16.gmra.mrb[0].mxu0 %v406
    %v1220 = vpop.f32.mrb[0].mxu0
    %v1221 = vadd.f32 0.0, %v1220
    %v1222 = vpop.f32.mrb[0].mxu0
    %v1223 = vadd.f32 0.0, %v1222
    %v1224 = vpop.f32.mrb[0].mxu0
    %v1225 = vadd.f32 0.0, %v1224
    %v1226 = vpop.f32.mrb[0].mxu0
    %v1227 = vadd.f32 0.0, %v1226
    %1228 = vmatprep.mubr.bf16.mxu0 0
    %1229 = vmatmul.mubr.bf16.gmra.mrb[0].mxu0 %v409
    %v1230 = vpop.f32.mrb[0].mxu0
    %v1231 = vadd.f32 0.0, %v1230
    %v1232 = vpop.f32.mrb[0].mxu0
    %v1233 = vadd.f32 0.0, %v1232
    %v1234 = vpop.f32.mrb[0].mxu0
    %v1235 = vadd.f32 0.0, %v1234
    %v1236 = vpop.f32.mrb[0].mxu0
    %v1237 = vadd.f32 0.0, %v1236
    %1238 = vmatprep.mubr.bf16.mxu0 0
    %1239 = vmatmul.mubr.bf16.gmra.mrb[0].mxu0 %v412
    %v1240 = vpop.f32.mrb[0].mxu0
    %v1241 = vadd.f32 0.0, %v1240
    %v1242 = vpop.f32.mrb[0].mxu0
    %v1243 = vadd.f32 0.0, %v1242
    %v1244 = vpop.f32.mrb[0].mxu0
    %v1245 = vadd.f32 0.0, %v1244
    %v1246 = vpop.f32.mrb[0].mxu0
    %v1247 = vadd.f32 0.0, %v1246
    %1248 = vmatprep.mubr.bf16.mxu0 0
    %1249 = vmatmul.mubr.bf16.gmra.mrb[0].mxu0 %v415
    %v1250 = vpop.f32.mrb[0].mxu0
    %v1251 = vadd.f32 0.0, %v1250
    %v1252 = vpop.f32.mrb[0].mxu0
    %v1253 = vadd.f32 0.0, %v1252
    %v1254 = vpop.f32.mrb[0].mxu0
    %v1255 = vadd.f32 0.0, %v1254
    %v1256 = vpop.f32.mrb[0].mxu0
    %v1257 = vadd.f32 0.0, %v1256
    %1258 = vmatprep.mubr.bf16.mxu0 0
    %1259 = vmatmul.mubr.bf16.gmra.mrb[0].mxu0 %v418
    %v1260 = vpop.f32.mrb[0].mxu0
    %v1261 = vadd.f32 0.0, %v1260
    %v1262 = vpop.f32.mrb[0].mxu0
    %v1263 = vadd.f32 0.0, %v1262
    %v1264 = vpop.f32.mrb[0].mxu0
    %v1265 = vadd.f32 0.0, %v1264
    %v1266 = vpop.f32.mrb[0].mxu0
    %v1267 = vadd.f32 0.0, %v1266
    %1268 = vmatprep.mubr.bf16.mxu0 0
    %1269 = vmatmul.mubr.bf16.gmra.mrb[0].mxu0 %v421
    %v1270 = vpop.f32.mrb[0].mxu0
    %v1271 = vadd.f32 0.0, %v1270
    %v1272 = vpop.f32.mrb[0].mxu0
    %v1273 = vadd.f32 0.0, %v1272
    %v1274 = vpop.f32.mrb[0].mxu0
    %v1275 = vadd.f32 0.0, %v1274
    %v1276 = vpop.f32.mrb[0].mxu0
    %v1277 = vadd.f32 0.0, %v1276
    %1278 = vmatprep.mubr.bf16.mxu0 0
    %1279 = vmatmul.mubr.bf16.gmra.mrb[0].mxu0 %v424
    %v1280 = vpop.f32.mrb[0].mxu0
    %v1281 = vadd.f32 0.0, %v1280
    %v1282 = vpop.f32.mrb[0].mxu0
    %v1283 = vadd.f32 0.0, %v1282
    %v1284 = vpop.f32.mrb[0].mxu0
    %v1285 = vadd.f32 0.0, %v1284
    %v1286 = vpop.f32.mrb[0].mxu0
    %v1287 = vadd.f32 0.0, %v1286
    %1288 = vmatprep.mubr.bf16.mxu0 0
    %1289 = vmatmul.mubr.bf16.gmra.mrb[0].mxu0 %v427
    %v1290 = vpop.f32.mrb[0].mxu0
    %v1291 = vadd.f32 0.0, %v1290
    %v1292 = vpop.f32.mrb[0].mxu0
    %v1293 = vadd.f32 0.0, %v1292
    %v1294 = vpop.f32.mrb[0].mxu0
    %v1295 = vadd.f32 0.0, %v1294
    %v1296 = vpop.f32.mrb[0].mxu0
    %v1297 = vadd.f32 0.0, %v1296
    %1298 = vmatprep.mubr.bf16.mxu0 0
    %1299 = vmatmul.mubr.bf16.gmra.mrb[0].mxu0 %v430
    %v1300 = vpop.f32.mrb[0].mxu0
    %v1301 = vadd.f32 0.0, %v1300
    %v1302 = vpop.f32.mrb[0].mxu0
    %v1303 = vadd.f32 0.0, %v1302
    %v1304 = vpop.f32.mrb[0].mxu0
    %v1305 = vadd.f32 0.0, %v1304
    %v1306 = vpop.f32.mrb[0].mxu0
    %v1307 = vadd.f32 0.0, %v1306
    %1308 = vmatprep.mubr.bf16.mxu0 0
    %1309 = vmatmul.mubr.bf16.gmra.mrb[0].mxu0 %v433
    %v1310 = vpop.f32.mrb[0].mxu0
    %v1311 = vadd.f32 0.0, %v1310
    %v1312 = vpop.f32.mrb[0].mxu0
    %v1313 = vadd.f32 0.0, %v1312
    %v1314 = vpop.f32.mrb[0].mxu0
    %v1315 = vadd.f32 0.0, %v1314
    %v1316 = vpop.f32.mrb[0].mxu0
    %v1317 = vadd.f32 0.0, %v1316
    %1318 = vmatprep.mubr.bf16.mxu0 0
    %1319 = vmatmul.mubr.bf16.gmra.mrb[0].mxu0 %v436
    %v1320 = vpop.f32.mrb[0].mxu0
    %v1321 = vadd.f32 0.0, %v1320
    %v1322 = vpop.f32.mrb[0].mxu0
    %v1323 = vadd.f32 0.0, %v1322
    %v1324 = vpop.f32.mrb[0].mxu0
    %v1325 = vadd.f32 0.0, %v1324
    %v1326 = vpop.f32.mrb[0].mxu0
    %v1327 = vadd.f32 0.0, %v1326
    %1328 = vmatprep.mubr.bf16.mxu0 0
    %1329 = vmatmul.mubr.bf16.gmra.mrb[0].mxu0 %v439
    %v1330 = vpop.f32.mrb[0].mxu0
    %v1331 = vadd.f32 0.0, %v1330
    %v1332 = vpop.f32.mrb[0].mxu0
    %v1333 = vadd.f32 0.0, %v1332
    %v1334 = vpop.f32.mrb[0].mxu0
    %v1335 = vadd.f32 0.0, %v1334
    %v1336 = vpop.f32.mrb[0].mxu0
    %v1337 = vadd.f32 0.0, %v1336
    %1338 = vdwg.mxu0
    %v1339 = vmax.f32 %v489, %v1028
    %v1340 = vmax.f32 %v491, %v1030
    %v1341 = vmax.f32 %v662, %v1201
    %v1342 = vmax.f32 %v664, %v1203
    %v1343 = vmax.f32 %v493, %v1032
    %v1344 = vmax.f32 %v495, %v1034
    %v1345 = vmax.f32 %v666, %v1205
    %v1346 = vmax.f32 %v668, %v1207
    %v1347 = vmax.f32 %v499, %v1038
    %v1348 = vmax.f32 %v501, %v1040
    %v1349 = vmax.f32 %v672, %v1211
    %v1350 = vmax.f32 %v674, %v1213
    %v1351 = vmax.f32 %v503, %v1042
    %v1352 = vmax.f32 %v505, %v1044
    %v1353 = vmax.f32 %v676, %v1215
    %v1354 = vmax.f32 %v678, %v1217
    %v1355 = vmax.f32 %v509, %v1048
    %v1356 = vmax.f32 %v511, %v1050
    %v1357 = vmax.f32 %v682, %v1221
    %v1358 = vmax.f32 %v684, %v1223
    %v1359 = vmax.f32 %v513, %v1052
    %v1360 = vmax.f32 %v515, %v1054
    %v1361 = vmax.f32 %v686, %v1225
    %v1362 = vmax.f32 %v688, %v1227
    %v1363 = vmax.f32 %v519, %v1058
    %v1364 = vmax.f32 %v521, %v1060
    %v1365 = vmax.f32 %v692, %v1231
    %v1366 = vmax.f32 %v694, %v1233
    %v1367 = vmax.f32 %v523, %v1062
    %v1368 = vmax.f32 %v525, %v1064
    %v1369 = vmax.f32 %v696, %v1235
    %v1370 = vmax.f32 %v698, %v1237
    %v1371 = vmax.f32 %v529, %v1068
    %v1372 = vmax.f32 %v531, %v1070
    %v1373 = vmax.f32 %v702, %v1241
    %v1374 = vmax.f32 %v704, %v1243
    %v1375 = vmax.f32 %v533, %v1072
    %v1376 = vmax.f32 %v535, %v1074
    %v1377 = vmax.f32 %v706, %v1245
    %v1378 = vmax.f32 %v708, %v1247
    %v1379 = vmax.f32 %v539, %v1078
    %v1380 = vmax.f32 %v541, %v1080
    %v1381 = vmax.f32 %v712, %v1251
    %v1382 = vmax.f32 %v714, %v1253
    %v1383 = vmax.f32 %v543, %v1082
    %v1384 = vmax.f32 %v545, %v1084
    %v1385 = vmax.f32 %v716, %v1255
    %v1386 = vmax.f32 %v718, %v1257
    %v1387 = vmax.f32 %v549, %v1088
    %v1388 = vmax.f32 %v551, %v1090
    %v1389 = vmax.f32 %v722, %v1261
    %v1390 = vmax.f32 %v724, %v1263
    %v1391 = vmax.f32 %v553, %v1092
    %v1392 = vmax.f32 %v555, %v1094
    %v1393 = vmax.f32 %v726, %v1265
    %v1394 = vmax.f32 %v728, %v1267
    %v1395 = vmax.f32 %v559, %v1098
    %v1396 = vmax.f32 %v561, %v1100
    %v1397 = vmax.f32 %v732, %v1271
    %v1398 = vmax.f32 %v734, %v1273
    %v1399 = vmax.f32 %v563, %v1102
    %v1400 = vmax.f32 %v565, %v1104
    %v1401 = vmax.f32 %v736, %v1275
    %v1402 = vmax.f32 %v738, %v1277
    %v1403 = vmax.f32 %v569, %v1108
    %v1404 = vmax.f32 %v571, %v1110
    %v1405 = vmax.f32 %v742, %v1281
    %v1406 = vmax.f32 %v744, %v1283
    %v1407 = vmax.f32 %v573, %v1112
    %v1408 = vmax.f32 %v575, %v1114
    %v1409 = vmax.f32 %v746, %v1285
    %v1410 = vmax.f32 %v748, %v1287
    %v1411 = vmax.f32 %v579, %v1118
    %v1412 = vmax.f32 %v581, %v1120
    %v1413 = vmax.f32 %v752, %v1291
    %v1414 = vmax.f32 %v754, %v1293
    %v1415 = vmax.f32 %v583, %v1122
    %v1416 = vmax.f32 %v585, %v1124
    %v1417 = vmax.f32 %v756, %v1295
    %v1418 = vmax.f32 %v758, %v1297
    %v1419 = vmax.f32 %v589, %v1128
    %v1420 = vmax.f32 %v591, %v1130
    %v1421 = vmax.f32 %v762, %v1301
    %v1422 = vmax.f32 %v764, %v1303
    %v1423 = vmax.f32 %v593, %v1132
    %v1424 = vmax.f32 %v595, %v1134
    %v1425 = vmax.f32 %v766, %v1305
    %v1426 = vmax.f32 %v768, %v1307
    %v1427 = vmax.f32 %v599, %v1138
    %v1428 = vmax.f32 %v601, %v1140
    %v1429 = vmax.f32 %v772, %v1311
    %v1430 = vmax.f32 %v774, %v1313
    %v1431 = vmax.f32 %v603, %v1142
    %v1432 = vmax.f32 %v605, %v1144
    %v1433 = vmax.f32 %v776, %v1315
    %v1434 = vmax.f32 %v778, %v1317
    %v1435 = vmax.f32 %v609, %v1148
    %v1436 = vmax.f32 %v611, %v1150
    %v1437 = vmax.f32 %v782, %v1321
    %v1438 = vmax.f32 %v784, %v1323
    %v1439 = vmax.f32 %v613, %v1152
    %v1440 = vmax.f32 %v615, %v1154
    %v1441 = vmax.f32 %v786, %v1325
    %v1442 = vmax.f32 %v788, %v1327
    %v1443 = vmax.f32 %v619, %v1158
    %v1444 = vmax.f32 %v621, %v1160
    %v1445 = vmax.f32 %v792, %v1331
    %v1446 = vmax.f32 %v794, %v1333
    %v1447 = vmax.f32 %v623, %v1162
    %v1448 = vmax.f32 %v625, %v1164
    %v1449 = vmax.f32 %v796, %v1335
    %v1450 = vmax.f32 %v798, %v1337
    %s1451 = scalar_lea.vmem %s1, 480
    %v1452 = vld [vmem:[%s1451] sm:$0xff]
    %v1453 = vld [vmem:[%s1451 + $0x8] sm:$0xff]
    %v1454 = vld [vmem:[%s1451 + $0x10] sm:$0xff]
    %v1455 = vld [vmem:[%s1451 + $0x18] sm:$0xff]
    %v1456 = vld [vmem:[%s1451 + $0x20] sm:$0xff]
    %v1457 = vld [vmem:[%s1451 + $0x28] sm:$0xff]
    %v1458 = vld [vmem:[%s1451 + $0x30] sm:$0xff]
    %v1459 = vld [vmem:[%s1451 + $0x38] sm:$0xff]
    %v1460 = vld [vmem:[%s1451 + $0x40] sm:$0xff]
    %v1461 = vld [vmem:[%s1451 + $0x48] sm:$0xff]
    %v1462 = vld [vmem:[%s1451 + $0x50] sm:$0xff]
    %v1463 = vld [vmem:[%s1451 + $0x58] sm:$0xff]
    %v1464 = vld [vmem:[%s1451 + $0x60] sm:$0xff]
    %v1465 = vld [vmem:[%s1451 + $0x68] sm:$0xff]
    %v1466 = vld [vmem:[%s1451 + $0x70] sm:$0xff]
    %v1467 = vld [vmem:[%s1451 + $0x78] sm:$0xff]
    %v1468 = vld [vmem:[%s1451 + $0x80] sm:$0xff]
    %v1469 = vld [vmem:[%s1451 + $0x88] sm:$0xff]
    %v1470 = vld [vmem:[%s1451 + $0x90] sm:$0xff]
    %v1471 = vld [vmem:[%s1451 + $0x98] sm:$0xff]
    %v1472 = vld [vmem:[%s1451 + $0xa0] sm:$0xff]
    %v1473 = vld [vmem:[%s1451 + $0xa8] sm:$0xff]
    %v1474 = vld [vmem:[%s1451 + $0xb0] sm:$0xff]
    %v1475 = vld [vmem:[%s1451 + $0xb8] sm:$0xff]
    %v1476 = vld [vmem:[%s1451 + $0xc0] sm:$0xff]
    %v1477 = vld [vmem:[%s1451 + $0xc8] sm:$0xff]
    %v1478 = vld [vmem:[%s1451 + $0xd0] sm:$0xff]
    %v1479 = vld [vmem:[%s1451 + $0xd8] sm:$0xff]
    %v1480 = vld [vmem:[%s1451 + $0xe0] sm:$0xff]
    %v1481 = vld [vmem:[%s1451 + $0xe8] sm:$0xff]
    %v1512 = vunpack.c.l.b16 %v1452
    %v1513 = vunpack.c.h.b16 %v1452
    %v1514 = vunpack.c.l.b16 %v1453
    %v1515 = vunpack.c.h.b16 %v1453
    %v1516 = vunpack.c.l.b16 %v1454
    %v1517 = vunpack.c.h.b16 %v1454
    %v1518 = vunpack.c.l.b16 %v1455
    %v1519 = vunpack.c.h.b16 %v1455
    %v1520 = vunpack.c.l.b16 %v1456
    %v1521 = vunpack.c.h.b16 %v1456
    %v1522 = vunpack.c.l.b16 %v1457
    %v1523 = vunpack.c.h.b16 %v1457
    %v1524 = vunpack.c.l.b16 %v1458
    %v1525 = vunpack.c.h.b16 %v1458
    %v1526 = vunpack.c.l.b16 %v1459
    %v1527 = vunpack.c.h.b16 %v1459
    %v1528 = vunpack.c.l.b16 %v1460
    %v1529 = vunpack.c.h.b16 %v1460
    %v1530 = vunpack.c.l.b16 %v1461
    %v1531 = vunpack.c.h.b16 %v1461
    %v1532 = vunpack.c.l.b16 %v1462
    %v1533 = vunpack.c.h.b16 %v1462
    %v1534 = vunpack.c.l.b16 %v1463
    %v1535 = vunpack.c.h.b16 %v1463
    %v1536 = vunpack.c.l.b16 %v1464
    %v1537 = vunpack.c.h.b16 %v1464
    %v1538 = vunpack.c.l.b16 %v1465
    %v1539 = vunpack.c.h.b16 %v1465
    %v1540 = vunpack.c.l.b16 %v1466
    %v1541 = vunpack.c.h.b16 %v1466
    %v1542 = vunpack.c.l.b16 %v1467
    %v1543 = vunpack.c.h.b16 %v1467
    %v1544 = vunpack.c.l.b16 %v1468
    %v1545 = vunpack.c.h.b16 %v1468
    %v1546 = vunpack.c.l.b16 %v1469
    %v1547 = vunpack.c.h.b16 %v1469
    %v1548 = vunpack.c.l.b16 %v1470
    %v1549 = vunpack.c.h.b16 %v1470
    %v1550 = vunpack.c.l.b16 %v1471
    %v1551 = vunpack.c.h.b16 %v1471
    %v1552 = vunpack.c.l.b16 %v1472
    %v1553 = vunpack.c.h.b16 %v1472
    %v1554 = vunpack.c.l.b16 %v1473
    %v1555 = vunpack.c.h.b16 %v1473
    %v1556 = vunpack.c.l.b16 %v1474
    %v1557 = vunpack.c.h.b16 %v1474
    %v1558 = vunpack.c.l.b16 %v1475
    %v1559 = vunpack.c.h.b16 %v1475
    %v1560 = vunpack.c.l.b16 %v1476
    %v1561 = vunpack.c.h.b16 %v1476
    %v1562 = vunpack.c.l.b16 %v1477
    %v1563 = vunpack.c.h.b16 %v1477
    %v1564 = vunpack.c.l.b16 %v1478
    %v1565 = vunpack.c.h.b16 %v1478
    %v1566 = vunpack.c.l.b16 %v1479
    %v1567 = vunpack.c.h.b16 %v1479
    %v1568 = vunpack.c.l.b16 %v1480
    %v1569 = vunpack.c.h.b16 %v1480
    %v1570 = vunpack.c.l.b16 %v1481
    %v1571 = vunpack.c.h.b16 %v1481
    %v1572 = vpack.c.b16 %v1516, %v1512
    %v1573 = vpack.c.b16 %v1517, %v1513
    %v1574 = vpack.c.b16 %v1518, %v1514
    %v1575 = vpack.c.b16 %v1519, %v1515
    %v1576 = vpack.c.b16 %v1524, %v1520
    %v1577 = vpack.c.b16 %v1525, %v1521
    %v1578 = vpack.c.b16 %v1526, %v1522
    %v1579 = vpack.c.b16 %v1527, %v1523
    %v1580 = vpack.c.b16 %v1532, %v1528
    %v1581 = vpack.c.b16 %v1533, %v1529
    %v1582 = vpack.c.b16 %v1534, %v1530
    %v1583 = vpack.c.b16 %v1535, %v1531
    %v1584 = vpack.c.b16 %v1540, %v1536
    %v1585 = vpack.c.b16 %v1541, %v1537
    %v1586 = vpack.c.b16 %v1542, %v1538
    %v1587 = vpack.c.b16 %v1543, %v1539
    %v1588 = vpack.c.b16 %v1548, %v1544
    %v1589 = vpack.c.b16 %v1549, %v1545
    %v1590 = vpack.c.b16 %v1550, %v1546
    %v1591 = vpack.c.b16 %v1551, %v1547
    %v1592 = vpack.c.b16 %v1556, %v1552
    %v1593 = vpack.c.b16 %v1557, %v1553
    %v1594 = vpack.c.b16 %v1558, %v1554
    %v1595 = vpack.c.b16 %v1559, %v1555
    %v1596 = vpack.c.b16 %v1564, %v1560
    %v1597 = vpack.c.b16 %v1565, %v1561
    %v1598 = vpack.c.b16 %v1566, %v1562
    %v1599 = vpack.c.b16 %v1567, %v1563
    %v1600 = vpack.c.b16 %v1568, %v1568
    %v1601 = vpack.c.b16 %v1569, %v1569
    %v1602 = vpack.c.b16 %v1570, %v1570
    %v1603 = vpack.c.b16 %v1571, %v1571
    %v1633 = vsel %vm441, %v1600, 0
    %v1636 = vsel %vm441, %v1601, 0
    %v1639 = vsel %vm441, %v1602, 0
    %v1642 = vsel %vm441, %v1603, 0
    %1644 = vmatprep.subr.bf16.mxu0 %v1573
    %1645 = vmatpush1.bf16.msra.mxu0 %v1572
    %1646 = vmatprep.subr.bf16.mxu0 %v1577
    %1647 = vmatpush1.bf16.msra.mxu0 %v1576
    %1648 = vmatprep.subr.bf16.mxu0 %v1581
    %1649 = vmatpush1.bf16.msra.mxu0 %v1580
    %1650 = vmatprep.subr.bf16.mxu0 %v1585
    %1651 = vmatpush1.bf16.msra.mxu0 %v1584
    %1652 = vmatprep.subr.bf16.mxu0 %v1589
    %1653 = vmatpush1.bf16.msra.mxu0 %v1588
    %1654 = vmatprep.subr.bf16.mxu0 %v1593
    %1655 = vmatpush1.bf16.msra.mxu0 %v1592
    %1656 = vmatprep.subr.bf16.mxu0 %v1597
    %1657 = vmatpush1.bf16.msra.mxu0 %v1596
    %1658 = vmatprep.subr.bf16.mxu0 %v1636
    %1659 = vmatpush1.bf16.msra.mxu0 %v1633
    %1660 = vmatprep.subr.bf16.mxu0 0
    %1661 = vmatpush1.bf16.msra.mxu0 0
    %1662 = vmatprep.subr.bf16.mxu0 0
    %1663 = vmatpush1.bf16.msra.mxu0 0
    %1664 = vmatprep.subr.bf16.mxu0 0
    %1665 = vmatpush1.bf16.msra.mxu0 0
    %1666 = vmatprep.subr.bf16.mxu0 0
    %1667 = vmatpush1.bf16.msra.mxu0 0
    %1668 = vmatprep.subr.bf16.mxu0 0
    %1669 = vmatpush1.bf16.msra.mxu0 0
    %1670 = vmatprep.subr.bf16.mxu0 0
    %1671 = vmatpush1.bf16.msra.mxu0 0
    %1672 = vmatprep.subr.bf16.mxu0 0
    %1673 = vmatpush1.bf16.msra.mxu0 0
    %1674 = vmatprep.subr.bf16.mxu0 0
    %1675 = vmatpush1.bf16.msra.mxu0 0
    %1676 = vmatprep.mubr.bf16.mxu0 0
    %1677 = vmatmul.mubr.bf16.gmra.mrb[0].mxu0 %v400
    %v1678 = vpop.f32.mrb[0].mxu0
    %v1679 = vadd.f32 0.0, %v1678
    %v1680 = vpop.f32.mrb[0].mxu0
    %v1681 = vadd.f32 0.0, %v1680
    %v1682 = vpop.f32.mrb[0].mxu0
    %v1683 = vadd.f32 0.0, %v1682
    %v1684 = vpop.f32.mrb[0].mxu0
    %v1685 = vadd.f32 0.0, %v1684
    %1686 = vmatprep.mubr.bf16.mxu0 0
    %1687 = vmatmul.mubr.bf16.gmra.mrb[0].mxu0 %v403
    %v1688 = vpop.f32.mrb[0].mxu0
    %v1689 = vadd.f32 0.0, %v1688
    %v1690 = vpop.f32.mrb[0].mxu0
    %v1691 = vadd.f32 0.0, %v1690
    %v1692 = vpop.f32.mrb[0].mxu0
    %v1693 = vadd.f32 0.0, %v1692
    %v1694 = vpop.f32.mrb[0].mxu0
    %v1695 = vadd.f32 0.0, %v1694
    %1696 = vmatprep.mubr.bf16.mxu0 0
    %1697 = vmatmul.mubr.bf16.gmra.mrb[0].mxu0 %v406
    %v1698 = vpop.f32.mrb[0].mxu0
    %v1699 = vadd.f32 0.0, %v1698
    %v1700 = vpop.f32.mrb[0].mxu0
    %v1701 = vadd.f32 0.0, %v1700
    %v1702 = vpop.f32.mrb[0].mxu0
    %v1703 = vadd.f32 0.0, %v1702
    %v1704 = vpop.f32.mrb[0].mxu0
    %v1705 = vadd.f32 0.0, %v1704
    %1706 = vmatprep.mubr.bf16.mxu0 0
    %1707 = vmatmul.mubr.bf16.gmra.mrb[0].mxu0 %v409
    %v1708 = vpop.f32.mrb[0].mxu0
    %v1709 = vadd.f32 0.0, %v1708
    %v1710 = vpop.f32.mrb[0].mxu0
    %v1711 = vadd.f32 0.0, %v1710
    %v1712 = vpop.f32.mrb[0].mxu0
    %v1713 = vadd.f32 0.0, %v1712
    %v1714 = vpop.f32.mrb[0].mxu0
    %v1715 = vadd.f32 0.0, %v1714
    %1716 = vmatprep.mubr.bf16.mxu0 0
    %1717 = vmatmul.mubr.bf16.gmra.mrb[0].mxu0 %v412
    %v1718 = vpop.f32.mrb[0].mxu0
    %v1719 = vadd.f32 0.0, %v1718
    %v1720 = vpop.f32.mrb[0].mxu0
    %v1721 = vadd.f32 0.0, %v1720
    %v1722 = vpop.f32.mrb[0].mxu0
    %v1723 = vadd.f32 0.0, %v1722
    %v1724 = vpop.f32.mrb[0].mxu0
    %v1725 = vadd.f32 0.0, %v1724
    %1726 = vmatprep.mubr.bf16.mxu0 0
    %1727 = vmatmul.mubr.bf16.gmra.mrb[0].mxu0 %v415
    %v1728 = vpop.f32.mrb[0].mxu0
    %v1729 = vadd.f32 0.0, %v1728
    %v1730 = vpop.f32.mrb[0].mxu0
    %v1731 = vadd.f32 0.0, %v1730
    %v1732 = vpop.f32.mrb[0].mxu0
    %v1733 = vadd.f32 0.0, %v1732
    %v1734 = vpop.f32.mrb[0].mxu0
    %v1735 = vadd.f32 0.0, %v1734
    %1736 = vmatprep.mubr.bf16.mxu0 0
    %1737 = vmatmul.mubr.bf16.gmra.mrb[0].mxu0 %v418
    %v1738 = vpop.f32.mrb[0].mxu0
    %v1739 = vadd.f32 0.0, %v1738
    %v1740 = vpop.f32.mrb[0].mxu0
    %v1741 = vadd.f32 0.0, %v1740
    %v1742 = vpop.f32.mrb[0].mxu0
    %v1743 = vadd.f32 0.0, %v1742
    %v1744 = vpop.f32.mrb[0].mxu0
    %v1745 = vadd.f32 0.0, %v1744
    %1746 = vmatprep.mubr.bf16.mxu0 0
    %1747 = vmatmul.mubr.bf16.gmra.mrb[0].mxu0 %v421
    %v1748 = vpop.f32.mrb[0].mxu0
    %v1749 = vadd.f32 0.0, %v1748
    %v1750 = vpop.f32.mrb[0].mxu0
    %v1751 = vadd.f32 0.0, %v1750
    %v1752 = vpop.f32.mrb[0].mxu0
    %v1753 = vadd.f32 0.0, %v1752
    %v1754 = vpop.f32.mrb[0].mxu0
    %v1755 = vadd.f32 0.0, %v1754
    %1756 = vmatprep.mubr.bf16.mxu0 0
    %1757 = vmatmul.mubr.bf16.gmra.mrb[0].mxu0 %v424
    %v1758 = vpop.f32.mrb[0].mxu0
    %v1759 = vadd.f32 0.0, %v1758
    %v1760 = vpop.f32.mrb[0].mxu0
    %v1761 = vadd.f32 0.0, %v1760
    %v1762 = vpop.f32.mrb[0].mxu0
    %v1763 = vadd.f32 0.0, %v1762
    %v1764 = vpop.f32.mrb[0].mxu0
    %v1765 = vadd.f32 0.0, %v1764
    %1766 = vmatprep.mubr.bf16.mxu0 0
    %1767 = vmatmul.mubr.bf16.gmra.mrb[0].mxu0 %v427
    %v1768 = vpop.f32.mrb[0].mxu0
    %v1769 = vadd.f32 0.0, %v1768
    %v1770 = vpop.f32.mrb[0].mxu0
    %v1771 = vadd.f32 0.0, %v1770
    %v1772 = vpop.f32.mrb[0].mxu0
    %v1773 = vadd.f32 0.0, %v1772
    %v1774 = vpop.f32.mrb[0].mxu0
    %v1775 = vadd.f32 0.0, %v1774
    %1776 = vmatprep.mubr.bf16.mxu0 0
    %1777 = vmatmul.mubr.bf16.gmra.mrb[0].mxu0 %v430
    %v1778 = vpop.f32.mrb[0].mxu0
    %v1779 = vadd.f32 0.0, %v1778
    %v1780 = vpop.f32.mrb[0].mxu0
    %v1781 = vadd.f32 0.0, %v1780
    %v1782 = vpop.f32.mrb[0].mxu0
    %v1783 = vadd.f32 0.0, %v1782
    %v1784 = vpop.f32.mrb[0].mxu0
    %v1785 = vadd.f32 0.0, %v1784
    %1786 = vmatprep.mubr.bf16.mxu0 0
    %1787 = vmatmul.mubr.bf16.gmra.mrb[0].mxu0 %v433
    %v1788 = vpop.f32.mrb[0].mxu0
    %v1789 = vadd.f32 0.0, %v1788
    %v1790 = vpop.f32.mrb[0].mxu0
    %v1791 = vadd.f32 0.0, %v1790
    %v1792 = vpop.f32.mrb[0].mxu0
    %v1793 = vadd.f32 0.0, %v1792
    %v1794 = vpop.f32.mrb[0].mxu0
    %v1795 = vadd.f32 0.0, %v1794
    %1796 = vmatprep.mubr.bf16.mxu0 0
    %1797 = vmatmul.mubr.bf16.gmra.mrb[0].mxu0 %v436
    %v1798 = vpop.f32.mrb[0].mxu0
    %v1799 = vadd.f32 0.0, %v1798
    %v1800 = vpop.f32.mrb[0].mxu0
    %v1801 = vadd.f32 0.0, %v1800
    %v1802 = vpop.f32.mrb[0].mxu0
    %v1803 = vadd.f32 0.0, %v1802
    %v1804 = vpop.f32.mrb[0].mxu0
    %v1805 = vadd.f32 0.0, %v1804
    %1806 = vmatprep.mubr.bf16.mxu0 0
    %1807 = vmatmul.mubr.bf16.gmra.mrb[0].mxu0 %v439
    %v1808 = vpop.f32.mrb[0].mxu0
    %v1809 = vadd.f32 0.0, %v1808
    %v1810 = vpop.f32.mrb[0].mxu0
    %v1811 = vadd.f32 0.0, %v1810
    %v1812 = vpop.f32.mrb[0].mxu0
    %v1813 = vadd.f32 0.0, %v1812
    %v1814 = vpop.f32.mrb[0].mxu0
    %v1815 = vadd.f32 0.0, %v1814
    %1816 = vdwg.mxu0
    %1817 = vmatprep.subr.bf16.mxu0 %v1575
    %1818 = vmatpush1.bf16.msra.mxu0 %v1574
    %1819 = vmatprep.subr.bf16.mxu0 %v1579
    %1820 = vmatpush1.bf16.msra.mxu0 %v1578
    %1821 = vmatprep.subr.bf16.mxu0 %v1583
    %1822 = vmatpush1.bf16.msra.mxu0 %v1582
    %1823 = vmatprep.subr.bf16.mxu0 %v1587
    %1824 = vmatpush1.bf16.msra.mxu0 %v1586
    %1825 = vmatprep.subr.bf16.mxu0 %v1591
    %1826 = vmatpush1.bf16.msra.mxu0 %v1590
    %1827 = vmatprep.subr.bf16.mxu0 %v1595
    %1828 = vmatpush1.bf16.msra.mxu0 %v1594
    %1829 = vmatprep.subr.bf16.mxu0 %v1599
    %1830 = vmatpush1.bf16.msra.mxu0 %v1598
    %1831 = vmatprep.subr.bf16.mxu0 %v1642
    %1832 = vmatpush1.bf16.msra.mxu0 %v1639
    %1833 = vmatprep.subr.bf16.mxu0 0
    %1834 = vmatpush1.bf16.msra.mxu0 0
    %1835 = vmatprep.subr.bf16.mxu0 0
    %1836 = vmatpush1.bf16.msra.mxu0 0
    %1837 = vmatprep.subr.bf16.mxu0 0
    %1838 = vmatpush1.bf16.msra.mxu0 0
    %1839 = vmatprep.subr.bf16.mxu0 0
    %1840 = vmatpush1.bf16.msra.mxu0 0
    %1841 = vmatprep.subr.bf16.mxu0 0
    %1842 = vmatpush1.bf16.msra.mxu0 0
    %1843 = vmatprep.subr.bf16.mxu0 0
    %1844 = vmatpush1.bf16.msra.mxu0 0
    %1845 = vmatprep.subr.bf16.mxu0 0
    %1846 = vmatpush1.bf16.msra.mxu0 0
    %1847 = vmatprep.subr.bf16.mxu0 0
    %1848 = vmatpush1.bf16.msra.mxu0 0
    %1849 = vmatprep.mubr.bf16.mxu0 0
    %1850 = vmatmul.mubr.bf16.gmra.mrb[0].mxu0 %v400
    %v1851 = vpop.f32.mrb[0].mxu0
    %v1852 = vadd.f32 0.0, %v1851
    %v1853 = vpop.f32.mrb[0].mxu0
    %v1854 = vadd.f32 0.0, %v1853
    %v1855 = vpop.f32.mrb[0].mxu0
    %v1856 = vadd.f32 0.0, %v1855
    %v1857 = vpop.f32.mrb[0].mxu0
    %v1858 = vadd.f32 0.0, %v1857
    %1859 = vmatprep.mubr.bf16.mxu0 0
    %1860 = vmatmul.mubr.bf16.gmra.mrb[0].mxu0 %v403
    %v1861 = vpop.f32.mrb[0].mxu0
    %v1862 = vadd.f32 0.0, %v1861
    %v1863 = vpop.f32.mrb[0].mxu0
    %v1864 = vadd.f32 0.0, %v1863
    %v1865 = vpop.f32.mrb[0].mxu0
    %v1866 = vadd.f32 0.0, %v1865
    %v1867 = vpop.f32.mrb[0].mxu0
    %v1868 = vadd.f32 0.0, %v1867
    %1869 = vmatprep.mubr.bf16.mxu0 0
    %1870 = vmatmul.mubr.bf16.gmra.mrb[0].mxu0 %v406
    %v1871 = vpop.f32.mrb[0].mxu0
    %v1872 = vadd.f32 0.0, %v1871
    %v1873 = vpop.f32.mrb[0].mxu0
    %v1874 = vadd.f32 0.0, %v1873
    %v1875 = vpop.f32.mrb[0].mxu0
    %v1876 = vadd.f32 0.0, %v1875
    %v1877 = vpop.f32.mrb[0].mxu0
    %v1878 = vadd.f32 0.0, %v1877
    %1879 = vmatprep.mubr.bf16.mxu0 0
    %1880 = vmatmul.mubr.bf16.gmra.mrb[0].mxu0 %v409
    %v1881 = vpop.f32.mrb[0].mxu0
    %v1882 = vadd.f32 0.0, %v1881
    %v1883 = vpop.f32.mrb[0].mxu0
    %v1884 = vadd.f32 0.0, %v1883
    %v1885 = vpop.f32.mrb[0].mxu0
    %v1886 = vadd.f32 0.0, %v1885
    %v1887 = vpop.f32.mrb[0].mxu0
    %v1888 = vadd.f32 0.0, %v1887
    %1889 = vmatprep.mubr.bf16.mxu0 0
    %1890 = vmatmul.mubr.bf16.gmra.mrb[0].mxu0 %v412
    %v1891 = vpop.f32.mrb[0].mxu0
    %v1892 = vadd.f32 0.0, %v1891
    %v1893 = vpop.f32.mrb[0].mxu0
    %v1894 = vadd.f32 0.0, %v1893
    %v1895 = vpop.f32.mrb[0].mxu0
    %v1896 = vadd.f32 0.0, %v1895
    %v1897 = vpop.f32.mrb[0].mxu0
    %v1898 = vadd.f32 0.0, %v1897
    %1899 = vmatprep.mubr.bf16.mxu0 0
    %1900 = vmatmul.mubr.bf16.gmra.mrb[0].mxu0 %v415
    %v1901 = vpop.f32.mrb[0].mxu0
    %v1902 = vadd.f32 0.0, %v1901
    %v1903 = vpop.f32.mrb[0].mxu0
    %v1904 = vadd.f32 0.0, %v1903
    %v1905 = vpop.f32.mrb[0].mxu0
    %v1906 = vadd.f32 0.0, %v1905
    %v1907 = vpop.f32.mrb[0].mxu0
    %v1908 = vadd.f32 0.0, %v1907
    %1909 = vmatprep.mubr.bf16.mxu0 0
    %1910 = vmatmul.mubr.bf16.gmra.mrb[0].mxu0 %v418
    %v1911 = vpop.f32.mrb[0].mxu0
    %v1912 = vadd.f32 0.0, %v1911
    %v1913 = vpop.f32.mrb[0].mxu0
    %v1914 = vadd.f32 0.0, %v1913
    %v1915 = vpop.f32.mrb[0].mxu0
    %v1916 = vadd.f32 0.0, %v1915
    %v1917 = vpop.f32.mrb[0].mxu0
    %v1918 = vadd.f32 0.0, %v1917
    %1919 = vmatprep.mubr.bf16.mxu0 0
    %1920 = vmatmul.mubr.bf16.gmra.mrb[0].mxu0 %v421
    %v1921 = vpop.f32.mrb[0].mxu0
    %v1922 = vadd.f32 0.0, %v1921
    %v1923 = vpop.f32.mrb[0].mxu0
    %v1924 = vadd.f32 0.0, %v1923
    %v1925 = vpop.f32.mrb[0].mxu0
    %v1926 = vadd.f32 0.0, %v1925
    %v1927 = vpop.f32.mrb[0].mxu0
    %v1928 = vadd.f32 0.0, %v1927
    %1929 = vmatprep.mubr.bf16.mxu0 0
    %1930 = vmatmul.mubr.bf16.gmra.mrb[0].mxu0 %v424
    %v1931 = vpop.f32.mrb[0].mxu0
    %v1932 = vadd.f32 0.0, %v1931
    %v1933 = vpop.f32.mrb[0].mxu0
    %v1934 = vadd.f32 0.0, %v1933
    %v1935 = vpop.f32.mrb[0].mxu0
    %v1936 = vadd.f32 0.0, %v1935
    %v1937 = vpop.f32.mrb[0].mxu0
    %v1938 = vadd.f32 0.0, %v1937
    %1939 = vmatprep.mubr.bf16.mxu0 0
    %1940 = vmatmul.mubr.bf16.gmra.mrb[0].mxu0 %v427
    %v1941 = vpop.f32.mrb[0].mxu0
    %v1942 = vadd.f32 0.0, %v1941
    %v1943 = vpop.f32.mrb[0].mxu0
    %v1944 = vadd.f32 0.0, %v1943
    %v1945 = vpop.f32.mrb[0].mxu0
    %v1946 = vadd.f32 0.0, %v1945
    %v1947 = vpop.f32.mrb[0].mxu0
    %v1948 = vadd.f32 0.0, %v1947
    %1949 = vmatprep.mubr.bf16.mxu0 0
    %1950 = vmatmul.mubr.bf16.gmra.mrb[0].mxu0 %v430
    %v1951 = vpop.f32.mrb[0].mxu0
    %v1952 = vadd.f32 0.0, %v1951
    %v1953 = vpop.f32.mrb[0].mxu0
    %v1954 = vadd.f32 0.0, %v1953
    %v1955 = vpop.f32.mrb[0].mxu0
    %v1956 = vadd.f32 0.0, %v1955
    %v1957 = vpop.f32.mrb[0].mxu0
    %v1958 = vadd.f32 0.0, %v1957
    %1959 = vmatprep.mubr.bf16.mxu0 0
    %1960 = vmatmul.mubr.bf16.gmra.mrb[0].mxu0 %v433
    %v1961 = vpop.f32.mrb[0].mxu0
    %v1962 = vadd.f32 0.0, %v1961
    %v1963 = vpop.f32.mrb[0].mxu0
    %v1964 = vadd.f32 0.0, %v1963
    %v1965 = vpop.f32.mrb[0].mxu0
    %v1966 = vadd.f32 0.0, %v1965
    %v1967 = vpop.f32.mrb[0].mxu0
    %v1968 = vadd.f32 0.0, %v1967
    %1969 = vmatprep.mubr.bf16.mxu0 0
    %1970 = vmatmul.mubr.bf16.gmra.mrb[0].mxu0 %v436
    %v1971 = vpop.f32.mrb[0].mxu0
    %v1972 = vadd.f32 0.0, %v1971
    %v1973 = vpop.f32.mrb[0].mxu0
    %v1974 = vadd.f32 0.0, %v1973
    %v1975 = vpop.f32.mrb[0].mxu0
    %v1976 = vadd.f32 0.0, %v1975
    %v1977 = vpop.f32.mrb[0].mxu0
    %v1978 = vadd.f32 0.0, %v1977
    %1979 = vmatprep.mubr.bf16.mxu0 0
    %1980 = vmatmul.mubr.bf16.gmra.mrb[0].mxu0 %v439
    %v1981 = vpop.f32.mrb[0].mxu0
    %v1982 = vadd.f32 0.0, %v1981
    %v1983 = vpop.f32.mrb[0].mxu0
    %v1984 = vadd.f32 0.0, %v1983
    %v1985 = vpop.f32.mrb[0].mxu0
    %v1986 = vadd.f32 0.0, %v1985
    %v1987 = vpop.f32.mrb[0].mxu0
    %v1988 = vadd.f32 0.0, %v1987
    %1989 = vdwg.mxu0
    %v1990 = vmax.f32 %v1339, %v1679
    %v1991 = vmax.f32 %v1340, %v1681
    %v1992 = vmax.f32 %v1341, %v1852
    %v1993 = vmax.f32 %v1342, %v1854
    %v1994 = vmax.f32 %v1343, %v1683
    %v1995 = vmax.f32 %v1344, %v1685
    %v1996 = vmax.f32 %v1345, %v1856
    %v1997 = vmax.f32 %v1346, %v1858
    %v1998 = vmax.f32 %v1347, %v1689
    %v1999 = vmax.f32 %v1348, %v1691
    %v2000 = vmax.f32 %v1349, %v1862
    %v2001 = vmax.f32 %v1350, %v1864
    %v2002 = vmax.f32 %v1351, %v1693
    %v2003 = vmax.f32 %v1352, %v1695
    %v2004 = vmax.f32 %v1353, %v1866
    %v2005 = vmax.f32 %v1354, %v1868
    %v2006 = vmax.f32 %v1355, %v1699
    %v2007 = vmax.f32 %v1356, %v1701
    %v2008 = vmax.f32 %v1357, %v1872
    %v2009 = vmax.f32 %v1358, %v1874
    %v2010 = vmax.f32 %v1359, %v1703
    %v2011 = vmax.f32 %v1360, %v1705
    %v2012 = vmax.f32 %v1361, %v1876
    %v2013 = vmax.f32 %v1362, %v1878
    %v2014 = vmax.f32 %v1363, %v1709
    %v2015 = vmax.f32 %v1364, %v1711
    %v2016 = vmax.f32 %v1365, %v1882
    %v2017 = vmax.f32 %v1366, %v1884
    %v2018 = vmax.f32 %v1367, %v1713
    %v2019 = vmax.f32 %v1368, %v1715
    %v2020 = vmax.f32 %v1369, %v1886
    %v2021 = vmax.f32 %v1370, %v1888
    %v2022 = vmax.f32 %v1371, %v1719
    %v2023 = vmax.f32 %v1372, %v1721
    %v2024 = vmax.f32 %v1373, %v1892
    %v2025 = vmax.f32 %v1374, %v1894
    %v2026 = vmax.f32 %v1375, %v1723
    %v2027 = vmax.f32 %v1376, %v1725
    %v2028 = vmax.f32 %v1377, %v1896
    %v2029 = vmax.f32 %v1378, %v1898
    %v2030 = vmax.f32 %v1379, %v1729
    %v2031 = vmax.f32 %v1380, %v1731
    %v2032 = vmax.f32 %v1381, %v1902
    %v2033 = vmax.f32 %v1382, %v1904
    %v2034 = vmax.f32 %v1383, %v1733
    %v2035 = vmax.f32 %v1384, %v1735
    %v2036 = vmax.f32 %v1385, %v1906
    %v2037 = vmax.f32 %v1386, %v1908
    %v2038 = vmax.f32 %v1387, %v1739
    %v2039 = vmax.f32 %v1388, %v1741
    %v2040 = vmax.f32 %v1389, %v1912
    %v2041 = vmax.f32 %v1390, %v1914
    %v2042 = vmax.f32 %v1391, %v1743
    %v2043 = vmax.f32 %v1392, %v1745
    %v2044 = vmax.f32 %v1393, %v1916
    %v2045 = vmax.f32 %v1394, %v1918
    %v2046 = vmax.f32 %v1395, %v1749
    %v2047 = vmax.f32 %v1396, %v1751
    %v2048 = vmax.f32 %v1397, %v1922
    %v2049 = vmax.f32 %v1398, %v1924
    %v2050 = vmax.f32 %v1399, %v1753
    %v2051 = vmax.f32 %v1400, %v1755
    %v2052 = vmax.f32 %v1401, %v1926
    %v2053 = vmax.f32 %v1402, %v1928
    %v2054 = vmax.f32 %v1403, %v1759
    %v2055 = vmax.f32 %v1404, %v1761
    %v2056 = vmax.f32 %v1405, %v1932
    %v2057 = vmax.f32 %v1406, %v1934
    %v2058 = vmax.f32 %v1407, %v1763
    %v2059 = vmax.f32 %v1408, %v1765
    %v2060 = vmax.f32 %v1409, %v1936
    %v2061 = vmax.f32 %v1410, %v1938
    %v2062 = vmax.f32 %v1411, %v1769
    %v2063 = vmax.f32 %v1412, %v1771
    %v2064 = vmax.f32 %v1413, %v1942
    %v2065 = vmax.f32 %v1414, %v1944
    %v2066 = vmax.f32 %v1415, %v1773
    %v2067 = vmax.f32 %v1416, %v1775
    %v2068 = vmax.f32 %v1417, %v1946
    %v2069 = vmax.f32 %v1418, %v1948
    %v2070 = vmax.f32 %v1419, %v1779
    %v2071 = vmax.f32 %v1420, %v1781
    %v2072 = vmax.f32 %v1421, %v1952
    %v2073 = vmax.f32 %v1422, %v1954
    %v2074 = vmax.f32 %v1423, %v1783
    %v2075 = vmax.f32 %v1424, %v1785
    %v2076 = vmax.f32 %v1425, %v1956
    %v2077 = vmax.f32 %v1426, %v1958
    %v2078 = vmax.f32 %v1427, %v1789
    %v2079 = vmax.f32 %v1428, %v1791
    %v2080 = vmax.f32 %v1429, %v1962
    %v2081 = vmax.f32 %v1430, %v1964
    %v2082 = vmax.f32 %v1431, %v1793
    %v2083 = vmax.f32 %v1432, %v1795
    %v2084 = vmax.f32 %v1433, %v1966
    %v2085 = vmax.f32 %v1434, %v1968
    %v2086 = vmax.f32 %v1435, %v1799
    %v2087 = vmax.f32 %v1436, %v1801
    %v2088 = vmax.f32 %v1437, %v1972
    %v2089 = vmax.f32 %v1438, %v1974
    %v2090 = vmax.f32 %v1439, %v1803
    %v2091 = vmax.f32 %v1440, %v1805
    %v2092 = vmax.f32 %v1441, %v1976
    %v2093 = vmax.f32 %v1442, %v1978
    %v2094 = vmax.f32 %v1443, %v1809
    %v2095 = vmax.f32 %v1444, %v1811
    %v2096 = vmax.f32 %v1445, %v1982
    %v2097 = vmax.f32 %v1446, %v1984
    %v2098 = vmax.f32 %v1447, %v1813
    %v2099 = vmax.f32 %v1448, %v1815
    %v2100 = vmax.f32 %v1449, %v1986
    %v2101 = vmax.f32 %v1450, %v1988
    %s2102 = scalar_lea.vmem %s1, 720
    %v2103 = vld [vmem:[%s2102] sm:$0xff]
    %v2104 = vld [vmem:[%s2102 + $0x8] sm:$0xff]
    %v2105 = vld [vmem:[%s2102 + $0x10] sm:$0xff]
    %v2106 = vld [vmem:[%s2102 + $0x18] sm:$0xff]
    %v2107 = vld [vmem:[%s2102 + $0x20] sm:$0xff]
    %v2108 = vld [vmem:[%s2102 + $0x28] sm:$0xff]
    %v2109 = vld [vmem:[%s2102 + $0x30] sm:$0xff]
    %v2110 = vld [vmem:[%s2102 + $0x38] sm:$0xff]
    %v2111 = vld [vmem:[%s2102 + $0x40] sm:$0xff]
    %v2112 = vld [vmem:[%s2102 + $0x48] sm:$0xff]
    %v2113 = vld [vmem:[%s2102 + $0x50] sm:$0xff]
    %v2114 = vld [vmem:[%s2102 + $0x58] sm:$0xff]
    %v2115 = vld [vmem:[%s2102 + $0x60] sm:$0xff]
    %v2116 = vld [vmem:[%s2102 + $0x68] sm:$0xff]
    %v2117 = vld [vmem:[%s2102 + $0x70] sm:$0xff]
    %v2118 = vld [vmem:[%s2102 + $0x78] sm:$0xff]
    %v2119 = vld [vmem:[%s2102 + $0x80] sm:$0xff]
    %v2120 = vld [vmem:[%s2102 + $0x88] sm:$0xff]
    %v2121 = vld [vmem:[%s2102 + $0x90] sm:$0xff]
    %v2122 = vld [vmem:[%s2102 + $0x98] sm:$0xff]
    %v2123 = vld [vmem:[%s2102 + $0xa0] sm:$0xff]
    %v2124 = vld [vmem:[%s2102 + $0xa8] sm:$0xff]
    %v2125 = vld [vmem:[%s2102 + $0xb0] sm:$0xff]
    %v2126 = vld [vmem:[%s2102 + $0xb8] sm:$0xff]
    %v2127 = vld [vmem:[%s2102 + $0xc0] sm:$0xff]
    %v2128 = vld [vmem:[%s2102 + $0xc8] sm:$0xff]
    %v2129 = vld [vmem:[%s2102 + $0xd0] sm:$0xff]
    %v2130 = vld [vmem:[%s2102 + $0xd8] sm:$0xff]
    %v2131 = vld [vmem:[%s2102 + $0xe0] sm:$0xff]
    %v2132 = vld [vmem:[%s2102 + $0xe8] sm:$0xff]
    %v2163 = vunpack.c.l.b16 %v2103
    %v2164 = vunpack.c.h.b16 %v2103
    %v2165 = vunpack.c.l.b16 %v2104
    %v2166 = vunpack.c.h.b16 %v2104
    %v2167 = vunpack.c.l.b16 %v2105
    %v2168 = vunpack.c.h.b16 %v2105
    %v2169 = vunpack.c.l.b16 %v2106
    %v2170 = vunpack.c.h.b16 %v2106
    %v2171 = vunpack.c.l.b16 %v2107
    %v2172 = vunpack.c.h.b16 %v2107
    %v2173 = vunpack.c.l.b16 %v2108
    %v2174 = vunpack.c.h.b16 %v2108
    %v2175 = vunpack.c.l.b16 %v2109
    %v2176 = vunpack.c.h.b16 %v2109
    %v2177 = vunpack.c.l.b16 %v2110
    %v2178 = vunpack.c.h.b16 %v2110
    %v2179 = vunpack.c.l.b16 %v2111
    %v2180 = vunpack.c.h.b16 %v2111
    %v2181 = vunpack.c.l.b16 %v2112
    %v2182 = vunpack.c.h.b16 %v2112
    %v2183 = vunpack.c.l.b16 %v2113
    %v2184 = vunpack.c.h.b16 %v2113
    %v2185 = vunpack.c.l.b16 %v2114
    %v2186 = vunpack.c.h.b16 %v2114
    %v2187 = vunpack.c.l.b16 %v2115
    %v2188 = vunpack.c.h.b16 %v2115
    %v2189 = vunpack.c.l.b16 %v2116
    %v2190 = vunpack.c.h.b16 %v2116
    %v2191 = vunpack.c.l.b16 %v2117
    %v2192 = vunpack.c.h.b16 %v2117
    %v2193 = vunpack.c.l.b16 %v2118
    %v2194 = vunpack.c.h.b16 %v2118
    %v2195 = vunpack.c.l.b16 %v2119
    %v2196 = vunpack.c.h.b16 %v2119
    %v2197 = vunpack.c.l.b16 %v2120
    %v2198 = vunpack.c.h.b16 %v2120
    %v2199 = vunpack.c.l.b16 %v2121
    %v2200 = vunpack.c.h.b16 %v2121
    %v2201 = vunpack.c.l.b16 %v2122
    %v2202 = vunpack.c.h.b16 %v2122
    %v2203 = vunpack.c.l.b16 %v2123
    %v2204 = vunpack.c.h.b16 %v2123
    %v2205 = vunpack.c.l.b16 %v2124
    %v2206 = vunpack.c.h.b16 %v2124
    %v2207 = vunpack.c.l.b16 %v2125
    %v2208 = vunpack.c.h.b16 %v2125
    %v2209 = vunpack.c.l.b16 %v2126
    %v2210 = vunpack.c.h.b16 %v2126
    %v2211 = vunpack.c.l.b16 %v2127
    %v2212 = vunpack.c.h.b16 %v2127
    %v2213 = vunpack.c.l.b16 %v2128
    %v2214 = vunpack.c.h.b16 %v2128
    %v2215 = vunpack.c.l.b16 %v2129
    %v2216 = vunpack.c.h.b16 %v2129
    %v2217 = vunpack.c.l.b16 %v2130
    %v2218 = vunpack.c.h.b16 %v2130
    %v2219 = vunpack.c.l.b16 %v2131
    %v2220 = vunpack.c.h.b16 %v2131
    %v2221 = vunpack.c.l.b16 %v2132
    %v2222 = vunpack.c.h.b16 %v2132
    %v2223 = vpack.c.b16 %v2167, %v2163
    %v2224 = vpack.c.b16 %v2168, %v2164
    %v2225 = vpack.c.b16 %v2169, %v2165
    %v2226 = vpack.c.b16 %v2170, %v2166
    %v2227 = vpack.c.b16 %v2175, %v2171
    %v2228 = vpack.c.b16 %v2176, %v2172
    %v2229 = vpack.c.b16 %v2177, %v2173
    %v2230 = vpack.c.b16 %v2178, %v2174
    %v2231 = vpack.c.b16 %v2183, %v2179
    %v2232 = vpack.c.b16 %v2184, %v2180
    %v2233 = vpack.c.b16 %v2185, %v2181
    %v2234 = vpack.c.b16 %v2186, %v2182
    %v2235 = vpack.c.b16 %v2191, %v2187
    %v2236 = vpack.c.b16 %v2192, %v2188
    %v2237 = vpack.c.b16 %v2193, %v2189
    %v2238 = vpack.c.b16 %v2194, %v2190
    %v2239 = vpack.c.b16 %v2199, %v2195
    %v2240 = vpack.c.b16 %v2200, %v2196
    %v2241 = vpack.c.b16 %v2201, %v2197
    %v2242 = vpack.c.b16 %v2202, %v2198
    %v2243 = vpack.c.b16 %v2207, %v2203
    %v2244 = vpack.c.b16 %v2208, %v2204
    %v2245 = vpack.c.b16 %v2209, %v2205
    %v2246 = vpack.c.b16 %v2210, %v2206
    %v2247 = vpack.c.b16 %v2215, %v2211
    %v2248 = vpack.c.b16 %v2216, %v2212
    %v2249 = vpack.c.b16 %v2217, %v2213
    %v2250 = vpack.c.b16 %v2218, %v2214
    %v2251 = vpack.c.b16 %v2219, %v2219
    %v2252 = vpack.c.b16 %v2220, %v2220
    %v2253 = vpack.c.b16 %v2221, %v2221
    %v2254 = vpack.c.b16 %v2222, %v2222
    %v2284 = vsel %vm441, %v2251, 0
    %v2287 = vsel %vm441, %v2252, 0
    %v2290 = vsel %vm441, %v2253, 0
    %v2293 = vsel %vm441, %v2254, 0
    %2295 = vmatprep.subr.bf16.mxu0 %v2224
    %2296 = vmatpush1.bf16.msra.mxu0 %v2223
    %2297 = vmatprep.subr.bf16.mxu0 %v2228
    %2298 = vmatpush1.bf16.msra.mxu0 %v2227
    %2299 = vmatprep.subr.bf16.mxu0 %v2232
    %2300 = vmatpush1.bf16.msra.mxu0 %v2231
    %2301 = vmatprep.subr.bf16.mxu0 %v2236
    %2302 = vmatpush1.bf16.msra.mxu0 %v2235
    %2303 = vmatprep.subr.bf16.mxu0 %v2240
    %2304 = vmatpush1.bf16.msra.mxu0 %v2239
    %2305 = vmatprep.subr.bf16.mxu0 %v2244
    %2306 = vmatpush1.bf16.msra.mxu0 %v2243
    %2307 = vmatprep.subr.bf16.mxu0 %v2248
    %2308 = vmatpush1.bf16.msra.mxu0 %v2247
    %2309 = vmatprep.subr.bf16.mxu0 %v2287
    %2310 = vmatpush1.bf16.msra.mxu0 %v2284
    %2311 = vmatprep.subr.bf16.mxu0 0
    %2312 = vmatpush1.bf16.msra.mxu0 0
    %2313 = vmatprep.subr.bf16.mxu0 0
    %2314 = vmatpush1.bf16.msra.mxu0 0
    %2315 = vmatprep.subr.bf16.mxu0 0
    %2316 = vmatpush1.bf16.msra.mxu0 0
    %2317 = vmatprep.subr.bf16.mxu0 0
    %2318 = vmatpush1.bf16.msra.mxu0 0
    %2319 = vmatprep.subr.bf16.mxu0 0
    %2320 = vmatpush1.bf16.msra.mxu0 0
    %2321 = vmatprep.subr.bf16.mxu0 0
    %2322 = vmatpush1.bf16.msra.mxu0 0
    %2323 = vmatprep.subr.bf16.mxu0 0
    %2324 = vmatpush1.bf16.msra.mxu0 0
    %2325 = vmatprep.subr.bf16.mxu0 0
    %2326 = vmatpush1.bf16.msra.mxu0 0
    %2327 = vmatprep.mubr.bf16.mxu0 0
    %2328 = vmatmul.mubr.bf16.gmra.mrb[0].mxu0 %v400
    %v2329 = vpop.f32.mrb[0].mxu0
    %v2330 = vadd.f32 0.0, %v2329
    %v2331 = vpop.f32.mrb[0].mxu0
    %v2332 = vadd.f32 0.0, %v2331
    %v2333 = vpop.f32.mrb[0].mxu0
    %v2334 = vadd.f32 0.0, %v2333
    %v2335 = vpop.f32.mrb[0].mxu0
    %v2336 = vadd.f32 0.0, %v2335
    %2337 = vmatprep.mubr.bf16.mxu0 0
    %2338 = vmatmul.mubr.bf16.gmra.mrb[0].mxu0 %v403
    %v2339 = vpop.f32.mrb[0].mxu0
    %v2340 = vadd.f32 0.0, %v2339
    %v2341 = vpop.f32.mrb[0].mxu0
    %v2342 = vadd.f32 0.0, %v2341
    %v2343 = vpop.f32.mrb[0].mxu0
    %v2344 = vadd.f32 0.0, %v2343
    %v2345 = vpop.f32.mrb[0].mxu0
    %v2346 = vadd.f32 0.0, %v2345
    %2347 = vmatprep.mubr.bf16.mxu0 0
    %2348 = vmatmul.mubr.bf16.gmra.mrb[0].mxu0 %v406
    %v2349 = vpop.f32.mrb[0].mxu0
    %v2350 = vadd.f32 0.0, %v2349
    %v2351 = vpop.f32.mrb[0].mxu0
    %v2352 = vadd.f32 0.0, %v2351
    %v2353 = vpop.f32.mrb[0].mxu0
    %v2354 = vadd.f32 0.0, %v2353
    %v2355 = vpop.f32.mrb[0].mxu0
    %v2356 = vadd.f32 0.0, %v2355
    %2357 = vmatprep.mubr.bf16.mxu0 0
    %2358 = vmatmul.mubr.bf16.gmra.mrb[0].mxu0 %v409
    %v2359 = vpop.f32.mrb[0].mxu0
    %v2360 = vadd.f32 0.0, %v2359
    %v2361 = vpop.f32.mrb[0].mxu0
    %v2362 = vadd.f32 0.0, %v2361
    %v2363 = vpop.f32.mrb[0].mxu0
    %v2364 = vadd.f32 0.0, %v2363
    %v2365 = vpop.f32.mrb[0].mxu0
    %v2366 = vadd.f32 0.0, %v2365
    %2367 = vmatprep.mubr.bf16.mxu0 0
    %2368 = vmatmul.mubr.bf16.gmra.mrb[0].mxu0 %v412
    %v2369 = vpop.f32.mrb[0].mxu0
    %v2370 = vadd.f32 0.0, %v2369
    %v2371 = vpop.f32.mrb[0].mxu0
    %v2372 = vadd.f32 0.0, %v2371
    %v2373 = vpop.f32.mrb[0].mxu0
    %v2374 = vadd.f32 0.0, %v2373
    %v2375 = vpop.f32.mrb[0].mxu0
    %v2376 = vadd.f32 0.0, %v2375
    %2377 = vmatprep.mubr.bf16.mxu0 0
    %2378 = vmatmul.mubr.bf16.gmra.mrb[0].mxu0 %v415
    %v2379 = vpop.f32.mrb[0].mxu0
    %v2380 = vadd.f32 0.0, %v2379
    %v2381 = vpop.f32.mrb[0].mxu0
    %v2382 = vadd.f32 0.0, %v2381
    %v2383 = vpop.f32.mrb[0].mxu0
    %v2384 = vadd.f32 0.0, %v2383
    %v2385 = vpop.f32.mrb[0].mxu0
    %v2386 = vadd.f32 0.0, %v2385
    %2387 = vmatprep.mubr.bf16.mxu0 0
    %2388 = vmatmul.mubr.bf16.gmra.mrb[0].mxu0 %v418
    %v2389 = vpop.f32.mrb[0].mxu0
    %v2390 = vadd.f32 0.0, %v2389
    %v2391 = vpop.f32.mrb[0].mxu0
    %v2392 = vadd.f32 0.0, %v2391
    %v2393 = vpop.f32.mrb[0].mxu0
    %v2394 = vadd.f32 0.0, %v2393
    %v2395 = vpop.f32.mrb[0].mxu0
    %v2396 = vadd.f32 0.0, %v2395
    %2397 = vmatprep.mubr.bf16.mxu0 0
    %2398 = vmatmul.mubr.bf16.gmra.mrb[0].mxu0 %v421
    %v2399 = vpop.f32.mrb[0].mxu0
    %v2400 = vadd.f32 0.0, %v2399
    %v2401 = vpop.f32.mrb[0].mxu0
    %v2402 = vadd.f32 0.0, %v2401
    %v2403 = vpop.f32.mrb[0].mxu0
    %v2404 = vadd.f32 0.0, %v2403
    %v2405 = vpop.f32.mrb[0].mxu0
    %v2406 = vadd.f32 0.0, %v2405
    %2407 = vmatprep.mubr.bf16.mxu0 0
    %2408 = vmatmul.mubr.bf16.gmra.mrb[0].mxu0 %v424
    %v2409 = vpop.f32.mrb[0].mxu0
    %v2410 = vadd.f32 0.0, %v2409
    %v2411 = vpop.f32.mrb[0].mxu0
    %v2412 = vadd.f32 0.0, %v2411
    %v2413 = vpop.f32.mrb[0].mxu0
    %v2414 = vadd.f32 0.0, %v2413
    %v2415 = vpop.f32.mrb[0].mxu0
    %v2416 = vadd.f32 0.0, %v2415
    %2417 = vmatprep.mubr.bf16.mxu0 0
    %2418 = vmatmul.mubr.bf16.gmra.mrb[0].mxu0 %v427
    %v2419 = vpop.f32.mrb[0].mxu0
    %v2420 = vadd.f32 0.0, %v2419
    %v2421 = vpop.f32.mrb[0].mxu0
    %v2422 = vadd.f32 0.0, %v2421
    %v2423 = vpop.f32.mrb[0].mxu0
    %v2424 = vadd.f32 0.0, %v2423
    %v2425 = vpop.f32.mrb[0].mxu0
    %v2426 = vadd.f32 0.0, %v2425
    %2427 = vmatprep.mubr.bf16.mxu0 0
    %2428 = vmatmul.mubr.bf16.gmra.mrb[0].mxu0 %v430
    %v2429 = vpop.f32.mrb[0].mxu0
    %v2430 = vadd.f32 0.0, %v2429
    %v2431 = vpop.f32.mrb[0].mxu0
    %v2432 = vadd.f32 0.0, %v2431
    %v2433 = vpop.f32.mrb[0].mxu0
    %v2434 = vadd.f32 0.0, %v2433
    %v2435 = vpop.f32.mrb[0].mxu0
    %v2436 = vadd.f32 0.0, %v2435
    %2437 = vmatprep.mubr.bf16.mxu0 0
    %2438 = vmatmul.mubr.bf16.gmra.mrb[0].mxu0 %v433
    %v2439 = vpop.f32.mrb[0].mxu0
    %v2440 = vadd.f32 0.0, %v2439
    %v2441 = vpop.f32.mrb[0].mxu0
    %v2442 = vadd.f32 0.0, %v2441
    %v2443 = vpop.f32.mrb[0].mxu0
    %v2444 = vadd.f32 0.0, %v2443
    %v2445 = vpop.f32.mrb[0].mxu0
    %v2446 = vadd.f32 0.0, %v2445
    %2447 = vmatprep.mubr.bf16.mxu0 0
    %2448 = vmatmul.mubr.bf16.gmra.mrb[0].mxu0 %v436
    %v2449 = vpop.f32.mrb[0].mxu0
    %v2450 = vadd.f32 0.0, %v2449
    %v2451 = vpop.f32.mrb[0].mxu0
    %v2452 = vadd.f32 0.0, %v2451
    %v2453 = vpop.f32.mrb[0].mxu0
    %v2454 = vadd.f32 0.0, %v2453
    %v2455 = vpop.f32.mrb[0].mxu0
    %v2456 = vadd.f32 0.0, %v2455
    %2457 = vmatprep.mubr.bf16.mxu0 0
    %2458 = vmatmul.mubr.bf16.gmra.mrb[0].mxu0 %v439
    %v2459 = vpop.f32.mrb[0].mxu0
    %v2460 = vadd.f32 0.0, %v2459
    %v2461 = vpop.f32.mrb[0].mxu0
    %v2462 = vadd.f32 0.0, %v2461
    %v2463 = vpop.f32.mrb[0].mxu0
    %v2464 = vadd.f32 0.0, %v2463
    %v2465 = vpop.f32.mrb[0].mxu0
    %v2466 = vadd.f32 0.0, %v2465
    %2467 = vdwg.mxu0
    %2468 = vmatprep.subr.bf16.mxu0 %v2226
    %2469 = vmatpush1.bf16.msra.mxu0 %v2225
    %2470 = vmatprep.subr.bf16.mxu0 %v2230
    %2471 = vmatpush1.bf16.msra.mxu0 %v2229
    %2472 = vmatprep.subr.bf16.mxu0 %v2234
    %2473 = vmatpush1.bf16.msra.mxu0 %v2233
    %2474 = vmatprep.subr.bf16.mxu0 %v2238
    %2475 = vmatpush1.bf16.msra.mxu0 %v2237
    %2476 = vmatprep.subr.bf16.mxu0 %v2242
    %2477 = vmatpush1.bf16.msra.mxu0 %v2241
    %2478 = vmatprep.subr.bf16.mxu0 %v2246
    %2479 = vmatpush1.bf16.msra.mxu0 %v2245
    %2480 = vmatprep.subr.bf16.mxu0 %v2250
    %2481 = vmatpush1.bf16.msra.mxu0 %v2249
    %2482 = vmatprep.subr.bf16.mxu0 %v2293
    %2483 = vmatpush1.bf16.msra.mxu0 %v2290
    %2484 = vmatprep.subr.bf16.mxu0 0
    %2485 = vmatpush1.bf16.msra.mxu0 0
    %2486 = vmatprep.subr.bf16.mxu0 0
    %2487 = vmatpush1.bf16.msra.mxu0 0
    %2488 = vmatprep.subr.bf16.mxu0 0
    %2489 = vmatpush1.bf16.msra.mxu0 0
    %2490 = vmatprep.subr.bf16.mxu0 0
    %2491 = vmatpush1.bf16.msra.mxu0 0
    %2492 = vmatprep.subr.bf16.mxu0 0
    %2493 = vmatpush1.bf16.msra.mxu0 0
    %2494 = vmatprep.subr.bf16.mxu0 0
    %2495 = vmatpush1.bf16.msra.mxu0 0
    %2496 = vmatprep.subr.bf16.mxu0 0
    %2497 = vmatpush1.bf16.msra.mxu0 0
    %2498 = vmatprep.subr.bf16.mxu0 0
    %2499 = vmatpush1.bf16.msra.mxu0 0
    %2500 = vmatprep.mubr.bf16.mxu0 0
    %2501 = vmatmul.mubr.bf16.gmra.mrb[0].mxu0 %v400
    %v2502 = vpop.f32.mrb[0].mxu0
    %v2503 = vadd.f32 0.0, %v2502
    %v2504 = vpop.f32.mrb[0].mxu0
    %v2505 = vadd.f32 0.0, %v2504
    %v2506 = vpop.f32.mrb[0].mxu0
    %v2507 = vadd.f32 0.0, %v2506
    %v2508 = vpop.f32.mrb[0].mxu0
    %v2509 = vadd.f32 0.0, %v2508
    %2510 = vmatprep.mubr.bf16.mxu0 0
    %2511 = vmatmul.mubr.bf16.gmra.mrb[0].mxu0 %v403
    %v2512 = vpop.f32.mrb[0].mxu0
    %v2513 = vadd.f32 0.0, %v2512
    %v2514 = vpop.f32.mrb[0].mxu0
    %v2515 = vadd.f32 0.0, %v2514
    %v2516 = vpop.f32.mrb[0].mxu0
    %v2517 = vadd.f32 0.0, %v2516
    %v2518 = vpop.f32.mrb[0].mxu0
    %v2519 = vadd.f32 0.0, %v2518
    %2520 = vmatprep.mubr.bf16.mxu0 0
    %2521 = vmatmul.mubr.bf16.gmra.mrb[0].mxu0 %v406
    %v2522 = vpop.f32.mrb[0].mxu0
    %v2523 = vadd.f32 0.0, %v2522
    %v2524 = vpop.f32.mrb[0].mxu0
    %v2525 = vadd.f32 0.0, %v2524
    %v2526 = vpop.f32.mrb[0].mxu0
    %v2527 = vadd.f32 0.0, %v2526
    %v2528 = vpop.f32.mrb[0].mxu0
    %v2529 = vadd.f32 0.0, %v2528
    %2530 = vmatprep.mubr.bf16.mxu0 0
    %2531 = vmatmul.mubr.bf16.gmra.mrb[0].mxu0 %v409
    %v2532 = vpop.f32.mrb[0].mxu0
    %v2533 = vadd.f32 0.0, %v2532
    %v2534 = vpop.f32.mrb[0].mxu0
    %v2535 = vadd.f32 0.0, %v2534
    %v2536 = vpop.f32.mrb[0].mxu0
    %v2537 = vadd.f32 0.0, %v2536
    %v2538 = vpop.f32.mrb[0].mxu0
    %v2539 = vadd.f32 0.0, %v2538
    %2540 = vmatprep.mubr.bf16.mxu0 0
    %2541 = vmatmul.mubr.bf16.gmra.mrb[0].mxu0 %v412
    %v2542 = vpop.f32.mrb[0].mxu0
    %v2543 = vadd.f32 0.0, %v2542
    %v2544 = vpop.f32.mrb[0].mxu0
    %v2545 = vadd.f32 0.0, %v2544
    %v2546 = vpop.f32.mrb[0].mxu0
    %v2547 = vadd.f32 0.0, %v2546
    %v2548 = vpop.f32.mrb[0].mxu0
    %v2549 = vadd.f32 0.0, %v2548
    %2550 = vmatprep.mubr.bf16.mxu0 0
    %2551 = vmatmul.mubr.bf16.gmra.mrb[0].mxu0 %v415
    %v2552 = vpop.f32.mrb[0].mxu0
    %v2553 = vadd.f32 0.0, %v2552
    %v2554 = vpop.f32.mrb[0].mxu0
    %v2555 = vadd.f32 0.0, %v2554
    %v2556 = vpop.f32.mrb[0].mxu0
    %v2557 = vadd.f32 0.0, %v2556
    %v2558 = vpop.f32.mrb[0].mxu0
    %v2559 = vadd.f32 0.0, %v2558
    %2560 = vmatprep.mubr.bf16.mxu0 0
    %2561 = vmatmul.mubr.bf16.gmra.mrb[0].mxu0 %v418
    %v2562 = vpop.f32.mrb[0].mxu0
    %v2563 = vadd.f32 0.0, %v2562
    %v2564 = vpop.f32.mrb[0].mxu0
    %v2565 = vadd.f32 0.0, %v2564
    %v2566 = vpop.f32.mrb[0].mxu0
    %v2567 = vadd.f32 0.0, %v2566
    %v2568 = vpop.f32.mrb[0].mxu0
    %v2569 = vadd.f32 0.0, %v2568
    %2570 = vmatprep.mubr.bf16.mxu0 0
    %2571 = vmatmul.mubr.bf16.gmra.mrb[0].mxu0 %v421
    %v2572 = vpop.f32.mrb[0].mxu0
    %v2573 = vadd.f32 0.0, %v2572
    %v2574 = vpop.f32.mrb[0].mxu0
    %v2575 = vadd.f32 0.0, %v2574
    %v2576 = vpop.f32.mrb[0].mxu0
    %v2577 = vadd.f32 0.0, %v2576
    %v2578 = vpop.f32.mrb[0].mxu0
    %v2579 = vadd.f32 0.0, %v2578
    %2580 = vmatprep.mubr.bf16.mxu0 0
    %2581 = vmatmul.mubr.bf16.gmra.mrb[0].mxu0 %v424
    %v2582 = vpop.f32.mrb[0].mxu0
    %v2583 = vadd.f32 0.0, %v2582
    %v2584 = vpop.f32.mrb[0].mxu0
    %v2585 = vadd.f32 0.0, %v2584
    %v2586 = vpop.f32.mrb[0].mxu0
    %v2587 = vadd.f32 0.0, %v2586
    %v2588 = vpop.f32.mrb[0].mxu0
    %v2589 = vadd.f32 0.0, %v2588
    %2590 = vmatprep.mubr.bf16.mxu0 0
    %2591 = vmatmul.mubr.bf16.gmra.mrb[0].mxu0 %v427
    %v2592 = vpop.f32.mrb[0].mxu0
    %v2593 = vadd.f32 0.0, %v2592
    %v2594 = vpop.f32.mrb[0].mxu0
    %v2595 = vadd.f32 0.0, %v2594
    %v2596 = vpop.f32.mrb[0].mxu0
    %v2597 = vadd.f32 0.0, %v2596
    %v2598 = vpop.f32.mrb[0].mxu0
    %v2599 = vadd.f32 0.0, %v2598
    %2600 = vmatprep.mubr.bf16.mxu0 0
    %2601 = vmatmul.mubr.bf16.gmra.mrb[0].mxu0 %v430
    %v2602 = vpop.f32.mrb[0].mxu0
    %v2603 = vadd.f32 0.0, %v2602
    %v2604 = vpop.f32.mrb[0].mxu0
    %v2605 = vadd.f32 0.0, %v2604
    %v2606 = vpop.f32.mrb[0].mxu0
    %v2607 = vadd.f32 0.0, %v2606
    %v2608 = vpop.f32.mrb[0].mxu0
    %v2609 = vadd.f32 0.0, %v2608
    %2610 = vmatprep.mubr.bf16.mxu0 0
    %2611 = vmatmul.mubr.bf16.gmra.mrb[0].mxu0 %v433
    %v2612 = vpop.f32.mrb[0].mxu0
    %v2613 = vadd.f32 0.0, %v2612
    %v2614 = vpop.f32.mrb[0].mxu0
    %v2615 = vadd.f32 0.0, %v2614
    %v2616 = vpop.f32.mrb[0].mxu0
    %v2617 = vadd.f32 0.0, %v2616
    %v2618 = vpop.f32.mrb[0].mxu0
    %v2619 = vadd.f32 0.0, %v2618
    %2620 = vmatprep.mubr.bf16.mxu0 0
    %2621 = vmatmul.mubr.bf16.gmra.mrb[0].mxu0 %v436
    %v2622 = vpop.f32.mrb[0].mxu0
    %v2623 = vadd.f32 0.0, %v2622
    %v2624 = vpop.f32.mrb[0].mxu0
    %v2625 = vadd.f32 0.0, %v2624
    %v2626 = vpop.f32.mrb[0].mxu0
    %v2627 = vadd.f32 0.0, %v2626
    %v2628 = vpop.f32.mrb[0].mxu0
    %v2629 = vadd.f32 0.0, %v2628
    %2630 = vmatprep.mubr.bf16.mxu0 0
    %2631 = vmatmul.mubr.bf16.gmra.mrb[0].mxu0 %v439
    %v2632 = vpop.f32.mrb[0].mxu0
    %v2633 = vadd.f32 0.0, %v2632
    %v2634 = vpop.f32.mrb[0].mxu0
    %v2635 = vadd.f32 0.0, %v2634
    %v2636 = vpop.f32.mrb[0].mxu0
    %v2637 = vadd.f32 0.0, %v2636
    %v2638 = vpop.f32.mrb[0].mxu0
    %v2639 = vadd.f32 0.0, %v2638
    %2640 = vdwg.mxu0
    %v2641 = vmax.f32 %v1990, %v2330
    %v2642 = vmax.f32 %v1991, %v2332
    %v2643 = vmax.f32 %v1992, %v2503
    %v2644 = vmax.f32 %v1993, %v2505
    %v2645 = vmax.f32 %v1994, %v2334
    %v2646 = vmax.f32 %v1995, %v2336
    %v2647 = vmax.f32 %v1996, %v2507
    %v2648 = vmax.f32 %v1997, %v2509
    %v2649 = vmax.f32 %v1998, %v2340
    %v2650 = vmax.f32 %v1999, %v2342
    %v2651 = vmax.f32 %v2000, %v2513
    %v2652 = vmax.f32 %v2001, %v2515
    %v2653 = vmax.f32 %v2002, %v2344
    %v2654 = vmax.f32 %v2003, %v2346
    %v2655 = vmax.f32 %v2004, %v2517
    %v2656 = vmax.f32 %v2005, %v2519
    %v2657 = vmax.f32 %v2006, %v2350
    %v2658 = vmax.f32 %v2007, %v2352
    %v2659 = vmax.f32 %v2008, %v2523
    %v2660 = vmax.f32 %v2009, %v2525
    %v2661 = vmax.f32 %v2010, %v2354
    %v2662 = vmax.f32 %v2011, %v2356
    %v2663 = vmax.f32 %v2012, %v2527
    %v2664 = vmax.f32 %v2013, %v2529
    %v2665 = vmax.f32 %v2014, %v2360
    %v2666 = vmax.f32 %v2015, %v2362
    %v2667 = vmax.f32 %v2016, %v2533
    %v2668 = vmax.f32 %v2017, %v2535
    %v2669 = vmax.f32 %v2018, %v2364
    %v2670 = vmax.f32 %v2019, %v2366
    %v2671 = vmax.f32 %v2020, %v2537
    %v2672 = vmax.f32 %v2021, %v2539
    %v2673 = vmax.f32 %v2022, %v2370
    %v2674 = vmax.f32 %v2023, %v2372
    %v2675 = vmax.f32 %v2024, %v2543
    %v2676 = vmax.f32 %v2025, %v2545
    %v2677 = vmax.f32 %v2026, %v2374
    %v2678 = vmax.f32 %v2027, %v2376
    %v2679 = vmax.f32 %v2028, %v2547
    %v2680 = vmax.f32 %v2029, %v2549
    %v2681 = vmax.f32 %v2030, %v2380
    %v2682 = vmax.f32 %v2031, %v2382
    %v2683 = vmax.f32 %v2032, %v2553
    %v2684 = vmax.f32 %v2033, %v2555
    %v2685 = vmax.f32 %v2034, %v2384
    %v2686 = vmax.f32 %v2035, %v2386
    %v2687 = vmax.f32 %v2036, %v2557
    %v2688 = vmax.f32 %v2037, %v2559
    %v2689 = vmax.f32 %v2038, %v2390
    %v2690 = vmax.f32 %v2039, %v2392
    %v2691 = vmax.f32 %v2040, %v2563
    %v2692 = vmax.f32 %v2041, %v2565
    %v2693 = vmax.f32 %v2042, %v2394
    %v2694 = vmax.f32 %v2043, %v2396
    %v2695 = vmax.f32 %v2044, %v2567
    %v2696 = vmax.f32 %v2045, %v2569
    %v2697 = vmax.f32 %v2046, %v2400
    %v2698 = vmax.f32 %v2047, %v2402
    %v2699 = vmax.f32 %v2048, %v2573
    %v2700 = vmax.f32 %v2049, %v2575
    %v2701 = vmax.f32 %v2050, %v2404
    %v2702 = vmax.f32 %v2051, %v2406
    %v2703 = vmax.f32 %v2052, %v2577
    %v2704 = vmax.f32 %v2053, %v2579
    %v2705 = vmax.f32 %v2054, %v2410
    %v2706 = vmax.f32 %v2055, %v2412
    %v2707 = vmax.f32 %v2056, %v2583
    %v2708 = vmax.f32 %v2057, %v2585
    %v2709 = vmax.f32 %v2058, %v2414
    %v2710 = vmax.f32 %v2059, %v2416
    %v2711 = vmax.f32 %v2060, %v2587
    %v2712 = vmax.f32 %v2061, %v2589
    %v2713 = vmax.f32 %v2062, %v2420
    %v2714 = vmax.f32 %v2063, %v2422
    %v2715 = vmax.f32 %v2064, %v2593
    %v2716 = vmax.f32 %v2065, %v2595
    %v2717 = vmax.f32 %v2066, %v2424
    %v2718 = vmax.f32 %v2067, %v2426
    %v2719 = vmax.f32 %v2068, %v2597
    %v2720 = vmax.f32 %v2069, %v2599
    %v2721 = vmax.f32 %v2070, %v2430
    %v2722 = vmax.f32 %v2071, %v2432
    %v2723 = vmax.f32 %v2072, %v2603
    %v2724 = vmax.f32 %v2073, %v2605
    %v2725 = vmax.f32 %v2074, %v2434
    %v2726 = vmax.f32 %v2075, %v2436
    %v2727 = vmax.f32 %v2076, %v2607
    %v2728 = vmax.f32 %v2077, %v2609
    %v2729 = vmax.f32 %v2078, %v2440
    %v2730 = vmax.f32 %v2079, %v2442
    %v2731 = vmax.f32 %v2080, %v2613
    %v2732 = vmax.f32 %v2081, %v2615
    %v2733 = vmax.f32 %v2082, %v2444
    %v2734 = vmax.f32 %v2083, %v2446
    %v2735 = vmax.f32 %v2084, %v2617
    %v2736 = vmax.f32 %v2085, %v2619
    %v2737 = vmax.f32 %v2086, %v2450
    %v2738 = vmax.f32 %v2087, %v2452
    %v2739 = vmax.f32 %v2088, %v2623
    %v2740 = vmax.f32 %v2089, %v2625
    %v2741 = vmax.f32 %v2090, %v2454
    %v2742 = vmax.f32 %v2091, %v2456
    %v2743 = vmax.f32 %v2092, %v2627
    %v2744 = vmax.f32 %v2093, %v2629
    %v2745 = vmax.f32 %v2094, %v2460
    %v2746 = vmax.f32 %v2095, %v2462
    %v2747 = vmax.f32 %v2096, %v2633
    %v2748 = vmax.f32 %v2097, %v2635
    %v2749 = vmax.f32 %v2098, %v2464
    %v2750 = vmax.f32 %v2099, %v2466
    %v2751 = vmax.f32 %v2100, %v2637
    %v2752 = vmax.f32 %v2101, %v2639
    %v2753 = vld [vmem:[#allocation2] sm:$0xf]
    %v2755 = vlaneseq
    %v2756 = vshrl.u32 %v2755, 7
    %v2757 = vsub.s32 0, %v2756
    %v2758 = vrot.slane %v2753, %v2757
    %v2759 = vlaneseq
    %v2760 = vshrl.u32 %v2759, 7
    %v2761 = vsub.s32 1, %v2760
    %v2762 = vrot.slane %v2753, %v2761
    %v2763 = vlaneseq
    %v2764 = vshrl.u32 %v2763, 7
    %v2765 = vsub.s32 2, %v2764
    %v2766 = vrot.slane %v2753, %v2765
    %v2767 = vlaneseq
    %v2768 = vshrl.u32 %v2767, 7
    %v2769 = vsub.s32 3, %v2768
    %v2770 = vrot.slane %v2753, %v2769
    %v2775 = vadd.f32 %v2641, %v2758
    %v2776 = vadd.f32 %v2642, %v2762
    %v2777 = vadd.f32 %v2643, %v2766
    %v2778 = vadd.f32 %v2644, %v2770
    %v2779 = vadd.f32 %v2645, %v2758
    %v2780 = vadd.f32 %v2646, %v2762
    %v2781 = vadd.f32 %v2647, %v2766
    %v2782 = vadd.f32 %v2648, %v2770
    %v2783 = vadd.f32 %v2649, %v2758
    %v2784 = vadd.f32 %v2650, %v2762
    %v2785 = vadd.f32 %v2651, %v2766
    %v2786 = vadd.f32 %v2652, %v2770
    %v2787 = vadd.f32 %v2653, %v2758
    %v2788 = vadd.f32 %v2654, %v2762
    %v2789 = vadd.f32 %v2655, %v2766
    %v2790 = vadd.f32 %v2656, %v2770
    %v2791 = vadd.f32 %v2657, %v2758
    %v2792 = vadd.f32 %v2658, %v2762
    %v2793 = vadd.f32 %v2659, %v2766
    %v2794 = vadd.f32 %v2660, %v2770
    %v2795 = vadd.f32 %v2661, %v2758
    %v2796 = vadd.f32 %v2662, %v2762
    %v2797 = vadd.f32 %v2663, %v2766
    %v2798 = vadd.f32 %v2664, %v2770
    %v2799 = vadd.f32 %v2665, %v2758
    %v2800 = vadd.f32 %v2666, %v2762
    %v2801 = vadd.f32 %v2667, %v2766
    %v2802 = vadd.f32 %v2668, %v2770
    %v2803 = vadd.f32 %v2669, %v2758
    %v2804 = vadd.f32 %v2670, %v2762
    %v2805 = vadd.f32 %v2671, %v2766
    %v2806 = vadd.f32 %v2672, %v2770
    %v2807 = vadd.f32 %v2673, %v2758
    %v2808 = vadd.f32 %v2674, %v2762
    %v2809 = vadd.f32 %v2675, %v2766
    %v2810 = vadd.f32 %v2676, %v2770
    %v2811 = vadd.f32 %v2677, %v2758
    %v2812 = vadd.f32 %v2678, %v2762
    %v2813 = vadd.f32 %v2679, %v2766
    %v2814 = vadd.f32 %v2680, %v2770
    %v2815 = vadd.f32 %v2681, %v2758
    %v2816 = vadd.f32 %v2682, %v2762
    %v2817 = vadd.f32 %v2683, %v2766
    %v2818 = vadd.f32 %v2684, %v2770
    %v2819 = vadd.f32 %v2685, %v2758
    %v2820 = vadd.f32 %v2686, %v2762
    %v2821 = vadd.f32 %v2687, %v2766
    %v2822 = vadd.f32 %v2688, %v2770
    %v2823 = vadd.f32 %v2689, %v2758
    %v2824 = vadd.f32 %v2690, %v2762
    %v2825 = vadd.f32 %v2691, %v2766
    %v2826 = vadd.f32 %v2692, %v2770
    %v2827 = vadd.f32 %v2693, %v2758
    %v2828 = vadd.f32 %v2694, %v2762
    %v2829 = vadd.f32 %v2695, %v2766
    %v2830 = vadd.f32 %v2696, %v2770
    %v2831 = vadd.f32 %v2697, %v2758
    %v2832 = vadd.f32 %v2698, %v2762
    %v2833 = vadd.f32 %v2699, %v2766
    %v2834 = vadd.f32 %v2700, %v2770
    %v2835 = vadd.f32 %v2701, %v2758
    %v2836 = vadd.f32 %v2702, %v2762
    %v2837 = vadd.f32 %v2703, %v2766
    %v2838 = vadd.f32 %v2704, %v2770
    %v2839 = vadd.f32 %v2705, %v2758
    %v2840 = vadd.f32 %v2706, %v2762
    %v2841 = vadd.f32 %v2707, %v2766
    %v2842 = vadd.f32 %v2708, %v2770
    %v2843 = vadd.f32 %v2709, %v2758
    %v2844 = vadd.f32 %v2710, %v2762
    %v2845 = vadd.f32 %v2711, %v2766
    %v2846 = vadd.f32 %v2712, %v2770
    %v2847 = vadd.f32 %v2713, %v2758
    %v2848 = vadd.f32 %v2714, %v2762
    %v2849 = vadd.f32 %v2715, %v2766
    %v2850 = vadd.f32 %v2716, %v2770
    %v2851 = vadd.f32 %v2717, %v2758
    %v2852 = vadd.f32 %v2718, %v2762
    %v2853 = vadd.f32 %v2719, %v2766
    %v2854 = vadd.f32 %v2720, %v2770
    %v2855 = vadd.f32 %v2721, %v2758
    %v2856 = vadd.f32 %v2722, %v2762
    %v2857 = vadd.f32 %v2723, %v2766
    %v2858 = vadd.f32 %v2724, %v2770
    %v2859 = vadd.f32 %v2725, %v2758
    %v2860 = vadd.f32 %v2726, %v2762
    %v2861 = vadd.f32 %v2727, %v2766
    %v2862 = vadd.f32 %v2728, %v2770
    %v2863 = vadd.f32 %v2729, %v2758
    %v2864 = vadd.f32 %v2730, %v2762
    %v2865 = vadd.f32 %v2731, %v2766
    %v2866 = vadd.f32 %v2732, %v2770
    %v2867 = vadd.f32 %v2733, %v2758
    %v2868 = vadd.f32 %v2734, %v2762
    %v2869 = vadd.f32 %v2735, %v2766
    %v2870 = vadd.f32 %v2736, %v2770
    %v2871 = vadd.f32 %v2737, %v2758
    %v2872 = vadd.f32 %v2738, %v2762
    %v2873 = vadd.f32 %v2739, %v2766
    %v2874 = vadd.f32 %v2740, %v2770
    %v2875 = vadd.f32 %v2741, %v2758
    %v2876 = vadd.f32 %v2742, %v2762
    %v2877 = vadd.f32 %v2743, %v2766
    %v2878 = vadd.f32 %v2744, %v2770
    %v2879 = vadd.f32 %v2745, %v2758
    %v2880 = vadd.f32 %v2746, %v2762
    %v2881 = vadd.f32 %v2747, %v2766
    %v2882 = vadd.f32 %v2748, %v2770
    %v2883 = vadd.f32 %v2749, %v2758
    %v2884 = vadd.f32 %v2750, %v2762
    %v2885 = vadd.f32 %v2751, %v2766
    %v2886 = vadd.f32 %v2752, %v2770
    %vm2887 = vcmp.gt.f32.partialorder %v2775, 0.0
    %vm2888 = vcmp.gt.f32.partialorder %v2776, 0.0
    %vm2889 = vcmp.gt.f32.partialorder %v2777, 0.0
    %vm2890 = vcmp.gt.f32.partialorder %v2778, 0.0
    %vm2891 = vcmp.gt.f32.partialorder %v2779, 0.0
    %vm2892 = vcmp.gt.f32.partialorder %v2780, 0.0
    %vm2893 = vcmp.gt.f32.partialorder %v2781, 0.0
    %vm2894 = vcmp.gt.f32.partialorder %v2782, 0.0
    %vm2895 = vcmp.gt.f32.partialorder %v2783, 0.0
    %vm2896 = vcmp.gt.f32.partialorder %v2784, 0.0
    %vm2897 = vcmp.gt.f32.partialorder %v2785, 0.0
    %vm2898 = vcmp.gt.f32.partialorder %v2786, 0.0
    %vm2899 = vcmp.gt.f32.partialorder %v2787, 0.0
    %vm2900 = vcmp.gt.f32.partialorder %v2788, 0.0
    %vm2901 = vcmp.gt.f32.partialorder %v2789, 0.0
    %vm2902 = vcmp.gt.f32.partialorder %v2790, 0.0
    %vm2903 = vcmp.gt.f32.partialorder %v2791, 0.0
    %vm2904 = vcmp.gt.f32.partialorder %v2792, 0.0
    %vm2905 = vcmp.gt.f32.partialorder %v2793, 0.0
    %vm2906 = vcmp.gt.f32.partialorder %v2794, 0.0
    %vm2907 = vcmp.gt.f32.partialorder %v2795, 0.0
    %vm2908 = vcmp.gt.f32.partialorder %v2796, 0.0
    %vm2909 = vcmp.gt.f32.partialorder %v2797, 0.0
    %vm2910 = vcmp.gt.f32.partialorder %v2798, 0.0
    %vm2911 = vcmp.gt.f32.partialorder %v2799, 0.0
    %vm2912 = vcmp.gt.f32.partialorder %v2800, 0.0
    %vm2913 = vcmp.gt.f32.partialorder %v2801, 0.0
    %vm2914 = vcmp.gt.f32.partialorder %v2802, 0.0
    %vm2915 = vcmp.gt.f32.partialorder %v2803, 0.0
    %vm2916 = vcmp.gt.f32.partialorder %v2804, 0.0
    %vm2917 = vcmp.gt.f32.partialorder %v2805, 0.0
    %vm2918 = vcmp.gt.f32.partialorder %v2806, 0.0
    %vm2919 = vcmp.gt.f32.partialorder %v2807, 0.0
    %vm2920 = vcmp.gt.f32.partialorder %v2808, 0.0
    %vm2921 = vcmp.gt.f32.partialorder %v2809, 0.0
    %vm2922 = vcmp.gt.f32.partialorder %v2810, 0.0
    %vm2923 = vcmp.gt.f32.partialorder %v2811, 0.0
    %vm2924 = vcmp.gt.f32.partialorder %v2812, 0.0
    %vm2925 = vcmp.gt.f32.partialorder %v2813, 0.0
    %vm2926 = vcmp.gt.f32.partialorder %v2814, 0.0
    %vm2927 = vcmp.gt.f32.partialorder %v2815, 0.0
    %vm2928 = vcmp.gt.f32.partialorder %v2816, 0.0
    %vm2929 = vcmp.gt.f32.partialorder %v2817, 0.0
    %vm2930 = vcmp.gt.f32.partialorder %v2818, 0.0
    %vm2931 = vcmp.gt.f32.partialorder %v2819, 0.0
    %vm2932 = vcmp.gt.f32.partialorder %v2820, 0.0
    %vm2933 = vcmp.gt.f32.partialorder %v2821, 0.0
    %vm2934 = vcmp.gt.f32.partialorder %v2822, 0.0
    %vm2935 = vcmp.gt.f32.partialorder %v2823, 0.0
    %vm2936 = vcmp.gt.f32.partialorder %v2824, 0.0
    %vm2937 = vcmp.gt.f32.partialorder %v2825, 0.0
    %vm2938 = vcmp.gt.f32.partialorder %v2826, 0.0
    %vm2939 = vcmp.gt.f32.partialorder %v2827, 0.0
    %vm2940 = vcmp.gt.f32.partialorder %v2828, 0.0
    %vm2941 = vcmp.gt.f32.partialorder %v2829, 0.0
    %vm2942 = vcmp.gt.f32.partialorder %v2830, 0.0
    %vm2943 = vcmp.gt.f32.partialorder %v2831, 0.0
    %vm2944 = vcmp.gt.f32.partialorder %v2832, 0.0
    %vm2945 = vcmp.gt.f32.partialorder %v2833, 0.0
    %vm2946 = vcmp.gt.f32.partialorder %v2834, 0.0
    %vm2947 = vcmp.gt.f32.partialorder %v2835, 0.0
    %vm2948 = vcmp.gt.f32.partialorder %v2836, 0.0
    %vm2949 = vcmp.gt.f32.partialorder %v2837, 0.0
    %vm2950 = vcmp.gt.f32.partialorder %v2838, 0.0
    %vm2951 = vcmp.gt.f32.partialorder %v2839, 0.0
    %vm2952 = vcmp.gt.f32.partialorder %v2840, 0.0
    %vm2953 = vcmp.gt.f32.partialorder %v2841, 0.0
    %vm2954 = vcmp.gt.f32.partialorder %v2842, 0.0
    %vm2955 = vcmp.gt.f32.partialorder %v2843, 0.0
    %vm2956 = vcmp.gt.f32.partialorder %v2844, 0.0
    %vm2957 = vcmp.gt.f32.partialorder %v2845, 0.0
    %vm2958 = vcmp.gt.f32.partialorder %v2846, 0.0
    %vm2959 = vcmp.gt.f32.partialorder %v2847, 0.0
    %vm2960 = vcmp.gt.f32.partialorder %v2848, 0.0
    %vm2961 = vcmp.gt.f32.partialorder %v2849, 0.0
    %vm2962 = vcmp.gt.f32.partialorder %v2850, 0.0
    %vm2963 = vcmp.gt.f32.partialorder %v2851, 0.0
    %vm2964 = vcmp.gt.f32.partialorder %v2852, 0.0
    %vm2965 = vcmp.gt.f32.partialorder %v2853, 0.0
    %vm2966 = vcmp.gt.f32.partialorder %v2854, 0.0
    %vm2967 = vcmp.gt.f32.partialorder %v2855, 0.0
    %vm2968 = vcmp.gt.f32.partialorder %v2856, 0.0
    %vm2969 = vcmp.gt.f32.partialorder %v2857, 0.0
    %vm2970 = vcmp.gt.f32.partialorder %v2858, 0.0
    %vm2971 = vcmp.gt.f32.partialorder %v2859, 0.0
    %vm2972 = vcmp.gt.f32.partialorder %v2860, 0.0
    %vm2973 = vcmp.gt.f32.partialorder %v2861, 0.0
    %vm2974 = vcmp.gt.f32.partialorder %v2862, 0.0
    %vm2975 = vcmp.gt.f32.partialorder %v2863, 0.0
    %vm2976 = vcmp.gt.f32.partialorder %v2864, 0.0
    %vm2977 = vcmp.gt.f32.partialorder %v2865, 0.0
    %vm2978 = vcmp.gt.f32.partialorder %v2866, 0.0
    %vm2979 = vcmp.gt.f32.partialorder %v2867, 0.0
    %vm2980 = vcmp.gt.f32.partialorder %v2868, 0.0
    %vm2981 = vcmp.gt.f32.partialorder %v2869, 0.0
    %vm2982 = vcmp.gt.f32.partialorder %v2870, 0.0
    %vm2983 = vcmp.gt.f32.partialorder %v2871, 0.0
    %vm2984 = vcmp.gt.f32.partialorder %v2872, 0.0
    %vm2985 = vcmp.gt.f32.partialorder %v2873, 0.0
    %vm2986 = vcmp.gt.f32.partialorder %v2874, 0.0
    %vm2987 = vcmp.gt.f32.partialorder %v2875, 0.0
    %vm2988 = vcmp.gt.f32.partialorder %v2876, 0.0
    %vm2989 = vcmp.gt.f32.partialorder %v2877, 0.0
    %vm2990 = vcmp.gt.f32.partialorder %v2878, 0.0
    %vm2991 = vcmp.gt.f32.partialorder %v2879, 0.0
    %vm2992 = vcmp.gt.f32.partialorder %v2880, 0.0
    %vm2993 = vcmp.gt.f32.partialorder %v2881, 0.0
    %vm2994 = vcmp.gt.f32.partialorder %v2882, 0.0
    %vm2995 = vcmp.gt.f32.partialorder %v2883, 0.0
    %vm2996 = vcmp.gt.f32.partialorder %v2884, 0.0
    %vm2997 = vcmp.gt.f32.partialorder %v2885, 0.0
    %vm2998 = vcmp.gt.f32.partialorder %v2886, 0.0
    %v2999 = vmul.f32 %v2775, 0.01
    %v3000 = vmul.f32 %v2776, 0.01
    %v3001 = vmul.f32 %v2777, 0.01
    %v3002 = vmul.f32 %v2778, 0.01
    %v3003 = vmul.f32 %v2779, 0.01
    %v3004 = vmul.f32 %v2780, 0.01
    %v3005 = vmul.f32 %v2781, 0.01
    %v3006 = vmul.f32 %v2782, 0.01
    %v3007 = vmul.f32 %v2783, 0.01
    %v3008 = vmul.f32 %v2784, 0.01
    %v3009 = vmul.f32 %v2785, 0.01
    %v3010 = vmul.f32 %v2786, 0.01
    %v3011 = vmul.f32 %v2787, 0.01
    %v3012 = vmul.f32 %v2788, 0.01
    %v3013 = vmul.f32 %v2789, 0.01
    %v3014 = vmul.f32 %v2790, 0.01
    %v3015 = vmul.f32 %v2791, 0.01
    %v3016 = vmul.f32 %v2792, 0.01
    %v3017 = vmul.f32 %v2793, 0.01
    %v3018 = vmul.f32 %v2794, 0.01
    %v3019 = vmul.f32 %v2795, 0.01
    %v3020 = vmul.f32 %v2796, 0.01
    %v3021 = vmul.f32 %v2797, 0.01
    %v3022 = vmul.f32 %v2798, 0.01
    %v3023 = vmul.f32 %v2799, 0.01
    %v3024 = vmul.f32 %v2800, 0.01
    %v3025 = vmul.f32 %v2801, 0.01
    %v3026 = vmul.f32 %v2802, 0.01
    %v3027 = vmul.f32 %v2803, 0.01
    %v3028 = vmul.f32 %v2804, 0.01
    %v3029 = vmul.f32 %v2805, 0.01
    %v3030 = vmul.f32 %v2806, 0.01
    %v3031 = vmul.f32 %v2807, 0.01
    %v3032 = vmul.f32 %v2808, 0.01
    %v3033 = vmul.f32 %v2809, 0.01
    %v3034 = vmul.f32 %v2810, 0.01
    %v3035 = vmul.f32 %v2811, 0.01
    %v3036 = vmul.f32 %v2812, 0.01
    %v3037 = vmul.f32 %v2813, 0.01
    %v3038 = vmul.f32 %v2814, 0.01
    %v3039 = vmul.f32 %v2815, 0.01
    %v3040 = vmul.f32 %v2816, 0.01
    %v3041 = vmul.f32 %v2817, 0.01
    %v3042 = vmul.f32 %v2818, 0.01
    %v3043 = vmul.f32 %v2819, 0.01
    %v3044 = vmul.f32 %v2820, 0.01
    %v3045 = vmul.f32 %v2821, 0.01
    %v3046 = vmul.f32 %v2822, 0.01
    %v3047 = vmul.f32 %v2823, 0.01
    %v3048 = vmul.f32 %v2824, 0.01
    %v3049 = vmul.f32 %v2825, 0.01
    %v3050 = vmul.f32 %v2826, 0.01
    %v3051 = vmul.f32 %v2827, 0.01
    %v3052 = vmul.f32 %v2828, 0.01
    %v3053 = vmul.f32 %v2829, 0.01
    %v3054 = vmul.f32 %v2830, 0.01
    %v3055 = vmul.f32 %v2831, 0.01
    %v3056 = vmul.f32 %v2832, 0.01
    %v3057 = vmul.f32 %v2833, 0.01
    %v3058 = vmul.f32 %v2834, 0.01
    %v3059 = vmul.f32 %v2835, 0.01
    %v3060 = vmul.f32 %v2836, 0.01
    %v3061 = vmul.f32 %v2837, 0.01
    %v3062 = vmul.f32 %v2838, 0.01
    %v3063 = vmul.f32 %v2839, 0.01
    %v3064 = vmul.f32 %v2840, 0.01
    %v3065 = vmul.f32 %v2841, 0.01
    %v3066 = vmul.f32 %v2842, 0.01
    %v3067 = vmul.f32 %v2843, 0.01
    %v3068 = vmul.f32 %v2844, 0.01
    %v3069 = vmul.f32 %v2845, 0.01
    %v3070 = vmul.f32 %v2846, 0.01
    %v3071 = vmul.f32 %v2847, 0.01
    %v3072 = vmul.f32 %v2848, 0.01
    %v3073 = vmul.f32 %v2849, 0.01
    %v3074 = vmul.f32 %v2850, 0.01
    %v3075 = vmul.f32 %v2851, 0.01
    %v3076 = vmul.f32 %v2852, 0.01
    %v3077 = vmul.f32 %v2853, 0.01
    %v3078 = vmul.f32 %v2854, 0.01
    %v3079 = vmul.f32 %v2855, 0.01
    %v3080 = vmul.f32 %v2856, 0.01
    %v3081 = vmul.f32 %v2857, 0.01
    %v3082 = vmul.f32 %v2858, 0.01
    %v3083 = vmul.f32 %v2859, 0.01
    %v3084 = vmul.f32 %v2860, 0.01
    %v3085 = vmul.f32 %v2861, 0.01
    %v3086 = vmul.f32 %v2862, 0.01
    %v3087 = vmul.f32 %v2863, 0.01
    %v3088 = vmul.f32 %v2864, 0.01
    %v3089 = vmul.f32 %v2865, 0.01
    %v3090 = vmul.f32 %v2866, 0.01
    %v3091 = vmul.f32 %v2867, 0.01
    %v3092 = vmul.f32 %v2868, 0.01
    %v3093 = vmul.f32 %v2869, 0.01
    %v3094 = vmul.f32 %v2870, 0.01
    %v3095 = vmul.f32 %v2871, 0.01
    %v3096 = vmul.f32 %v2872, 0.01
    %v3097 = vmul.f32 %v2873, 0.01
    %v3098 = vmul.f32 %v2874, 0.01
    %v3099 = vmul.f32 %v2875, 0.01
    %v3100 = vmul.f32 %v2876, 0.01
    %v3101 = vmul.f32 %v2877, 0.01
    %v3102 = vmul.f32 %v2878, 0.01
    %v3103 = vmul.f32 %v2879, 0.01
    %v3104 = vmul.f32 %v2880, 0.01
    %v3105 = vmul.f32 %v2881, 0.01
    %v3106 = vmul.f32 %v2882, 0.01
    %v3107 = vmul.f32 %v2883, 0.01
    %v3108 = vmul.f32 %v2884, 0.01
    %v3109 = vmul.f32 %v2885, 0.01
    %v3110 = vmul.f32 %v2886, 0.01
    %v3111 = vsel %vm2887, %v2775, %v2999
    %v3112 = vsel %vm2888, %v2776, %v3000
    %v3113 = vsel %vm2889, %v2777, %v3001
    %v3114 = vsel %vm2890, %v2778, %v3002
    %v3115 = vsel %vm2891, %v2779, %v3003
    %v3116 = vsel %vm2892, %v2780, %v3004
    %v3117 = vsel %vm2893, %v2781, %v3005
    %v3118 = vsel %vm2894, %v2782, %v3006
    %v3119 = vsel %vm2895, %v2783, %v3007
    %v3120 = vsel %vm2896, %v2784, %v3008
    %v3121 = vsel %vm2897, %v2785, %v3009
    %v3122 = vsel %vm2898, %v2786, %v3010
    %v3123 = vsel %vm2899, %v2787, %v3011
    %v3124 = vsel %vm2900, %v2788, %v3012
    %v3125 = vsel %vm2901, %v2789, %v3013
    %v3126 = vsel %vm2902, %v2790, %v3014
    %v3127 = vsel %vm2903, %v2791, %v3015
    %v3128 = vsel %vm2904, %v2792, %v3016
    %v3129 = vsel %vm2905, %v2793, %v3017
    %v3130 = vsel %vm2906, %v2794, %v3018
    %v3131 = vsel %vm2907, %v2795, %v3019
    %v3132 = vsel %vm2908, %v2796, %v3020
    %v3133 = vsel %vm2909, %v2797, %v3021
    %v3134 = vsel %vm2910, %v2798, %v3022
    %v3135 = vsel %vm2911, %v2799, %v3023
    %v3136 = vsel %vm2912, %v2800, %v3024
    %v3137 = vsel %vm2913, %v2801, %v3025
    %v3138 = vsel %vm2914, %v2802, %v3026
    %v3139 = vsel %vm2915, %v2803, %v3027
    %v3140 = vsel %vm2916, %v2804, %v3028
    %v3141 = vsel %vm2917, %v2805, %v3029
    %v3142 = vsel %vm2918, %v2806, %v3030
    %v3143 = vsel %vm2919, %v2807, %v3031
    %v3144 = vsel %vm2920, %v2808, %v3032
    %v3145 = vsel %vm2921, %v2809, %v3033
    %v3146 = vsel %vm2922, %v2810, %v3034
    %v3147 = vsel %vm2923, %v2811, %v3035
    %v3148 = vsel %vm2924, %v2812, %v3036
    %v3149 = vsel %vm2925, %v2813, %v3037
    %v3150 = vsel %vm2926, %v2814, %v3038
    %v3151 = vsel %vm2927, %v2815, %v3039
    %v3152 = vsel %vm2928, %v2816, %v3040
    %v3153 = vsel %vm2929, %v2817, %v3041
    %v3154 = vsel %vm2930, %v2818, %v3042
    %v3155 = vsel %vm2931, %v2819, %v3043
    %v3156 = vsel %vm2932, %v2820, %v3044
    %v3157 = vsel %vm2933, %v2821, %v3045
    %v3158 = vsel %vm2934, %v2822, %v3046
    %v3159 = vsel %vm2935, %v2823, %v3047
    %v3160 = vsel %vm2936, %v2824, %v3048
    %v3161 = vsel %vm2937, %v2825, %v3049
    %v3162 = vsel %vm2938, %v2826, %v3050
    %v3163 = vsel %vm2939, %v2827, %v3051
    %v3164 = vsel %vm2940, %v2828, %v3052
    %v3165 = vsel %vm2941, %v2829, %v3053
    %v3166 = vsel %vm2942, %v2830, %v3054
    %v3167 = vsel %vm2943, %v2831, %v3055
    %v3168 = vsel %vm2944, %v2832, %v3056
    %v3169 = vsel %vm2945, %v2833, %v3057
    %v3170 = vsel %vm2946, %v2834, %v3058
    %v3171 = vsel %vm2947, %v2835, %v3059
    %v3172 = vsel %vm2948, %v2836, %v3060
    %v3173 = vsel %vm2949, %v2837, %v3061
    %v3174 = vsel %vm2950, %v2838, %v3062
    %v3175 = vsel %vm2951, %v2839, %v3063
    %v3176 = vsel %vm2952, %v2840, %v3064
    %v3177 = vsel %vm2953, %v2841, %v3065
    %v3178 = vsel %vm2954, %v2842, %v3066
    %v3179 = vsel %vm2955, %v2843, %v3067
    %v3180 = vsel %vm2956, %v2844, %v3068
    %v3181 = vsel %vm2957, %v2845, %v3069
    %v3182 = vsel %vm2958, %v2846, %v3070
    %v3183 = vsel %vm2959, %v2847, %v3071
    %v3184 = vsel %vm2960, %v2848, %v3072
    %v3185 = vsel %vm2961, %v2849, %v3073
    %v3186 = vsel %vm2962, %v2850, %v3074
    %v3187 = vsel %vm2963, %v2851, %v3075
    %v3188 = vsel %vm2964, %v2852, %v3076
    %v3189 = vsel %vm2965, %v2853, %v3077
    %v3190 = vsel %vm2966, %v2854, %v3078
    %v3191 = vsel %vm2967, %v2855, %v3079
    %v3192 = vsel %vm2968, %v2856, %v3080
    %v3193 = vsel %vm2969, %v2857, %v3081
    %v3194 = vsel %vm2970, %v2858, %v3082
    %v3195 = vsel %vm2971, %v2859, %v3083
    %v3196 = vsel %vm2972, %v2860, %v3084
    %v3197 = vsel %vm2973, %v2861, %v3085
    %v3198 = vsel %vm2974, %v2862, %v3086
    %v3199 = vsel %vm2975, %v2863, %v3087
    %v3200 = vsel %vm2976, %v2864, %v3088
    %v3201 = vsel %vm2977, %v2865, %v3089
    %v3202 = vsel %vm2978, %v2866, %v3090
    %v3203 = vsel %vm2979, %v2867, %v3091
    %v3204 = vsel %vm2980, %v2868, %v3092
    %v3205 = vsel %vm2981, %v2869, %v3093
    %v3206 = vsel %vm2982, %v2870, %v3094
    %v3207 = vsel %vm2983, %v2871, %v3095
    %v3208 = vsel %vm2984, %v2872, %v3096
    %v3209 = vsel %vm2985, %v2873, %v3097
    %v3210 = vsel %vm2986, %v2874, %v3098
    %v3211 = vsel %vm2987, %v2875, %v3099
    %v3212 = vsel %vm2988, %v2876, %v3100
    %v3213 = vsel %vm2989, %v2877, %v3101
    %v3214 = vsel %vm2990, %v2878, %v3102
    %v3215 = vsel %vm2991, %v2879, %v3103
    %v3216 = vsel %vm2992, %v2880, %v3104
    %v3217 = vsel %vm2993, %v2881, %v3105
    %v3218 = vsel %vm2994, %v2882, %v3106
    %v3219 = vsel %vm2995, %v2883, %v3107
    %v3220 = vsel %vm2996, %v2884, %v3108
    %v3221 = vsel %vm2997, %v2885, %v3109
    %v3222 = vsel %vm2998, %v2886, %v3110
    %v3223 = vpack.c.bf16 %v3115, %v3111
    %v3224 = vpack.c.bf16 %v3116, %v3112
    %v3225 = vpack.c.bf16 %v3117, %v3113
    %v3226 = vpack.c.bf16 %v3118, %v3114
    %v3227 = vpack.c.bf16 %v3123, %v3119
    %v3228 = vpack.c.bf16 %v3124, %v3120
    %v3229 = vpack.c.bf16 %v3125, %v3121
    %v3230 = vpack.c.bf16 %v3126, %v3122
    %v3231 = vpack.c.bf16 %v3131, %v3127
    %v3232 = vpack.c.bf16 %v3132, %v3128
    %v3233 = vpack.c.bf16 %v3133, %v3129
    %v3234 = vpack.c.bf16 %v3134, %v3130
    %v3235 = vpack.c.bf16 %v3139, %v3135
    %v3236 = vpack.c.bf16 %v3140, %v3136
    %v3237 = vpack.c.bf16 %v3141, %v3137
    %v3238 = vpack.c.bf16 %v3142, %v3138
    %v3239 = vpack.c.bf16 %v3147, %v3143
    %v3240 = vpack.c.bf16 %v3148, %v3144
    %v3241 = vpack.c.bf16 %v3149, %v3145
    %v3242 = vpack.c.bf16 %v3150, %v3146
    %v3243 = vpack.c.bf16 %v3155, %v3151
    %v3244 = vpack.c.bf16 %v3156, %v3152
    %v3245 = vpack.c.bf16 %v3157, %v3153
    %v3246 = vpack.c.bf16 %v3158, %v3154
    %v3247 = vpack.c.bf16 %v3163, %v3159
    %v3248 = vpack.c.bf16 %v3164, %v3160
    %v3249 = vpack.c.bf16 %v3165, %v3161
    %v3250 = vpack.c.bf16 %v3166, %v3162
    %v3251 = vpack.c.bf16 %v3171, %v3167
    %v3252 = vpack.c.bf16 %v3172, %v3168
    %v3253 = vpack.c.bf16 %v3173, %v3169
    %v3254 = vpack.c.bf16 %v3174, %v3170
    %v3255 = vpack.c.bf16 %v3179, %v3175
    %v3256 = vpack.c.bf16 %v3180, %v3176
    %v3257 = vpack.c.bf16 %v3181, %v3177
    %v3258 = vpack.c.bf16 %v3182, %v3178
    %v3259 = vpack.c.bf16 %v3187, %v3183
    %v3260 = vpack.c.bf16 %v3188, %v3184
    %v3261 = vpack.c.bf16 %v3189, %v3185
    %v3262 = vpack.c.bf16 %v3190, %v3186
    %v3263 = vpack.c.bf16 %v3195, %v3191
    %v3264 = vpack.c.bf16 %v3196, %v3192
    %v3265 = vpack.c.bf16 %v3197, %v3193
    %v3266 = vpack.c.bf16 %v3198, %v3194
    %v3267 = vpack.c.bf16 %v3203, %v3199
    %v3268 = vpack.c.bf16 %v3204, %v3200
    %v3269 = vpack.c.bf16 %v3205, %v3201
    %v3270 = vpack.c.bf16 %v3206, %v3202
    %v3271 = vpack.c.bf16 %v3211, %v3207
    %v3272 = vpack.c.bf16 %v3212, %v3208
    %v3273 = vpack.c.bf16 %v3213, %v3209
    %v3274 = vpack.c.bf16 %v3214, %v3210
    %v3275 = vpack.c.bf16 %v3219, %v3215
    %v3276 = vpack.c.bf16 %v3220, %v3216
    %v3277 = vpack.c.bf16 %v3221, %v3217
    %v3278 = vpack.c.bf16 %v3222, %v3218
    %v3279 = vld [vmem:[#allocation4] sm:$0xff]
    %v3280 = vld [vmem:[#allocation4 + $0x8] sm:$0xff]
    %v3281 = vld [vmem:[#allocation4 + $0x10] sm:$0xff]
    %v3282 = vld [vmem:[#allocation4 + $0x18] sm:$0xff]
    %v3283 = vld [vmem:[#allocation4 + $0x20] sm:$0xff]
    %v3284 = vld [vmem:[#allocation4 + $0x28] sm:$0xff]
    %v3285 = vld [vmem:[#allocation4 + $0x30] sm:$0xff]
    %v3286 = vld [vmem:[#allocation4 + $0x38] sm:$0xff]
    %v3287 = vld [vmem:[#allocation4 + $0x40] sm:$0xff]
    %v3288 = vld [vmem:[#allocation4 + $0x48] sm:$0xff]
    %v3289 = vld [vmem:[#allocation4 + $0x50] sm:$0xff]
    %v3290 = vld [vmem:[#allocation4 + $0x58] sm:$0xff]
    %v3291 = vld [vmem:[#allocation4 + $0x60] sm:$0xff]
    %v3292 = vld [vmem:[#allocation4 + $0x68] sm:$0xff]
    %v3293 = vld [vmem:[#allocation4 + $0x70] sm:$0xff]
    %v3294 = vld [vmem:[#allocation4 + $0x78] sm:$0xff]
    %v3295 = vld [vmem:[#allocation4 + $0x80] sm:$0xff]
    %v3296 = vld [vmem:[#allocation4 + $0x88] sm:$0xff]
    %v3297 = vld [vmem:[#allocation4 + $0x90] sm:$0xff]
    %v3298 = vld [vmem:[#allocation4 + $0x98] sm:$0xff]
    %v3299 = vld [vmem:[#allocation4 + $0xa0] sm:$0xff]
    %v3300 = vld [vmem:[#allocation4 + $0xa8] sm:$0xff]
    %v3301 = vld [vmem:[#allocation4 + $0xb0] sm:$0xff]
    %v3302 = vld [vmem:[#allocation4 + $0xb8] sm:$0xff]
    %v3303 = vld [vmem:[#allocation4 + $0xc0] sm:$0xff]
    %v3304 = vld [vmem:[#allocation4 + $0xc8] sm:$0xff]
    %v3305 = vld [vmem:[#allocation4 + $0xd0] sm:$0xff]
    %v3306 = vld [vmem:[#allocation4 + $0xd8] sm:$0xff]
    %v3307 = vld [vmem:[#allocation4 + $0xe0] sm:$0xff]
    %v3308 = vld [vmem:[#allocation4 + $0xe8] sm:$0xff]
    %v3309 = vld [vmem:[#allocation4 + $0xf0] sm:$0xff]
    %v3310 = vld [vmem:[#allocation4 + $0xf8] sm:$0xff]
    %v3311 = vld [vmem:[#allocation4 + $0x100] sm:$0xff]
    %v3312 = vld [vmem:[#allocation4 + $0x108] sm:$0xff]
    %v3313 = vld [vmem:[#allocation4 + $0x110] sm:$0xff]
    %v3314 = vld [vmem:[#allocation4 + $0x118] sm:$0xff]
    %v3315 = vld [vmem:[#allocation4 + $0x120] sm:$0xff]
    %v3316 = vld [vmem:[#allocation4 + $0x128] sm:$0xff]
    %v3317 = vld [vmem:[#allocation4 + $0x130] sm:$0xff]
    %v3318 = vld [vmem:[#allocation4 + $0x138] sm:$0xff]
    %v3319 = vld [vmem:[#allocation4 + $0x140] sm:$0xff]
    %v3320 = vld [vmem:[#allocation4 + $0x148] sm:$0xff]
    %v3321 = vld [vmem:[#allocation4 + $0x150] sm:$0xff]
    %v3322 = vld [vmem:[#allocation4 + $0x158] sm:$0xff]
    %v3323 = vld [vmem:[#allocation4 + $0x160] sm:$0xff]
    %v3324 = vld [vmem:[#allocation4 + $0x168] sm:$0xff]
    %v3325 = vld [vmem:[#allocation4 + $0x170] sm:$0xff]
    %v3326 = vld [vmem:[#allocation4 + $0x178] sm:$0xff]
    %v3327 = vld [vmem:[#allocation4 + $0x180] sm:$0xff]
    %v3328 = vld [vmem:[#allocation4 + $0x188] sm:$0xff]
    %v3329 = vld [vmem:[#allocation4 + $0x190] sm:$0xff]
    %v3330 = vld [vmem:[#allocation4 + $0x198] sm:$0xff]
    %v3331 = vld [vmem:[#allocation4 + $0x1a0] sm:$0xff]
    %v3332 = vld [vmem:[#allocation4 + $0x1a8] sm:$0xff]
    %v3333 = vld [vmem:[#allocation4 + $0x1b0] sm:$0xff]
    %v3334 = vld [vmem:[#allocation4 + $0x1b8] sm:$0xff]
    %s3335 = scalar_lea.vmem [#allocation4], 448
    %v3336 = vld [vmem:[%s3335] sm:$0xff]
    %v3337 = vld [vmem:[%s3335 + $0x8] sm:$0xff]
    %v3338 = vld [vmem:[%s3335 + $0x10] sm:$0xff]
    %v3339 = vld [vmem:[%s3335 + $0x18] sm:$0xff]
    %v3340 = vld [vmem:[%s3335 + $0x20] sm:$0xff]
    %v3341 = vld [vmem:[%s3335 + $0x28] sm:$0xff]
    %v3342 = vld [vmem:[%s3335 + $0x30] sm:$0xff]
    %v3343 = vld [vmem:[%s3335 + $0x38] sm:$0xff]
    %v3344 = vld [vmem:[%s3335 + $0x40] sm:$0xff]
    %v3345 = vld [vmem:[%s3335 + $0x48] sm:$0xff]
    %v3346 = vld [vmem:[%s3335 + $0x50] sm:$0xff]
    %v3347 = vld [vmem:[%s3335 + $0x58] sm:$0xff]
    %v3348 = vld [vmem:[%s3335 + $0x60] sm:$0xff]
    %v3349 = vld [vmem:[%s3335 + $0x68] sm:$0xff]
    %v3350 = vld [vmem:[%s3335 + $0x70] sm:$0xff]
    %v3351 = vld [vmem:[%s3335 + $0x78] sm:$0xff]
    %v3352 = vld [vmem:[%s3335 + $0x80] sm:$0xff]
    %v3353 = vld [vmem:[%s3335 + $0x88] sm:$0xff]
    %v3354 = vld [vmem:[%s3335 + $0x90] sm:$0xff]
    %v3355 = vld [vmem:[%s3335 + $0x98] sm:$0xff]
    %v3356 = vld [vmem:[%s3335 + $0xa0] sm:$0xff]
    %v3357 = vld [vmem:[%s3335 + $0xa8] sm:$0xff]
    %v3358 = vld [vmem:[%s3335 + $0xb0] sm:$0xff]
    %v3359 = vld [vmem:[%s3335 + $0xb8] sm:$0xff]
    %v3360 = vld [vmem:[%s3335 + $0xc0] sm:$0xff]
    %v3361 = vld [vmem:[%s3335 + $0xc8] sm:$0xff]
    %v3362 = vld [vmem:[%s3335 + $0xd0] sm:$0xff]
    %v3363 = vld [vmem:[%s3335 + $0xd8] sm:$0xff]
    %v3364 = vld [vmem:[%s3335 + $0xe0] sm:$0xff]
    %v3365 = vld [vmem:[%s3335 + $0xe8] sm:$0xff]
    %v3366 = vld [vmem:[%s3335 + $0xf0] sm:$0xff]
    %v3367 = vld [vmem:[%s3335 + $0xf8] sm:$0xff]
    %v3368 = vld [vmem:[%s3335 + $0x100] sm:$0xff]
    %v3369 = vld [vmem:[%s3335 + $0x108] sm:$0xff]
    %v3370 = vld [vmem:[%s3335 + $0x110] sm:$0xff]
    %v3371 = vld [vmem:[%s3335 + $0x118] sm:$0xff]
    %v3372 = vld [vmem:[%s3335 + $0x120] sm:$0xff]
    %v3373 = vld [vmem:[%s3335 + $0x128] sm:$0xff]
    %v3374 = vld [vmem:[%s3335 + $0x130] sm:$0xff]
    %v3375 = vld [vmem:[%s3335 + $0x138] sm:$0xff]
    %v3376 = vld [vmem:[%s3335 + $0x140] sm:$0xff]
    %v3377 = vld [vmem:[%s3335 + $0x148] sm:$0xff]
    %v3378 = vld [vmem:[%s3335 + $0x150] sm:$0xff]
    %v3379 = vld [vmem:[%s3335 + $0x158] sm:$0xff]
    %v3380 = vld [vmem:[%s3335 + $0x160] sm:$0xff]
    %v3381 = vld [vmem:[%s3335 + $0x168] sm:$0xff]
    %v3382 = vld [vmem:[%s3335 + $0x170] sm:$0xff]
    %v3383 = vld [vmem:[%s3335 + $0x178] sm:$0xff]
    %v3384 = vld [vmem:[%s3335 + $0x180] sm:$0xff]
    %v3385 = vld [vmem:[%s3335 + $0x188] sm:$0xff]
    %v3386 = vld [vmem:[%s3335 + $0x190] sm:$0xff]
    %v3387 = vld [vmem:[%s3335 + $0x198] sm:$0xff]
    %v3388 = vld [vmem:[%s3335 + $0x1a0] sm:$0xff]
    %v3389 = vld [vmem:[%s3335 + $0x1a8] sm:$0xff]
    %v3390 = vld [vmem:[%s3335 + $0x1b0] sm:$0xff]
    %v3391 = vld [vmem:[%s3335 + $0x1b8] sm:$0xff]
    %v3448 = vunpack.c.l.b16 %v3336
    %v3449 = vunpack.c.h.b16 %v3336
    %v3450 = vunpack.c.l.b16 %v3337
    %v3451 = vunpack.c.h.b16 %v3337
    %v3452 = vunpack.c.l.b16 %v3338
    %v3453 = vunpack.c.h.b16 %v3338
    %v3454 = vunpack.c.l.b16 %v3339
    %v3455 = vunpack.c.h.b16 %v3339
    %v3456 = vunpack.c.l.b16 %v3340
    %v3457 = vunpack.c.h.b16 %v3340
    %v3458 = vunpack.c.l.b16 %v3341
    %v3459 = vunpack.c.h.b16 %v3341
    %v3460 = vunpack.c.l.b16 %v3342
    %v3461 = vunpack.c.h.b16 %v3342
    %v3462 = vunpack.c.l.b16 %v3343
    %v3463 = vunpack.c.h.b16 %v3343
    %v3464 = vunpack.c.l.b16 %v3344
    %v3465 = vunpack.c.h.b16 %v3344
    %v3466 = vunpack.c.l.b16 %v3345
    %v3467 = vunpack.c.h.b16 %v3345
    %v3468 = vunpack.c.l.b16 %v3346
    %v3469 = vunpack.c.h.b16 %v3346
    %v3470 = vunpack.c.l.b16 %v3347
    %v3471 = vunpack.c.h.b16 %v3347
    %v3472 = vunpack.c.l.b16 %v3348
    %v3473 = vunpack.c.h.b16 %v3348
    %v3474 = vunpack.c.l.b16 %v3349
    %v3475 = vunpack.c.h.b16 %v3349
    %v3476 = vunpack.c.l.b16 %v3350
    %v3477 = vunpack.c.h.b16 %v3350
    %v3478 = vunpack.c.l.b16 %v3351
    %v3479 = vunpack.c.h.b16 %v3351
    %v3480 = vunpack.c.l.b16 %v3352
    %v3481 = vunpack.c.h.b16 %v3352
    %v3482 = vunpack.c.l.b16 %v3353
    %v3483 = vunpack.c.h.b16 %v3353
    %v3484 = vunpack.c.l.b16 %v3354
    %v3485 = vunpack.c.h.b16 %v3354
    %v3486 = vunpack.c.l.b16 %v3355
    %v3487 = vunpack.c.h.b16 %v3355
    %v3488 = vunpack.c.l.b16 %v3356
    %v3489 = vunpack.c.h.b16 %v3356
    %v3490 = vunpack.c.l.b16 %v3357
    %v3491 = vunpack.c.h.b16 %v3357
    %v3492 = vunpack.c.l.b16 %v3358
    %v3493 = vunpack.c.h.b16 %v3358
    %v3494 = vunpack.c.l.b16 %v3359
    %v3495 = vunpack.c.h.b16 %v3359
    %v3496 = vunpack.c.l.b16 %v3360
    %v3497 = vunpack.c.h.b16 %v3360
    %v3498 = vunpack.c.l.b16 %v3361
    %v3499 = vunpack.c.h.b16 %v3361
    %v3500 = vunpack.c.l.b16 %v3362
    %v3501 = vunpack.c.h.b16 %v3362
    %v3502 = vunpack.c.l.b16 %v3363
    %v3503 = vunpack.c.h.b16 %v3363
    %v3504 = vunpack.c.l.b16 %v3364
    %v3505 = vunpack.c.h.b16 %v3364
    %v3506 = vunpack.c.l.b16 %v3365
    %v3507 = vunpack.c.h.b16 %v3365
    %v3508 = vunpack.c.l.b16 %v3366
    %v3509 = vunpack.c.h.b16 %v3366
    %v3510 = vunpack.c.l.b16 %v3367
    %v3511 = vunpack.c.h.b16 %v3367
    %v3512 = vunpack.c.l.b16 %v3368
    %v3513 = vunpack.c.h.b16 %v3368
    %v3514 = vunpack.c.l.b16 %v3369
    %v3515 = vunpack.c.h.b16 %v3369
    %v3516 = vunpack.c.l.b16 %v3370
    %v3517 = vunpack.c.h.b16 %v3370
    %v3518 = vunpack.c.l.b16 %v3371
    %v3519 = vunpack.c.h.b16 %v3371
    %v3520 = vunpack.c.l.b16 %v3372
    %v3521 = vunpack.c.h.b16 %v3372
    %v3522 = vunpack.c.l.b16 %v3373
    %v3523 = vunpack.c.h.b16 %v3373
    %v3524 = vunpack.c.l.b16 %v3374
    %v3525 = vunpack.c.h.b16 %v3374
    %v3526 = vunpack.c.l.b16 %v3375
    %v3527 = vunpack.c.h.b16 %v3375
    %v3528 = vunpack.c.l.b16 %v3376
    %v3529 = vunpack.c.h.b16 %v3376
    %v3530 = vunpack.c.l.b16 %v3377
    %v3531 = vunpack.c.h.b16 %v3377
    %v3532 = vunpack.c.l.b16 %v3378
    %v3533 = vunpack.c.h.b16 %v3378
    %v3534 = vunpack.c.l.b16 %v3379
    %v3535 = vunpack.c.h.b16 %v3379
    %v3536 = vunpack.c.l.b16 %v3380
    %v3537 = vunpack.c.h.b16 %v3380
    %v3538 = vunpack.c.l.b16 %v3381
    %v3539 = vunpack.c.h.b16 %v3381
    %v3540 = vunpack.c.l.b16 %v3382
    %v3541 = vunpack.c.h.b16 %v3382
    %v3542 = vunpack.c.l.b16 %v3383
    %v3543 = vunpack.c.h.b16 %v3383
    %v3544 = vunpack.c.l.b16 %v3384
    %v3545 = vunpack.c.h.b16 %v3384
    %v3546 = vunpack.c.l.b16 %v3385
    %v3547 = vunpack.c.h.b16 %v3385
    %v3548 = vunpack.c.l.b16 %v3386
    %v3549 = vunpack.c.h.b16 %v3386
    %v3550 = vunpack.c.l.b16 %v3387
    %v3551 = vunpack.c.h.b16 %v3387
    %v3552 = vunpack.c.l.b16 %v3388
    %v3553 = vunpack.c.h.b16 %v3388
    %v3554 = vunpack.c.l.b16 %v3389
    %v3555 = vunpack.c.h.b16 %v3389
    %v3556 = vunpack.c.l.b16 %v3390
    %v3557 = vunpack.c.h.b16 %v3390
    %v3558 = vunpack.c.l.b16 %v3391
    %v3559 = vunpack.c.h.b16 %v3391
    %v3560 = vpack.c.b16 %v3450, %v3448
    %v3561 = vpack.c.b16 %v3451, %v3449
    %v3562 = vpack.c.b16 %v3454, %v3452
    %v3563 = vpack.c.b16 %v3455, %v3453
    %v3564 = vpack.c.b16 %v3458, %v3456
    %v3565 = vpack.c.b16 %v3459, %v3457
    %v3566 = vpack.c.b16 %v3462, %v3460
    %v3567 = vpack.c.b16 %v3463, %v3461
    %v3568 = vpack.c.b16 %v3466, %v3464
    %v3569 = vpack.c.b16 %v3467, %v3465
    %v3570 = vpack.c.b16 %v3470, %v3468
    %v3571 = vpack.c.b16 %v3471, %v3469
    %v3572 = vpack.c.b16 %v3474, %v3472
    %v3573 = vpack.c.b16 %v3475, %v3473
    %v3574 = vpack.c.b16 %v3478, %v3476
    %v3575 = vpack.c.b16 %v3479, %v3477
    %v3576 = vpack.c.b16 %v3482, %v3480
    %v3577 = vpack.c.b16 %v3483, %v3481
    %v3578 = vpack.c.b16 %v3486, %v3484
    %v3579 = vpack.c.b16 %v3487, %v3485
    %v3580 = vpack.c.b16 %v3490, %v3488
    %v3581 = vpack.c.b16 %v3491, %v3489
    %v3582 = vpack.c.b16 %v3494, %v3492
    %v3583 = vpack.c.b16 %v3495, %v3493
    %v3584 = vpack.c.b16 %v3498, %v3496
    %v3585 = vpack.c.b16 %v3499, %v3497
    %v3586 = vpack.c.b16 %v3502, %v3500
    %v3587 = vpack.c.b16 %v3503, %v3501
    %v3588 = vpack.c.b16 %v3506, %v3504
    %v3589 = vpack.c.b16 %v3507, %v3505
    %v3590 = vpack.c.b16 %v3510, %v3508
    %v3591 = vpack.c.b16 %v3511, %v3509
    %v3592 = vpack.c.b16 %v3514, %v3512
    %v3593 = vpack.c.b16 %v3515, %v3513
    %v3594 = vpack.c.b16 %v3518, %v3516
    %v3595 = vpack.c.b16 %v3519, %v3517
    %v3596 = vpack.c.b16 %v3522, %v3520
    %v3597 = vpack.c.b16 %v3523, %v3521
    %v3598 = vpack.c.b16 %v3526, %v3524
    %v3599 = vpack.c.b16 %v3527, %v3525
    %v3600 = vpack.c.b16 %v3530, %v3528
    %v3601 = vpack.c.b16 %v3531, %v3529
    %v3602 = vpack.c.b16 %v3534, %v3532
    %v3603 = vpack.c.b16 %v3535, %v3533
    %v3604 = vpack.c.b16 %v3538, %v3536
    %v3605 = vpack.c.b16 %v3539, %v3537
    %v3606 = vpack.c.b16 %v3542, %v3540
    %v3607 = vpack.c.b16 %v3543, %v3541
    %v3608 = vpack.c.b16 %v3546, %v3544
    %v3609 = vpack.c.b16 %v3547, %v3545
    %v3610 = vpack.c.b16 %v3550, %v3548
    %v3611 = vpack.c.b16 %v3551, %v3549
    %v3612 = vpack.c.b16 %v3554, %v3552
    %v3613 = vpack.c.b16 %v3555, %v3553
    %v3614 = vpack.c.b16 %v3558, %v3556
    %v3615 = vpack.c.b16 %v3559, %v3557
    %vm3672 = vcmask 523264
    %v3674 = vsel %vm3672, %v3230, 0
    %3676 = vmatprep.subr.bf16.mxu0 %v3561
    %3677 = vmatpush1.bf16.msra.mxu0 %v3560
    %3678 = vmatprep.subr.bf16.mxu0 %v3563
    %3679 = vmatpush1.bf16.msra.mxu0 %v3562
    %3680 = vmatprep.subr.bf16.mxu0 %v3565
    %3681 = vmatpush1.bf16.msra.mxu0 %v3564
    %3682 = vmatprep.subr.bf16.mxu0 %v3567
    %3683 = vmatpush1.bf16.msra.mxu0 %v3566
    %3684 = vmatprep.subr.bf16.mxu0 %v3569
    %3685 = vmatpush1.bf16.msra.mxu0 %v3568
    %3686 = vmatprep.subr.bf16.mxu0 %v3571
    %3687 = vmatpush1.bf16.msra.mxu0 %v3570
    %3688 = vmatprep.subr.bf16.mxu0 %v3573
    %3689 = vmatpush1.bf16.msra.mxu0 %v3572
    %3690 = vmatprep.subr.bf16.mxu0 %v3575
    %3691 = vmatpush1.bf16.msra.mxu0 %v3574
    %3692 = vmatprep.subr.bf16.mxu0 %v3577
    %3693 = vmatpush1.bf16.msra.mxu0 %v3576
    %3694 = vmatprep.subr.bf16.mxu0 %v3579
    %3695 = vmatpush1.bf16.msra.mxu0 %v3578
    %3696 = vmatprep.subr.bf16.mxu0 %v3581
    %3697 = vmatpush1.bf16.msra.mxu0 %v3580
    %3698 = vmatprep.subr.bf16.mxu0 %v3583
    %3699 = vmatpush1.bf16.msra.mxu0 %v3582
    %3700 = vmatprep.subr.bf16.mxu0 %v3585
    %3701 = vmatpush1.bf16.msra.mxu0 %v3584
    %3702 = vmatprep.subr.bf16.mxu0 %v3587
    %3703 = vmatpush1.bf16.msra.mxu0 %v3586
    %3704 = vmatprep.subr.bf16.mxu0 %v3589
    %3705 = vmatpush1.bf16.msra.mxu0 %v3588
    %3706 = vmatprep.subr.bf16.mxu0 %v3591
    %3707 = vmatpush1.bf16.msra.mxu0 %v3590
    %3708 = vmatprep.mubr.bf16.mxu0 %v3228
    %3709 = vmatmul.mubr.bf16.gmra.mrb[0].mxu0 %v3227
    %v3710 = vpop.f32.mrb[0].mxu0
    %v3711 = vadd.f32 0.0, %v3710
    %v3712 = vpop.f32.mrb[0].mxu0
    %v3713 = vadd.f32 0.0, %v3712
    %v3714 = vpop.f32.mrb[0].mxu0
    %v3715 = vadd.f32 0.0, %v3714
    %v3716 = vpop.f32.mrb[0].mxu0
    %v3717 = vadd.f32 0.0, %v3716
    %3718 = vdwg.mxu0
    %3719 = vmatprep.subr.bf16.mxu0 %v3593
    %3720 = vmatpush1.bf16.msra.mxu0 %v3592
    %3721 = vmatprep.subr.bf16.mxu0 %v3595
    %3722 = vmatpush1.bf16.msra.mxu0 %v3594
    %3723 = vmatprep.subr.bf16.mxu0 %v3597
    %3724 = vmatpush1.bf16.msra.mxu0 %v3596
    %3725 = vmatprep.subr.bf16.mxu0 %v3599
    %3726 = vmatpush1.bf16.msra.mxu0 %v3598
    %3727 = vmatprep.subr.bf16.mxu0 %v3601
    %3728 = vmatpush1.bf16.msra.mxu0 %v3600
    %3729 = vmatprep.subr.bf16.mxu0 %v3603
    %3730 = vmatpush1.bf16.msra.mxu0 %v3602
    %3731 = vmatprep.subr.bf16.mxu0 %v3605
    %3732 = vmatpush1.bf16.msra.mxu0 %v3604
    %3733 = vmatprep.subr.bf16.mxu0 %v3607
    %3734 = vmatpush1.bf16.msra.mxu0 %v3606
    %3735 = vmatprep.subr.bf16.mxu0 %v3609
    %3736 = vmatpush1.bf16.msra.mxu0 %v3608
    %3737 = vmatprep.subr.bf16.mxu0 %v3611
    %3738 = vmatpush1.bf16.msra.mxu0 %v3610
    %3739 = vmatprep.subr.bf16.mxu0 %v3613
    %3740 = vmatpush1.bf16.msra.mxu0 %v3612
    %3741 = vmatprep.subr.bf16.mxu0 %v3615
    %3742 = vmatpush1.bf16.msra.mxu0 %v3614
    %3743 = vmatprep.subr.bf16.mxu0 0
    %3744 = vmatpush1.bf16.msra.mxu0 0
    %3745 = vmatprep.subr.bf16.mxu0 0
    %3746 = vmatpush1.bf16.msra.mxu0 0
    %3747 = vmatprep.subr.bf16.mxu0 0
    %3748 = vmatpush1.bf16.msra.mxu0 0
    %3749 = vmatprep.subr.bf16.mxu0 0
    %3750 = vmatpush1.bf16.msra.mxu0 0
    %3751 = vmatprep.mubr.bf16.mxu0 %v3674
    %3752 = vmatmul.mubr.bf16.gmra.mrb[0].mxu0 %v3229
    %v3753 = vpop.f32.mrb[0].mxu0
    %v3754 = vadd.f32 %v3711, %v3753
    %v3755 = vpop.f32.mrb[0].mxu0
    %v3756 = vadd.f32 %v3713, %v3755
    %v3757 = vpop.f32.mrb[0].mxu0
    %v3758 = vadd.f32 %v3715, %v3757
    %v3759 = vpop.f32.mrb[0].mxu0
    %v3760 = vadd.f32 %v3717, %v3759
    %3761 = vdwg.mxu0
    %v3818 = vunpack.c.l.b16 %v3279
    %v3819 = vunpack.c.h.b16 %v3279
    %v3820 = vunpack.c.l.b16 %v3280
    %v3821 = vunpack.c.h.b16 %v3280
    %v3822 = vunpack.c.l.b16 %v3281
    %v3823 = vunpack.c.h.b16 %v3281
    %v3824 = vunpack.c.l.b16 %v3282
    %v3825 = vunpack.c.h.b16 %v3282
    %v3826 = vunpack.c.l.b16 %v3283
    %v3827 = vunpack.c.h.b16 %v3283
    %v3828 = vunpack.c.l.b16 %v3284
    %v3829 = vunpack.c.h.b16 %v3284
    %v3830 = vunpack.c.l.b16 %v3285
    %v3831 = vunpack.c.h.b16 %v3285
    %v3832 = vunpack.c.l.b16 %v3286
    %v3833 = vunpack.c.h.b16 %v3286
    %v3834 = vunpack.c.l.b16 %v3287
    %v3835 = vunpack.c.h.b16 %v3287
    %v3836 = vunpack.c.l.b16 %v3288
    %v3837 = vunpack.c.h.b16 %v3288
    %v3838 = vunpack.c.l.b16 %v3289
    %v3839 = vunpack.c.h.b16 %v3289
    %v3840 = vunpack.c.l.b16 %v3290
    %v3841 = vunpack.c.h.b16 %v3290
    %v3842 = vunpack.c.l.b16 %v3291
    %v3843 = vunpack.c.h.b16 %v3291
    %v3844 = vunpack.c.l.b16 %v3292
    %v3845 = vunpack.c.h.b16 %v3292
    %v3846 = vunpack.c.l.b16 %v3293
    %v3847 = vunpack.c.h.b16 %v3293
    %v3848 = vunpack.c.l.b16 %v3294
    %v3849 = vunpack.c.h.b16 %v3294
    %v3850 = vunpack.c.l.b16 %v3295
    %v3851 = vunpack.c.h.b16 %v3295
    %v3852 = vunpack.c.l.b16 %v3296
    %v3853 = vunpack.c.h.b16 %v3296
    %v3854 = vunpack.c.l.b16 %v3297
    %v3855 = vunpack.c.h.b16 %v3297
    %v3856 = vunpack.c.l.b16 %v3298
    %v3857 = vunpack.c.h.b16 %v3298
    %v3858 = vunpack.c.l.b16 %v3299
    %v3859 = vunpack.c.h.b16 %v3299
    %v3860 = vunpack.c.l.b16 %v3300
    %v3861 = vunpack.c.h.b16 %v3300
    %v3862 = vunpack.c.l.b16 %v3301
    %v3863 = vunpack.c.h.b16 %v3301
    %v3864 = vunpack.c.l.b16 %v3302
    %v3865 = vunpack.c.h.b16 %v3302
    %v3866 = vunpack.c.l.b16 %v3303
    %v3867 = vunpack.c.h.b16 %v3303
    %v3868 = vunpack.c.l.b16 %v3304
    %v3869 = vunpack.c.h.b16 %v3304
    %v3870 = vunpack.c.l.b16 %v3305
    %v3871 = vunpack.c.h.b16 %v3305
    %v3872 = vunpack.c.l.b16 %v3306
    %v3873 = vunpack.c.h.b16 %v3306
    %v3874 = vunpack.c.l.b16 %v3307
    %v3875 = vunpack.c.h.b16 %v3307
    %v3876 = vunpack.c.l.b16 %v3308
    %v3877 = vunpack.c.h.b16 %v3308
    %v3878 = vunpack.c.l.b16 %v3309
    %v3879 = vunpack.c.h.b16 %v3309
    %v3880 = vunpack.c.l.b16 %v3310
    %v3881 = vunpack.c.h.b16 %v3310
    %v3882 = vunpack.c.l.b16 %v3311
    %v3883 = vunpack.c.h.b16 %v3311
    %v3884 = vunpack.c.l.b16 %v3312
    %v3885 = vunpack.c.h.b16 %v3312
    %v3886 = vunpack.c.l.b16 %v3313
    %v3887 = vunpack.c.h.b16 %v3313
    %v3888 = vunpack.c.l.b16 %v3314
    %v3889 = vunpack.c.h.b16 %v3314
    %v3890 = vunpack.c.l.b16 %v3315
    %v3891 = vunpack.c.h.b16 %v3315
    %v3892 = vunpack.c.l.b16 %v3316
    %v3893 = vunpack.c.h.b16 %v3316
    %v3894 = vunpack.c.l.b16 %v3317
    %v3895 = vunpack.c.h.b16 %v3317
    %v3896 = vunpack.c.l.b16 %v3318
    %v3897 = vunpack.c.h.b16 %v3318
    %v3898 = vunpack.c.l.b16 %v3319
    %v3899 = vunpack.c.h.b16 %v3319
    %v3900 = vunpack.c.l.b16 %v3320
    %v3901 = vunpack.c.h.b16 %v3320
    %v3902 = vunpack.c.l.b16 %v3321
    %v3903 = vunpack.c.h.b16 %v3321
    %v3904 = vunpack.c.l.b16 %v3322
    %v3905 = vunpack.c.h.b16 %v3322
    %v3906 = vunpack.c.l.b16 %v3323
    %v3907 = vunpack.c.h.b16 %v3323
    %v3908 = vunpack.c.l.b16 %v3324
    %v3909 = vunpack.c.h.b16 %v3324
    %v3910 = vunpack.c.l.b16 %v3325
    %v3911 = vunpack.c.h.b16 %v3325
    %v3912 = vunpack.c.l.b16 %v3326
    %v3913 = vunpack.c.h.b16 %v3326
    %v3914 = vunpack.c.l.b16 %v3327
    %v3915 = vunpack.c.h.b16 %v3327
    %v3916 = vunpack.c.l.b16 %v3328
    %v3917 = vunpack.c.h.b16 %v3328
    %v3918 = vunpack.c.l.b16 %v3329
    %v3919 = vunpack.c.h.b16 %v3329
    %v3920 = vunpack.c.l.b16 %v3330
    %v3921 = vunpack.c.h.b16 %v3330
    %v3922 = vunpack.c.l.b16 %v3331
    %v3923 = vunpack.c.h.b16 %v3331
    %v3924 = vunpack.c.l.b16 %v3332
    %v3925 = vunpack.c.h.b16 %v3332
    %v3926 = vunpack.c.l.b16 %v3333
    %v3927 = vunpack.c.h.b16 %v3333
    %v3928 = vunpack.c.l.b16 %v3334
    %v3929 = vunpack.c.h.b16 %v3334
    %v3930 = vpack.c.b16 %v3820, %v3818
    %v3931 = vpack.c.b16 %v3821, %v3819
    %v3932 = vpack.c.b16 %v3824, %v3822
    %v3933 = vpack.c.b16 %v3825, %v3823
    %v3934 = vpack.c.b16 %v3828, %v3826
    %v3935 = vpack.c.b16 %v3829, %v3827
    %v3936 = vpack.c.b16 %v3832, %v3830
    %v3937 = vpack.c.b16 %v3833, %v3831
    %v3938 = vpack.c.b16 %v3836, %v3834
    %v3939 = vpack.c.b16 %v3837, %v3835
    %v3940 = vpack.c.b16 %v3840, %v3838
    %v3941 = vpack.c.b16 %v3841, %v3839
    %v3942 = vpack.c.b16 %v3844, %v3842
    %v3943 = vpack.c.b16 %v3845, %v3843
    %v3944 = vpack.c.b16 %v3848, %v3846
    %v3945 = vpack.c.b16 %v3849, %v3847
    %v3946 = vpack.c.b16 %v3852, %v3850
    %v3947 = vpack.c.b16 %v3853, %v3851
    %v3948 = vpack.c.b16 %v3856, %v3854
    %v3949 = vpack.c.b16 %v3857, %v3855
    %v3950 = vpack.c.b16 %v3860, %v3858
    %v3951 = vpack.c.b16 %v3861, %v3859
    %v3952 = vpack.c.b16 %v3864, %v3862
    %v3953 = vpack.c.b16 %v3865, %v3863
    %v3954 = vpack.c.b16 %v3868, %v3866
    %v3955 = vpack.c.b16 %v3869, %v3867
    %v3956 = vpack.c.b16 %v3872, %v3870
    %v3957 = vpack.c.b16 %v3873, %v3871
    %v3958 = vpack.c.b16 %v3876, %v3874
    %v3959 = vpack.c.b16 %v3877, %v3875
    %v3960 = vpack.c.b16 %v3880, %v3878
    %v3961 = vpack.c.b16 %v3881, %v3879
    %v3962 = vpack.c.b16 %v3884, %v3882
    %v3963 = vpack.c.b16 %v3885, %v3883
    %v3964 = vpack.c.b16 %v3888, %v3886
    %v3965 = vpack.c.b16 %v3889, %v3887
    %v3966 = vpack.c.b16 %v3892, %v3890
    %v3967 = vpack.c.b16 %v3893, %v3891
    %v3968 = vpack.c.b16 %v3896, %v3894
    %v3969 = vpack.c.b16 %v3897, %v3895
    %v3970 = vpack.c.b16 %v3900, %v3898
    %v3971 = vpack.c.b16 %v3901, %v3899
    %v3972 = vpack.c.b16 %v3904, %v3902
    %v3973 = vpack.c.b16 %v3905, %v3903
    %v3974 = vpack.c.b16 %v3908, %v3906
    %v3975 = vpack.c.b16 %v3909, %v3907
    %v3976 = vpack.c.b16 %v3912, %v3910
    %v3977 = vpack.c.b16 %v3913, %v3911
    %v3978 = vpack.c.b16 %v3916, %v3914
    %v3979 = vpack.c.b16 %v3917, %v3915
    %v3980 = vpack.c.b16 %v3920, %v3918
    %v3981 = vpack.c.b16 %v3921, %v3919
    %v3982 = vpack.c.b16 %v3924, %v3922
    %v3983 = vpack.c.b16 %v3925, %v3923
    %v3984 = vpack.c.b16 %v3928, %v3926
    %v3985 = vpack.c.b16 %v3929, %v3927
    %v4043 = vsel %vm3672, %v3226, 0
    %4045 = vmatprep.subr.bf16.mxu0 %v3931
    %4046 = vmatpush1.bf16.msra.mxu0 %v3930
    %4047 = vmatprep.subr.bf16.mxu0 %v3933
    %4048 = vmatpush1.bf16.msra.mxu0 %v3932
    %4049 = vmatprep.subr.bf16.mxu0 %v3935
    %4050 = vmatpush1.bf16.msra.mxu0 %v3934
    %4051 = vmatprep.subr.bf16.mxu0 %v3937
    %4052 = vmatpush1.bf16.msra.mxu0 %v3936
    %4053 = vmatprep.subr.bf16.mxu0 %v3939
    %4054 = vmatpush1.bf16.msra.mxu0 %v3938
    %4055 = vmatprep.subr.bf16.mxu0 %v3941
    %4056 = vmatpush1.bf16.msra.mxu0 %v3940
    %4057 = vmatprep.subr.bf16.mxu0 %v3943
    %4058 = vmatpush1.bf16.msra.mxu0 %v3942
    %4059 = vmatprep.subr.bf16.mxu0 %v3945
    %4060 = vmatpush1.bf16.msra.mxu0 %v3944
    %4061 = vmatprep.subr.bf16.mxu0 %v3947
    %4062 = vmatpush1.bf16.msra.mxu0 %v3946
    %4063 = vmatprep.subr.bf16.mxu0 %v3949
    %4064 = vmatpush1.bf16.msra.mxu0 %v3948
    %4065 = vmatprep.subr.bf16.mxu0 %v3951
    %4066 = vmatpush1.bf16.msra.mxu0 %v3950
    %4067 = vmatprep.subr.bf16.mxu0 %v3953
    %4068 = vmatpush1.bf16.msra.mxu0 %v3952
    %4069 = vmatprep.subr.bf16.mxu0 %v3955
    %4070 = vmatpush1.bf16.msra.mxu0 %v3954
    %4071 = vmatprep.subr.bf16.mxu0 %v3957
    %4072 = vmatpush1.bf16.msra.mxu0 %v3956
    %4073 = vmatprep.subr.bf16.mxu0 %v3959
    %4074 = vmatpush1.bf16.msra.mxu0 %v3958
    %4075 = vmatprep.subr.bf16.mxu0 %v3961
    %4076 = vmatpush1.bf16.msra.mxu0 %v3960
    %4077 = vmatprep.mubr.bf16.mxu0 %v3224
    %4078 = vmatmul.mubr.bf16.gmra.mrb[0].mxu0 %v3223
    %v4079 = vpop.f32.mrb[0].mxu0
    %v4080 = vadd.f32 %v3754, %v4079
    %v4081 = vpop.f32.mrb[0].mxu0
    %v4082 = vadd.f32 %v3756, %v4081
    %v4083 = vpop.f32.mrb[0].mxu0
    %v4084 = vadd.f32 %v3758, %v4083
    %v4085 = vpop.f32.mrb[0].mxu0
    %v4086 = vadd.f32 %v3760, %v4085
    %4087 = vdwg.mxu0
    %4088 = vmatprep.subr.bf16.mxu0 %v3963
    %4089 = vmatpush1.bf16.msra.mxu0 %v3962
    %4090 = vmatprep.subr.bf16.mxu0 %v3965
    %4091 = vmatpush1.bf16.msra.mxu0 %v3964
    %4092 = vmatprep.subr.bf16.mxu0 %v3967
    %4093 = vmatpush1.bf16.msra.mxu0 %v3966
    %4094 = vmatprep.subr.bf16.mxu0 %v3969
    %4095 = vmatpush1.bf16.msra.mxu0 %v3968
    %4096 = vmatprep.subr.bf16.mxu0 %v3971
    %4097 = vmatpush1.bf16.msra.mxu0 %v3970
    %4098 = vmatprep.subr.bf16.mxu0 %v3973
    %4099 = vmatpush1.bf16.msra.mxu0 %v3972
    %4100 = vmatprep.subr.bf16.mxu0 %v3975
    %4101 = vmatpush1.bf16.msra.mxu0 %v3974
    %4102 = vmatprep.subr.bf16.mxu0 %v3977
    %4103 = vmatpush1.bf16.msra.mxu0 %v3976
    %4104 = vmatprep.subr.bf16.mxu0 %v3979
    %4105 = vmatpush1.bf16.msra.mxu0 %v3978
    %4106 = vmatprep.subr.bf16.mxu0 %v3981
    %4107 = vmatpush1.bf16.msra.mxu0 %v3980
    %4108 = vmatprep.subr.bf16.mxu0 %v3983
    %4109 = vmatpush1.bf16.msra.mxu0 %v3982
    %4110 = vmatprep.subr.bf16.mxu0 %v3985
    %4111 = vmatpush1.bf16.msra.mxu0 %v3984
    %4112 = vmatprep.subr.bf16.mxu0 0
    %4113 = vmatpush1.bf16.msra.mxu0 0
    %4114 = vmatprep.subr.bf16.mxu0 0
    %4115 = vmatpush1.bf16.msra.mxu0 0
    %4116 = vmatprep.subr.bf16.mxu0 0
    %4117 = vmatpush1.bf16.msra.mxu0 0
    %4118 = vmatprep.subr.bf16.mxu0 0
    %4119 = vmatpush1.bf16.msra.mxu0 0
    %4120 = vmatprep.mubr.bf16.mxu0 %v4043
    %4121 = vmatmul.mubr.bf16.gmra.mrb[0].mxu0 %v3225
    %v4122 = vpop.f32.mrb[0].mxu0
    %v4123 = vadd.f32 %v4080, %v4122
    %v4124 = vpop.f32.mrb[0].mxu0
    %v4125 = vadd.f32 %v4082, %v4124
    %v4126 = vpop.f32.mrb[0].mxu0
    %v4127 = vadd.f32 %v4084, %v4126
    %v4128 = vpop.f32.mrb[0].mxu0
    %v4129 = vadd.f32 %v4086, %v4128
    %4130 = vdwg.mxu0
    %s4131 = scalar_lea.vmem [#allocation4], 896
    %v4132 = vld [vmem:[%s4131] sm:$0xff]
    %v4133 = vld [vmem:[%s4131 + $0x8] sm:$0xff]
    %v4134 = vld [vmem:[%s4131 + $0x10] sm:$0xff]
    %v4135 = vld [vmem:[%s4131 + $0x18] sm:$0xff]
    %v4136 = vld [vmem:[%s4131 + $0x20] sm:$0xff]
    %v4137 = vld [vmem:[%s4131 + $0x28] sm:$0xff]
    %v4138 = vld [vmem:[%s4131 + $0x30] sm:$0xff]
    %v4139 = vld [vmem:[%s4131 + $0x38] sm:$0xff]
    %v4140 = vld [vmem:[%s4131 + $0x40] sm:$0xff]
    %v4141 = vld [vmem:[%s4131 + $0x48] sm:$0xff]
    %v4142 = vld [vmem:[%s4131 + $0x50] sm:$0xff]
    %v4143 = vld [vmem:[%s4131 + $0x58] sm:$0xff]
    %v4144 = vld [vmem:[%s4131 + $0x60] sm:$0xff]
    %v4145 = vld [vmem:[%s4131 + $0x68] sm:$0xff]
    %v4146 = vld [vmem:[%s4131 + $0x70] sm:$0xff]
    %v4147 = vld [vmem:[%s4131 + $0x78] sm:$0xff]
    %v4148 = vld [vmem:[%s4131 + $0x80] sm:$0xff]
    %v4149 = vld [vmem:[%s4131 + $0x88] sm:$0xff]
    %v4150 = vld [vmem:[%s4131 + $0x90] sm:$0xff]
    %v4151 = vld [vmem:[%s4131 + $0x98] sm:$0xff]
    %v4152 = vld [vmem:[%s4131 + $0xa0] sm:$0xff]
    %v4153 = vld [vmem:[%s4131 + $0xa8] sm:$0xff]
    %v4154 = vld [vmem:[%s4131 + $0xb0] sm:$0xff]
    %v4155 = vld [vmem:[%s4131 + $0xb8] sm:$0xff]
    %v4156 = vld [vmem:[%s4131 + $0xc0] sm:$0xff]
    %v4157 = vld [vmem:[%s4131 + $0xc8] sm:$0xff]
    %v4158 = vld [vmem:[%s4131 + $0xd0] sm:$0xff]
    %v4159 = vld [vmem:[%s4131 + $0xd8] sm:$0xff]
    %v4160 = vld [vmem:[%s4131 + $0xe0] sm:$0xff]
    %v4161 = vld [vmem:[%s4131 + $0xe8] sm:$0xff]
    %v4162 = vld [vmem:[%s4131 + $0xf0] sm:$0xff]
    %v4163 = vld [vmem:[%s4131 + $0xf8] sm:$0xff]
    %v4164 = vld [vmem:[%s4131 + $0x100] sm:$0xff]
    %v4165 = vld [vmem:[%s4131 + $0x108] sm:$0xff]
    %v4166 = vld [vmem:[%s4131 + $0x110] sm:$0xff]
    %v4167 = vld [vmem:[%s4131 + $0x118] sm:$0xff]
    %v4168 = vld [vmem:[%s4131 + $0x120] sm:$0xff]
    %v4169 = vld [vmem:[%s4131 + $0x128] sm:$0xff]
    %v4170 = vld [vmem:[%s4131 + $0x130] sm:$0xff]
    %v4171 = vld [vmem:[%s4131 + $0x138] sm:$0xff]
    %v4172 = vld [vmem:[%s4131 + $0x140] sm:$0xff]
    %v4173 = vld [vmem:[%s4131 + $0x148] sm:$0xff]
    %v4174 = vld [vmem:[%s4131 + $0x150] sm:$0xff]
    %v4175 = vld [vmem:[%s4131 + $0x158] sm:$0xff]
    %v4176 = vld [vmem:[%s4131 + $0x160] sm:$0xff]
    %v4177 = vld [vmem:[%s4131 + $0x168] sm:$0xff]
    %v4178 = vld [vmem:[%s4131 + $0x170] sm:$0xff]
    %v4179 = vld [vmem:[%s4131 + $0x178] sm:$0xff]
    %v4180 = vld [vmem:[%s4131 + $0x180] sm:$0xff]
    %v4181 = vld [vmem:[%s4131 + $0x188] sm:$0xff]
    %v4182 = vld [vmem:[%s4131 + $0x190] sm:$0xff]
    %v4183 = vld [vmem:[%s4131 + $0x198] sm:$0xff]
    %v4184 = vld [vmem:[%s4131 + $0x1a0] sm:$0xff]
    %v4185 = vld [vmem:[%s4131 + $0x1a8] sm:$0xff]
    %v4186 = vld [vmem:[%s4131 + $0x1b0] sm:$0xff]
    %v4187 = vld [vmem:[%s4131 + $0x1b8] sm:$0xff]
    %v4244 = vunpack.c.l.b16 %v4132
    %v4245 = vunpack.c.h.b16 %v4132
    %v4246 = vunpack.c.l.b16 %v4133
    %v4247 = vunpack.c.h.b16 %v4133
    %v4248 = vunpack.c.l.b16 %v4134
    %v4249 = vunpack.c.h.b16 %v4134
    %v4250 = vunpack.c.l.b16 %v4135
    %v4251 = vunpack.c.h.b16 %v4135
    %v4252 = vunpack.c.l.b16 %v4136
    %v4253 = vunpack.c.h.b16 %v4136
    %v4254 = vunpack.c.l.b16 %v4137
    %v4255 = vunpack.c.h.b16 %v4137
    %v4256 = vunpack.c.l.b16 %v4138
    %v4257 = vunpack.c.h.b16 %v4138
    %v4258 = vunpack.c.l.b16 %v4139
    %v4259 = vunpack.c.h.b16 %v4139
    %v4260 = vunpack.c.l.b16 %v4140
    %v4261 = vunpack.c.h.b16 %v4140
    %v4262 = vunpack.c.l.b16 %v4141
    %v4263 = vunpack.c.h.b16 %v4141
    %v4264 = vunpack.c.l.b16 %v4142
    %v4265 = vunpack.c.h.b16 %v4142
    %v4266 = vunpack.c.l.b16 %v4143
    %v4267 = vunpack.c.h.b16 %v4143
    %v4268 = vunpack.c.l.b16 %v4144
    %v4269 = vunpack.c.h.b16 %v4144
    %v4270 = vunpack.c.l.b16 %v4145
    %v4271 = vunpack.c.h.b16 %v4145
    %v4272 = vunpack.c.l.b16 %v4146
    %v4273 = vunpack.c.h.b16 %v4146
    %v4274 = vunpack.c.l.b16 %v4147
    %v4275 = vunpack.c.h.b16 %v4147
    %v4276 = vunpack.c.l.b16 %v4148
    %v4277 = vunpack.c.h.b16 %v4148
    %v4278 = vunpack.c.l.b16 %v4149
    %v4279 = vunpack.c.h.b16 %v4149
    %v4280 = vunpack.c.l.b16 %v4150
    %v4281 = vunpack.c.h.b16 %v4150
    %v4282 = vunpack.c.l.b16 %v4151
    %v4283 = vunpack.c.h.b16 %v4151
    %v4284 = vunpack.c.l.b16 %v4152
    %v4285 = vunpack.c.h.b16 %v4152
    %v4286 = vunpack.c.l.b16 %v4153
    %v4287 = vunpack.c.h.b16 %v4153
    %v4288 = vunpack.c.l.b16 %v4154
    %v4289 = vunpack.c.h.b16 %v4154
    %v4290 = vunpack.c.l.b16 %v4155
    %v4291 = vunpack.c.h.b16 %v4155
    %v4292 = vunpack.c.l.b16 %v4156
    %v4293 = vunpack.c.h.b16 %v4156
    %v4294 = vunpack.c.l.b16 %v4157
    %v4295 = vunpack.c.h.b16 %v4157
    %v4296 = vunpack.c.l.b16 %v4158
    %v4297 = vunpack.c.h.b16 %v4158
    %v4298 = vunpack.c.l.b16 %v4159
    %v4299 = vunpack.c.h.b16 %v4159
    %v4300 = vunpack.c.l.b16 %v4160
    %v4301 = vunpack.c.h.b16 %v4160
    %v4302 = vunpack.c.l.b16 %v4161
    %v4303 = vunpack.c.h.b16 %v4161
    %v4304 = vunpack.c.l.b16 %v4162
    %v4305 = vunpack.c.h.b16 %v4162
    %v4306 = vunpack.c.l.b16 %v4163
    %v4307 = vunpack.c.h.b16 %v4163
    %v4308 = vunpack.c.l.b16 %v4164
    %v4309 = vunpack.c.h.b16 %v4164
    %v4310 = vunpack.c.l.b16 %v4165
    %v4311 = vunpack.c.h.b16 %v4165
    %v4312 = vunpack.c.l.b16 %v4166
    %v4313 = vunpack.c.h.b16 %v4166
    %v4314 = vunpack.c.l.b16 %v4167
    %v4315 = vunpack.c.h.b16 %v4167
    %v4316 = vunpack.c.l.b16 %v4168
    %v4317 = vunpack.c.h.b16 %v4168
    %v4318 = vunpack.c.l.b16 %v4169
    %v4319 = vunpack.c.h.b16 %v4169
    %v4320 = vunpack.c.l.b16 %v4170
    %v4321 = vunpack.c.h.b16 %v4170
    %v4322 = vunpack.c.l.b16 %v4171
    %v4323 = vunpack.c.h.b16 %v4171
    %v4324 = vunpack.c.l.b16 %v4172
    %v4325 = vunpack.c.h.b16 %v4172
    %v4326 = vunpack.c.l.b16 %v4173
    %v4327 = vunpack.c.h.b16 %v4173
    %v4328 = vunpack.c.l.b16 %v4174
    %v4329 = vunpack.c.h.b16 %v4174
    %v4330 = vunpack.c.l.b16 %v4175
    %v4331 = vunpack.c.h.b16 %v4175
    %v4332 = vunpack.c.l.b16 %v4176
    %v4333 = vunpack.c.h.b16 %v4176
    %v4334 = vunpack.c.l.b16 %v4177
    %v4335 = vunpack.c.h.b16 %v4177
    %v4336 = vunpack.c.l.b16 %v4178
    %v4337 = vunpack.c.h.b16 %v4178
    %v4338 = vunpack.c.l.b16 %v4179
    %v4339 = vunpack.c.h.b16 %v4179
    %v4340 = vunpack.c.l.b16 %v4180
    %v4341 = vunpack.c.h.b16 %v4180
    %v4342 = vunpack.c.l.b16 %v4181
    %v4343 = vunpack.c.h.b16 %v4181
    %v4344 = vunpack.c.l.b16 %v4182
    %v4345 = vunpack.c.h.b16 %v4182
    %v4346 = vunpack.c.l.b16 %v4183
    %v4347 = vunpack.c.h.b16 %v4183
    %v4348 = vunpack.c.l.b16 %v4184
    %v4349 = vunpack.c.h.b16 %v4184
    %v4350 = vunpack.c.l.b16 %v4185
    %v4351 = vunpack.c.h.b16 %v4185
    %v4352 = vunpack.c.l.b16 %v4186
    %v4353 = vunpack.c.h.b16 %v4186
    %v4354 = vunpack.c.l.b16 %v4187
    %v4355 = vunpack.c.h.b16 %v4187
    %v4356 = vpack.c.b16 %v4246, %v4244
    %v4357 = vpack.c.b16 %v4247, %v4245
    %v4358 = vpack.c.b16 %v4250, %v4248
    %v4359 = vpack.c.b16 %v4251, %v4249
    %v4360 = vpack.c.b16 %v4254, %v4252
    %v4361 = vpack.c.b16 %v4255, %v4253
    %v4362 = vpack.c.b16 %v4258, %v4256
    %v4363 = vpack.c.b16 %v4259, %v4257
    %v4364 = vpack.c.b16 %v4262, %v4260
    %v4365 = vpack.c.b16 %v4263, %v4261
    %v4366 = vpack.c.b16 %v4266, %v4264
    %v4367 = vpack.c.b16 %v4267, %v4265
    %v4368 = vpack.c.b16 %v4270, %v4268
    %v4369 = vpack.c.b16 %v4271, %v4269
    %v4370 = vpack.c.b16 %v4274, %v4272
    %v4371 = vpack.c.b16 %v4275, %v4273
    %v4372 = vpack.c.b16 %v4278, %v4276
    %v4373 = vpack.c.b16 %v4279, %v4277
    %v4374 = vpack.c.b16 %v4282, %v4280
    %v4375 = vpack.c.b16 %v4283, %v4281
    %v4376 = vpack.c.b16 %v4286, %v4284
    %v4377 = vpack.c.b16 %v4287, %v4285
    %v4378 = vpack.c.b16 %v4290, %v4288
    %v4379 = vpack.c.b16 %v4291, %v4289
    %v4380 = vpack.c.b16 %v4294, %v4292
    %v4381 = vpack.c.b16 %v4295, %v4293
    %v4382 = vpack.c.b16 %v4298, %v4296
    %v4383 = vpack.c.b16 %v4299, %v4297
    %v4384 = vpack.c.b16 %v4302, %v4300
    %v4385 = vpack.c.b16 %v4303, %v4301
    %v4386 = vpack.c.b16 %v4306, %v4304
    %v4387 = vpack.c.b16 %v4307, %v4305
    %v4388 = vpack.c.b16 %v4310, %v4308
    %v4389 = vpack.c.b16 %v4311, %v4309
    %v4390 = vpack.c.b16 %v4314, %v4312
    %v4391 = vpack.c.b16 %v4315, %v4313
    %v4392 = vpack.c.b16 %v4318, %v4316
    %v4393 = vpack.c.b16 %v4319, %v4317
    %v4394 = vpack.c.b16 %v4322, %v4320
    %v4395 = vpack.c.b16 %v4323, %v4321
    %v4396 = vpack.c.b16 %v4326, %v4324
    %v4397 = vpack.c.b16 %v4327, %v4325
    %v4398 = vpack.c.b16 %v4330, %v4328
    %v4399 = vpack.c.b16 %v4331, %v4329
    %v4400 = vpack.c.b16 %v4334, %v4332
    %v4401 = vpack.c.b16 %v4335, %v4333
    %v4402 = vpack.c.b16 %v4338, %v4336
    %v4403 = vpack.c.b16 %v4339, %v4337
    %v4404 = vpack.c.b16 %v4342, %v4340
    %v4405 = vpack.c.b16 %v4343, %v4341
    %v4406 = vpack.c.b16 %v4346, %v4344
    %v4407 = vpack.c.b16 %v4347, %v4345
    %v4408 = vpack.c.b16 %v4350, %v4348
    %v4409 = vpack.c.b16 %v4351, %v4349
    %v4410 = vpack.c.b16 %v4354, %v4352
    %v4411 = vpack.c.b16 %v4355, %v4353
    %v4469 = vsel %vm3672, %v3234, 0
    %4471 = vmatprep.subr.bf16.mxu0 %v4357
    %4472 = vmatpush1.bf16.msra.mxu0 %v4356
    %4473 = vmatprep.subr.bf16.mxu0 %v4359
    %4474 = vmatpush1.bf16.msra.mxu0 %v4358
    %4475 = vmatprep.subr.bf16.mxu0 %v4361
    %4476 = vmatpush1.bf16.msra.mxu0 %v4360
    %4477 = vmatprep.subr.bf16.mxu0 %v4363
    %4478 = vmatpush1.bf16.msra.mxu0 %v4362
    %4479 = vmatprep.subr.bf16.mxu0 %v4365
    %4480 = vmatpush1.bf16.msra.mxu0 %v4364
    %4481 = vmatprep.subr.bf16.mxu0 %v4367
    %4482 = vmatpush1.bf16.msra.mxu0 %v4366
    %4483 = vmatprep.subr.bf16.mxu0 %v4369
    %4484 = vmatpush1.bf16.msra.mxu0 %v4368
    %4485 = vmatprep.subr.bf16.mxu0 %v4371
    %4486 = vmatpush1.bf16.msra.mxu0 %v4370
    %4487 = vmatprep.subr.bf16.mxu0 %v4373
    %4488 = vmatpush1.bf16.msra.mxu0 %v4372
    %4489 = vmatprep.subr.bf16.mxu0 %v4375
    %4490 = vmatpush1.bf16.msra.mxu0 %v4374
    %4491 = vmatprep.subr.bf16.mxu0 %v4377
    %4492 = vmatpush1.bf16.msra.mxu0 %v4376
    %4493 = vmatprep.subr.bf16.mxu0 %v4379
    %4494 = vmatpush1.bf16.msra.mxu0 %v4378
    %4495 = vmatprep.subr.bf16.mxu0 %v4381
    %4496 = vmatpush1.bf16.msra.mxu0 %v4380
    %4497 = vmatprep.subr.bf16.mxu0 %v4383
    %4498 = vmatpush1.bf16.msra.mxu0 %v4382
    %4499 = vmatprep.subr.bf16.mxu0 %v4385
    %4500 = vmatpush1.bf16.msra.mxu0 %v4384
    %4501 = vmatprep.subr.bf16.mxu0 %v4387
    %4502 = vmatpush1.bf16.msra.mxu0 %v4386
    %4503 = vmatprep.mubr.bf16.mxu0 %v3232
    %4504 = vmatmul.mubr.bf16.gmra.mrb[0].mxu0 %v3231
    %v4505 = vpop.f32.mrb[0].mxu0
    %v4506 = vadd.f32 0.0, %v4505
    %v4507 = vpop.f32.mrb[0].mxu0
    %v4508 = vadd.f32 0.0, %v4507
    %v4509 = vpop.f32.mrb[0].mxu0
    %v4510 = vadd.f32 0.0, %v4509
    %v4511 = vpop.f32.mrb[0].mxu0
    %v4512 = vadd.f32 0.0, %v4511
    %4513 = vdwg.mxu0
    %4514 = vmatprep.subr.bf16.mxu0 %v4389
    %4515 = vmatpush1.bf16.msra.mxu0 %v4388
    %4516 = vmatprep.subr.bf16.mxu0 %v4391
    %4517 = vmatpush1.bf16.msra.mxu0 %v4390
    %4518 = vmatprep.subr.bf16.mxu0 %v4393
    %4519 = vmatpush1.bf16.msra.mxu0 %v4392
    %4520 = vmatprep.subr.bf16.mxu0 %v4395
    %4521 = vmatpush1.bf16.msra.mxu0 %v4394
    %4522 = vmatprep.subr.bf16.mxu0 %v4397
    %4523 = vmatpush1.bf16.msra.mxu0 %v4396
    %4524 = vmatprep.subr.bf16.mxu0 %v4399
    %4525 = vmatpush1.bf16.msra.mxu0 %v4398
    %4526 = vmatprep.subr.bf16.mxu0 %v4401
    %4527 = vmatpush1.bf16.msra.mxu0 %v4400
    %4528 = vmatprep.subr.bf16.mxu0 %v4403
    %4529 = vmatpush1.bf16.msra.mxu0 %v4402
    %4530 = vmatprep.subr.bf16.mxu0 %v4405
    %4531 = vmatpush1.bf16.msra.mxu0 %v4404
    %4532 = vmatprep.subr.bf16.mxu0 %v4407
    %4533 = vmatpush1.bf16.msra.mxu0 %v4406
    %4534 = vmatprep.subr.bf16.mxu0 %v4409
    %4535 = vmatpush1.bf16.msra.mxu0 %v4408
    %4536 = vmatprep.subr.bf16.mxu0 %v4411
    %4537 = vmatpush1.bf16.msra.mxu0 %v4410
    %4538 = vmatprep.subr.bf16.mxu0 0
    %4539 = vmatpush1.bf16.msra.mxu0 0
    %4540 = vmatprep.subr.bf16.mxu0 0
    %4541 = vmatpush1.bf16.msra.mxu0 0
    %4542 = vmatprep.subr.bf16.mxu0 0
    %4543 = vmatpush1.bf16.msra.mxu0 0
    %4544 = vmatprep.subr.bf16.mxu0 0
    %4545 = vmatpush1.bf16.msra.mxu0 0
    %4546 = vmatprep.mubr.bf16.mxu0 %v4469
    %4547 = vmatmul.mubr.bf16.gmra.mrb[0].mxu0 %v3233
    %v4548 = vpop.f32.mrb[0].mxu0
    %v4549 = vadd.f32 %v4506, %v4548
    %v4550 = vpop.f32.mrb[0].mxu0
    %v4551 = vadd.f32 %v4508, %v4550
    %v4552 = vpop.f32.mrb[0].mxu0
    %v4553 = vadd.f32 %v4510, %v4552
    %v4554 = vpop.f32.mrb[0].mxu0
    %v4555 = vadd.f32 %v4512, %v4554
    %4556 = vdwg.mxu0
    %v4557 = vadd.f32 %v4123, %v4549
    %v4558 = vadd.f32 %v4125, %v4551
    %v4559 = vadd.f32 %v4127, %v4553
    %v4560 = vadd.f32 %v4129, %v4555
    %s4561 = scalar_lea.vmem [#allocation4], 1344
    %v4562 = vld [vmem:[%s4561] sm:$0xff]
    %v4563 = vld [vmem:[%s4561 + $0x8] sm:$0xff]
    %v4564 = vld [vmem:[%s4561 + $0x10] sm:$0xff]
    %v4565 = vld [vmem:[%s4561 + $0x18] sm:$0xff]
    %v4566 = vld [vmem:[%s4561 + $0x20] sm:$0xff]
    %v4567 = vld [vmem:[%s4561 + $0x28] sm:$0xff]
    %v4568 = vld [vmem:[%s4561 + $0x30] sm:$0xff]
    %v4569 = vld [vmem:[%s4561 + $0x38] sm:$0xff]
    %v4570 = vld [vmem:[%s4561 + $0x40] sm:$0xff]
    %v4571 = vld [vmem:[%s4561 + $0x48] sm:$0xff]
    %v4572 = vld [vmem:[%s4561 + $0x50] sm:$0xff]
    %v4573 = vld [vmem:[%s4561 + $0x58] sm:$0xff]
    %v4574 = vld [vmem:[%s4561 + $0x60] sm:$0xff]
    %v4575 = vld [vmem:[%s4561 + $0x68] sm:$0xff]
    %v4576 = vld [vmem:[%s4561 + $0x70] sm:$0xff]
    %v4577 = vld [vmem:[%s4561 + $0x78] sm:$0xff]
    %v4578 = vld [vmem:[%s4561 + $0x80] sm:$0xff]
    %v4579 = vld [vmem:[%s4561 + $0x88] sm:$0xff]
    %v4580 = vld [vmem:[%s4561 + $0x90] sm:$0xff]
    %v4581 = vld [vmem:[%s4561 + $0x98] sm:$0xff]
    %v4582 = vld [vmem:[%s4561 + $0xa0] sm:$0xff]
    %v4583 = vld [vmem:[%s4561 + $0xa8] sm:$0xff]
    %v4584 = vld [vmem:[%s4561 + $0xb0] sm:$0xff]
    %v4585 = vld [vmem:[%s4561 + $0xb8] sm:$0xff]
    %v4586 = vld [vmem:[%s4561 + $0xc0] sm:$0xff]
    %v4587 = vld [vmem:[%s4561 + $0xc8] sm:$0xff]
    %v4588 = vld [vmem:[%s4561 + $0xd0] sm:$0xff]
    %v4589 = vld [vmem:[%s4561 + $0xd8] sm:$0xff]
    %v4590 = vld [vmem:[%s4561 + $0xe0] sm:$0xff]
    %v4591 = vld [vmem:[%s4561 + $0xe8] sm:$0xff]
    %v4592 = vld [vmem:[%s4561 + $0xf0] sm:$0xff]
    %v4593 = vld [vmem:[%s4561 + $0xf8] sm:$0xff]
    %v4594 = vld [vmem:[%s4561 + $0x100] sm:$0xff]
    %v4595 = vld [vmem:[%s4561 + $0x108] sm:$0xff]
    %v4596 = vld [vmem:[%s4561 + $0x110] sm:$0xff]
    %v4597 = vld [vmem:[%s4561 + $0x118] sm:$0xff]
    %v4598 = vld [vmem:[%s4561 + $0x120] sm:$0xff]
    %v4599 = vld [vmem:[%s4561 + $0x128] sm:$0xff]
    %v4600 = vld [vmem:[%s4561 + $0x130] sm:$0xff]
    %v4601 = vld [vmem:[%s4561 + $0x138] sm:$0xff]
    %v4602 = vld [vmem:[%s4561 + $0x140] sm:$0xff]
    %v4603 = vld [vmem:[%s4561 + $0x148] sm:$0xff]
    %v4604 = vld [vmem:[%s4561 + $0x150] sm:$0xff]
    %v4605 = vld [vmem:[%s4561 + $0x158] sm:$0xff]
    %v4606 = vld [vmem:[%s4561 + $0x160] sm:$0xff]
    %v4607 = vld [vmem:[%s4561 + $0x168] sm:$0xff]
    %v4608 = vld [vmem:[%s4561 + $0x170] sm:$0xff]
    %v4609 = vld [vmem:[%s4561 + $0x178] sm:$0xff]
    %v4610 = vld [vmem:[%s4561 + $0x180] sm:$0xff]
    %v4611 = vld [vmem:[%s4561 + $0x188] sm:$0xff]
    %v4612 = vld [vmem:[%s4561 + $0x190] sm:$0xff]
    %v4613 = vld [vmem:[%s4561 + $0x198] sm:$0xff]
    %v4614 = vld [vmem:[%s4561 + $0x1a0] sm:$0xff]
    %v4615 = vld [vmem:[%s4561 + $0x1a8] sm:$0xff]
    %v4616 = vld [vmem:[%s4561 + $0x1b0] sm:$0xff]
    %v4617 = vld [vmem:[%s4561 + $0x1b8] sm:$0xff]
    %v4674 = vunpack.c.l.b16 %v4562
    %v4675 = vunpack.c.h.b16 %v4562
    %v4676 = vunpack.c.l.b16 %v4563
    %v4677 = vunpack.c.h.b16 %v4563
    %v4678 = vunpack.c.l.b16 %v4564
    %v4679 = vunpack.c.h.b16 %v4564
    %v4680 = vunpack.c.l.b16 %v4565
    %v4681 = vunpack.c.h.b16 %v4565
    %v4682 = vunpack.c.l.b16 %v4566
    %v4683 = vunpack.c.h.b16 %v4566
    %v4684 = vunpack.c.l.b16 %v4567
    %v4685 = vunpack.c.h.b16 %v4567
    %v4686 = vunpack.c.l.b16 %v4568
    %v4687 = vunpack.c.h.b16 %v4568
    %v4688 = vunpack.c.l.b16 %v4569
    %v4689 = vunpack.c.h.b16 %v4569
    %v4690 = vunpack.c.l.b16 %v4570
    %v4691 = vunpack.c.h.b16 %v4570
    %v4692 = vunpack.c.l.b16 %v4571
    %v4693 = vunpack.c.h.b16 %v4571
    %v4694 = vunpack.c.l.b16 %v4572
    %v4695 = vunpack.c.h.b16 %v4572
    %v4696 = vunpack.c.l.b16 %v4573
    %v4697 = vunpack.c.h.b16 %v4573
    %v4698 = vunpack.c.l.b16 %v4574
    %v4699 = vunpack.c.h.b16 %v4574
    %v4700 = vunpack.c.l.b16 %v4575
    %v4701 = vunpack.c.h.b16 %v4575
    %v4702 = vunpack.c.l.b16 %v4576
    %v4703 = vunpack.c.h.b16 %v4576
    %v4704 = vunpack.c.l.b16 %v4577
    %v4705 = vunpack.c.h.b16 %v4577
    %v4706 = vunpack.c.l.b16 %v4578
    %v4707 = vunpack.c.h.b16 %v4578
    %v4708 = vunpack.c.l.b16 %v4579
    %v4709 = vunpack.c.h.b16 %v4579
    %v4710 = vunpack.c.l.b16 %v4580
    %v4711 = vunpack.c.h.b16 %v4580
    %v4712 = vunpack.c.l.b16 %v4581
    %v4713 = vunpack.c.h.b16 %v4581
    %v4714 = vunpack.c.l.b16 %v4582
    %v4715 = vunpack.c.h.b16 %v4582
    %v4716 = vunpack.c.l.b16 %v4583
    %v4717 = vunpack.c.h.b16 %v4583
    %v4718 = vunpack.c.l.b16 %v4584
    %v4719 = vunpack.c.h.b16 %v4584
    %v4720 = vunpack.c.l.b16 %v4585
    %v4721 = vunpack.c.h.b16 %v4585
    %v4722 = vunpack.c.l.b16 %v4586
    %v4723 = vunpack.c.h.b16 %v4586
    %v4724 = vunpack.c.l.b16 %v4587
    %v4725 = vunpack.c.h.b16 %v4587
    %v4726 = vunpack.c.l.b16 %v4588
    %v4727 = vunpack.c.h.b16 %v4588
    %v4728 = vunpack.c.l.b16 %v4589
    %v4729 = vunpack.c.h.b16 %v4589
    %v4730 = vunpack.c.l.b16 %v4590
    %v4731 = vunpack.c.h.b16 %v4590
    %v4732 = vunpack.c.l.b16 %v4591
    %v4733 = vunpack.c.h.b16 %v4591
    %v4734 = vunpack.c.l.b16 %v4592
    %v4735 = vunpack.c.h.b16 %v4592
    %v4736 = vunpack.c.l.b16 %v4593
    %v4737 = vunpack.c.h.b16 %v4593
    %v4738 = vunpack.c.l.b16 %v4594
    %v4739 = vunpack.c.h.b16 %v4594
    %v4740 = vunpack.c.l.b16 %v4595
    %v4741 = vunpack.c.h.b16 %v4595
    %v4742 = vunpack.c.l.b16 %v4596
    %v4743 = vunpack.c.h.b16 %v4596
    %v4744 = vunpack.c.l.b16 %v4597
    %v4745 = vunpack.c.h.b16 %v4597
    %v4746 = vunpack.c.l.b16 %v4598
    %v4747 = vunpack.c.h.b16 %v4598
    %v4748 = vunpack.c.l.b16 %v4599
    %v4749 = vunpack.c.h.b16 %v4599
    %v4750 = vunpack.c.l.b16 %v4600
    %v4751 = vunpack.c.h.b16 %v4600
    %v4752 = vunpack.c.l.b16 %v4601
    %v4753 = vunpack.c.h.b16 %v4601
    %v4754 = vunpack.c.l.b16 %v4602
    %v4755 = vunpack.c.h.b16 %v4602
    %v4756 = vunpack.c.l.b16 %v4603
    %v4757 = vunpack.c.h.b16 %v4603
    %v4758 = vunpack.c.l.b16 %v4604
    %v4759 = vunpack.c.h.b16 %v4604
    %v4760 = vunpack.c.l.b16 %v4605
    %v4761 = vunpack.c.h.b16 %v4605
    %v4762 = vunpack.c.l.b16 %v4606
    %v4763 = vunpack.c.h.b16 %v4606
    %v4764 = vunpack.c.l.b16 %v4607
    %v4765 = vunpack.c.h.b16 %v4607
    %v4766 = vunpack.c.l.b16 %v4608
    %v4767 = vunpack.c.h.b16 %v4608
    %v4768 = vunpack.c.l.b16 %v4609
    %v4769 = vunpack.c.h.b16 %v4609
    %v4770 = vunpack.c.l.b16 %v4610
    %v4771 = vunpack.c.h.b16 %v4610
    %v4772 = vunpack.c.l.b16 %v4611
    %v4773 = vunpack.c.h.b16 %v4611
    %v4774 = vunpack.c.l.b16 %v4612
    %v4775 = vunpack.c.h.b16 %v4612
    %v4776 = vunpack.c.l.b16 %v4613
    %v4777 = vunpack.c.h.b16 %v4613
    %v4778 = vunpack.c.l.b16 %v4614
    %v4779 = vunpack.c.h.b16 %v4614
    %v4780 = vunpack.c.l.b16 %v4615
    %v4781 = vunpack.c.h.b16 %v4615
    %v4782 = vunpack.c.l.b16 %v4616
    %v4783 = vunpack.c.h.b16 %v4616
    %v4784 = vunpack.c.l.b16 %v4617
    %v4785 = vunpack.c.h.b16 %v4617
    %v4786 = vpack.c.b16 %v4676, %v4674
    %v4787 = vpack.c.b16 %v4677, %v4675
    %v4788 = vpack.c.b16 %v4680, %v4678
    %v4789 = vpack.c.b16 %v4681, %v4679
    %v4790 = vpack.c.b16 %v4684, %v4682
    %v4791 = vpack.c.b16 %v4685, %v4683
    %v4792 = vpack.c.b16 %v4688, %v4686
    %v4793 = vpack.c.b16 %v4689, %v4687
    %v4794 = vpack.c.b16 %v4692, %v4690
    %v4795 = vpack.c.b16 %v4693, %v4691
    %v4796 = vpack.c.b16 %v4696, %v4694
    %v4797 = vpack.c.b16 %v4697, %v4695
    %v4798 = vpack.c.b16 %v4700, %v4698
    %v4799 = vpack.c.b16 %v4701, %v4699
    %v4800 = vpack.c.b16 %v4704, %v4702
    %v4801 = vpack.c.b16 %v4705, %v4703
    %v4802 = vpack.c.b16 %v4708, %v4706
    %v4803 = vpack.c.b16 %v4709, %v4707
    %v4804 = vpack.c.b16 %v4712, %v4710
    %v4805 = vpack.c.b16 %v4713, %v4711
    %v4806 = vpack.c.b16 %v4716, %v4714
    %v4807 = vpack.c.b16 %v4717, %v4715
    %v4808 = vpack.c.b16 %v4720, %v4718
    %v4809 = vpack.c.b16 %v4721, %v4719
    %v4810 = vpack.c.b16 %v4724, %v4722
    %v4811 = vpack.c.b16 %v4725, %v4723
    %v4812 = vpack.c.b16 %v4728, %v4726
    %v4813 = vpack.c.b16 %v4729, %v4727
    %v4814 = vpack.c.b16 %v4732, %v4730
    %v4815 = vpack.c.b16 %v4733, %v4731
    %v4816 = vpack.c.b16 %v4736, %v4734
    %v4817 = vpack.c.b16 %v4737, %v4735
    %v4818 = vpack.c.b16 %v4740, %v4738
    %v4819 = vpack.c.b16 %v4741, %v4739
    %v4820 = vpack.c.b16 %v4744, %v4742
    %v4821 = vpack.c.b16 %v4745, %v4743
    %v4822 = vpack.c.b16 %v4748, %v4746
    %v4823 = vpack.c.b16 %v4749, %v4747
    %v4824 = vpack.c.b16 %v4752, %v4750
    %v4825 = vpack.c.b16 %v4753, %v4751
    %v4826 = vpack.c.b16 %v4756, %v4754
    %v4827 = vpack.c.b16 %v4757, %v4755
    %v4828 = vpack.c.b16 %v4760, %v4758
    %v4829 = vpack.c.b16 %v4761, %v4759
    %v4830 = vpack.c.b16 %v4764, %v4762
    %v4831 = vpack.c.b16 %v4765, %v4763
    %v4832 = vpack.c.b16 %v4768, %v4766
    %v4833 = vpack.c.b16 %v4769, %v4767
    %v4834 = vpack.c.b16 %v4772, %v4770
    %v4835 = vpack.c.b16 %v4773, %v4771
    %v4836 = vpack.c.b16 %v4776, %v4774
    %v4837 = vpack.c.b16 %v4777, %v4775
    %v4838 = vpack.c.b16 %v4780, %v4778
    %v4839 = vpack.c.b16 %v4781, %v4779
    %v4840 = vpack.c.b16 %v4784, %v4782
    %v4841 = vpack.c.b16 %v4785, %v4783
    %v4899 = vsel %vm3672, %v3238, 0
    %4901 = vmatprep.subr.bf16.mxu0 %v4787
    %4902 = vmatpush1.bf16.msra.mxu0 %v4786
    %4903 = vmatprep.subr.bf16.mxu0 %v4789
    %4904 = vmatpush1.bf16.msra.mxu0 %v4788
    %4905 = vmatprep.subr.bf16.mxu0 %v4791
    %4906 = vmatpush1.bf16.msra.mxu0 %v4790
    %4907 = vmatprep.subr.bf16.mxu0 %v4793
    %4908 = vmatpush1.bf16.msra.mxu0 %v4792
    %4909 = vmatprep.subr.bf16.mxu0 %v4795
    %4910 = vmatpush1.bf16.msra.mxu0 %v4794
    %4911 = vmatprep.subr.bf16.mxu0 %v4797
    %4912 = vmatpush1.bf16.msra.mxu0 %v4796
    %4913 = vmatprep.subr.bf16.mxu0 %v4799
    %4914 = vmatpush1.bf16.msra.mxu0 %v4798
    %4915 = vmatprep.subr.bf16.mxu0 %v4801
    %4916 = vmatpush1.bf16.msra.mxu0 %v4800
    %4917 = vmatprep.subr.bf16.mxu0 %v4803
    %4918 = vmatpush1.bf16.msra.mxu0 %v4802
    %4919 = vmatprep.subr.bf16.mxu0 %v4805
    %4920 = vmatpush1.bf16.msra.mxu0 %v4804
    %4921 = vmatprep.subr.bf16.mxu0 %v4807
    %4922 = vmatpush1.bf16.msra.mxu0 %v4806
    %4923 = vmatprep.subr.bf16.mxu0 %v4809
    %4924 = vmatpush1.bf16.msra.mxu0 %v4808
    %4925 = vmatprep.subr.bf16.mxu0 %v4811
    %4926 = vmatpush1.bf16.msra.mxu0 %v4810
    %4927 = vmatprep.subr.bf16.mxu0 %v4813
    %4928 = vmatpush1.bf16.msra.mxu0 %v4812
    %4929 = vmatprep.subr.bf16.mxu0 %v4815
    %4930 = vmatpush1.bf16.msra.mxu0 %v4814
    %4931 = vmatprep.subr.bf16.mxu0 %v4817
    %4932 = vmatpush1.bf16.msra.mxu0 %v4816
    %4933 = vmatprep.mubr.bf16.mxu0 %v3236
    %4934 = vmatmul.mubr.bf16.gmra.mrb[0].mxu0 %v3235
    %v4935 = vpop.f32.mrb[0].mxu0
    %v4936 = vadd.f32 0.0, %v4935
    %v4937 = vpop.f32.mrb[0].mxu0
    %v4938 = vadd.f32 0.0, %v4937
    %v4939 = vpop.f32.mrb[0].mxu0
    %v4940 = vadd.f32 0.0, %v4939
    %v4941 = vpop.f32.mrb[0].mxu0
    %v4942 = vadd.f32 0.0, %v4941
    %4943 = vdwg.mxu0
    %4944 = vmatprep.subr.bf16.mxu0 %v4819
    %4945 = vmatpush1.bf16.msra.mxu0 %v4818
    %4946 = vmatprep.subr.bf16.mxu0 %v4821
    %4947 = vmatpush1.bf16.msra.mxu0 %v4820
    %4948 = vmatprep.subr.bf16.mxu0 %v4823
    %4949 = vmatpush1.bf16.msra.mxu0 %v4822
    %4950 = vmatprep.subr.bf16.mxu0 %v4825
    %4951 = vmatpush1.bf16.msra.mxu0 %v4824
    %4952 = vmatprep.subr.bf16.mxu0 %v4827
    %4953 = vmatpush1.bf16.msra.mxu0 %v4826
    %4954 = vmatprep.subr.bf16.mxu0 %v4829
    %4955 = vmatpush1.bf16.msra.mxu0 %v4828
    %4956 = vmatprep.subr.bf16.mxu0 %v4831
    %4957 = vmatpush1.bf16.msra.mxu0 %v4830
    %4958 = vmatprep.subr.bf16.mxu0 %v4833
    %4959 = vmatpush1.bf16.msra.mxu0 %v4832
    %4960 = vmatprep.subr.bf16.mxu0 %v4835
    %4961 = vmatpush1.bf16.msra.mxu0 %v4834
    %4962 = vmatprep.subr.bf16.mxu0 %v4837
    %4963 = vmatpush1.bf16.msra.mxu0 %v4836
    %4964 = vmatprep.subr.bf16.mxu0 %v4839
    %4965 = vmatpush1.bf16.msra.mxu0 %v4838
    %4966 = vmatprep.subr.bf16.mxu0 %v4841
    %4967 = vmatpush1.bf16.msra.mxu0 %v4840
    %4968 = vmatprep.subr.bf16.mxu0 0
    %4969 = vmatpush1.bf16.msra.mxu0 0
    %4970 = vmatprep.subr.bf16.mxu0 0
    %4971 = vmatpush1.bf16.msra.mxu0 0
    %4972 = vmatprep.subr.bf16.mxu0 0
    %4973 = vmatpush1.bf16.msra.mxu0 0
    %4974 = vmatprep.subr.bf16.mxu0 0
    %4975 = vmatpush1.bf16.msra.mxu0 0
    %4976 = vmatprep.mubr.bf16.mxu0 %v4899
    %4977 = vmatmul.mubr.bf16.gmra.mrb[0].mxu0 %v3237
    %v4978 = vpop.f32.mrb[0].mxu0
    %v4979 = vadd.f32 %v4936, %v4978
    %v4980 = vpop.f32.mrb[0].mxu0
    %v4981 = vadd.f32 %v4938, %v4980
    %v4982 = vpop.f32.mrb[0].mxu0
    %v4983 = vadd.f32 %v4940, %v4982
    %v4984 = vpop.f32.mrb[0].mxu0
    %v4985 = vadd.f32 %v4942, %v4984
    %4986 = vdwg.mxu0
    %v4987 = vadd.f32 %v4557, %v4979
    %v4988 = vadd.f32 %v4558, %v4981
    %v4989 = vadd.f32 %v4559, %v4983
    %v4990 = vadd.f32 %v4560, %v4985
    %s4991 = scalar_lea.vmem [#allocation4], 1792
    %v4992 = vld [vmem:[%s4991] sm:$0xff]
    %v4993 = vld [vmem:[%s4991 + $0x8] sm:$0xff]
    %v4994 = vld [vmem:[%s4991 + $0x10] sm:$0xff]
    %v4995 = vld [vmem:[%s4991 + $0x18] sm:$0xff]
    %v4996 = vld [vmem:[%s4991 + $0x20] sm:$0xff]
    %v4997 = vld [vmem:[%s4991 + $0x28] sm:$0xff]
    %v4998 = vld [vmem:[%s4991 + $0x30] sm:$0xff]
    %v4999 = vld [vmem:[%s4991 + $0x38] sm:$0xff]
    %v5000 = vld [vmem:[%s4991 + $0x40] sm:$0xff]
    %v5001 = vld [vmem:[%s4991 + $0x48] sm:$0xff]
    %v5002 = vld [vmem:[%s4991 + $0x50] sm:$0xff]
    %v5003 = vld [vmem:[%s4991 + $0x58] sm:$0xff]
    %v5004 = vld [vmem:[%s4991 + $0x60] sm:$0xff]
    %v5005 = vld [vmem:[%s4991 + $0x68] sm:$0xff]
    %v5006 = vld [vmem:[%s4991 + $0x70] sm:$0xff]
    %v5007 = vld [vmem:[%s4991 + $0x78] sm:$0xff]
    %v5008 = vld [vmem:[%s4991 + $0x80] sm:$0xff]
    %v5009 = vld [vmem:[%s4991 + $0x88] sm:$0xff]
    %v5010 = vld [vmem:[%s4991 + $0x90] sm:$0xff]
    %v5011 = vld [vmem:[%s4991 + $0x98] sm:$0xff]
    %v5012 = vld [vmem:[%s4991 + $0xa0] sm:$0xff]
    %v5013 = vld [vmem:[%s4991 + $0xa8] sm:$0xff]
    %v5014 = vld [vmem:[%s4991 + $0xb0] sm:$0xff]
    %v5015 = vld [vmem:[%s4991 + $0xb8] sm:$0xff]
    %v5016 = vld [vmem:[%s4991 + $0xc0] sm:$0xff]
    %v5017 = vld [vmem:[%s4991 + $0xc8] sm:$0xff]
    %v5018 = vld [vmem:[%s4991 + $0xd0] sm:$0xff]
    %v5019 = vld [vmem:[%s4991 + $0xd8] sm:$0xff]
    %v5020 = vld [vmem:[%s4991 + $0xe0] sm:$0xff]
    %v5021 = vld [vmem:[%s4991 + $0xe8] sm:$0xff]
    %v5022 = vld [vmem:[%s4991 + $0xf0] sm:$0xff]
    %v5023 = vld [vmem:[%s4991 + $0xf8] sm:$0xff]
    %v5024 = vld [vmem:[%s4991 + $0x100] sm:$0xff]
    %v5025 = vld [vmem:[%s4991 + $0x108] sm:$0xff]
    %v5026 = vld [vmem:[%s4991 + $0x110] sm:$0xff]
    %v5027 = vld [vmem:[%s4991 + $0x118] sm:$0xff]
    %v5028 = vld [vmem:[%s4991 + $0x120] sm:$0xff]
    %v5029 = vld [vmem:[%s4991 + $0x128] sm:$0xff]
    %v5030 = vld [vmem:[%s4991 + $0x130] sm:$0xff]
    %v5031 = vld [vmem:[%s4991 + $0x138] sm:$0xff]
    %v5032 = vld [vmem:[%s4991 + $0x140] sm:$0xff]
    %v5033 = vld [vmem:[%s4991 + $0x148] sm:$0xff]
    %v5034 = vld [vmem:[%s4991 + $0x150] sm:$0xff]
    %v5035 = vld [vmem:[%s4991 + $0x158] sm:$0xff]
    %v5036 = vld [vmem:[%s4991 + $0x160] sm:$0xff]
    %v5037 = vld [vmem:[%s4991 + $0x168] sm:$0xff]
    %v5038 = vld [vmem:[%s4991 + $0x170] sm:$0xff]
    %v5039 = vld [vmem:[%s4991 + $0x178] sm:$0xff]
    %v5040 = vld [vmem:[%s4991 + $0x180] sm:$0xff]
    %v5041 = vld [vmem:[%s4991 + $0x188] sm:$0xff]
    %v5042 = vld [vmem:[%s4991 + $0x190] sm:$0xff]
    %v5043 = vld [vmem:[%s4991 + $0x198] sm:$0xff]
    %v5044 = vld [vmem:[%s4991 + $0x1a0] sm:$0xff]
    %v5045 = vld [vmem:[%s4991 + $0x1a8] sm:$0xff]
    %v5046 = vld [vmem:[%s4991 + $0x1b0] sm:$0xff]
    %v5047 = vld [vmem:[%s4991 + $0x1b8] sm:$0xff]
    %v5104 = vunpack.c.l.b16 %v4992
    %v5105 = vunpack.c.h.b16 %v4992
    %v5106 = vunpack.c.l.b16 %v4993
    %v5107 = vunpack.c.h.b16 %v4993
    %v5108 = vunpack.c.l.b16 %v4994
    %v5109 = vunpack.c.h.b16 %v4994
    %v5110 = vunpack.c.l.b16 %v4995
    %v5111 = vunpack.c.h.b16 %v4995
    %v5112 = vunpack.c.l.b16 %v4996
    %v5113 = vunpack.c.h.b16 %v4996
    %v5114 = vunpack.c.l.b16 %v4997
    %v5115 = vunpack.c.h.b16 %v4997
    %v5116 = vunpack.c.l.b16 %v4998
    %v5117 = vunpack.c.h.b16 %v4998
    %v5118 = vunpack.c.l.b16 %v4999
    %v5119 = vunpack.c.h.b16 %v4999
    %v5120 = vunpack.c.l.b16 %v5000
    %v5121 = vunpack.c.h.b16 %v5000
    %v5122 = vunpack.c.l.b16 %v5001
    %v5123 = vunpack.c.h.b16 %v5001
    %v5124 = vunpack.c.l.b16 %v5002
    %v5125 = vunpack.c.h.b16 %v5002
    %v5126 = vunpack.c.l.b16 %v5003
    %v5127 = vunpack.c.h.b16 %v5003
    %v5128 = vunpack.c.l.b16 %v5004
    %v5129 = vunpack.c.h.b16 %v5004
    %v5130 = vunpack.c.l.b16 %v5005
    %v5131 = vunpack.c.h.b16 %v5005
    %v5132 = vunpack.c.l.b16 %v5006
    %v5133 = vunpack.c.h.b16 %v5006
    %v5134 = vunpack.c.l.b16 %v5007
    %v5135 = vunpack.c.h.b16 %v5007
    %v5136 = vunpack.c.l.b16 %v5008
    %v5137 = vunpack.c.h.b16 %v5008
    %v5138 = vunpack.c.l.b16 %v5009
    %v5139 = vunpack.c.h.b16 %v5009
    %v5140 = vunpack.c.l.b16 %v5010
    %v5141 = vunpack.c.h.b16 %v5010
    %v5142 = vunpack.c.l.b16 %v5011
    %v5143 = vunpack.c.h.b16 %v5011
    %v5144 = vunpack.c.l.b16 %v5012
    %v5145 = vunpack.c.h.b16 %v5012
    %v5146 = vunpack.c.l.b16 %v5013
    %v5147 = vunpack.c.h.b16 %v5013
    %v5148 = vunpack.c.l.b16 %v5014
    %v5149 = vunpack.c.h.b16 %v5014
    %v5150 = vunpack.c.l.b16 %v5015
    %v5151 = vunpack.c.h.b16 %v5015
    %v5152 = vunpack.c.l.b16 %v5016
    %v5153 = vunpack.c.h.b16 %v5016
    %v5154 = vunpack.c.l.b16 %v5017
    %v5155 = vunpack.c.h.b16 %v5017
    %v5156 = vunpack.c.l.b16 %v5018
    %v5157 = vunpack.c.h.b16 %v5018
    %v5158 = vunpack.c.l.b16 %v5019
    %v5159 = vunpack.c.h.b16 %v5019
    %v5160 = vunpack.c.l.b16 %v5020
    %v5161 = vunpack.c.h.b16 %v5020
    %v5162 = vunpack.c.l.b16 %v5021
    %v5163 = vunpack.c.h.b16 %v5021
    %v5164 = vunpack.c.l.b16 %v5022
    %v5165 = vunpack.c.h.b16 %v5022
    %v5166 = vunpack.c.l.b16 %v5023
    %v5167 = vunpack.c.h.b16 %v5023
    %v5168 = vunpack.c.l.b16 %v5024
    %v5169 = vunpack.c.h.b16 %v5024
    %v5170 = vunpack.c.l.b16 %v5025
    %v5171 = vunpack.c.h.b16 %v5025
    %v5172 = vunpack.c.l.b16 %v5026
    %v5173 = vunpack.c.h.b16 %v5026
    %v5174 = vunpack.c.l.b16 %v5027
    %v5175 = vunpack.c.h.b16 %v5027
    %v5176 = vunpack.c.l.b16 %v5028
    %v5177 = vunpack.c.h.b16 %v5028
    %v5178 = vunpack.c.l.b16 %v5029
    %v5179 = vunpack.c.h.b16 %v5029
    %v5180 = vunpack.c.l.b16 %v5030
    %v5181 = vunpack.c.h.b16 %v5030
    %v5182 = vunpack.c.l.b16 %v5031
    %v5183 = vunpack.c.h.b16 %v5031
    %v5184 = vunpack.c.l.b16 %v5032
    %v5185 = vunpack.c.h.b16 %v5032
    %v5186 = vunpack.c.l.b16 %v5033
    %v5187 = vunpack.c.h.b16 %v5033
    %v5188 = vunpack.c.l.b16 %v5034
    %v5189 = vunpack.c.h.b16 %v5034
    %v5190 = vunpack.c.l.b16 %v5035
    %v5191 = vunpack.c.h.b16 %v5035
    %v5192 = vunpack.c.l.b16 %v5036
    %v5193 = vunpack.c.h.b16 %v5036
    %v5194 = vunpack.c.l.b16 %v5037
    %v5195 = vunpack.c.h.b16 %v5037
    %v5196 = vunpack.c.l.b16 %v5038
    %v5197 = vunpack.c.h.b16 %v5038
    %v5198 = vunpack.c.l.b16 %v5039
    %v5199 = vunpack.c.h.b16 %v5039
    %v5200 = vunpack.c.l.b16 %v5040
    %v5201 = vunpack.c.h.b16 %v5040
    %v5202 = vunpack.c.l.b16 %v5041
    %v5203 = vunpack.c.h.b16 %v5041
    %v5204 = vunpack.c.l.b16 %v5042
    %v5205 = vunpack.c.h.b16 %v5042
    %v5206 = vunpack.c.l.b16 %v5043
    %v5207 = vunpack.c.h.b16 %v5043
    %v5208 = vunpack.c.l.b16 %v5044
    %v5209 = vunpack.c.h.b16 %v5044
    %v5210 = vunpack.c.l.b16 %v5045
    %v5211 = vunpack.c.h.b16 %v5045
    %v5212 = vunpack.c.l.b16 %v5046
    %v5213 = vunpack.c.h.b16 %v5046
    %v5214 = vunpack.c.l.b16 %v5047
    %v5215 = vunpack.c.h.b16 %v5047
    %v5216 = vpack.c.b16 %v5106, %v5104
    %v5217 = vpack.c.b16 %v5107, %v5105
    %v5218 = vpack.c.b16 %v5110, %v5108
    %v5219 = vpack.c.b16 %v5111, %v5109
    %v5220 = vpack.c.b16 %v5114, %v5112
    %v5221 = vpack.c.b16 %v5115, %v5113
    %v5222 = vpack.c.b16 %v5118, %v5116
    %v5223 = vpack.c.b16 %v5119, %v5117
    %v5224 = vpack.c.b16 %v5122, %v5120
    %v5225 = vpack.c.b16 %v5123, %v5121
    %v5226 = vpack.c.b16 %v5126, %v5124
    %v5227 = vpack.c.b16 %v5127, %v5125
    %v5228 = vpack.c.b16 %v5130, %v5128
    %v5229 = vpack.c.b16 %v5131, %v5129
    %v5230 = vpack.c.b16 %v5134, %v5132
    %v5231 = vpack.c.b16 %v5135, %v5133
    %v5232 = vpack.c.b16 %v5138, %v5136
    %v5233 = vpack.c.b16 %v5139, %v5137
    %v5234 = vpack.c.b16 %v5142, %v5140
    %v5235 = vpack.c.b16 %v5143, %v5141
    %v5236 = vpack.c.b16 %v5146, %v5144
    %v5237 = vpack.c.b16 %v5147, %v5145
    %v5238 = vpack.c.b16 %v5150, %v5148
    %v5239 = vpack.c.b16 %v5151, %v5149
    %v5240 = vpack.c.b16 %v5154, %v5152
    %v5241 = vpack.c.b16 %v5155, %v5153
    %v5242 = vpack.c.b16 %v5158, %v5156
    %v5243 = vpack.c.b16 %v5159, %v5157
    %v5244 = vpack.c.b16 %v5162, %v5160
    %v5245 = vpack.c.b16 %v5163, %v5161
    %v5246 = vpack.c.b16 %v5166, %v5164
    %v5247 = vpack.c.b16 %v5167, %v5165
    %v5248 = vpack.c.b16 %v5170, %v5168
    %v5249 = vpack.c.b16 %v5171, %v5169
    %v5250 = vpack.c.b16 %v5174, %v5172
    %v5251 = vpack.c.b16 %v5175, %v5173
    %v5252 = vpack.c.b16 %v5178, %v5176
    %v5253 = vpack.c.b16 %v5179, %v5177
    %v5254 = vpack.c.b16 %v5182, %v5180
    %v5255 = vpack.c.b16 %v5183, %v5181
    %v5256 = vpack.c.b16 %v5186, %v5184
    %v5257 = vpack.c.b16 %v5187, %v5185
    %v5258 = vpack.c.b16 %v5190, %v5188
    %v5259 = vpack.c.b16 %v5191, %v5189
    %v5260 = vpack.c.b16 %v5194, %v5192
    %v5261 = vpack.c.b16 %v5195, %v5193
    %v5262 = vpack.c.b16 %v5198, %v5196
    %v5263 = vpack.c.b16 %v5199, %v5197
    %v5264 = vpack.c.b16 %v5202, %v5200
    %v5265 = vpack.c.b16 %v5203, %v5201
    %v5266 = vpack.c.b16 %v5206, %v5204
    %v5267 = vpack.c.b16 %v5207, %v5205
    %v5268 = vpack.c.b16 %v5210, %v5208
    %v5269 = vpack.c.b16 %v5211, %v5209
    %v5270 = vpack.c.b16 %v5214, %v5212
    %v5271 = vpack.c.b16 %v5215, %v5213
    %v5329 = vsel %vm3672, %v3242, 0
    %5331 = vmatprep.subr.bf16.mxu0 %v5217
    %5332 = vmatpush1.bf16.msra.mxu0 %v5216
    %5333 = vmatprep.subr.bf16.mxu0 %v5219
    %5334 = vmatpush1.bf16.msra.mxu0 %v5218
    %5335 = vmatprep.subr.bf16.mxu0 %v5221
    %5336 = vmatpush1.bf16.msra.mxu0 %v5220
    %5337 = vmatprep.subr.bf16.mxu0 %v5223
    %5338 = vmatpush1.bf16.msra.mxu0 %v5222
    %5339 = vmatprep.subr.bf16.mxu0 %v5225
    %5340 = vmatpush1.bf16.msra.mxu0 %v5224
    %5341 = vmatprep.subr.bf16.mxu0 %v5227
    %5342 = vmatpush1.bf16.msra.mxu0 %v5226
    %5343 = vmatprep.subr.bf16.mxu0 %v5229
    %5344 = vmatpush1.bf16.msra.mxu0 %v5228
    %5345 = vmatprep.subr.bf16.mxu0 %v5231
    %5346 = vmatpush1.bf16.msra.mxu0 %v5230
    %5347 = vmatprep.subr.bf16.mxu0 %v5233
    %5348 = vmatpush1.bf16.msra.mxu0 %v5232
    %5349 = vmatprep.subr.bf16.mxu0 %v5235
    %5350 = vmatpush1.bf16.msra.mxu0 %v5234
    %5351 = vmatprep.subr.bf16.mxu0 %v5237
    %5352 = vmatpush1.bf16.msra.mxu0 %v5236
    %5353 = vmatprep.subr.bf16.mxu0 %v5239
    %5354 = vmatpush1.bf16.msra.mxu0 %v5238
    %5355 = vmatprep.subr.bf16.mxu0 %v5241
    %5356 = vmatpush1.bf16.msra.mxu0 %v5240
    %5357 = vmatprep.subr.bf16.mxu0 %v5243
    %5358 = vmatpush1.bf16.msra.mxu0 %v5242
    %5359 = vmatprep.subr.bf16.mxu0 %v5245
    %5360 = vmatpush1.bf16.msra.mxu0 %v5244
    %5361 = vmatprep.subr.bf16.mxu0 %v5247
    %5362 = vmatpush1.bf16.msra.mxu0 %v5246
    %5363 = vmatprep.mubr.bf16.mxu0 %v3240
    %5364 = vmatmul.mubr.bf16.gmra.mrb[0].mxu0 %v3239
    %v5365 = vpop.f32.mrb[0].mxu0
    %v5366 = vadd.f32 0.0, %v5365
    %v5367 = vpop.f32.mrb[0].mxu0
    %v5368 = vadd.f32 0.0, %v5367
    %v5369 = vpop.f32.mrb[0].mxu0
    %v5370 = vadd.f32 0.0, %v5369
    %v5371 = vpop.f32.mrb[0].mxu0
    %v5372 = vadd.f32 0.0, %v5371
    %5373 = vdwg.mxu0
    %5374 = vmatprep.subr.bf16.mxu0 %v5249
    %5375 = vmatpush1.bf16.msra.mxu0 %v5248
    %5376 = vmatprep.subr.bf16.mxu0 %v5251
    %5377 = vmatpush1.bf16.msra.mxu0 %v5250
    %5378 = vmatprep.subr.bf16.mxu0 %v5253
    %5379 = vmatpush1.bf16.msra.mxu0 %v5252
    %5380 = vmatprep.subr.bf16.mxu0 %v5255
    %5381 = vmatpush1.bf16.msra.mxu0 %v5254
    %5382 = vmatprep.subr.bf16.mxu0 %v5257
    %5383 = vmatpush1.bf16.msra.mxu0 %v5256
    %5384 = vmatprep.subr.bf16.mxu0 %v5259
    %5385 = vmatpush1.bf16.msra.mxu0 %v5258
    %5386 = vmatprep.subr.bf16.mxu0 %v5261
    %5387 = vmatpush1.bf16.msra.mxu0 %v5260
    %5388 = vmatprep.subr.bf16.mxu0 %v5263
    %5389 = vmatpush1.bf16.msra.mxu0 %v5262
    %5390 = vmatprep.subr.bf16.mxu0 %v5265
    %5391 = vmatpush1.bf16.msra.mxu0 %v5264
    %5392 = vmatprep.subr.bf16.mxu0 %v5267
    %5393 = vmatpush1.bf16.msra.mxu0 %v5266
    %5394 = vmatprep.subr.bf16.mxu0 %v5269
    %5395 = vmatpush1.bf16.msra.mxu0 %v5268
    %5396 = vmatprep.subr.bf16.mxu0 %v5271
    %5397 = vmatpush1.bf16.msra.mxu0 %v5270
    %5398 = vmatprep.subr.bf16.mxu0 0
    %5399 = vmatpush1.bf16.msra.mxu0 0
    %5400 = vmatprep.subr.bf16.mxu0 0
    %5401 = vmatpush1.bf16.msra.mxu0 0
    %5402 = vmatprep.subr.bf16.mxu0 0
    %5403 = vmatpush1.bf16.msra.mxu0 0
    %5404 = vmatprep.subr.bf16.mxu0 0
    %5405 = vmatpush1.bf16.msra.mxu0 0
    %5406 = vmatprep.mubr.bf16.mxu0 %v5329
    %5407 = vmatmul.mubr.bf16.gmra.mrb[0].mxu0 %v3241
    %v5408 = vpop.f32.mrb[0].mxu0
    %v5409 = vadd.f32 %v5366, %v5408
    %v5410 = vpop.f32.mrb[0].mxu0
    %v5411 = vadd.f32 %v5368, %v5410
    %v5412 = vpop.f32.mrb[0].mxu0
    %v5413 = vadd.f32 %v5370, %v5412
    %v5414 = vpop.f32.mrb[0].mxu0
    %v5415 = vadd.f32 %v5372, %v5414
    %5416 = vdwg.mxu0
    %v5417 = vadd.f32 %v4987, %v5409
    %v5418 = vadd.f32 %v4988, %v5411
    %v5419 = vadd.f32 %v4989, %v5413
    %v5420 = vadd.f32 %v4990, %v5415
    %s5421 = scalar_lea.vmem [#allocation4], 2240
    %v5422 = vld [vmem:[%s5421] sm:$0xff]
    %v5423 = vld [vmem:[%s5421 + $0x8] sm:$0xff]
    %v5424 = vld [vmem:[%s5421 + $0x10] sm:$0xff]
    %v5425 = vld [vmem:[%s5421 + $0x18] sm:$0xff]
    %v5426 = vld [vmem:[%s5421 + $0x20] sm:$0xff]
    %v5427 = vld [vmem:[%s5421 + $0x28] sm:$0xff]
    %v5428 = vld [vmem:[%s5421 + $0x30] sm:$0xff]
    %v5429 = vld [vmem:[%s5421 + $0x38] sm:$0xff]
    %v5430 = vld [vmem:[%s5421 + $0x40] sm:$0xff]
    %v5431 = vld [vmem:[%s5421 + $0x48] sm:$0xff]
    %v5432 = vld [vmem:[%s5421 + $0x50] sm:$0xff]
    %v5433 = vld [vmem:[%s5421 + $0x58] sm:$0xff]
    %v5434 = vld [vmem:[%s5421 + $0x60] sm:$0xff]
    %v5435 = vld [vmem:[%s5421 + $0x68] sm:$0xff]
    %v5436 = vld [vmem:[%s5421 + $0x70] sm:$0xff]
    %v5437 = vld [vmem:[%s5421 + $0x78] sm:$0xff]
    %v5438 = vld [vmem:[%s5421 + $0x80] sm:$0xff]
    %v5439 = vld [vmem:[%s5421 + $0x88] sm:$0xff]
    %v5440 = vld [vmem:[%s5421 + $0x90] sm:$0xff]
    %v5441 = vld [vmem:[%s5421 + $0x98] sm:$0xff]
    %v5442 = vld [vmem:[%s5421 + $0xa0] sm:$0xff]
    %v5443 = vld [vmem:[%s5421 + $0xa8] sm:$0xff]
    %v5444 = vld [vmem:[%s5421 + $0xb0] sm:$0xff]
    %v5445 = vld [vmem:[%s5421 + $0xb8] sm:$0xff]
    %v5446 = vld [vmem:[%s5421 + $0xc0] sm:$0xff]
    %v5447 = vld [vmem:[%s5421 + $0xc8] sm:$0xff]
    %v5448 = vld [vmem:[%s5421 + $0xd0] sm:$0xff]
    %v5449 = vld [vmem:[%s5421 + $0xd8] sm:$0xff]
    %v5450 = vld [vmem:[%s5421 + $0xe0] sm:$0xff]
    %v5451 = vld [vmem:[%s5421 + $0xe8] sm:$0xff]
    %v5452 = vld [vmem:[%s5421 + $0xf0] sm:$0xff]
    %v5453 = vld [vmem:[%s5421 + $0xf8] sm:$0xff]
    %v5454 = vld [vmem:[%s5421 + $0x100] sm:$0xff]
    %v5455 = vld [vmem:[%s5421 + $0x108] sm:$0xff]
    %v5456 = vld [vmem:[%s5421 + $0x110] sm:$0xff]
    %v5457 = vld [vmem:[%s5421 + $0x118] sm:$0xff]
    %v5458 = vld [vmem:[%s5421 + $0x120] sm:$0xff]
    %v5459 = vld [vmem:[%s5421 + $0x128] sm:$0xff]
    %v5460 = vld [vmem:[%s5421 + $0x130] sm:$0xff]
    %v5461 = vld [vmem:[%s5421 + $0x138] sm:$0xff]
    %v5462 = vld [vmem:[%s5421 + $0x140] sm:$0xff]
    %v5463 = vld [vmem:[%s5421 + $0x148] sm:$0xff]
    %v5464 = vld [vmem:[%s5421 + $0x150] sm:$0xff]
    %v5465 = vld [vmem:[%s5421 + $0x158] sm:$0xff]
    %v5466 = vld [vmem:[%s5421 + $0x160] sm:$0xff]
    %v5467 = vld [vmem:[%s5421 + $0x168] sm:$0xff]
    %v5468 = vld [vmem:[%s5421 + $0x170] sm:$0xff]
    %v5469 = vld [vmem:[%s5421 + $0x178] sm:$0xff]
    %v5470 = vld [vmem:[%s5421 + $0x180] sm:$0xff]
    %v5471 = vld [vmem:[%s5421 + $0x188] sm:$0xff]
    %v5472 = vld [vmem:[%s5421 + $0x190] sm:$0xff]
    %v5473 = vld [vmem:[%s5421 + $0x198] sm:$0xff]
    %v5474 = vld [vmem:[%s5421 + $0x1a0] sm:$0xff]
    %v5475 = vld [vmem:[%s5421 + $0x1a8] sm:$0xff]
    %v5476 = vld [vmem:[%s5421 + $0x1b0] sm:$0xff]
    %v5477 = vld [vmem:[%s5421 + $0x1b8] sm:$0xff]
    %v5534 = vunpack.c.l.b16 %v5422
    %v5535 = vunpack.c.h.b16 %v5422
    %v5536 = vunpack.c.l.b16 %v5423
    %v5537 = vunpack.c.h.b16 %v5423
    %v5538 = vunpack.c.l.b16 %v5424
    %v5539 = vunpack.c.h.b16 %v5424
    %v5540 = vunpack.c.l.b16 %v5425
    %v5541 = vunpack.c.h.b16 %v5425
    %v5542 = vunpack.c.l.b16 %v5426
    %v5543 = vunpack.c.h.b16 %v5426
    %v5544 = vunpack.c.l.b16 %v5427
    %v5545 = vunpack.c.h.b16 %v5427
    %v5546 = vunpack.c.l.b16 %v5428
    %v5547 = vunpack.c.h.b16 %v5428
    %v5548 = vunpack.c.l.b16 %v5429
    %v5549 = vunpack.c.h.b16 %v5429
    %v5550 = vunpack.c.l.b16 %v5430
    %v5551 = vunpack.c.h.b16 %v5430
    %v5552 = vunpack.c.l.b16 %v5431
    %v5553 = vunpack.c.h.b16 %v5431
    %v5554 = vunpack.c.l.b16 %v5432
    %v5555 = vunpack.c.h.b16 %v5432
    %v5556 = vunpack.c.l.b16 %v5433
    %v5557 = vunpack.c.h.b16 %v5433
    %v5558 = vunpack.c.l.b16 %v5434
    %v5559 = vunpack.c.h.b16 %v5434
    %v5560 = vunpack.c.l.b16 %v5435
    %v5561 = vunpack.c.h.b16 %v5435
    %v5562 = vunpack.c.l.b16 %v5436
    %v5563 = vunpack.c.h.b16 %v5436
    %v5564 = vunpack.c.l.b16 %v5437
    %v5565 = vunpack.c.h.b16 %v5437
    %v5566 = vunpack.c.l.b16 %v5438
    %v5567 = vunpack.c.h.b16 %v5438
    %v5568 = vunpack.c.l.b16 %v5439
    %v5569 = vunpack.c.h.b16 %v5439
    %v5570 = vunpack.c.l.b16 %v5440
    %v5571 = vunpack.c.h.b16 %v5440
    %v5572 = vunpack.c.l.b16 %v5441
    %v5573 = vunpack.c.h.b16 %v5441
    %v5574 = vunpack.c.l.b16 %v5442
    %v5575 = vunpack.c.h.b16 %v5442
    %v5576 = vunpack.c.l.b16 %v5443
    %v5577 = vunpack.c.h.b16 %v5443
    %v5578 = vunpack.c.l.b16 %v5444
    %v5579 = vunpack.c.h.b16 %v5444
    %v5580 = vunpack.c.l.b16 %v5445
    %v5581 = vunpack.c.h.b16 %v5445
    %v5582 = vunpack.c.l.b16 %v5446
    %v5583 = vunpack.c.h.b16 %v5446
    %v5584 = vunpack.c.l.b16 %v5447
    %v5585 = vunpack.c.h.b16 %v5447
    %v5586 = vunpack.c.l.b16 %v5448
    %v5587 = vunpack.c.h.b16 %v5448
    %v5588 = vunpack.c.l.b16 %v5449
    %v5589 = vunpack.c.h.b16 %v5449
    %v5590 = vunpack.c.l.b16 %v5450
    %v5591 = vunpack.c.h.b16 %v5450
    %v5592 = vunpack.c.l.b16 %v5451
    %v5593 = vunpack.c.h.b16 %v5451
    %v5594 = vunpack.c.l.b16 %v5452
    %v5595 = vunpack.c.h.b16 %v5452
    %v5596 = vunpack.c.l.b16 %v5453
    %v5597 = vunpack.c.h.b16 %v5453
    %v5598 = vunpack.c.l.b16 %v5454
    %v5599 = vunpack.c.h.b16 %v5454
    %v5600 = vunpack.c.l.b16 %v5455
    %v5601 = vunpack.c.h.b16 %v5455
    %v5602 = vunpack.c.l.b16 %v5456
    %v5603 = vunpack.c.h.b16 %v5456
    %v5604 = vunpack.c.l.b16 %v5457
    %v5605 = vunpack.c.h.b16 %v5457
    %v5606 = vunpack.c.l.b16 %v5458
    %v5607 = vunpack.c.h.b16 %v5458
    %v5608 = vunpack.c.l.b16 %v5459
    %v5609 = vunpack.c.h.b16 %v5459
    %v5610 = vunpack.c.l.b16 %v5460
    %v5611 = vunpack.c.h.b16 %v5460
    %v5612 = vunpack.c.l.b16 %v5461
    %v5613 = vunpack.c.h.b16 %v5461
    %v5614 = vunpack.c.l.b16 %v5462
    %v5615 = vunpack.c.h.b16 %v5462
    %v5616 = vunpack.c.l.b16 %v5463
    %v5617 = vunpack.c.h.b16 %v5463
    %v5618 = vunpack.c.l.b16 %v5464
    %v5619 = vunpack.c.h.b16 %v5464
    %v5620 = vunpack.c.l.b16 %v5465
    %v5621 = vunpack.c.h.b16 %v5465
    %v5622 = vunpack.c.l.b16 %v5466
    %v5623 = vunpack.c.h.b16 %v5466
    %v5624 = vunpack.c.l.b16 %v5467
    %v5625 = vunpack.c.h.b16 %v5467
    %v5626 = vunpack.c.l.b16 %v5468
    %v5627 = vunpack.c.h.b16 %v5468
    %v5628 = vunpack.c.l.b16 %v5469
    %v5629 = vunpack.c.h.b16 %v5469
    %v5630 = vunpack.c.l.b16 %v5470
    %v5631 = vunpack.c.h.b16 %v5470
    %v5632 = vunpack.c.l.b16 %v5471
    %v5633 = vunpack.c.h.b16 %v5471
    %v5634 = vunpack.c.l.b16 %v5472
    %v5635 = vunpack.c.h.b16 %v5472
    %v5636 = vunpack.c.l.b16 %v5473
    %v5637 = vunpack.c.h.b16 %v5473
    %v5638 = vunpack.c.l.b16 %v5474
    %v5639 = vunpack.c.h.b16 %v5474
    %v5640 = vunpack.c.l.b16 %v5475
    %v5641 = vunpack.c.h.b16 %v5475
    %v5642 = vunpack.c.l.b16 %v5476
    %v5643 = vunpack.c.h.b16 %v5476
    %v5644 = vunpack.c.l.b16 %v5477
    %v5645 = vunpack.c.h.b16 %v5477
    %v5646 = vpack.c.b16 %v5536, %v5534
    %v5647 = vpack.c.b16 %v5537, %v5535
    %v5648 = vpack.c.b16 %v5540, %v5538
    %v5649 = vpack.c.b16 %v5541, %v5539
    %v5650 = vpack.c.b16 %v5544, %v5542
    %v5651 = vpack.c.b16 %v5545, %v5543
    %v5652 = vpack.c.b16 %v5548, %v5546
    %v5653 = vpack.c.b16 %v5549, %v5547
    %v5654 = vpack.c.b16 %v5552, %v5550
    %v5655 = vpack.c.b16 %v5553, %v5551
    %v5656 = vpack.c.b16 %v5556, %v5554
    %v5657 = vpack.c.b16 %v5557, %v5555
    %v5658 = vpack.c.b16 %v5560, %v5558
    %v5659 = vpack.c.b16 %v5561, %v5559
    %v5660 = vpack.c.b16 %v5564, %v5562
    %v5661 = vpack.c.b16 %v5565, %v5563
    %v5662 = vpack.c.b16 %v5568, %v5566
    %v5663 = vpack.c.b16 %v5569, %v5567
    %v5664 = vpack.c.b16 %v5572, %v5570
    %v5665 = vpack.c.b16 %v5573, %v5571
    %v5666 = vpack.c.b16 %v5576, %v5574
    %v5667 = vpack.c.b16 %v5577, %v5575
    %v5668 = vpack.c.b16 %v5580, %v5578
    %v5669 = vpack.c.b16 %v5581, %v5579
    %v5670 = vpack.c.b16 %v5584, %v5582
    %v5671 = vpack.c.b16 %v5585, %v5583
    %v5672 = vpack.c.b16 %v5588, %v5586
    %v5673 = vpack.c.b16 %v5589, %v5587
    %v5674 = vpack.c.b16 %v5592, %v5590
    %v5675 = vpack.c.b16 %v5593, %v5591
    %v5676 = vpack.c.b16 %v5596, %v5594
    %v5677 = vpack.c.b16 %v5597, %v5595
    %v5678 = vpack.c.b16 %v5600, %v5598
    %v5679 = vpack.c.b16 %v5601, %v5599
    %v5680 = vpack.c.b16 %v5604, %v5602
    %v5681 = vpack.c.b16 %v5605, %v5603
    %v5682 = vpack.c.b16 %v5608, %v5606
    %v5683 = vpack.c.b16 %v5609, %v5607
    %v5684 = vpack.c.b16 %v5612, %v5610
    %v5685 = vpack.c.b16 %v5613, %v5611
    %v5686 = vpack.c.b16 %v5616, %v5614
    %v5687 = vpack.c.b16 %v5617, %v5615
    %v5688 = vpack.c.b16 %v5620, %v5618
    %v5689 = vpack.c.b16 %v5621, %v5619
    %v5690 = vpack.c.b16 %v5624, %v5622
    %v5691 = vpack.c.b16 %v5625, %v5623
    %v5692 = vpack.c.b16 %v5628, %v5626
    %v5693 = vpack.c.b16 %v5629, %v5627
    %v5694 = vpack.c.b16 %v5632, %v5630
    %v5695 = vpack.c.b16 %v5633, %v5631
    %v5696 = vpack.c.b16 %v5636, %v5634
    %v5697 = vpack.c.b16 %v5637, %v5635
    %v5698 = vpack.c.b16 %v5640, %v5638
    %v5699 = vpack.c.b16 %v5641, %v5639
    %v5700 = vpack.c.b16 %v5644, %v5642
    %v5701 = vpack.c.b16 %v5645, %v5643
    %v5759 = vsel %vm3672, %v3246, 0
    %5761 = vmatprep.subr.bf16.mxu0 %v5647
    %5762 = vmatpush1.bf16.msra.mxu0 %v5646
    %5763 = vmatprep.subr.bf16.mxu0 %v5649
    %5764 = vmatpush1.bf16.msra.mxu0 %v5648
    %5765 = vmatprep.subr.bf16.mxu0 %v5651
    %5766 = vmatpush1.bf16.msra.mxu0 %v5650
    %5767 = vmatprep.subr.bf16.mxu0 %v5653
    %5768 = vmatpush1.bf16.msra.mxu0 %v5652
    %5769 = vmatprep.subr.bf16.mxu0 %v5655
    %5770 = vmatpush1.bf16.msra.mxu0 %v5654
    %5771 = vmatprep.subr.bf16.mxu0 %v5657
    %5772 = vmatpush1.bf16.msra.mxu0 %v5656
    %5773 = vmatprep.subr.bf16.mxu0 %v5659
    %5774 = vmatpush1.bf16.msra.mxu0 %v5658
    %5775 = vmatprep.subr.bf16.mxu0 %v5661
    %5776 = vmatpush1.bf16.msra.mxu0 %v5660
    %5777 = vmatprep.subr.bf16.mxu0 %v5663
    %5778 = vmatpush1.bf16.msra.mxu0 %v5662
    %5779 = vmatprep.subr.bf16.mxu0 %v5665
    %5780 = vmatpush1.bf16.msra.mxu0 %v5664
    %5781 = vmatprep.subr.bf16.mxu0 %v5667
    %5782 = vmatpush1.bf16.msra.mxu0 %v5666
    %5783 = vmatprep.subr.bf16.mxu0 %v5669
    %5784 = vmatpush1.bf16.msra.mxu0 %v5668
    %5785 = vmatprep.subr.bf16.mxu0 %v5671
    %5786 = vmatpush1.bf16.msra.mxu0 %v5670
    %5787 = vmatprep.subr.bf16.mxu0 %v5673
    %5788 = vmatpush1.bf16.msra.mxu0 %v5672
    %5789 = vmatprep.subr.bf16.mxu0 %v5675
    %5790 = vmatpush1.bf16.msra.mxu0 %v5674
    %5791 = vmatprep.subr.bf16.mxu0 %v5677
    %5792 = vmatpush1.bf16.msra.mxu0 %v5676
    %5793 = vmatprep.mubr.bf16.mxu0 %v3244
    %5794 = vmatmul.mubr.bf16.gmra.mrb[0].mxu0 %v3243
    %v5795 = vpop.f32.mrb[0].mxu0
    %v5796 = vadd.f32 0.0, %v5795
    %v5797 = vpop.f32.mrb[0].mxu0
    %v5798 = vadd.f32 0.0, %v5797
    %v5799 = vpop.f32.mrb[0].mxu0
    %v5800 = vadd.f32 0.0, %v5799
    %v5801 = vpop.f32.mrb[0].mxu0
    %v5802 = vadd.f32 0.0, %v5801
    %5803 = vdwg.mxu0
    %5804 = vmatprep.subr.bf16.mxu0 %v5679
    %5805 = vmatpush1.bf16.msra.mxu0 %v5678
    %5806 = vmatprep.subr.bf16.mxu0 %v5681
    %5807 = vmatpush1.bf16.msra.mxu0 %v5680
    %5808 = vmatprep.subr.bf16.mxu0 %v5683
    %5809 = vmatpush1.bf16.msra.mxu0 %v5682
    %5810 = vmatprep.subr.bf16.mxu0 %v5685
    %5811 = vmatpush1.bf16.msra.mxu0 %v5684
    %5812 = vmatprep.subr.bf16.mxu0 %v5687
    %5813 = vmatpush1.bf16.msra.mxu0 %v5686
    %5814 = vmatprep.subr.bf16.mxu0 %v5689
    %5815 = vmatpush1.bf16.msra.mxu0 %v5688
    %5816 = vmatprep.subr.bf16.mxu0 %v5691
    %5817 = vmatpush1.bf16.msra.mxu0 %v5690
    %5818 = vmatprep.subr.bf16.mxu0 %v5693
    %5819 = vmatpush1.bf16.msra.mxu0 %v5692
    %5820 = vmatprep.subr.bf16.mxu0 %v5695
    %5821 = vmatpush1.bf16.msra.mxu0 %v5694
    %5822 = vmatprep.subr.bf16.mxu0 %v5697
    %5823 = vmatpush1.bf16.msra.mxu0 %v5696
    %5824 = vmatprep.subr.bf16.mxu0 %v5699
    %5825 = vmatpush1.bf16.msra.mxu0 %v5698
    %5826 = vmatprep.subr.bf16.mxu0 %v5701
    %5827 = vmatpush1.bf16.msra.mxu0 %v5700
    %5828 = vmatprep.subr.bf16.mxu0 0
    %5829 = vmatpush1.bf16.msra.mxu0 0
    %5830 = vmatprep.subr.bf16.mxu0 0
    %5831 = vmatpush1.bf16.msra.mxu0 0
    %5832 = vmatprep.subr.bf16.mxu0 0
    %5833 = vmatpush1.bf16.msra.mxu0 0
    %5834 = vmatprep.subr.bf16.mxu0 0
    %5835 = vmatpush1.bf16.msra.mxu0 0
    %5836 = vmatprep.mubr.bf16.mxu0 %v5759
    %5837 = vmatmul.mubr.bf16.gmra.mrb[0].mxu0 %v3245
    %v5838 = vpop.f32.mrb[0].mxu0
    %v5839 = vadd.f32 %v5796, %v5838
    %v5840 = vpop.f32.mrb[0].mxu0
    %v5841 = vadd.f32 %v5798, %v5840
    %v5842 = vpop.f32.mrb[0].mxu0
    %v5843 = vadd.f32 %v5800, %v5842
    %v5844 = vpop.f32.mrb[0].mxu0
    %v5845 = vadd.f32 %v5802, %v5844
    %5846 = vdwg.mxu0
    %v5847 = vadd.f32 %v5417, %v5839
    %v5848 = vadd.f32 %v5418, %v5841
    %v5849 = vadd.f32 %v5419, %v5843
    %v5850 = vadd.f32 %v5420, %v5845
    %s5851 = scalar_lea.vmem [#allocation4], 2688
    %v5852 = vld [vmem:[%s5851] sm:$0xff]
    %v5853 = vld [vmem:[%s5851 + $0x8] sm:$0xff]
    %v5854 = vld [vmem:[%s5851 + $0x10] sm:$0xff]
    %v5855 = vld [vmem:[%s5851 + $0x18] sm:$0xff]
    %v5856 = vld [vmem:[%s5851 + $0x20] sm:$0xff]
    %v5857 = vld [vmem:[%s5851 + $0x28] sm:$0xff]
    %v5858 = vld [vmem:[%s5851 + $0x30] sm:$0xff]
    %v5859 = vld [vmem:[%s5851 + $0x38] sm:$0xff]
    %v5860 = vld [vmem:[%s5851 + $0x40] sm:$0xff]
    %v5861 = vld [vmem:[%s5851 + $0x48] sm:$0xff]
    %v5862 = vld [vmem:[%s5851 + $0x50] sm:$0xff]
    %v5863 = vld [vmem:[%s5851 + $0x58] sm:$0xff]
    %v5864 = vld [vmem:[%s5851 + $0x60] sm:$0xff]
    %v5865 = vld [vmem:[%s5851 + $0x68] sm:$0xff]
    %v5866 = vld [vmem:[%s5851 + $0x70] sm:$0xff]
    %v5867 = vld [vmem:[%s5851 + $0x78] sm:$0xff]
    %v5868 = vld [vmem:[%s5851 + $0x80] sm:$0xff]
    %v5869 = vld [vmem:[%s5851 + $0x88] sm:$0xff]
    %v5870 = vld [vmem:[%s5851 + $0x90] sm:$0xff]
    %v5871 = vld [vmem:[%s5851 + $0x98] sm:$0xff]
    %v5872 = vld [vmem:[%s5851 + $0xa0] sm:$0xff]
    %v5873 = vld [vmem:[%s5851 + $0xa8] sm:$0xff]
    %v5874 = vld [vmem:[%s5851 + $0xb0] sm:$0xff]
    %v5875 = vld [vmem:[%s5851 + $0xb8] sm:$0xff]
    %v5876 = vld [vmem:[%s5851 + $0xc0] sm:$0xff]
    %v5877 = vld [vmem:[%s5851 + $0xc8] sm:$0xff]
    %v5878 = vld [vmem:[%s5851 + $0xd0] sm:$0xff]
    %v5879 = vld [vmem:[%s5851 + $0xd8] sm:$0xff]
    %v5880 = vld [vmem:[%s5851 + $0xe0] sm:$0xff]
    %v5881 = vld [vmem:[%s5851 + $0xe8] sm:$0xff]
    %v5882 = vld [vmem:[%s5851 + $0xf0] sm:$0xff]
    %v5883 = vld [vmem:[%s5851 + $0xf8] sm:$0xff]
    %v5884 = vld [vmem:[%s5851 + $0x100] sm:$0xff]
    %v5885 = vld [vmem:[%s5851 + $0x108] sm:$0xff]
    %v5886 = vld [vmem:[%s5851 + $0x110] sm:$0xff]
    %v5887 = vld [vmem:[%s5851 + $0x118] sm:$0xff]
    %v5888 = vld [vmem:[%s5851 + $0x120] sm:$0xff]
    %v5889 = vld [vmem:[%s5851 + $0x128] sm:$0xff]
    %v5890 = vld [vmem:[%s5851 + $0x130] sm:$0xff]
    %v5891 = vld [vmem:[%s5851 + $0x138] sm:$0xff]
    %v5892 = vld [vmem:[%s5851 + $0x140] sm:$0xff]
    %v5893 = vld [vmem:[%s5851 + $0x148] sm:$0xff]
    %v5894 = vld [vmem:[%s5851 + $0x150] sm:$0xff]
    %v5895 = vld [vmem:[%s5851 + $0x158] sm:$0xff]
    %v5896 = vld [vmem:[%s5851 + $0x160] sm:$0xff]
    %v5897 = vld [vmem:[%s5851 + $0x168] sm:$0xff]
    %v5898 = vld [vmem:[%s5851 + $0x170] sm:$0xff]
    %v5899 = vld [vmem:[%s5851 + $0x178] sm:$0xff]
    %v5900 = vld [vmem:[%s5851 + $0x180] sm:$0xff]
    %v5901 = vld [vmem:[%s5851 + $0x188] sm:$0xff]
    %v5902 = vld [vmem:[%s5851 + $0x190] sm:$0xff]
    %v5903 = vld [vmem:[%s5851 + $0x198] sm:$0xff]
    %v5904 = vld [vmem:[%s5851 + $0x1a0] sm:$0xff]
    %v5905 = vld [vmem:[%s5851 + $0x1a8] sm:$0xff]
    %v5906 = vld [vmem:[%s5851 + $0x1b0] sm:$0xff]
    %v5907 = vld [vmem:[%s5851 + $0x1b8] sm:$0xff]
    %v5964 = vunpack.c.l.b16 %v5852
    %v5965 = vunpack.c.h.b16 %v5852
    %v5966 = vunpack.c.l.b16 %v5853
    %v5967 = vunpack.c.h.b16 %v5853
    %v5968 = vunpack.c.l.b16 %v5854
    %v5969 = vunpack.c.h.b16 %v5854
    %v5970 = vunpack.c.l.b16 %v5855
    %v5971 = vunpack.c.h.b16 %v5855
    %v5972 = vunpack.c.l.b16 %v5856
    %v5973 = vunpack.c.h.b16 %v5856
    %v5974 = vunpack.c.l.b16 %v5857
    %v5975 = vunpack.c.h.b16 %v5857
    %v5976 = vunpack.c.l.b16 %v5858
    %v5977 = vunpack.c.h.b16 %v5858
    %v5978 = vunpack.c.l.b16 %v5859
    %v5979 = vunpack.c.h.b16 %v5859
    %v5980 = vunpack.c.l.b16 %v5860
    %v5981 = vunpack.c.h.b16 %v5860
    %v5982 = vunpack.c.l.b16 %v5861
    %v5983 = vunpack.c.h.b16 %v5861
    %v5984 = vunpack.c.l.b16 %v5862
    %v5985 = vunpack.c.h.b16 %v5862
    %v5986 = vunpack.c.l.b16 %v5863
    %v5987 = vunpack.c.h.b16 %v5863
    %v5988 = vunpack.c.l.b16 %v5864
    %v5989 = vunpack.c.h.b16 %v5864
    %v5990 = vunpack.c.l.b16 %v5865
    %v5991 = vunpack.c.h.b16 %v5865
    %v5992 = vunpack.c.l.b16 %v5866
    %v5993 = vunpack.c.h.b16 %v5866
    %v5994 = vunpack.c.l.b16 %v5867
    %v5995 = vunpack.c.h.b16 %v5867
    %v5996 = vunpack.c.l.b16 %v5868
    %v5997 = vunpack.c.h.b16 %v5868
    %v5998 = vunpack.c.l.b16 %v5869
    %v5999 = vunpack.c.h.b16 %v5869
    %v6000 = vunpack.c.l.b16 %v5870
    %v6001 = vunpack.c.h.b16 %v5870
    %v6002 = vunpack.c.l.b16 %v5871
    %v6003 = vunpack.c.h.b16 %v5871
    %v6004 = vunpack.c.l.b16 %v5872
    %v6005 = vunpack.c.h.b16 %v5872
    %v6006 = vunpack.c.l.b16 %v5873
    %v6007 = vunpack.c.h.b16 %v5873
    %v6008 = vunpack.c.l.b16 %v5874
    %v6009 = vunpack.c.h.b16 %v5874
    %v6010 = vunpack.c.l.b16 %v5875
    %v6011 = vunpack.c.h.b16 %v5875
    %v6012 = vunpack.c.l.b16 %v5876
    %v6013 = vunpack.c.h.b16 %v5876
    %v6014 = vunpack.c.l.b16 %v5877
    %v6015 = vunpack.c.h.b16 %v5877
    %v6016 = vunpack.c.l.b16 %v5878
    %v6017 = vunpack.c.h.b16 %v5878
    %v6018 = vunpack.c.l.b16 %v5879
    %v6019 = vunpack.c.h.b16 %v5879
    %v6020 = vunpack.c.l.b16 %v5880
    %v6021 = vunpack.c.h.b16 %v5880
    %v6022 = vunpack.c.l.b16 %v5881
    %v6023 = vunpack.c.h.b16 %v5881
    %v6024 = vunpack.c.l.b16 %v5882
    %v6025 = vunpack.c.h.b16 %v5882
    %v6026 = vunpack.c.l.b16 %v5883
    %v6027 = vunpack.c.h.b16 %v5883
    %v6028 = vunpack.c.l.b16 %v5884
    %v6029 = vunpack.c.h.b16 %v5884
    %v6030 = vunpack.c.l.b16 %v5885
    %v6031 = vunpack.c.h.b16 %v5885
    %v6032 = vunpack.c.l.b16 %v5886
    %v6033 = vunpack.c.h.b16 %v5886
    %v6034 = vunpack.c.l.b16 %v5887
    %v6035 = vunpack.c.h.b16 %v5887
    %v6036 = vunpack.c.l.b16 %v5888
    %v6037 = vunpack.c.h.b16 %v5888
    %v6038 = vunpack.c.l.b16 %v5889
    %v6039 = vunpack.c.h.b16 %v5889
    %v6040 = vunpack.c.l.b16 %v5890
    %v6041 = vunpack.c.h.b16 %v5890
    %v6042 = vunpack.c.l.b16 %v5891
    %v6043 = vunpack.c.h.b16 %v5891
    %v6044 = vunpack.c.l.b16 %v5892
    %v6045 = vunpack.c.h.b16 %v5892
    %v6046 = vunpack.c.l.b16 %v5893
    %v6047 = vunpack.c.h.b16 %v5893
    %v6048 = vunpack.c.l.b16 %v5894
    %v6049 = vunpack.c.h.b16 %v5894
    %v6050 = vunpack.c.l.b16 %v5895
    %v6051 = vunpack.c.h.b16 %v5895
    %v6052 = vunpack.c.l.b16 %v5896
    %v6053 = vunpack.c.h.b16 %v5896
    %v6054 = vunpack.c.l.b16 %v5897
    %v6055 = vunpack.c.h.b16 %v5897
    %v6056 = vunpack.c.l.b16 %v5898
    %v6057 = vunpack.c.h.b16 %v5898
    %v6058 = vunpack.c.l.b16 %v5899
    %v6059 = vunpack.c.h.b16 %v5899
    %v6060 = vunpack.c.l.b16 %v5900
    %v6061 = vunpack.c.h.b16 %v5900
    %v6062 = vunpack.c.l.b16 %v5901
    %v6063 = vunpack.c.h.b16 %v5901
    %v6064 = vunpack.c.l.b16 %v5902
    %v6065 = vunpack.c.h.b16 %v5902
    %v6066 = vunpack.c.l.b16 %v5903
    %v6067 = vunpack.c.h.b16 %v5903
    %v6068 = vunpack.c.l.b16 %v5904
    %v6069 = vunpack.c.h.b16 %v5904
    %v6070 = vunpack.c.l.b16 %v5905
    %v6071 = vunpack.c.h.b16 %v5905
    %v6072 = vunpack.c.l.b16 %v5906
    %v6073 = vunpack.c.h.b16 %v5906
    %v6074 = vunpack.c.l.b16 %v5907
    %v6075 = vunpack.c.h.b16 %v5907
    %v6076 = vpack.c.b16 %v5966, %v5964
    %v6077 = vpack.c.b16 %v5967, %v5965
    %v6078 = vpack.c.b16 %v5970, %v5968
    %v6079 = vpack.c.b16 %v5971, %v5969
    %v6080 = vpack.c.b16 %v5974, %v5972
    %v6081 = vpack.c.b16 %v5975, %v5973
    %v6082 = vpack.c.b16 %v5978, %v5976
    %v6083 = vpack.c.b16 %v5979, %v5977
    %v6084 = vpack.c.b16 %v5982, %v5980
    %v6085 = vpack.c.b16 %v5983, %v5981
    %v6086 = vpack.c.b16 %v5986, %v5984
    %v6087 = vpack.c.b16 %v5987, %v5985
    %v6088 = vpack.c.b16 %v5990, %v5988
    %v6089 = vpack.c.b16 %v5991, %v5989
    %v6090 = vpack.c.b16 %v5994, %v5992
    %v6091 = vpack.c.b16 %v5995, %v5993
    %v6092 = vpack.c.b16 %v5998, %v5996
    %v6093 = vpack.c.b16 %v5999, %v5997
    %v6094 = vpack.c.b16 %v6002, %v6000
    %v6095 = vpack.c.b16 %v6003, %v6001
    %v6096 = vpack.c.b16 %v6006, %v6004
    %v6097 = vpack.c.b16 %v6007, %v6005
    %v6098 = vpack.c.b16 %v6010, %v6008
    %v6099 = vpack.c.b16 %v6011, %v6009
    %v6100 = vpack.c.b16 %v6014, %v6012
    %v6101 = vpack.c.b16 %v6015, %v6013
    %v6102 = vpack.c.b16 %v6018, %v6016
    %v6103 = vpack.c.b16 %v6019, %v6017
    %v6104 = vpack.c.b16 %v6022, %v6020
    %v6105 = vpack.c.b16 %v6023, %v6021
    %v6106 = vpack.c.b16 %v6026, %v6024
    %v6107 = vpack.c.b16 %v6027, %v6025
    %v6108 = vpack.c.b16 %v6030, %v6028
    %v6109 = vpack.c.b16 %v6031, %v6029
    %v6110 = vpack.c.b16 %v6034, %v6032
    %v6111 = vpack.c.b16 %v6035, %v6033
    %v6112 = vpack.c.b16 %v6038, %v6036
    %v6113 = vpack.c.b16 %v6039, %v6037
    %v6114 = vpack.c.b16 %v6042, %v6040
    %v6115 = vpack.c.b16 %v6043, %v6041
    %v6116 = vpack.c.b16 %v6046, %v6044
    %v6117 = vpack.c.b16 %v6047, %v6045
    %v6118 = vpack.c.b16 %v6050, %v6048
    %v6119 = vpack.c.b16 %v6051, %v6049
    %v6120 = vpack.c.b16 %v6054, %v6052
    %v6121 = vpack.c.b16 %v6055, %v6053
    %v6122 = vpack.c.b16 %v6058, %v6056
    %v6123 = vpack.c.b16 %v6059, %v6057
    %v6124 = vpack.c.b16 %v6062, %v6060
    %v6125 = vpack.c.b16 %v6063, %v6061
    %v6126 = vpack.c.b16 %v6066, %v6064
    %v6127 = vpack.c.b16 %v6067, %v6065
    %v6128 = vpack.c.b16 %v6070, %v6068
    %v6129 = vpack.c.b16 %v6071, %v6069
    %v6130 = vpack.c.b16 %v6074, %v6072
    %v6131 = vpack.c.b16 %v6075, %v6073
    %v6189 = vsel %vm3672, %v3250, 0
    %6191 = vmatprep.subr.bf16.mxu0 %v6077
    %6192 = vmatpush1.bf16.msra.mxu0 %v6076
    %6193 = vmatprep.subr.bf16.mxu0 %v6079
    %6194 = vmatpush1.bf16.msra.mxu0 %v6078
    %6195 = vmatprep.subr.bf16.mxu0 %v6081
    %6196 = vmatpush1.bf16.msra.mxu0 %v6080
    %6197 = vmatprep.subr.bf16.mxu0 %v6083
    %6198 = vmatpush1.bf16.msra.mxu0 %v6082
    %6199 = vmatprep.subr.bf16.mxu0 %v6085
    %6200 = vmatpush1.bf16.msra.mxu0 %v6084
    %6201 = vmatprep.subr.bf16.mxu0 %v6087
    %6202 = vmatpush1.bf16.msra.mxu0 %v6086
    %6203 = vmatprep.subr.bf16.mxu0 %v6089
    %6204 = vmatpush1.bf16.msra.mxu0 %v6088
    %6205 = vmatprep.subr.bf16.mxu0 %v6091
    %6206 = vmatpush1.bf16.msra.mxu0 %v6090
    %6207 = vmatprep.subr.bf16.mxu0 %v6093
    %6208 = vmatpush1.bf16.msra.mxu0 %v6092
    %6209 = vmatprep.subr.bf16.mxu0 %v6095
    %6210 = vmatpush1.bf16.msra.mxu0 %v6094
    %6211 = vmatprep.subr.bf16.mxu0 %v6097
    %6212 = vmatpush1.bf16.msra.mxu0 %v6096
    %6213 = vmatprep.subr.bf16.mxu0 %v6099
    %6214 = vmatpush1.bf16.msra.mxu0 %v6098
    %6215 = vmatprep.subr.bf16.mxu0 %v6101
    %6216 = vmatpush1.bf16.msra.mxu0 %v6100
    %6217 = vmatprep.subr.bf16.mxu0 %v6103
    %6218 = vmatpush1.bf16.msra.mxu0 %v6102
    %6219 = vmatprep.subr.bf16.mxu0 %v6105
    %6220 = vmatpush1.bf16.msra.mxu0 %v6104
    %6221 = vmatprep.subr.bf16.mxu0 %v6107
    %6222 = vmatpush1.bf16.msra.mxu0 %v6106
    %6223 = vmatprep.mubr.bf16.mxu0 %v3248
    %6224 = vmatmul.mubr.bf16.gmra.mrb[0].mxu0 %v3247
    %v6225 = vpop.f32.mrb[0].mxu0
    %v6226 = vadd.f32 0.0, %v6225
    %v6227 = vpop.f32.mrb[0].mxu0
    %v6228 = vadd.f32 0.0, %v6227
    %v6229 = vpop.f32.mrb[0].mxu0
    %v6230 = vadd.f32 0.0, %v6229
    %v6231 = vpop.f32.mrb[0].mxu0
    %v6232 = vadd.f32 0.0, %v6231
    %6233 = vdwg.mxu0
    %6234 = vmatprep.subr.bf16.mxu0 %v6109
    %6235 = vmatpush1.bf16.msra.mxu0 %v6108
    %6236 = vmatprep.subr.bf16.mxu0 %v6111
    %6237 = vmatpush1.bf16.msra.mxu0 %v6110
    %6238 = vmatprep.subr.bf16.mxu0 %v6113
    %6239 = vmatpush1.bf16.msra.mxu0 %v6112
    %6240 = vmatprep.subr.bf16.mxu0 %v6115
    %6241 = vmatpush1.bf16.msra.mxu0 %v6114
    %6242 = vmatprep.subr.bf16.mxu0 %v6117
    %6243 = vmatpush1.bf16.msra.mxu0 %v6116
    %6244 = vmatprep.subr.bf16.mxu0 %v6119
    %6245 = vmatpush1.bf16.msra.mxu0 %v6118
    %6246 = vmatprep.subr.bf16.mxu0 %v6121
    %6247 = vmatpush1.bf16.msra.mxu0 %v6120
    %6248 = vmatprep.subr.bf16.mxu0 %v6123
    %6249 = vmatpush1.bf16.msra.mxu0 %v6122
    %6250 = vmatprep.subr.bf16.mxu0 %v6125
    %6251 = vmatpush1.bf16.msra.mxu0 %v6124
    %6252 = vmatprep.subr.bf16.mxu0 %v6127
    %6253 = vmatpush1.bf16.msra.mxu0 %v6126
    %6254 = vmatprep.subr.bf16.mxu0 %v6129
    %6255 = vmatpush1.bf16.msra.mxu0 %v6128
    %6256 = vmatprep.subr.bf16.mxu0 %v6131
    %6257 = vmatpush1.bf16.msra.mxu0 %v6130
    %6258 = vmatprep.subr.bf16.mxu0 0
    %6259 = vmatpush1.bf16.msra.mxu0 0
    %6260 = vmatprep.subr.bf16.mxu0 0
    %6261 = vmatpush1.bf16.msra.mxu0 0
    %6262 = vmatprep.subr.bf16.mxu0 0
    %6263 = vmatpush1.bf16.msra.mxu0 0
    %6264 = vmatprep.subr.bf16.mxu0 0
    %6265 = vmatpush1.bf16.msra.mxu0 0
    %6266 = vmatprep.mubr.bf16.mxu0 %v6189
    %6267 = vmatmul.mubr.bf16.gmra.mrb[0].mxu0 %v3249
    %v6268 = vpop.f32.mrb[0].mxu0
    %v6269 = vadd.f32 %v6226, %v6268
    %v6270 = vpop.f32.mrb[0].mxu0
    %v6271 = vadd.f32 %v6228, %v6270
    %v6272 = vpop.f32.mrb[0].mxu0
    %v6273 = vadd.f32 %v6230, %v6272
    %v6274 = vpop.f32.mrb[0].mxu0
    %v6275 = vadd.f32 %v6232, %v6274
    %6276 = vdwg.mxu0
    %v6277 = vadd.f32 %v5847, %v6269
    %v6278 = vadd.f32 %v5848, %v6271
    %v6279 = vadd.f32 %v5849, %v6273
    %v6280 = vadd.f32 %v5850, %v6275
    %s6281 = scalar_lea.vmem [#allocation4], 3136
    %v6282 = vld [vmem:[%s6281] sm:$0xff]
    %v6283 = vld [vmem:[%s6281 + $0x8] sm:$0xff]
    %v6284 = vld [vmem:[%s6281 + $0x10] sm:$0xff]
    %v6285 = vld [vmem:[%s6281 + $0x18] sm:$0xff]
    %v6286 = vld [vmem:[%s6281 + $0x20] sm:$0xff]
    %v6287 = vld [vmem:[%s6281 + $0x28] sm:$0xff]
    %v6288 = vld [vmem:[%s6281 + $0x30] sm:$0xff]
    %v6289 = vld [vmem:[%s6281 + $0x38] sm:$0xff]
    %v6290 = vld [vmem:[%s6281 + $0x40] sm:$0xff]
    %v6291 = vld [vmem:[%s6281 + $0x48] sm:$0xff]
    %v6292 = vld [vmem:[%s6281 + $0x50] sm:$0xff]
    %v6293 = vld [vmem:[%s6281 + $0x58] sm:$0xff]
    %v6294 = vld [vmem:[%s6281 + $0x60] sm:$0xff]
    %v6295 = vld [vmem:[%s6281 + $0x68] sm:$0xff]
    %v6296 = vld [vmem:[%s6281 + $0x70] sm:$0xff]
    %v6297 = vld [vmem:[%s6281 + $0x78] sm:$0xff]
    %v6298 = vld [vmem:[%s6281 + $0x80] sm:$0xff]
    %v6299 = vld [vmem:[%s6281 + $0x88] sm:$0xff]
    %v6300 = vld [vmem:[%s6281 + $0x90] sm:$0xff]
    %v6301 = vld [vmem:[%s6281 + $0x98] sm:$0xff]
    %v6302 = vld [vmem:[%s6281 + $0xa0] sm:$0xff]
    %v6303 = vld [vmem:[%s6281 + $0xa8] sm:$0xff]
    %v6304 = vld [vmem:[%s6281 + $0xb0] sm:$0xff]
    %v6305 = vld [vmem:[%s6281 + $0xb8] sm:$0xff]
    %v6306 = vld [vmem:[%s6281 + $0xc0] sm:$0xff]
    %v6307 = vld [vmem:[%s6281 + $0xc8] sm:$0xff]
    %v6308 = vld [vmem:[%s6281 + $0xd0] sm:$0xff]
    %v6309 = vld [vmem:[%s6281 + $0xd8] sm:$0xff]
    %v6310 = vld [vmem:[%s6281 + $0xe0] sm:$0xff]
    %v6311 = vld [vmem:[%s6281 + $0xe8] sm:$0xff]
    %v6312 = vld [vmem:[%s6281 + $0xf0] sm:$0xff]
    %v6313 = vld [vmem:[%s6281 + $0xf8] sm:$0xff]
    %v6314 = vld [vmem:[%s6281 + $0x100] sm:$0xff]
    %v6315 = vld [vmem:[%s6281 + $0x108] sm:$0xff]
    %v6316 = vld [vmem:[%s6281 + $0x110] sm:$0xff]
    %v6317 = vld [vmem:[%s6281 + $0x118] sm:$0xff]
    %v6318 = vld [vmem:[%s6281 + $0x120] sm:$0xff]
    %v6319 = vld [vmem:[%s6281 + $0x128] sm:$0xff]
    %v6320 = vld [vmem:[%s6281 + $0x130] sm:$0xff]
    %v6321 = vld [vmem:[%s6281 + $0x138] sm:$0xff]
    %v6322 = vld [vmem:[%s6281 + $0x140] sm:$0xff]
    %v6323 = vld [vmem:[%s6281 + $0x148] sm:$0xff]
    %v6324 = vld [vmem:[%s6281 + $0x150] sm:$0xff]
    %v6325 = vld [vmem:[%s6281 + $0x158] sm:$0xff]
    %v6326 = vld [vmem:[%s6281 + $0x160] sm:$0xff]
    %v6327 = vld [vmem:[%s6281 + $0x168] sm:$0xff]
    %v6328 = vld [vmem:[%s6281 + $0x170] sm:$0xff]
    %v6329 = vld [vmem:[%s6281 + $0x178] sm:$0xff]
    %v6330 = vld [vmem:[%s6281 + $0x180] sm:$0xff]
    %v6331 = vld [vmem:[%s6281 + $0x188] sm:$0xff]
    %v6332 = vld [vmem:[%s6281 + $0x190] sm:$0xff]
    %v6333 = vld [vmem:[%s6281 + $0x198] sm:$0xff]
    %v6334 = vld [vmem:[%s6281 + $0x1a0] sm:$0xff]
    %v6335 = vld [vmem:[%s6281 + $0x1a8] sm:$0xff]
    %v6336 = vld [vmem:[%s6281 + $0x1b0] sm:$0xff]
    %v6337 = vld [vmem:[%s6281 + $0x1b8] sm:$0xff]
    %v6394 = vunpack.c.l.b16 %v6282
    %v6395 = vunpack.c.h.b16 %v6282
    %v6396 = vunpack.c.l.b16 %v6283
    %v6397 = vunpack.c.h.b16 %v6283
    %v6398 = vunpack.c.l.b16 %v6284
    %v6399 = vunpack.c.h.b16 %v6284
    %v6400 = vunpack.c.l.b16 %v6285
    %v6401 = vunpack.c.h.b16 %v6285
    %v6402 = vunpack.c.l.b16 %v6286
    %v6403 = vunpack.c.h.b16 %v6286
    %v6404 = vunpack.c.l.b16 %v6287
    %v6405 = vunpack.c.h.b16 %v6287
    %v6406 = vunpack.c.l.b16 %v6288
    %v6407 = vunpack.c.h.b16 %v6288
    %v6408 = vunpack.c.l.b16 %v6289
    %v6409 = vunpack.c.h.b16 %v6289
    %v6410 = vunpack.c.l.b16 %v6290
    %v6411 = vunpack.c.h.b16 %v6290
    %v6412 = vunpack.c.l.b16 %v6291
    %v6413 = vunpack.c.h.b16 %v6291
    %v6414 = vunpack.c.l.b16 %v6292
    %v6415 = vunpack.c.h.b16 %v6292
    %v6416 = vunpack.c.l.b16 %v6293
    %v6417 = vunpack.c.h.b16 %v6293
    %v6418 = vunpack.c.l.b16 %v6294
    %v6419 = vunpack.c.h.b16 %v6294
    %v6420 = vunpack.c.l.b16 %v6295
    %v6421 = vunpack.c.h.b16 %v6295
    %v6422 = vunpack.c.l.b16 %v6296
    %v6423 = vunpack.c.h.b16 %v6296
    %v6424 = vunpack.c.l.b16 %v6297
    %v6425 = vunpack.c.h.b16 %v6297
    %v6426 = vunpack.c.l.b16 %v6298
    %v6427 = vunpack.c.h.b16 %v6298
    %v6428 = vunpack.c.l.b16 %v6299
    %v6429 = vunpack.c.h.b16 %v6299
    %v6430 = vunpack.c.l.b16 %v6300
    %v6431 = vunpack.c.h.b16 %v6300
    %v6432 = vunpack.c.l.b16 %v6301
    %v6433 = vunpack.c.h.b16 %v6301
    %v6434 = vunpack.c.l.b16 %v6302
    %v6435 = vunpack.c.h.b16 %v6302
    %v6436 = vunpack.c.l.b16 %v6303
    %v6437 = vunpack.c.h.b16 %v6303
    %v6438 = vunpack.c.l.b16 %v6304
    %v6439 = vunpack.c.h.b16 %v6304
    %v6440 = vunpack.c.l.b16 %v6305
    %v6441 = vunpack.c.h.b16 %v6305
    %v6442 = vunpack.c.l.b16 %v6306
    %v6443 = vunpack.c.h.b16 %v6306
    %v6444 = vunpack.c.l.b16 %v6307
    %v6445 = vunpack.c.h.b16 %v6307
    %v6446 = vunpack.c.l.b16 %v6308
    %v6447 = vunpack.c.h.b16 %v6308
    %v6448 = vunpack.c.l.b16 %v6309
    %v6449 = vunpack.c.h.b16 %v6309
    %v6450 = vunpack.c.l.b16 %v6310
    %v6451 = vunpack.c.h.b16 %v6310
    %v6452 = vunpack.c.l.b16 %v6311
    %v6453 = vunpack.c.h.b16 %v6311
    %v6454 = vunpack.c.l.b16 %v6312
    %v6455 = vunpack.c.h.b16 %v6312
    %v6456 = vunpack.c.l.b16 %v6313
    %v6457 = vunpack.c.h.b16 %v6313
    %v6458 = vunpack.c.l.b16 %v6314
    %v6459 = vunpack.c.h.b16 %v6314
    %v6460 = vunpack.c.l.b16 %v6315
    %v6461 = vunpack.c.h.b16 %v6315
    %v6462 = vunpack.c.l.b16 %v6316
    %v6463 = vunpack.c.h.b16 %v6316
    %v6464 = vunpack.c.l.b16 %v6317
    %v6465 = vunpack.c.h.b16 %v6317
    %v6466 = vunpack.c.l.b16 %v6318
    %v6467 = vunpack.c.h.b16 %v6318
    %v6468 = vunpack.c.l.b16 %v6319
    %v6469 = vunpack.c.h.b16 %v6319
    %v6470 = vunpack.c.l.b16 %v6320
    %v6471 = vunpack.c.h.b16 %v6320
    %v6472 = vunpack.c.l.b16 %v6321
    %v6473 = vunpack.c.h.b16 %v6321
    %v6474 = vunpack.c.l.b16 %v6322
    %v6475 = vunpack.c.h.b16 %v6322
    %v6476 = vunpack.c.l.b16 %v6323
    %v6477 = vunpack.c.h.b16 %v6323
    %v6478 = vunpack.c.l.b16 %v6324
    %v6479 = vunpack.c.h.b16 %v6324
    %v6480 = vunpack.c.l.b16 %v6325
    %v6481 = vunpack.c.h.b16 %v6325
    %v6482 = vunpack.c.l.b16 %v6326
    %v6483 = vunpack.c.h.b16 %v6326
    %v6484 = vunpack.c.l.b16 %v6327
    %v6485 = vunpack.c.h.b16 %v6327
    %v6486 = vunpack.c.l.b16 %v6328
    %v6487 = vunpack.c.h.b16 %v6328
    %v6488 = vunpack.c.l.b16 %v6329
    %v6489 = vunpack.c.h.b16 %v6329
    %v6490 = vunpack.c.l.b16 %v6330
    %v6491 = vunpack.c.h.b16 %v6330
    %v6492 = vunpack.c.l.b16 %v6331
    %v6493 = vunpack.c.h.b16 %v6331
    %v6494 = vunpack.c.l.b16 %v6332
    %v6495 = vunpack.c.h.b16 %v6332
    %v6496 = vunpack.c.l.b16 %v6333
    %v6497 = vunpack.c.h.b16 %v6333
    %v6498 = vunpack.c.l.b16 %v6334
    %v6499 = vunpack.c.h.b16 %v6334
    %v6500 = vunpack.c.l.b16 %v6335
    %v6501 = vunpack.c.h.b16 %v6335
    %v6502 = vunpack.c.l.b16 %v6336
    %v6503 = vunpack.c.h.b16 %v6336
    %v6504 = vunpack.c.l.b16 %v6337
    %v6505 = vunpack.c.h.b16 %v6337
    %v6506 = vpack.c.b16 %v6396, %v6394
    %v6507 = vpack.c.b16 %v6397, %v6395
    %v6508 = vpack.c.b16 %v6400, %v6398
    %v6509 = vpack.c.b16 %v6401, %v6399
    %v6510 = vpack.c.b16 %v6404, %v6402
    %v6511 = vpack.c.b16 %v6405, %v6403
    %v6512 = vpack.c.b16 %v6408, %v6406
    %v6513 = vpack.c.b16 %v6409, %v6407
    %v6514 = vpack.c.b16 %v6412, %v6410
    %v6515 = vpack.c.b16 %v6413, %v6411
    %v6516 = vpack.c.b16 %v6416, %v6414
    %v6517 = vpack.c.b16 %v6417, %v6415
    %v6518 = vpack.c.b16 %v6420, %v6418
    %v6519 = vpack.c.b16 %v6421, %v6419
    %v6520 = vpack.c.b16 %v6424, %v6422
    %v6521 = vpack.c.b16 %v6425, %v6423
    %v6522 = vpack.c.b16 %v6428, %v6426
    %v6523 = vpack.c.b16 %v6429, %v6427
    %v6524 = vpack.c.b16 %v6432, %v6430
    %v6525 = vpack.c.b16 %v6433, %v6431
    %v6526 = vpack.c.b16 %v6436, %v6434
    %v6527 = vpack.c.b16 %v6437, %v6435
    %v6528 = vpack.c.b16 %v6440, %v6438
    %v6529 = vpack.c.b16 %v6441, %v6439
    %v6530 = vpack.c.b16 %v6444, %v6442
    %v6531 = vpack.c.b16 %v6445, %v6443
    %v6532 = vpack.c.b16 %v6448, %v6446
    %v6533 = vpack.c.b16 %v6449, %v6447
    %v6534 = vpack.c.b16 %v6452, %v6450
    %v6535 = vpack.c.b16 %v6453, %v6451
    %v6536 = vpack.c.b16 %v6456, %v6454
    %v6537 = vpack.c.b16 %v6457, %v6455
    %v6538 = vpack.c.b16 %v6460, %v6458
    %v6539 = vpack.c.b16 %v6461, %v6459
    %v6540 = vpack.c.b16 %v6464, %v6462
    %v6541 = vpack.c.b16 %v6465, %v6463
    %v6542 = vpack.c.b16 %v6468, %v6466
    %v6543 = vpack.c.b16 %v6469, %v6467
    %v6544 = vpack.c.b16 %v6472, %v6470
    %v6545 = vpack.c.b16 %v6473, %v6471
    %v6546 = vpack.c.b16 %v6476, %v6474
    %v6547 = vpack.c.b16 %v6477, %v6475
    %v6548 = vpack.c.b16 %v6480, %v6478
    %v6549 = vpack.c.b16 %v6481, %v6479
    %v6550 = vpack.c.b16 %v6484, %v6482
    %v6551 = vpack.c.b16 %v6485, %v6483
    %v6552 = vpack.c.b16 %v6488, %v6486
    %v6553 = vpack.c.b16 %v6489, %v6487
    %v6554 = vpack.c.b16 %v6492, %v6490
    %v6555 = vpack.c.b16 %v6493, %v6491
    %v6556 = vpack.c.b16 %v6496, %v6494
    %v6557 = vpack.c.b16 %v6497, %v6495
    %v6558 = vpack.c.b16 %v6500, %v6498
    %v6559 = vpack.c.b16 %v6501, %v6499
    %v6560 = vpack.c.b16 %v6504, %v6502
    %v6561 = vpack.c.b16 %v6505, %v6503
    %v6619 = vsel %vm3672, %v3254, 0
    %6621 = vmatprep.subr.bf16.mxu0 %v6507
    %6622 = vmatpush1.bf16.msra.mxu0 %v6506
    %6623 = vmatprep.subr.bf16.mxu0 %v6509
    %6624 = vmatpush1.bf16.msra.mxu0 %v6508
    %6625 = vmatprep.subr.bf16.mxu0 %v6511
    %6626 = vmatpush1.bf16.msra.mxu0 %v6510
    %6627 = vmatprep.subr.bf16.mxu0 %v6513
    %6628 = vmatpush1.bf16.msra.mxu0 %v6512
    %6629 = vmatprep.subr.bf16.mxu0 %v6515
    %6630 = vmatpush1.bf16.msra.mxu0 %v6514
    %6631 = vmatprep.subr.bf16.mxu0 %v6517
    %6632 = vmatpush1.bf16.msra.mxu0 %v6516
    %6633 = vmatprep.subr.bf16.mxu0 %v6519
    %6634 = vmatpush1.bf16.msra.mxu0 %v6518
    %6635 = vmatprep.subr.bf16.mxu0 %v6521
    %6636 = vmatpush1.bf16.msra.mxu0 %v6520
    %6637 = vmatprep.subr.bf16.mxu0 %v6523
    %6638 = vmatpush1.bf16.msra.mxu0 %v6522
    %6639 = vmatprep.subr.bf16.mxu0 %v6525
    %6640 = vmatpush1.bf16.msra.mxu0 %v6524
    %6641 = vmatprep.subr.bf16.mxu0 %v6527
    %6642 = vmatpush1.bf16.msra.mxu0 %v6526
    %6643 = vmatprep.subr.bf16.mxu0 %v6529
    %6644 = vmatpush1.bf16.msra.mxu0 %v6528
    %6645 = vmatprep.subr.bf16.mxu0 %v6531
    %6646 = vmatpush1.bf16.msra.mxu0 %v6530
    %6647 = vmatprep.subr.bf16.mxu0 %v6533
    %6648 = vmatpush1.bf16.msra.mxu0 %v6532
    %6649 = vmatprep.subr.bf16.mxu0 %v6535
    %6650 = vmatpush1.bf16.msra.mxu0 %v6534
    %6651 = vmatprep.subr.bf16.mxu0 %v6537
    %6652 = vmatpush1.bf16.msra.mxu0 %v6536
    %6653 = vmatprep.mubr.bf16.mxu0 %v3252
    %6654 = vmatmul.mubr.bf16.gmra.mrb[0].mxu0 %v3251
    %v6655 = vpop.f32.mrb[0].mxu0
    %v6656 = vadd.f32 0.0, %v6655
    %v6657 = vpop.f32.mrb[0].mxu0
    %v6658 = vadd.f32 0.0, %v6657
    %v6659 = vpop.f32.mrb[0].mxu0
    %v6660 = vadd.f32 0.0, %v6659
    %v6661 = vpop.f32.mrb[0].mxu0
    %v6662 = vadd.f32 0.0, %v6661
    %6663 = vdwg.mxu0
    %6664 = vmatprep.subr.bf16.mxu0 %v6539
    %6665 = vmatpush1.bf16.msra.mxu0 %v6538
    %6666 = vmatprep.subr.bf16.mxu0 %v6541
    %6667 = vmatpush1.bf16.msra.mxu0 %v6540
    %6668 = vmatprep.subr.bf16.mxu0 %v6543
    %6669 = vmatpush1.bf16.msra.mxu0 %v6542
    %6670 = vmatprep.subr.bf16.mxu0 %v6545
    %6671 = vmatpush1.bf16.msra.mxu0 %v6544
    %6672 = vmatprep.subr.bf16.mxu0 %v6547
    %6673 = vmatpush1.bf16.msra.mxu0 %v6546
    %6674 = vmatprep.subr.bf16.mxu0 %v6549
    %6675 = vmatpush1.bf16.msra.mxu0 %v6548
    %6676 = vmatprep.subr.bf16.mxu0 %v6551
    %6677 = vmatpush1.bf16.msra.mxu0 %v6550
    %6678 = vmatprep.subr.bf16.mxu0 %v6553
    %6679 = vmatpush1.bf16.msra.mxu0 %v6552
    %6680 = vmatprep.subr.bf16.mxu0 %v6555
    %6681 = vmatpush1.bf16.msra.mxu0 %v6554
    %6682 = vmatprep.subr.bf16.mxu0 %v6557
    %6683 = vmatpush1.bf16.msra.mxu0 %v6556
    %6684 = vmatprep.subr.bf16.mxu0 %v6559
    %6685 = vmatpush1.bf16.msra.mxu0 %v6558
    %6686 = vmatprep.subr.bf16.mxu0 %v6561
    %6687 = vmatpush1.bf16.msra.mxu0 %v6560
    %6688 = vmatprep.subr.bf16.mxu0 0
    %6689 = vmatpush1.bf16.msra.mxu0 0
    %6690 = vmatprep.subr.bf16.mxu0 0
    %6691 = vmatpush1.bf16.msra.mxu0 0
    %6692 = vmatprep.subr.bf16.mxu0 0
    %6693 = vmatpush1.bf16.msra.mxu0 0
    %6694 = vmatprep.subr.bf16.mxu0 0
    %6695 = vmatpush1.bf16.msra.mxu0 0
    %6696 = vmatprep.mubr.bf16.mxu0 %v6619
    %6697 = vmatmul.mubr.bf16.gmra.mrb[0].mxu0 %v3253
    %v6698 = vpop.f32.mrb[0].mxu0
    %v6699 = vadd.f32 %v6656, %v6698
    %v6700 = vpop.f32.mrb[0].mxu0
    %v6701 = vadd.f32 %v6658, %v6700
    %v6702 = vpop.f32.mrb[0].mxu0
    %v6703 = vadd.f32 %v6660, %v6702
    %v6704 = vpop.f32.mrb[0].mxu0
    %v6705 = vadd.f32 %v6662, %v6704
    %6706 = vdwg.mxu0
    %v6707 = vadd.f32 %v6277, %v6699
    %v6708 = vadd.f32 %v6278, %v6701
    %v6709 = vadd.f32 %v6279, %v6703
    %v6710 = vadd.f32 %v6280, %v6705
    %s6711 = scalar_lea.vmem [#allocation4], 3584
    %v6712 = vld [vmem:[%s6711] sm:$0xff]
    %v6713 = vld [vmem:[%s6711 + $0x8] sm:$0xff]
    %v6714 = vld [vmem:[%s6711 + $0x10] sm:$0xff]
    %v6715 = vld [vmem:[%s6711 + $0x18] sm:$0xff]
    %v6716 = vld [vmem:[%s6711 + $0x20] sm:$0xff]
    %v6717 = vld [vmem:[%s6711 + $0x28] sm:$0xff]
    %v6718 = vld [vmem:[%s6711 + $0x30] sm:$0xff]
    %v6719 = vld [vmem:[%s6711 + $0x38] sm:$0xff]
    %v6720 = vld [vmem:[%s6711 + $0x40] sm:$0xff]
    %v6721 = vld [vmem:[%s6711 + $0x48] sm:$0xff]
    %v6722 = vld [vmem:[%s6711 + $0x50] sm:$0xff]
    %v6723 = vld [vmem:[%s6711 + $0x58] sm:$0xff]
    %v6724 = vld [vmem:[%s6711 + $0x60] sm:$0xff]
    %v6725 = vld [vmem:[%s6711 + $0x68] sm:$0xff]
    %v6726 = vld [vmem:[%s6711 + $0x70] sm:$0xff]
    %v6727 = vld [vmem:[%s6711 + $0x78] sm:$0xff]
    %v6728 = vld [vmem:[%s6711 + $0x80] sm:$0xff]
    %v6729 = vld [vmem:[%s6711 + $0x88] sm:$0xff]
    %v6730 = vld [vmem:[%s6711 + $0x90] sm:$0xff]
    %v6731 = vld [vmem:[%s6711 + $0x98] sm:$0xff]
    %v6732 = vld [vmem:[%s6711 + $0xa0] sm:$0xff]
    %v6733 = vld [vmem:[%s6711 + $0xa8] sm:$0xff]
    %v6734 = vld [vmem:[%s6711 + $0xb0] sm:$0xff]
    %v6735 = vld [vmem:[%s6711 + $0xb8] sm:$0xff]
    %v6736 = vld [vmem:[%s6711 + $0xc0] sm:$0xff]
    %v6737 = vld [vmem:[%s6711 + $0xc8] sm:$0xff]
    %v6738 = vld [vmem:[%s6711 + $0xd0] sm:$0xff]
    %v6739 = vld [vmem:[%s6711 + $0xd8] sm:$0xff]
    %v6740 = vld [vmem:[%s6711 + $0xe0] sm:$0xff]
    %v6741 = vld [vmem:[%s6711 + $0xe8] sm:$0xff]
    %v6742 = vld [vmem:[%s6711 + $0xf0] sm:$0xff]
    %v6743 = vld [vmem:[%s6711 + $0xf8] sm:$0xff]
    %v6744 = vld [vmem:[%s6711 + $0x100] sm:$0xff]
    %v6745 = vld [vmem:[%s6711 + $0x108] sm:$0xff]
    %v6746 = vld [vmem:[%s6711 + $0x110] sm:$0xff]
    %v6747 = vld [vmem:[%s6711 + $0x118] sm:$0xff]
    %v6748 = vld [vmem:[%s6711 + $0x120] sm:$0xff]
    %v6749 = vld [vmem:[%s6711 + $0x128] sm:$0xff]
    %v6750 = vld [vmem:[%s6711 + $0x130] sm:$0xff]
    %v6751 = vld [vmem:[%s6711 + $0x138] sm:$0xff]
    %v6752 = vld [vmem:[%s6711 + $0x140] sm:$0xff]
    %v6753 = vld [vmem:[%s6711 + $0x148] sm:$0xff]
    %v6754 = vld [vmem:[%s6711 + $0x150] sm:$0xff]
    %v6755 = vld [vmem:[%s6711 + $0x158] sm:$0xff]
    %v6756 = vld [vmem:[%s6711 + $0x160] sm:$0xff]
    %v6757 = vld [vmem:[%s6711 + $0x168] sm:$0xff]
    %v6758 = vld [vmem:[%s6711 + $0x170] sm:$0xff]
    %v6759 = vld [vmem:[%s6711 + $0x178] sm:$0xff]
    %v6760 = vld [vmem:[%s6711 + $0x180] sm:$0xff]
    %v6761 = vld [vmem:[%s6711 + $0x188] sm:$0xff]
    %v6762 = vld [vmem:[%s6711 + $0x190] sm:$0xff]
    %v6763 = vld [vmem:[%s6711 + $0x198] sm:$0xff]
    %v6764 = vld [vmem:[%s6711 + $0x1a0] sm:$0xff]
    %v6765 = vld [vmem:[%s6711 + $0x1a8] sm:$0xff]
    %v6766 = vld [vmem:[%s6711 + $0x1b0] sm:$0xff]
    %v6767 = vld [vmem:[%s6711 + $0x1b8] sm:$0xff]
    %v6824 = vunpack.c.l.b16 %v6712
    %v6825 = vunpack.c.h.b16 %v6712
    %v6826 = vunpack.c.l.b16 %v6713
    %v6827 = vunpack.c.h.b16 %v6713
    %v6828 = vunpack.c.l.b16 %v6714
    %v6829 = vunpack.c.h.b16 %v6714
    %v6830 = vunpack.c.l.b16 %v6715
    %v6831 = vunpack.c.h.b16 %v6715
    %v6832 = vunpack.c.l.b16 %v6716
    %v6833 = vunpack.c.h.b16 %v6716
    %v6834 = vunpack.c.l.b16 %v6717
    %v6835 = vunpack.c.h.b16 %v6717
    %v6836 = vunpack.c.l.b16 %v6718
    %v6837 = vunpack.c.h.b16 %v6718
    %v6838 = vunpack.c.l.b16 %v6719
    %v6839 = vunpack.c.h.b16 %v6719
    %v6840 = vunpack.c.l.b16 %v6720
    %v6841 = vunpack.c.h.b16 %v6720
    %v6842 = vunpack.c.l.b16 %v6721
    %v6843 = vunpack.c.h.b16 %v6721
    %v6844 = vunpack.c.l.b16 %v6722
    %v6845 = vunpack.c.h.b16 %v6722
    %v6846 = vunpack.c.l.b16 %v6723
    %v6847 = vunpack.c.h.b16 %v6723
    %v6848 = vunpack.c.l.b16 %v6724
    %v6849 = vunpack.c.h.b16 %v6724
    %v6850 = vunpack.c.l.b16 %v6725
    %v6851 = vunpack.c.h.b16 %v6725
    %v6852 = vunpack.c.l.b16 %v6726
    %v6853 = vunpack.c.h.b16 %v6726
    %v6854 = vunpack.c.l.b16 %v6727
    %v6855 = vunpack.c.h.b16 %v6727
    %v6856 = vunpack.c.l.b16 %v6728
    %v6857 = vunpack.c.h.b16 %v6728
    %v6858 = vunpack.c.l.b16 %v6729
    %v6859 = vunpack.c.h.b16 %v6729
    %v6860 = vunpack.c.l.b16 %v6730
    %v6861 = vunpack.c.h.b16 %v6730
    %v6862 = vunpack.c.l.b16 %v6731
    %v6863 = vunpack.c.h.b16 %v6731
    %v6864 = vunpack.c.l.b16 %v6732
    %v6865 = vunpack.c.h.b16 %v6732
    %v6866 = vunpack.c.l.b16 %v6733
    %v6867 = vunpack.c.h.b16 %v6733
    %v6868 = vunpack.c.l.b16 %v6734
    %v6869 = vunpack.c.h.b16 %v6734
    %v6870 = vunpack.c.l.b16 %v6735
    %v6871 = vunpack.c.h.b16 %v6735
    %v6872 = vunpack.c.l.b16 %v6736
    %v6873 = vunpack.c.h.b16 %v6736
    %v6874 = vunpack.c.l.b16 %v6737
    %v6875 = vunpack.c.h.b16 %v6737
    %v6876 = vunpack.c.l.b16 %v6738
    %v6877 = vunpack.c.h.b16 %v6738
    %v6878 = vunpack.c.l.b16 %v6739
    %v6879 = vunpack.c.h.b16 %v6739
    %v6880 = vunpack.c.l.b16 %v6740
    %v6881 = vunpack.c.h.b16 %v6740
    %v6882 = vunpack.c.l.b16 %v6741
    %v6883 = vunpack.c.h.b16 %v6741
    %v6884 = vunpack.c.l.b16 %v6742
    %v6885 = vunpack.c.h.b16 %v6742
    %v6886 = vunpack.c.l.b16 %v6743
    %v6887 = vunpack.c.h.b16 %v6743
    %v6888 = vunpack.c.l.b16 %v6744
    %v6889 = vunpack.c.h.b16 %v6744
    %v6890 = vunpack.c.l.b16 %v6745
    %v6891 = vunpack.c.h.b16 %v6745
    %v6892 = vunpack.c.l.b16 %v6746
    %v6893 = vunpack.c.h.b16 %v6746
    %v6894 = vunpack.c.l.b16 %v6747
    %v6895 = vunpack.c.h.b16 %v6747
    %v6896 = vunpack.c.l.b16 %v6748
    %v6897 = vunpack.c.h.b16 %v6748
    %v6898 = vunpack.c.l.b16 %v6749
    %v6899 = vunpack.c.h.b16 %v6749
    %v6900 = vunpack.c.l.b16 %v6750
    %v6901 = vunpack.c.h.b16 %v6750
    %v6902 = vunpack.c.l.b16 %v6751
    %v6903 = vunpack.c.h.b16 %v6751
    %v6904 = vunpack.c.l.b16 %v6752
    %v6905 = vunpack.c.h.b16 %v6752
    %v6906 = vunpack.c.l.b16 %v6753
    %v6907 = vunpack.c.h.b16 %v6753
    %v6908 = vunpack.c.l.b16 %v6754
    %v6909 = vunpack.c.h.b16 %v6754
    %v6910 = vunpack.c.l.b16 %v6755
    %v6911 = vunpack.c.h.b16 %v6755
    %v6912 = vunpack.c.l.b16 %v6756
    %v6913 = vunpack.c.h.b16 %v6756
    %v6914 = vunpack.c.l.b16 %v6757
    %v6915 = vunpack.c.h.b16 %v6757
    %v6916 = vunpack.c.l.b16 %v6758
    %v6917 = vunpack.c.h.b16 %v6758
    %v6918 = vunpack.c.l.b16 %v6759
    %v6919 = vunpack.c.h.b16 %v6759
    %v6920 = vunpack.c.l.b16 %v6760
    %v6921 = vunpack.c.h.b16 %v6760
    %v6922 = vunpack.c.l.b16 %v6761
    %v6923 = vunpack.c.h.b16 %v6761
    %v6924 = vunpack.c.l.b16 %v6762
    %v6925 = vunpack.c.h.b16 %v6762
    %v6926 = vunpack.c.l.b16 %v6763
    %v6927 = vunpack.c.h.b16 %v6763
    %v6928 = vunpack.c.l.b16 %v6764
    %v6929 = vunpack.c.h.b16 %v6764
    %v6930 = vunpack.c.l.b16 %v6765
    %v6931 = vunpack.c.h.b16 %v6765
    %v6932 = vunpack.c.l.b16 %v6766
    %v6933 = vunpack.c.h.b16 %v6766
    %v6934 = vunpack.c.l.b16 %v6767
    %v6935 = vunpack.c.h.b16 %v6767
    %v6936 = vpack.c.b16 %v6826, %v6824
    %v6937 = vpack.c.b16 %v6827, %v6825
    %v6938 = vpack.c.b16 %v6830, %v6828
    %v6939 = vpack.c.b16 %v6831, %v6829
    %v6940 = vpack.c.b16 %v6834, %v6832
    %v6941 = vpack.c.b16 %v6835, %v6833
    %v6942 = vpack.c.b16 %v6838, %v6836
    %v6943 = vpack.c.b16 %v6839, %v6837
    %v6944 = vpack.c.b16 %v6842, %v6840
    %v6945 = vpack.c.b16 %v6843, %v6841
    %v6946 = vpack.c.b16 %v6846, %v6844
    %v6947 = vpack.c.b16 %v6847, %v6845
    %v6948 = vpack.c.b16 %v6850, %v6848
    %v6949 = vpack.c.b16 %v6851, %v6849
    %v6950 = vpack.c.b16 %v6854, %v6852
    %v6951 = vpack.c.b16 %v6855, %v6853
    %v6952 = vpack.c.b16 %v6858, %v6856
    %v6953 = vpack.c.b16 %v6859, %v6857
    %v6954 = vpack.c.b16 %v6862, %v6860
    %v6955 = vpack.c.b16 %v6863, %v6861
    %v6956 = vpack.c.b16 %v6866, %v6864
    %v6957 = vpack.c.b16 %v6867, %v6865
    %v6958 = vpack.c.b16 %v6870, %v6868
    %v6959 = vpack.c.b16 %v6871, %v6869
    %v6960 = vpack.c.b16 %v6874, %v6872
    %v6961 = vpack.c.b16 %v6875, %v6873
    %v6962 = vpack.c.b16 %v6878, %v6876
    %v6963 = vpack.c.b16 %v6879, %v6877
    %v6964 = vpack.c.b16 %v6882, %v6880
    %v6965 = vpack.c.b16 %v6883, %v6881
    %v6966 = vpack.c.b16 %v6886, %v6884
    %v6967 = vpack.c.b16 %v6887, %v6885
    %v6968 = vpack.c.b16 %v6890, %v6888
    %v6969 = vpack.c.b16 %v6891, %v6889
    %v6970 = vpack.c.b16 %v6894, %v6892
    %v6971 = vpack.c.b16 %v6895, %v6893
    %v6972 = vpack.c.b16 %v6898, %v6896
    %v6973 = vpack.c.b16 %v6899, %v6897
    %v6974 = vpack.c.b16 %v6902, %v6900
    %v6975 = vpack.c.b16 %v6903, %v6901
    %v6976 = vpack.c.b16 %v6906, %v6904
    %v6977 = vpack.c.b16 %v6907, %v6905
    %v6978 = vpack.c.b16 %v6910, %v6908
    %v6979 = vpack.c.b16 %v6911, %v6909
    %v6980 = vpack.c.b16 %v6914, %v6912
    %v6981 = vpack.c.b16 %v6915, %v6913
    %v6982 = vpack.c.b16 %v6918, %v6916
    %v6983 = vpack.c.b16 %v6919, %v6917
    %v6984 = vpack.c.b16 %v6922, %v6920
    %v6985 = vpack.c.b16 %v6923, %v6921
    %v6986 = vpack.c.b16 %v6926, %v6924
    %v6987 = vpack.c.b16 %v6927, %v6925
    %v6988 = vpack.c.b16 %v6930, %v6928
    %v6989 = vpack.c.b16 %v6931, %v6929
    %v6990 = vpack.c.b16 %v6934, %v6932
    %v6991 = vpack.c.b16 %v6935, %v6933
    %v7049 = vsel %vm3672, %v3258, 0
    %7051 = vmatprep.subr.bf16.mxu0 %v6937
    %7052 = vmatpush1.bf16.msra.mxu0 %v6936
    %7053 = vmatprep.subr.bf16.mxu0 %v6939
    %7054 = vmatpush1.bf16.msra.mxu0 %v6938
    %7055 = vmatprep.subr.bf16.mxu0 %v6941
    %7056 = vmatpush1.bf16.msra.mxu0 %v6940
    %7057 = vmatprep.subr.bf16.mxu0 %v6943
    %7058 = vmatpush1.bf16.msra.mxu0 %v6942
    %7059 = vmatprep.subr.bf16.mxu0 %v6945
    %7060 = vmatpush1.bf16.msra.mxu0 %v6944
    %7061 = vmatprep.subr.bf16.mxu0 %v6947
    %7062 = vmatpush1.bf16.msra.mxu0 %v6946
    %7063 = vmatprep.subr.bf16.mxu0 %v6949
    %7064 = vmatpush1.bf16.msra.mxu0 %v6948
    %7065 = vmatprep.subr.bf16.mxu0 %v6951
    %7066 = vmatpush1.bf16.msra.mxu0 %v6950
    %7067 = vmatprep.subr.bf16.mxu0 %v6953
    %7068 = vmatpush1.bf16.msra.mxu0 %v6952
    %7069 = vmatprep.subr.bf16.mxu0 %v6955
    %7070 = vmatpush1.bf16.msra.mxu0 %v6954
    %7071 = vmatprep.subr.bf16.mxu0 %v6957
    %7072 = vmatpush1.bf16.msra.mxu0 %v6956
    %7073 = vmatprep.subr.bf16.mxu0 %v6959
    %7074 = vmatpush1.bf16.msra.mxu0 %v6958
    %7075 = vmatprep.subr.bf16.mxu0 %v6961
    %7076 = vmatpush1.bf16.msra.mxu0 %v6960
    %7077 = vmatprep.subr.bf16.mxu0 %v6963
    %7078 = vmatpush1.bf16.msra.mxu0 %v6962
    %7079 = vmatprep.subr.bf16.mxu0 %v6965
    %7080 = vmatpush1.bf16.msra.mxu0 %v6964
    %7081 = vmatprep.subr.bf16.mxu0 %v6967
    %7082 = vmatpush1.bf16.msra.mxu0 %v6966
    %7083 = vmatprep.mubr.bf16.mxu0 %v3256
    %7084 = vmatmul.mubr.bf16.gmra.mrb[0].mxu0 %v3255
    %v7085 = vpop.f32.mrb[0].mxu0
    %v7086 = vadd.f32 0.0, %v7085
    %v7087 = vpop.f32.mrb[0].mxu0
    %v7088 = vadd.f32 0.0, %v7087
    %v7089 = vpop.f32.mrb[0].mxu0
    %v7090 = vadd.f32 0.0, %v7089
    %v7091 = vpop.f32.mrb[0].mxu0
    %v7092 = vadd.f32 0.0, %v7091
    %7093 = vdwg.mxu0
    %7094 = vmatprep.subr.bf16.mxu0 %v6969
    %7095 = vmatpush1.bf16.msra.mxu0 %v6968
    %7096 = vmatprep.subr.bf16.mxu0 %v6971
    %7097 = vmatpush1.bf16.msra.mxu0 %v6970
    %7098 = vmatprep.subr.bf16.mxu0 %v6973
    %7099 = vmatpush1.bf16.msra.mxu0 %v6972
    %7100 = vmatprep.subr.bf16.mxu0 %v6975
    %7101 = vmatpush1.bf16.msra.mxu0 %v6974
    %7102 = vmatprep.subr.bf16.mxu0 %v6977
    %7103 = vmatpush1.bf16.msra.mxu0 %v6976
    %7104 = vmatprep.subr.bf16.mxu0 %v6979
    %7105 = vmatpush1.bf16.msra.mxu0 %v6978
    %7106 = vmatprep.subr.bf16.mxu0 %v6981
    %7107 = vmatpush1.bf16.msra.mxu0 %v6980
    %7108 = vmatprep.subr.bf16.mxu0 %v6983
    %7109 = vmatpush1.bf16.msra.mxu0 %v6982
    %7110 = vmatprep.subr.bf16.mxu0 %v6985
    %7111 = vmatpush1.bf16.msra.mxu0 %v6984
    %7112 = vmatprep.subr.bf16.mxu0 %v6987
    %7113 = vmatpush1.bf16.msra.mxu0 %v6986
    %7114 = vmatprep.subr.bf16.mxu0 %v6989
    %7115 = vmatpush1.bf16.msra.mxu0 %v6988
    %7116 = vmatprep.subr.bf16.mxu0 %v6991
    %7117 = vmatpush1.bf16.msra.mxu0 %v6990
    %7118 = vmatprep.subr.bf16.mxu0 0
    %7119 = vmatpush1.bf16.msra.mxu0 0
    %7120 = vmatprep.subr.bf16.mxu0 0
    %7121 = vmatpush1.bf16.msra.mxu0 0
    %7122 = vmatprep.subr.bf16.mxu0 0
    %7123 = vmatpush1.bf16.msra.mxu0 0
    %7124 = vmatprep.subr.bf16.mxu0 0
    %7125 = vmatpush1.bf16.msra.mxu0 0
    %7126 = vmatprep.mubr.bf16.mxu0 %v7049
    %7127 = vmatmul.mubr.bf16.gmra.mrb[0].mxu0 %v3257
    %v7128 = vpop.f32.mrb[0].mxu0
    %v7129 = vadd.f32 %v7086, %v7128
    %v7130 = vpop.f32.mrb[0].mxu0
    %v7131 = vadd.f32 %v7088, %v7130
    %v7132 = vpop.f32.mrb[0].mxu0
    %v7133 = vadd.f32 %v7090, %v7132
    %v7134 = vpop.f32.mrb[0].mxu0
    %v7135 = vadd.f32 %v7092, %v7134
    %7136 = vdwg.mxu0
    %v7137 = vadd.f32 %v6707, %v7129
    %v7138 = vadd.f32 %v6708, %v7131
    %v7139 = vadd.f32 %v6709, %v7133
    %v7140 = vadd.f32 %v6710, %v7135
    %s7141 = scalar_lea.vmem [#allocation4], 4032
    %v7142 = vld [vmem:[%s7141] sm:$0xff]
    %v7143 = vld [vmem:[%s7141 + $0x8] sm:$0xff]
    %v7144 = vld [vmem:[%s7141 + $0x10] sm:$0xff]
    %v7145 = vld [vmem:[%s7141 + $0x18] sm:$0xff]
    %v7146 = vld [vmem:[%s7141 + $0x20] sm:$0xff]
    %v7147 = vld [vmem:[%s7141 + $0x28] sm:$0xff]
    %v7148 = vld [vmem:[%s7141 + $0x30] sm:$0xff]
    %v7149 = vld [vmem:[%s7141 + $0x38] sm:$0xff]
    %v7150 = vld [vmem:[%s7141 + $0x40] sm:$0xff]
    %v7151 = vld [vmem:[%s7141 + $0x48] sm:$0xff]
    %v7152 = vld [vmem:[%s7141 + $0x50] sm:$0xff]
    %v7153 = vld [vmem:[%s7141 + $0x58] sm:$0xff]
    %v7154 = vld [vmem:[%s7141 + $0x60] sm:$0xff]
    %v7155 = vld [vmem:[%s7141 + $0x68] sm:$0xff]
    %v7156 = vld [vmem:[%s7141 + $0x70] sm:$0xff]
    %v7157 = vld [vmem:[%s7141 + $0x78] sm:$0xff]
    %v7158 = vld [vmem:[%s7141 + $0x80] sm:$0xff]
    %v7159 = vld [vmem:[%s7141 + $0x88] sm:$0xff]
    %v7160 = vld [vmem:[%s7141 + $0x90] sm:$0xff]
    %v7161 = vld [vmem:[%s7141 + $0x98] sm:$0xff]
    %v7162 = vld [vmem:[%s7141 + $0xa0] sm:$0xff]
    %v7163 = vld [vmem:[%s7141 + $0xa8] sm:$0xff]
    %v7164 = vld [vmem:[%s7141 + $0xb0] sm:$0xff]
    %v7165 = vld [vmem:[%s7141 + $0xb8] sm:$0xff]
    %v7166 = vld [vmem:[%s7141 + $0xc0] sm:$0xff]
    %v7167 = vld [vmem:[%s7141 + $0xc8] sm:$0xff]
    %v7168 = vld [vmem:[%s7141 + $0xd0] sm:$0xff]
    %v7169 = vld [vmem:[%s7141 + $0xd8] sm:$0xff]
    %v7170 = vld [vmem:[%s7141 + $0xe0] sm:$0xff]
    %v7171 = vld [vmem:[%s7141 + $0xe8] sm:$0xff]
    %v7172 = vld [vmem:[%s7141 + $0xf0] sm:$0xff]
    %v7173 = vld [vmem:[%s7141 + $0xf8] sm:$0xff]
    %v7174 = vld [vmem:[%s7141 + $0x100] sm:$0xff]
    %v7175 = vld [vmem:[%s7141 + $0x108] sm:$0xff]
    %v7176 = vld [vmem:[%s7141 + $0x110] sm:$0xff]
    %v7177 = vld [vmem:[%s7141 + $0x118] sm:$0xff]
    %v7178 = vld [vmem:[%s7141 + $0x120] sm:$0xff]
    %v7179 = vld [vmem:[%s7141 + $0x128] sm:$0xff]
    %v7180 = vld [vmem:[%s7141 + $0x130] sm:$0xff]
    %v7181 = vld [vmem:[%s7141 + $0x138] sm:$0xff]
    %v7182 = vld [vmem:[%s7141 + $0x140] sm:$0xff]
    %v7183 = vld [vmem:[%s7141 + $0x148] sm:$0xff]
    %v7184 = vld [vmem:[%s7141 + $0x150] sm:$0xff]
    %v7185 = vld [vmem:[%s7141 + $0x158] sm:$0xff]
    %v7186 = vld [vmem:[%s7141 + $0x160] sm:$0xff]
    %v7187 = vld [vmem:[%s7141 + $0x168] sm:$0xff]
    %v7188 = vld [vmem:[%s7141 + $0x170] sm:$0xff]
    %v7189 = vld [vmem:[%s7141 + $0x178] sm:$0xff]
    %v7190 = vld [vmem:[%s7141 + $0x180] sm:$0xff]
    %v7191 = vld [vmem:[%s7141 + $0x188] sm:$0xff]
    %v7192 = vld [vmem:[%s7141 + $0x190] sm:$0xff]
    %v7193 = vld [vmem:[%s7141 + $0x198] sm:$0xff]
    %v7194 = vld [vmem:[%s7141 + $0x1a0] sm:$0xff]
    %v7195 = vld [vmem:[%s7141 + $0x1a8] sm:$0xff]
    %v7196 = vld [vmem:[%s7141 + $0x1b0] sm:$0xff]
    %v7197 = vld [vmem:[%s7141 + $0x1b8] sm:$0xff]
    %v7254 = vunpack.c.l.b16 %v7142
    %v7255 = vunpack.c.h.b16 %v7142
    %v7256 = vunpack.c.l.b16 %v7143
    %v7257 = vunpack.c.h.b16 %v7143
    %v7258 = vunpack.c.l.b16 %v7144
    %v7259 = vunpack.c.h.b16 %v7144
    %v7260 = vunpack.c.l.b16 %v7145
    %v7261 = vunpack.c.h.b16 %v7145
    %v7262 = vunpack.c.l.b16 %v7146
    %v7263 = vunpack.c.h.b16 %v7146
    %v7264 = vunpack.c.l.b16 %v7147
    %v7265 = vunpack.c.h.b16 %v7147
    %v7266 = vunpack.c.l.b16 %v7148
    %v7267 = vunpack.c.h.b16 %v7148
    %v7268 = vunpack.c.l.b16 %v7149
    %v7269 = vunpack.c.h.b16 %v7149
    %v7270 = vunpack.c.l.b16 %v7150
    %v7271 = vunpack.c.h.b16 %v7150
    %v7272 = vunpack.c.l.b16 %v7151
    %v7273 = vunpack.c.h.b16 %v7151
    %v7274 = vunpack.c.l.b16 %v7152
    %v7275 = vunpack.c.h.b16 %v7152
    %v7276 = vunpack.c.l.b16 %v7153
    %v7277 = vunpack.c.h.b16 %v7153
    %v7278 = vunpack.c.l.b16 %v7154
    %v7279 = vunpack.c.h.b16 %v7154
    %v7280 = vunpack.c.l.b16 %v7155
    %v7281 = vunpack.c.h.b16 %v7155
    %v7282 = vunpack.c.l.b16 %v7156
    %v7283 = vunpack.c.h.b16 %v7156
    %v7284 = vunpack.c.l.b16 %v7157
    %v7285 = vunpack.c.h.b16 %v7157
    %v7286 = vunpack.c.l.b16 %v7158
    %v7287 = vunpack.c.h.b16 %v7158
    %v7288 = vunpack.c.l.b16 %v7159
    %v7289 = vunpack.c.h.b16 %v7159
    %v7290 = vunpack.c.l.b16 %v7160
    %v7291 = vunpack.c.h.b16 %v7160
    %v7292 = vunpack.c.l.b16 %v7161
    %v7293 = vunpack.c.h.b16 %v7161
    %v7294 = vunpack.c.l.b16 %v7162
    %v7295 = vunpack.c.h.b16 %v7162
    %v7296 = vunpack.c.l.b16 %v7163
    %v7297 = vunpack.c.h.b16 %v7163
    %v7298 = vunpack.c.l.b16 %v7164
    %v7299 = vunpack.c.h.b16 %v7164
    %v7300 = vunpack.c.l.b16 %v7165
    %v7301 = vunpack.c.h.b16 %v7165
    %v7302 = vunpack.c.l.b16 %v7166
    %v7303 = vunpack.c.h.b16 %v7166
    %v7304 = vunpack.c.l.b16 %v7167
    %v7305 = vunpack.c.h.b16 %v7167
    %v7306 = vunpack.c.l.b16 %v7168
    %v7307 = vunpack.c.h.b16 %v7168
    %v7308 = vunpack.c.l.b16 %v7169
    %v7309 = vunpack.c.h.b16 %v7169
    %v7310 = vunpack.c.l.b16 %v7170
    %v7311 = vunpack.c.h.b16 %v7170
    %v7312 = vunpack.c.l.b16 %v7171
    %v7313 = vunpack.c.h.b16 %v7171
    %v7314 = vunpack.c.l.b16 %v7172
    %v7315 = vunpack.c.h.b16 %v7172
    %v7316 = vunpack.c.l.b16 %v7173
    %v7317 = vunpack.c.h.b16 %v7173
    %v7318 = vunpack.c.l.b16 %v7174
    %v7319 = vunpack.c.h.b16 %v7174
    %v7320 = vunpack.c.l.b16 %v7175
    %v7321 = vunpack.c.h.b16 %v7175
    %v7322 = vunpack.c.l.b16 %v7176
    %v7323 = vunpack.c.h.b16 %v7176
    %v7324 = vunpack.c.l.b16 %v7177
    %v7325 = vunpack.c.h.b16 %v7177
    %v7326 = vunpack.c.l.b16 %v7178
    %v7327 = vunpack.c.h.b16 %v7178
    %v7328 = vunpack.c.l.b16 %v7179
    %v7329 = vunpack.c.h.b16 %v7179
    %v7330 = vunpack.c.l.b16 %v7180
    %v7331 = vunpack.c.h.b16 %v7180
    %v7332 = vunpack.c.l.b16 %v7181
    %v7333 = vunpack.c.h.b16 %v7181
    %v7334 = vunpack.c.l.b16 %v7182
    %v7335 = vunpack.c.h.b16 %v7182
    %v7336 = vunpack.c.l.b16 %v7183
    %v7337 = vunpack.c.h.b16 %v7183
    %v7338 = vunpack.c.l.b16 %v7184
    %v7339 = vunpack.c.h.b16 %v7184
    %v7340 = vunpack.c.l.b16 %v7185
    %v7341 = vunpack.c.h.b16 %v7185
    %v7342 = vunpack.c.l.b16 %v7186
    %v7343 = vunpack.c.h.b16 %v7186
    %v7344 = vunpack.c.l.b16 %v7187
    %v7345 = vunpack.c.h.b16 %v7187
    %v7346 = vunpack.c.l.b16 %v7188
    %v7347 = vunpack.c.h.b16 %v7188
    %v7348 = vunpack.c.l.b16 %v7189
    %v7349 = vunpack.c.h.b16 %v7189
    %v7350 = vunpack.c.l.b16 %v7190
    %v7351 = vunpack.c.h.b16 %v7190
    %v7352 = vunpack.c.l.b16 %v7191
    %v7353 = vunpack.c.h.b16 %v7191
    %v7354 = vunpack.c.l.b16 %v7192
    %v7355 = vunpack.c.h.b16 %v7192
    %v7356 = vunpack.c.l.b16 %v7193
    %v7357 = vunpack.c.h.b16 %v7193
    %v7358 = vunpack.c.l.b16 %v7194
    %v7359 = vunpack.c.h.b16 %v7194
    %v7360 = vunpack.c.l.b16 %v7195
    %v7361 = vunpack.c.h.b16 %v7195
    %v7362 = vunpack.c.l.b16 %v7196
    %v7363 = vunpack.c.h.b16 %v7196
    %v7364 = vunpack.c.l.b16 %v7197
    %v7365 = vunpack.c.h.b16 %v7197
    %v7366 = vpack.c.b16 %v7256, %v7254
    %v7367 = vpack.c.b16 %v7257, %v7255
    %v7368 = vpack.c.b16 %v7260, %v7258
    %v7369 = vpack.c.b16 %v7261, %v7259
    %v7370 = vpack.c.b16 %v7264, %v7262
    %v7371 = vpack.c.b16 %v7265, %v7263
    %v7372 = vpack.c.b16 %v7268, %v7266
    %v7373 = vpack.c.b16 %v7269, %v7267
    %v7374 = vpack.c.b16 %v7272, %v7270
    %v7375 = vpack.c.b16 %v7273, %v7271
    %v7376 = vpack.c.b16 %v7276, %v7274
    %v7377 = vpack.c.b16 %v7277, %v7275
    %v7378 = vpack.c.b16 %v7280, %v7278
    %v7379 = vpack.c.b16 %v7281, %v7279
    %v7380 = vpack.c.b16 %v7284, %v7282
    %v7381 = vpack.c.b16 %v7285, %v7283
    %v7382 = vpack.c.b16 %v7288, %v7286
    %v7383 = vpack.c.b16 %v7289, %v7287
    %v7384 = vpack.c.b16 %v7292, %v7290
    %v7385 = vpack.c.b16 %v7293, %v7291
    %v7386 = vpack.c.b16 %v7296, %v7294
    %v7387 = vpack.c.b16 %v7297, %v7295
    %v7388 = vpack.c.b16 %v7300, %v7298
    %v7389 = vpack.c.b16 %v7301, %v7299
    %v7390 = vpack.c.b16 %v7304, %v7302
    %v7391 = vpack.c.b16 %v7305, %v7303
    %v7392 = vpack.c.b16 %v7308, %v7306
    %v7393 = vpack.c.b16 %v7309, %v7307
    %v7394 = vpack.c.b16 %v7312, %v7310
    %v7395 = vpack.c.b16 %v7313, %v7311
    %v7396 = vpack.c.b16 %v7316, %v7314
    %v7397 = vpack.c.b16 %v7317, %v7315
    %v7398 = vpack.c.b16 %v7320, %v7318
    %v7399 = vpack.c.b16 %v7321, %v7319
    %v7400 = vpack.c.b16 %v7324, %v7322
    %v7401 = vpack.c.b16 %v7325, %v7323
    %v7402 = vpack.c.b16 %v7328, %v7326
    %v7403 = vpack.c.b16 %v7329, %v7327
    %v7404 = vpack.c.b16 %v7332, %v7330
    %v7405 = vpack.c.b16 %v7333, %v7331
    %v7406 = vpack.c.b16 %v7336, %v7334
    %v7407 = vpack.c.b16 %v7337, %v7335
    %v7408 = vpack.c.b16 %v7340, %v7338
    %v7409 = vpack.c.b16 %v7341, %v7339
    %v7410 = vpack.c.b16 %v7344, %v7342
    %v7411 = vpack.c.b16 %v7345, %v7343
    %v7412 = vpack.c.b16 %v7348, %v7346
    %v7413 = vpack.c.b16 %v7349, %v7347
    %v7414 = vpack.c.b16 %v7352, %v7350
    %v7415 = vpack.c.b16 %v7353, %v7351
    %v7416 = vpack.c.b16 %v7356, %v7354
    %v7417 = vpack.c.b16 %v7357, %v7355
    %v7418 = vpack.c.b16 %v7360, %v7358
    %v7419 = vpack.c.b16 %v7361, %v7359
    %v7420 = vpack.c.b16 %v7364, %v7362
    %v7421 = vpack.c.b16 %v7365, %v7363
    %v7479 = vsel %vm3672, %v3262, 0
    %7481 = vmatprep.subr.bf16.mxu0 %v7367
    %7482 = vmatpush1.bf16.msra.mxu0 %v7366
    %7483 = vmatprep.subr.bf16.mxu0 %v7369
    %7484 = vmatpush1.bf16.msra.mxu0 %v7368
    %7485 = vmatprep.subr.bf16.mxu0 %v7371
    %7486 = vmatpush1.bf16.msra.mxu0 %v7370
    %7487 = vmatprep.subr.bf16.mxu0 %v7373
    %7488 = vmatpush1.bf16.msra.mxu0 %v7372
    %7489 = vmatprep.subr.bf16.mxu0 %v7375
    %7490 = vmatpush1.bf16.msra.mxu0 %v7374
    %7491 = vmatprep.subr.bf16.mxu0 %v7377
    %7492 = vmatpush1.bf16.msra.mxu0 %v7376
    %7493 = vmatprep.subr.bf16.mxu0 %v7379
    %7494 = vmatpush1.bf16.msra.mxu0 %v7378
    %7495 = vmatprep.subr.bf16.mxu0 %v7381
    %7496 = vmatpush1.bf16.msra.mxu0 %v7380
    %7497 = vmatprep.subr.bf16.mxu0 %v7383
    %7498 = vmatpush1.bf16.msra.mxu0 %v7382
    %7499 = vmatprep.subr.bf16.mxu0 %v7385
    %7500 = vmatpush1.bf16.msra.mxu0 %v7384
    %7501 = vmatprep.subr.bf16.mxu0 %v7387
    %7502 = vmatpush1.bf16.msra.mxu0 %v7386
    %7503 = vmatprep.subr.bf16.mxu0 %v7389
    %7504 = vmatpush1.bf16.msra.mxu0 %v7388
    %7505 = vmatprep.subr.bf16.mxu0 %v7391
    %7506 = vmatpush1.bf16.msra.mxu0 %v7390
    %7507 = vmatprep.subr.bf16.mxu0 %v7393
    %7508 = vmatpush1.bf16.msra.mxu0 %v7392
    %7509 = vmatprep.subr.bf16.mxu0 %v7395
    %7510 = vmatpush1.bf16.msra.mxu0 %v7394
    %7511 = vmatprep.subr.bf16.mxu0 %v7397
    %7512 = vmatpush1.bf16.msra.mxu0 %v7396
    %7513 = vmatprep.mubr.bf16.mxu0 %v3260
    %7514 = vmatmul.mubr.bf16.gmra.mrb[0].mxu0 %v3259
    %v7515 = vpop.f32.mrb[0].mxu0
    %v7516 = vadd.f32 0.0, %v7515
    %v7517 = vpop.f32.mrb[0].mxu0
    %v7518 = vadd.f32 0.0, %v7517
    %v7519 = vpop.f32.mrb[0].mxu0
    %v7520 = vadd.f32 0.0, %v7519
    %v7521 = vpop.f32.mrb[0].mxu0
    %v7522 = vadd.f32 0.0, %v7521
    %7523 = vdwg.mxu0
    %7524 = vmatprep.subr.bf16.mxu0 %v7399
    %7525 = vmatpush1.bf16.msra.mxu0 %v7398
    %7526 = vmatprep.subr.bf16.mxu0 %v7401
    %7527 = vmatpush1.bf16.msra.mxu0 %v7400
    %7528 = vmatprep.subr.bf16.mxu0 %v7403
    %7529 = vmatpush1.bf16.msra.mxu0 %v7402
    %7530 = vmatprep.subr.bf16.mxu0 %v7405
    %7531 = vmatpush1.bf16.msra.mxu0 %v7404
    %7532 = vmatprep.subr.bf16.mxu0 %v7407
    %7533 = vmatpush1.bf16.msra.mxu0 %v7406
    %7534 = vmatprep.subr.bf16.mxu0 %v7409
    %7535 = vmatpush1.bf16.msra.mxu0 %v7408
    %7536 = vmatprep.subr.bf16.mxu0 %v7411
    %7537 = vmatpush1.bf16.msra.mxu0 %v7410
    %7538 = vmatprep.subr.bf16.mxu0 %v7413
    %7539 = vmatpush1.bf16.msra.mxu0 %v7412
    %7540 = vmatprep.subr.bf16.mxu0 %v7415
    %7541 = vmatpush1.bf16.msra.mxu0 %v7414
    %7542 = vmatprep.subr.bf16.mxu0 %v7417
    %7543 = vmatpush1.bf16.msra.mxu0 %v7416
    %7544 = vmatprep.subr.bf16.mxu0 %v7419
    %7545 = vmatpush1.bf16.msra.mxu0 %v7418
    %7546 = vmatprep.subr.bf16.mxu0 %v7421
    %7547 = vmatpush1.bf16.msra.mxu0 %v7420
    %7548 = vmatprep.subr.bf16.mxu0 0
    %7549 = vmatpush1.bf16.msra.mxu0 0
    %7550 = vmatprep.subr.bf16.mxu0 0
    %7551 = vmatpush1.bf16.msra.mxu0 0
    %7552 = vmatprep.subr.bf16.mxu0 0
    %7553 = vmatpush1.bf16.msra.mxu0 0
    %7554 = vmatprep.subr.bf16.mxu0 0
    %7555 = vmatpush1.bf16.msra.mxu0 0
    %7556 = vmatprep.mubr.bf16.mxu0 %v7479
    %7557 = vmatmul.mubr.bf16.gmra.mrb[0].mxu0 %v3261
    %v7558 = vpop.f32.mrb[0].mxu0
    %v7559 = vadd.f32 %v7516, %v7558
    %v7560 = vpop.f32.mrb[0].mxu0
    %v7561 = vadd.f32 %v7518, %v7560
    %v7562 = vpop.f32.mrb[0].mxu0
    %v7563 = vadd.f32 %v7520, %v7562
    %v7564 = vpop.f32.mrb[0].mxu0
    %v7565 = vadd.f32 %v7522, %v7564
    %7566 = vdwg.mxu0
    %v7567 = vadd.f32 %v7137, %v7559
    %v7568 = vadd.f32 %v7138, %v7561
    %v7569 = vadd.f32 %v7139, %v7563
    %v7570 = vadd.f32 %v7140, %v7565
    %s7571 = scalar_lea.vmem [#allocation4], 4480
    %v7572 = vld [vmem:[%s7571] sm:$0xff]
    %v7573 = vld [vmem:[%s7571 + $0x8] sm:$0xff]
    %v7574 = vld [vmem:[%s7571 + $0x10] sm:$0xff]
    %v7575 = vld [vmem:[%s7571 + $0x18] sm:$0xff]
    %v7576 = vld [vmem:[%s7571 + $0x20] sm:$0xff]
    %v7577 = vld [vmem:[%s7571 + $0x28] sm:$0xff]
    %v7578 = vld [vmem:[%s7571 + $0x30] sm:$0xff]
    %v7579 = vld [vmem:[%s7571 + $0x38] sm:$0xff]
    %v7580 = vld [vmem:[%s7571 + $0x40] sm:$0xff]
    %v7581 = vld [vmem:[%s7571 + $0x48] sm:$0xff]
    %v7582 = vld [vmem:[%s7571 + $0x50] sm:$0xff]
    %v7583 = vld [vmem:[%s7571 + $0x58] sm:$0xff]
    %v7584 = vld [vmem:[%s7571 + $0x60] sm:$0xff]
    %v7585 = vld [vmem:[%s7571 + $0x68] sm:$0xff]
    %v7586 = vld [vmem:[%s7571 + $0x70] sm:$0xff]
    %v7587 = vld [vmem:[%s7571 + $0x78] sm:$0xff]
    %v7588 = vld [vmem:[%s7571 + $0x80] sm:$0xff]
    %v7589 = vld [vmem:[%s7571 + $0x88] sm:$0xff]
    %v7590 = vld [vmem:[%s7571 + $0x90] sm:$0xff]
    %v7591 = vld [vmem:[%s7571 + $0x98] sm:$0xff]
    %v7592 = vld [vmem:[%s7571 + $0xa0] sm:$0xff]
    %v7593 = vld [vmem:[%s7571 + $0xa8] sm:$0xff]
    %v7594 = vld [vmem:[%s7571 + $0xb0] sm:$0xff]
    %v7595 = vld [vmem:[%s7571 + $0xb8] sm:$0xff]
    %v7596 = vld [vmem:[%s7571 + $0xc0] sm:$0xff]
    %v7597 = vld [vmem:[%s7571 + $0xc8] sm:$0xff]
    %v7598 = vld [vmem:[%s7571 + $0xd0] sm:$0xff]
    %v7599 = vld [vmem:[%s7571 + $0xd8] sm:$0xff]
    %v7600 = vld [vmem:[%s7571 + $0xe0] sm:$0xff]
    %v7601 = vld [vmem:[%s7571 + $0xe8] sm:$0xff]
    %v7602 = vld [vmem:[%s7571 + $0xf0] sm:$0xff]
    %v7603 = vld [vmem:[%s7571 + $0xf8] sm:$0xff]
    %v7604 = vld [vmem:[%s7571 + $0x100] sm:$0xff]
    %v7605 = vld [vmem:[%s7571 + $0x108] sm:$0xff]
    %v7606 = vld [vmem:[%s7571 + $0x110] sm:$0xff]
    %v7607 = vld [vmem:[%s7571 + $0x118] sm:$0xff]
    %v7608 = vld [vmem:[%s7571 + $0x120] sm:$0xff]
    %v7609 = vld [vmem:[%s7571 + $0x128] sm:$0xff]
    %v7610 = vld [vmem:[%s7571 + $0x130] sm:$0xff]
    %v7611 = vld [vmem:[%s7571 + $0x138] sm:$0xff]
    %v7612 = vld [vmem:[%s7571 + $0x140] sm:$0xff]
    %v7613 = vld [vmem:[%s7571 + $0x148] sm:$0xff]
    %v7614 = vld [vmem:[%s7571 + $0x150] sm:$0xff]
    %v7615 = vld [vmem:[%s7571 + $0x158] sm:$0xff]
    %v7616 = vld [vmem:[%s7571 + $0x160] sm:$0xff]
    %v7617 = vld [vmem:[%s7571 + $0x168] sm:$0xff]
    %v7618 = vld [vmem:[%s7571 + $0x170] sm:$0xff]
    %v7619 = vld [vmem:[%s7571 + $0x178] sm:$0xff]
    %v7620 = vld [vmem:[%s7571 + $0x180] sm:$0xff]
    %v7621 = vld [vmem:[%s7571 + $0x188] sm:$0xff]
    %v7622 = vld [vmem:[%s7571 + $0x190] sm:$0xff]
    %v7623 = vld [vmem:[%s7571 + $0x198] sm:$0xff]
    %v7624 = vld [vmem:[%s7571 + $0x1a0] sm:$0xff]
    %v7625 = vld [vmem:[%s7571 + $0x1a8] sm:$0xff]
    %v7626 = vld [vmem:[%s7571 + $0x1b0] sm:$0xff]
    %v7627 = vld [vmem:[%s7571 + $0x1b8] sm:$0xff]
    %v7684 = vunpack.c.l.b16 %v7572
    %v7685 = vunpack.c.h.b16 %v7572
    %v7686 = vunpack.c.l.b16 %v7573
    %v7687 = vunpack.c.h.b16 %v7573
    %v7688 = vunpack.c.l.b16 %v7574
    %v7689 = vunpack.c.h.b16 %v7574
    %v7690 = vunpack.c.l.b16 %v7575
    %v7691 = vunpack.c.h.b16 %v7575
    %v7692 = vunpack.c.l.b16 %v7576
    %v7693 = vunpack.c.h.b16 %v7576
    %v7694 = vunpack.c.l.b16 %v7577
    %v7695 = vunpack.c.h.b16 %v7577
    %v7696 = vunpack.c.l.b16 %v7578
    %v7697 = vunpack.c.h.b16 %v7578
    %v7698 = vunpack.c.l.b16 %v7579
    %v7699 = vunpack.c.h.b16 %v7579
    %v7700 = vunpack.c.l.b16 %v7580
    %v7701 = vunpack.c.h.b16 %v7580
    %v7702 = vunpack.c.l.b16 %v7581
    %v7703 = vunpack.c.h.b16 %v7581
    %v7704 = vunpack.c.l.b16 %v7582
    %v7705 = vunpack.c.h.b16 %v7582
    %v7706 = vunpack.c.l.b16 %v7583
    %v7707 = vunpack.c.h.b16 %v7583
    %v7708 = vunpack.c.l.b16 %v7584
    %v7709 = vunpack.c.h.b16 %v7584
    %v7710 = vunpack.c.l.b16 %v7585
    %v7711 = vunpack.c.h.b16 %v7585
    %v7712 = vunpack.c.l.b16 %v7586
    %v7713 = vunpack.c.h.b16 %v7586
    %v7714 = vunpack.c.l.b16 %v7587
    %v7715 = vunpack.c.h.b16 %v7587
    %v7716 = vunpack.c.l.b16 %v7588
    %v7717 = vunpack.c.h.b16 %v7588
    %v7718 = vunpack.c.l.b16 %v7589
    %v7719 = vunpack.c.h.b16 %v7589
    %v7720 = vunpack.c.l.b16 %v7590
    %v7721 = vunpack.c.h.b16 %v7590
    %v7722 = vunpack.c.l.b16 %v7591
    %v7723 = vunpack.c.h.b16 %v7591
    %v7724 = vunpack.c.l.b16 %v7592
    %v7725 = vunpack.c.h.b16 %v7592
    %v7726 = vunpack.c.l.b16 %v7593
    %v7727 = vunpack.c.h.b16 %v7593
    %v7728 = vunpack.c.l.b16 %v7594
    %v7729 = vunpack.c.h.b16 %v7594
    %v7730 = vunpack.c.l.b16 %v7595
    %v7731 = vunpack.c.h.b16 %v7595
    %v7732 = vunpack.c.l.b16 %v7596
    %v7733 = vunpack.c.h.b16 %v7596
    %v7734 = vunpack.c.l.b16 %v7597
    %v7735 = vunpack.c.h.b16 %v7597
    %v7736 = vunpack.c.l.b16 %v7598
    %v7737 = vunpack.c.h.b16 %v7598
    %v7738 = vunpack.c.l.b16 %v7599
    %v7739 = vunpack.c.h.b16 %v7599
    %v7740 = vunpack.c.l.b16 %v7600
    %v7741 = vunpack.c.h.b16 %v7600
    %v7742 = vunpack.c.l.b16 %v7601
    %v7743 = vunpack.c.h.b16 %v7601
    %v7744 = vunpack.c.l.b16 %v7602
    %v7745 = vunpack.c.h.b16 %v7602
    %v7746 = vunpack.c.l.b16 %v7603
    %v7747 = vunpack.c.h.b16 %v7603
    %v7748 = vunpack.c.l.b16 %v7604
    %v7749 = vunpack.c.h.b16 %v7604
    %v7750 = vunpack.c.l.b16 %v7605
    %v7751 = vunpack.c.h.b16 %v7605
    %v7752 = vunpack.c.l.b16 %v7606
    %v7753 = vunpack.c.h.b16 %v7606
    %v7754 = vunpack.c.l.b16 %v7607
    %v7755 = vunpack.c.h.b16 %v7607
    %v7756 = vunpack.c.l.b16 %v7608
    %v7757 = vunpack.c.h.b16 %v7608
    %v7758 = vunpack.c.l.b16 %v7609
    %v7759 = vunpack.c.h.b16 %v7609
    %v7760 = vunpack.c.l.b16 %v7610
    %v7761 = vunpack.c.h.b16 %v7610
    %v7762 = vunpack.c.l.b16 %v7611
    %v7763 = vunpack.c.h.b16 %v7611
    %v7764 = vunpack.c.l.b16 %v7612
    %v7765 = vunpack.c.h.b16 %v7612
    %v7766 = vunpack.c.l.b16 %v7613
    %v7767 = vunpack.c.h.b16 %v7613
    %v7768 = vunpack.c.l.b16 %v7614
    %v7769 = vunpack.c.h.b16 %v7614
    %v7770 = vunpack.c.l.b16 %v7615
    %v7771 = vunpack.c.h.b16 %v7615
    %v7772 = vunpack.c.l.b16 %v7616
    %v7773 = vunpack.c.h.b16 %v7616
    %v7774 = vunpack.c.l.b16 %v7617
    %v7775 = vunpack.c.h.b16 %v7617
    %v7776 = vunpack.c.l.b16 %v7618
    %v7777 = vunpack.c.h.b16 %v7618
    %v7778 = vunpack.c.l.b16 %v7619
    %v7779 = vunpack.c.h.b16 %v7619
    %v7780 = vunpack.c.l.b16 %v7620
    %v7781 = vunpack.c.h.b16 %v7620
    %v7782 = vunpack.c.l.b16 %v7621
    %v7783 = vunpack.c.h.b16 %v7621
    %v7784 = vunpack.c.l.b16 %v7622
    %v7785 = vunpack.c.h.b16 %v7622
    %v7786 = vunpack.c.l.b16 %v7623
    %v7787 = vunpack.c.h.b16 %v7623
    %v7788 = vunpack.c.l.b16 %v7624
    %v7789 = vunpack.c.h.b16 %v7624
    %v7790 = vunpack.c.l.b16 %v7625
    %v7791 = vunpack.c.h.b16 %v7625
    %v7792 = vunpack.c.l.b16 %v7626
    %v7793 = vunpack.c.h.b16 %v7626
    %v7794 = vunpack.c.l.b16 %v7627
    %v7795 = vunpack.c.h.b16 %v7627
    %v7796 = vpack.c.b16 %v7686, %v7684
    %v7797 = vpack.c.b16 %v7687, %v7685
    %v7798 = vpack.c.b16 %v7690, %v7688
    %v7799 = vpack.c.b16 %v7691, %v7689
    %v7800 = vpack.c.b16 %v7694, %v7692
    %v7801 = vpack.c.b16 %v7695, %v7693
    %v7802 = vpack.c.b16 %v7698, %v7696
    %v7803 = vpack.c.b16 %v7699, %v7697
    %v7804 = vpack.c.b16 %v7702, %v7700
    %v7805 = vpack.c.b16 %v7703, %v7701
    %v7806 = vpack.c.b16 %v7706, %v7704
    %v7807 = vpack.c.b16 %v7707, %v7705
    %v7808 = vpack.c.b16 %v7710, %v7708
    %v7809 = vpack.c.b16 %v7711, %v7709
    %v7810 = vpack.c.b16 %v7714, %v7712
    %v7811 = vpack.c.b16 %v7715, %v7713
    %v7812 = vpack.c.b16 %v7718, %v7716
    %v7813 = vpack.c.b16 %v7719, %v7717
    %v7814 = vpack.c.b16 %v7722, %v7720
    %v7815 = vpack.c.b16 %v7723, %v7721
    %v7816 = vpack.c.b16 %v7726, %v7724
    %v7817 = vpack.c.b16 %v7727, %v7725
    %v7818 = vpack.c.b16 %v7730, %v7728
    %v7819 = vpack.c.b16 %v7731, %v7729
    %v7820 = vpack.c.b16 %v7734, %v7732
    %v7821 = vpack.c.b16 %v7735, %v7733
    %v7822 = vpack.c.b16 %v7738, %v7736
    %v7823 = vpack.c.b16 %v7739, %v7737
    %v7824 = vpack.c.b16 %v7742, %v7740
    %v7825 = vpack.c.b16 %v7743, %v7741
    %v7826 = vpack.c.b16 %v7746, %v7744
    %v7827 = vpack.c.b16 %v7747, %v7745
    %v7828 = vpack.c.b16 %v7750, %v7748
    %v7829 = vpack.c.b16 %v7751, %v7749
    %v7830 = vpack.c.b16 %v7754, %v7752
    %v7831 = vpack.c.b16 %v7755, %v7753
    %v7832 = vpack.c.b16 %v7758, %v7756
    %v7833 = vpack.c.b16 %v7759, %v7757
    %v7834 = vpack.c.b16 %v7762, %v7760
    %v7835 = vpack.c.b16 %v7763, %v7761
    %v7836 = vpack.c.b16 %v7766, %v7764
    %v7837 = vpack.c.b16 %v7767, %v7765
    %v7838 = vpack.c.b16 %v7770, %v7768
    %v7839 = vpack.c.b16 %v7771, %v7769
    %v7840 = vpack.c.b16 %v7774, %v7772
    %v7841 = vpack.c.b16 %v7775, %v7773
    %v7842 = vpack.c.b16 %v7778, %v7776
    %v7843 = vpack.c.b16 %v7779, %v7777
    %v7844 = vpack.c.b16 %v7782, %v7780
    %v7845 = vpack.c.b16 %v7783, %v7781
    %v7846 = vpack.c.b16 %v7786, %v7784
    %v7847 = vpack.c.b16 %v7787, %v7785
    %v7848 = vpack.c.b16 %v7790, %v7788
    %v7849 = vpack.c.b16 %v7791, %v7789
    %v7850 = vpack.c.b16 %v7794, %v7792
    %v7851 = vpack.c.b16 %v7795, %v7793
    %v7909 = vsel %vm3672, %v3266, 0
    %7911 = vmatprep.subr.bf16.mxu0 %v7797
    %7912 = vmatpush1.bf16.msra.mxu0 %v7796
    %7913 = vmatprep.subr.bf16.mxu0 %v7799
    %7914 = vmatpush1.bf16.msra.mxu0 %v7798
    %7915 = vmatprep.subr.bf16.mxu0 %v7801
    %7916 = vmatpush1.bf16.msra.mxu0 %v7800
    %7917 = vmatprep.subr.bf16.mxu0 %v7803
    %7918 = vmatpush1.bf16.msra.mxu0 %v7802
    %7919 = vmatprep.subr.bf16.mxu0 %v7805
    %7920 = vmatpush1.bf16.msra.mxu0 %v7804
    %7921 = vmatprep.subr.bf16.mxu0 %v7807
    %7922 = vmatpush1.bf16.msra.mxu0 %v7806
    %7923 = vmatprep.subr.bf16.mxu0 %v7809
    %7924 = vmatpush1.bf16.msra.mxu0 %v7808
    %7925 = vmatprep.subr.bf16.mxu0 %v7811
    %7926 = vmatpush1.bf16.msra.mxu0 %v7810
    %7927 = vmatprep.subr.bf16.mxu0 %v7813
    %7928 = vmatpush1.bf16.msra.mxu0 %v7812
    %7929 = vmatprep.subr.bf16.mxu0 %v7815
    %7930 = vmatpush1.bf16.msra.mxu0 %v7814
    %7931 = vmatprep.subr.bf16.mxu0 %v7817
    %7932 = vmatpush1.bf16.msra.mxu0 %v7816
    %7933 = vmatprep.subr.bf16.mxu0 %v7819
    %7934 = vmatpush1.bf16.msra.mxu0 %v7818
    %7935 = vmatprep.subr.bf16.mxu0 %v7821
    %7936 = vmatpush1.bf16.msra.mxu0 %v7820
    %7937 = vmatprep.subr.bf16.mxu0 %v7823
    %7938 = vmatpush1.bf16.msra.mxu0 %v7822
    %7939 = vmatprep.subr.bf16.mxu0 %v7825
    %7940 = vmatpush1.bf16.msra.mxu0 %v7824
    %7941 = vmatprep.subr.bf16.mxu0 %v7827
    %7942 = vmatpush1.bf16.msra.mxu0 %v7826
    %7943 = vmatprep.mubr.bf16.mxu0 %v3264
    %7944 = vmatmul.mubr.bf16.gmra.mrb[0].mxu0 %v3263
    %v7945 = vpop.f32.mrb[0].mxu0
    %v7946 = vadd.f32 0.0, %v7945
    %v7947 = vpop.f32.mrb[0].mxu0
    %v7948 = vadd.f32 0.0, %v7947
    %v7949 = vpop.f32.mrb[0].mxu0
    %v7950 = vadd.f32 0.0, %v7949
    %v7951 = vpop.f32.mrb[0].mxu0
    %v7952 = vadd.f32 0.0, %v7951
    %7953 = vdwg.mxu0
    %7954 = vmatprep.subr.bf16.mxu0 %v7829
    %7955 = vmatpush1.bf16.msra.mxu0 %v7828
    %7956 = vmatprep.subr.bf16.mxu0 %v7831
    %7957 = vmatpush1.bf16.msra.mxu0 %v7830
    %7958 = vmatprep.subr.bf16.mxu0 %v7833
    %7959 = vmatpush1.bf16.msra.mxu0 %v7832
    %7960 = vmatprep.subr.bf16.mxu0 %v7835
    %7961 = vmatpush1.bf16.msra.mxu0 %v7834
    %7962 = vmatprep.subr.bf16.mxu0 %v7837
    %7963 = vmatpush1.bf16.msra.mxu0 %v7836
    %7964 = vmatprep.subr.bf16.mxu0 %v7839
    %7965 = vmatpush1.bf16.msra.mxu0 %v7838
    %7966 = vmatprep.subr.bf16.mxu0 %v7841
    %7967 = vmatpush1.bf16.msra.mxu0 %v7840
    %7968 = vmatprep.subr.bf16.mxu0 %v7843
    %7969 = vmatpush1.bf16.msra.mxu0 %v7842
    %7970 = vmatprep.subr.bf16.mxu0 %v7845
    %7971 = vmatpush1.bf16.msra.mxu0 %v7844
    %7972 = vmatprep.subr.bf16.mxu0 %v7847
    %7973 = vmatpush1.bf16.msra.mxu0 %v7846
    %7974 = vmatprep.subr.bf16.mxu0 %v7849
    %7975 = vmatpush1.bf16.msra.mxu0 %v7848
    %7976 = vmatprep.subr.bf16.mxu0 %v7851
    %7977 = vmatpush1.bf16.msra.mxu0 %v7850
    %7978 = vmatprep.subr.bf16.mxu0 0
    %7979 = vmatpush1.bf16.msra.mxu0 0
    %7980 = vmatprep.subr.bf16.mxu0 0
    %7981 = vmatpush1.bf16.msra.mxu0 0
    %7982 = vmatprep.subr.bf16.mxu0 0
    %7983 = vmatpush1.bf16.msra.mxu0 0
    %7984 = vmatprep.subr.bf16.mxu0 0
    %7985 = vmatpush1.bf16.msra.mxu0 0
    %7986 = vmatprep.mubr.bf16.mxu0 %v7909
    %7987 = vmatmul.mubr.bf16.gmra.mrb[0].mxu0 %v3265
    %v7988 = vpop.f32.mrb[0].mxu0
    %v7989 = vadd.f32 %v7946, %v7988
    %v7990 = vpop.f32.mrb[0].mxu0
    %v7991 = vadd.f32 %v7948, %v7990
    %v7992 = vpop.f32.mrb[0].mxu0
    %v7993 = vadd.f32 %v7950, %v7992
    %v7994 = vpop.f32.mrb[0].mxu0
    %v7995 = vadd.f32 %v7952, %v7994
    %7996 = vdwg.mxu0
    %v7997 = vadd.f32 %v7567, %v7989
    %v7998 = vadd.f32 %v7568, %v7991
    %v7999 = vadd.f32 %v7569, %v7993
    %v8000 = vadd.f32 %v7570, %v7995
    %s8001 = scalar_lea.vmem [#allocation4], 4928
    %v8002 = vld [vmem:[%s8001] sm:$0xff]
    %v8003 = vld [vmem:[%s8001 + $0x8] sm:$0xff]
    %v8004 = vld [vmem:[%s8001 + $0x10] sm:$0xff]
    %v8005 = vld [vmem:[%s8001 + $0x18] sm:$0xff]
    %v8006 = vld [vmem:[%s8001 + $0x20] sm:$0xff]
    %v8007 = vld [vmem:[%s8001 + $0x28] sm:$0xff]
    %v8008 = vld [vmem:[%s8001 + $0x30] sm:$0xff]
    %v8009 = vld [vmem:[%s8001 + $0x38] sm:$0xff]
    %v8010 = vld [vmem:[%s8001 + $0x40] sm:$0xff]
    %v8011 = vld [vmem:[%s8001 + $0x48] sm:$0xff]
    %v8012 = vld [vmem:[%s8001 + $0x50] sm:$0xff]
    %v8013 = vld [vmem:[%s8001 + $0x58] sm:$0xff]
    %v8014 = vld [vmem:[%s8001 + $0x60] sm:$0xff]
    %v8015 = vld [vmem:[%s8001 + $0x68] sm:$0xff]
    %v8016 = vld [vmem:[%s8001 + $0x70] sm:$0xff]
    %v8017 = vld [vmem:[%s8001 + $0x78] sm:$0xff]
    %v8018 = vld [vmem:[%s8001 + $0x80] sm:$0xff]
    %v8019 = vld [vmem:[%s8001 + $0x88] sm:$0xff]
    %v8020 = vld [vmem:[%s8001 + $0x90] sm:$0xff]
    %v8021 = vld [vmem:[%s8001 + $0x98] sm:$0xff]
    %v8022 = vld [vmem:[%s8001 + $0xa0] sm:$0xff]
    %v8023 = vld [vmem:[%s8001 + $0xa8] sm:$0xff]
    %v8024 = vld [vmem:[%s8001 + $0xb0] sm:$0xff]
    %v8025 = vld [vmem:[%s8001 + $0xb8] sm:$0xff]
    %v8026 = vld [vmem:[%s8001 + $0xc0] sm:$0xff]
    %v8027 = vld [vmem:[%s8001 + $0xc8] sm:$0xff]
    %v8028 = vld [vmem:[%s8001 + $0xd0] sm:$0xff]
    %v8029 = vld [vmem:[%s8001 + $0xd8] sm:$0xff]
    %v8030 = vld [vmem:[%s8001 + $0xe0] sm:$0xff]
    %v8031 = vld [vmem:[%s8001 + $0xe8] sm:$0xff]
    %v8032 = vld [vmem:[%s8001 + $0xf0] sm:$0xff]
    %v8033 = vld [vmem:[%s8001 + $0xf8] sm:$0xff]
    %v8034 = vld [vmem:[%s8001 + $0x100] sm:$0xff]
    %v8035 = vld [vmem:[%s8001 + $0x108] sm:$0xff]
    %v8036 = vld [vmem:[%s8001 + $0x110] sm:$0xff]
    %v8037 = vld [vmem:[%s8001 + $0x118] sm:$0xff]
    %v8038 = vld [vmem:[%s8001 + $0x120] sm:$0xff]
    %v8039 = vld [vmem:[%s8001 + $0x128] sm:$0xff]
    %v8040 = vld [vmem:[%s8001 + $0x130] sm:$0xff]
    %v8041 = vld [vmem:[%s8001 + $0x138] sm:$0xff]
    %v8042 = vld [vmem:[%s8001 + $0x140] sm:$0xff]
    %v8043 = vld [vmem:[%s8001 + $0x148] sm:$0xff]
    %v8044 = vld [vmem:[%s8001 + $0x150] sm:$0xff]
    %v8045 = vld [vmem:[%s8001 + $0x158] sm:$0xff]
    %v8046 = vld [vmem:[%s8001 + $0x160] sm:$0xff]
    %v8047 = vld [vmem:[%s8001 + $0x168] sm:$0xff]
    %v8048 = vld [vmem:[%s8001 + $0x170] sm:$0xff]
    %v8049 = vld [vmem:[%s8001 + $0x178] sm:$0xff]
    %v8050 = vld [vmem:[%s8001 + $0x180] sm:$0xff]
    %v8051 = vld [vmem:[%s8001 + $0x188] sm:$0xff]
    %v8052 = vld [vmem:[%s8001 + $0x190] sm:$0xff]
    %v8053 = vld [vmem:[%s8001 + $0x198] sm:$0xff]
    %v8054 = vld [vmem:[%s8001 + $0x1a0] sm:$0xff]
    %v8055 = vld [vmem:[%s8001 + $0x1a8] sm:$0xff]
    %v8056 = vld [vmem:[%s8001 + $0x1b0] sm:$0xff]
    %v8057 = vld [vmem:[%s8001 + $0x1b8] sm:$0xff]
    %v8114 = vunpack.c.l.b16 %v8002
    %v8115 = vunpack.c.h.b16 %v8002
    %v8116 = vunpack.c.l.b16 %v8003
    %v8117 = vunpack.c.h.b16 %v8003
    %v8118 = vunpack.c.l.b16 %v8004
    %v8119 = vunpack.c.h.b16 %v8004
    %v8120 = vunpack.c.l.b16 %v8005
    %v8121 = vunpack.c.h.b16 %v8005
    %v8122 = vunpack.c.l.b16 %v8006
    %v8123 = vunpack.c.h.b16 %v8006
    %v8124 = vunpack.c.l.b16 %v8007
    %v8125 = vunpack.c.h.b16 %v8007
    %v8126 = vunpack.c.l.b16 %v8008
    %v8127 = vunpack.c.h.b16 %v8008
    %v8128 = vunpack.c.l.b16 %v8009
    %v8129 = vunpack.c.h.b16 %v8009
    %v8130 = vunpack.c.l.b16 %v8010
    %v8131 = vunpack.c.h.b16 %v8010
    %v8132 = vunpack.c.l.b16 %v8011
    %v8133 = vunpack.c.h.b16 %v8011
    %v8134 = vunpack.c.l.b16 %v8012
    %v8135 = vunpack.c.h.b16 %v8012
    %v8136 = vunpack.c.l.b16 %v8013
    %v8137 = vunpack.c.h.b16 %v8013
    %v8138 = vunpack.c.l.b16 %v8014
    %v8139 = vunpack.c.h.b16 %v8014
    %v8140 = vunpack.c.l.b16 %v8015
    %v8141 = vunpack.c.h.b16 %v8015
    %v8142 = vunpack.c.l.b16 %v8016
    %v8143 = vunpack.c.h.b16 %v8016
    %v8144 = vunpack.c.l.b16 %v8017
    %v8145 = vunpack.c.h.b16 %v8017
    %v8146 = vunpack.c.l.b16 %v8018
    %v8147 = vunpack.c.h.b16 %v8018
    %v8148 = vunpack.c.l.b16 %v8019
    %v8149 = vunpack.c.h.b16 %v8019
    %v8150 = vunpack.c.l.b16 %v8020
    %v8151 = vunpack.c.h.b16 %v8020
    %v8152 = vunpack.c.l.b16 %v8021
    %v8153 = vunpack.c.h.b16 %v8021
    %v8154 = vunpack.c.l.b16 %v8022
    %v8155 = vunpack.c.h.b16 %v8022
    %v8156 = vunpack.c.l.b16 %v8023
    %v8157 = vunpack.c.h.b16 %v8023
    %v8158 = vunpack.c.l.b16 %v8024
    %v8159 = vunpack.c.h.b16 %v8024
    %v8160 = vunpack.c.l.b16 %v8025
    %v8161 = vunpack.c.h.b16 %v8025
    %v8162 = vunpack.c.l.b16 %v8026
    %v8163 = vunpack.c.h.b16 %v8026
    %v8164 = vunpack.c.l.b16 %v8027
    %v8165 = vunpack.c.h.b16 %v8027
    %v8166 = vunpack.c.l.b16 %v8028
    %v8167 = vunpack.c.h.b16 %v8028
    %v8168 = vunpack.c.l.b16 %v8029
    %v8169 = vunpack.c.h.b16 %v8029
    %v8170 = vunpack.c.l.b16 %v8030
    %v8171 = vunpack.c.h.b16 %v8030
    %v8172 = vunpack.c.l.b16 %v8031
    %v8173 = vunpack.c.h.b16 %v8031
    %v8174 = vunpack.c.l.b16 %v8032
    %v8175 = vunpack.c.h.b16 %v8032
    %v8176 = vunpack.c.l.b16 %v8033
    %v8177 = vunpack.c.h.b16 %v8033
    %v8178 = vunpack.c.l.b16 %v8034
    %v8179 = vunpack.c.h.b16 %v8034
    %v8180 = vunpack.c.l.b16 %v8035
    %v8181 = vunpack.c.h.b16 %v8035
    %v8182 = vunpack.c.l.b16 %v8036
    %v8183 = vunpack.c.h.b16 %v8036
    %v8184 = vunpack.c.l.b16 %v8037
    %v8185 = vunpack.c.h.b16 %v8037
    %v8186 = vunpack.c.l.b16 %v8038
    %v8187 = vunpack.c.h.b16 %v8038
    %v8188 = vunpack.c.l.b16 %v8039
    %v8189 = vunpack.c.h.b16 %v8039
    %v8190 = vunpack.c.l.b16 %v8040
    %v8191 = vunpack.c.h.b16 %v8040
    %v8192 = vunpack.c.l.b16 %v8041
    %v8193 = vunpack.c.h.b16 %v8041
    %v8194 = vunpack.c.l.b16 %v8042
    %v8195 = vunpack.c.h.b16 %v8042
    %v8196 = vunpack.c.l.b16 %v8043
    %v8197 = vunpack.c.h.b16 %v8043
    %v8198 = vunpack.c.l.b16 %v8044
    %v8199 = vunpack.c.h.b16 %v8044
    %v8200 = vunpack.c.l.b16 %v8045
    %v8201 = vunpack.c.h.b16 %v8045
    %v8202 = vunpack.c.l.b16 %v8046
    %v8203 = vunpack.c.h.b16 %v8046
    %v8204 = vunpack.c.l.b16 %v8047
    %v8205 = vunpack.c.h.b16 %v8047
    %v8206 = vunpack.c.l.b16 %v8048
    %v8207 = vunpack.c.h.b16 %v8048
    %v8208 = vunpack.c.l.b16 %v8049
    %v8209 = vunpack.c.h.b16 %v8049
    %v8210 = vunpack.c.l.b16 %v8050
    %v8211 = vunpack.c.h.b16 %v8050
    %v8212 = vunpack.c.l.b16 %v8051
    %v8213 = vunpack.c.h.b16 %v8051
    %v8214 = vunpack.c.l.b16 %v8052
    %v8215 = vunpack.c.h.b16 %v8052
    %v8216 = vunpack.c.l.b16 %v8053
    %v8217 = vunpack.c.h.b16 %v8053
    %v8218 = vunpack.c.l.b16 %v8054
    %v8219 = vunpack.c.h.b16 %v8054
    %v8220 = vunpack.c.l.b16 %v8055
    %v8221 = vunpack.c.h.b16 %v8055
    %v8222 = vunpack.c.l.b16 %v8056
    %v8223 = vunpack.c.h.b16 %v8056
    %v8224 = vunpack.c.l.b16 %v8057
    %v8225 = vunpack.c.h.b16 %v8057
    %v8226 = vpack.c.b16 %v8116, %v8114
    %v8227 = vpack.c.b16 %v8117, %v8115
    %v8228 = vpack.c.b16 %v8120, %v8118
    %v8229 = vpack.c.b16 %v8121, %v8119
    %v8230 = vpack.c.b16 %v8124, %v8122
    %v8231 = vpack.c.b16 %v8125, %v8123
    %v8232 = vpack.c.b16 %v8128, %v8126
    %v8233 = vpack.c.b16 %v8129, %v8127
    %v8234 = vpack.c.b16 %v8132, %v8130
    %v8235 = vpack.c.b16 %v8133, %v8131
    %v8236 = vpack.c.b16 %v8136, %v8134
    %v8237 = vpack.c.b16 %v8137, %v8135
    %v8238 = vpack.c.b16 %v8140, %v8138
    %v8239 = vpack.c.b16 %v8141, %v8139
    %v8240 = vpack.c.b16 %v8144, %v8142
    %v8241 = vpack.c.b16 %v8145, %v8143
    %v8242 = vpack.c.b16 %v8148, %v8146
    %v8243 = vpack.c.b16 %v8149, %v8147
    %v8244 = vpack.c.b16 %v8152, %v8150
    %v8245 = vpack.c.b16 %v8153, %v8151
    %v8246 = vpack.c.b16 %v8156, %v8154
    %v8247 = vpack.c.b16 %v8157, %v8155
    %v8248 = vpack.c.b16 %v8160, %v8158
    %v8249 = vpack.c.b16 %v8161, %v8159
    %v8250 = vpack.c.b16 %v8164, %v8162
    %v8251 = vpack.c.b16 %v8165, %v8163
    %v8252 = vpack.c.b16 %v8168, %v8166
    %v8253 = vpack.c.b16 %v8169, %v8167
    %v8254 = vpack.c.b16 %v8172, %v8170
    %v8255 = vpack.c.b16 %v8173, %v8171
    %v8256 = vpack.c.b16 %v8176, %v8174
    %v8257 = vpack.c.b16 %v8177, %v8175
    %v8258 = vpack.c.b16 %v8180, %v8178
    %v8259 = vpack.c.b16 %v8181, %v8179
    %v8260 = vpack.c.b16 %v8184, %v8182
    %v8261 = vpack.c.b16 %v8185, %v8183
    %v8262 = vpack.c.b16 %v8188, %v8186
    %v8263 = vpack.c.b16 %v8189, %v8187
    %v8264 = vpack.c.b16 %v8192, %v8190
    %v8265 = vpack.c.b16 %v8193, %v8191
    %v8266 = vpack.c.b16 %v8196, %v8194
    %v8267 = vpack.c.b16 %v8197, %v8195
    %v8268 = vpack.c.b16 %v8200, %v8198
    %v8269 = vpack.c.b16 %v8201, %v8199
    %v8270 = vpack.c.b16 %v8204, %v8202
    %v8271 = vpack.c.b16 %v8205, %v8203
    %v8272 = vpack.c.b16 %v8208, %v8206
    %v8273 = vpack.c.b16 %v8209, %v8207
    %v8274 = vpack.c.b16 %v8212, %v8210
    %v8275 = vpack.c.b16 %v8213, %v8211
    %v8276 = vpack.c.b16 %v8216, %v8214
    %v8277 = vpack.c.b16 %v8217, %v8215
    %v8278 = vpack.c.b16 %v8220, %v8218
    %v8279 = vpack.c.b16 %v8221, %v8219
    %v8280 = vpack.c.b16 %v8224, %v8222
    %v8281 = vpack.c.b16 %v8225, %v8223
    %v8339 = vsel %vm3672, %v3270, 0
    %8341 = vmatprep.subr.bf16.mxu0 %v8227
    %8342 = vmatpush1.bf16.msra.mxu0 %v8226
    %8343 = vmatprep.subr.bf16.mxu0 %v8229
    %8344 = vmatpush1.bf16.msra.mxu0 %v8228
    %8345 = vmatprep.subr.bf16.mxu0 %v8231
    %8346 = vmatpush1.bf16.msra.mxu0 %v8230
    %8347 = vmatprep.subr.bf16.mxu0 %v8233
    %8348 = vmatpush1.bf16.msra.mxu0 %v8232
    %8349 = vmatprep.subr.bf16.mxu0 %v8235
    %8350 = vmatpush1.bf16.msra.mxu0 %v8234
    %8351 = vmatprep.subr.bf16.mxu0 %v8237
    %8352 = vmatpush1.bf16.msra.mxu0 %v8236
    %8353 = vmatprep.subr.bf16.mxu0 %v8239
    %8354 = vmatpush1.bf16.msra.mxu0 %v8238
    %8355 = vmatprep.subr.bf16.mxu0 %v8241
    %8356 = vmatpush1.bf16.msra.mxu0 %v8240
    %8357 = vmatprep.subr.bf16.mxu0 %v8243
    %8358 = vmatpush1.bf16.msra.mxu0 %v8242
    %8359 = vmatprep.subr.bf16.mxu0 %v8245
    %8360 = vmatpush1.bf16.msra.mxu0 %v8244
    %8361 = vmatprep.subr.bf16.mxu0 %v8247
    %8362 = vmatpush1.bf16.msra.mxu0 %v8246
    %8363 = vmatprep.subr.bf16.mxu0 %v8249
    %8364 = vmatpush1.bf16.msra.mxu0 %v8248
    %8365 = vmatprep.subr.bf16.mxu0 %v8251
    %8366 = vmatpush1.bf16.msra.mxu0 %v8250
    %8367 = vmatprep.subr.bf16.mxu0 %v8253
    %8368 = vmatpush1.bf16.msra.mxu0 %v8252
    %8369 = vmatprep.subr.bf16.mxu0 %v8255
    %8370 = vmatpush1.bf16.msra.mxu0 %v8254
    %8371 = vmatprep.subr.bf16.mxu0 %v8257
    %8372 = vmatpush1.bf16.msra.mxu0 %v8256
    %8373 = vmatprep.mubr.bf16.mxu0 %v3268
    %8374 = vmatmul.mubr.bf16.gmra.mrb[0].mxu0 %v3267
    %v8375 = vpop.f32.mrb[0].mxu0
    %v8376 = vadd.f32 0.0, %v8375
    %v8377 = vpop.f32.mrb[0].mxu0
    %v8378 = vadd.f32 0.0, %v8377
    %v8379 = vpop.f32.mrb[0].mxu0
    %v8380 = vadd.f32 0.0, %v8379
    %v8381 = vpop.f32.mrb[0].mxu0
    %v8382 = vadd.f32 0.0, %v8381
    %8383 = vdwg.mxu0
    %8384 = vmatprep.subr.bf16.mxu0 %v8259
    %8385 = vmatpush1.bf16.msra.mxu0 %v8258
    %8386 = vmatprep.subr.bf16.mxu0 %v8261
    %8387 = vmatpush1.bf16.msra.mxu0 %v8260
    %8388 = vmatprep.subr.bf16.mxu0 %v8263
    %8389 = vmatpush1.bf16.msra.mxu0 %v8262
    %8390 = vmatprep.subr.bf16.mxu0 %v8265
    %8391 = vmatpush1.bf16.msra.mxu0 %v8264
    %8392 = vmatprep.subr.bf16.mxu0 %v8267
    %8393 = vmatpush1.bf16.msra.mxu0 %v8266
    %8394 = vmatprep.subr.bf16.mxu0 %v8269
    %8395 = vmatpush1.bf16.msra.mxu0 %v8268
    %8396 = vmatprep.subr.bf16.mxu0 %v8271
    %8397 = vmatpush1.bf16.msra.mxu0 %v8270
    %8398 = vmatprep.subr.bf16.mxu0 %v8273
    %8399 = vmatpush1.bf16.msra.mxu0 %v8272
    %8400 = vmatprep.subr.bf16.mxu0 %v8275
    %8401 = vmatpush1.bf16.msra.mxu0 %v8274
    %8402 = vmatprep.subr.bf16.mxu0 %v8277
    %8403 = vmatpush1.bf16.msra.mxu0 %v8276
    %8404 = vmatprep.subr.bf16.mxu0 %v8279
    %8405 = vmatpush1.bf16.msra.mxu0 %v8278
    %8406 = vmatprep.subr.bf16.mxu0 %v8281
    %8407 = vmatpush1.bf16.msra.mxu0 %v8280
    %8408 = vmatprep.subr.bf16.mxu0 0
    %8409 = vmatpush1.bf16.msra.mxu0 0
    %8410 = vmatprep.subr.bf16.mxu0 0
    %8411 = vmatpush1.bf16.msra.mxu0 0
    %8412 = vmatprep.subr.bf16.mxu0 0
    %8413 = vmatpush1.bf16.msra.mxu0 0
    %8414 = vmatprep.subr.bf16.mxu0 0
    %8415 = vmatpush1.bf16.msra.mxu0 0
    %8416 = vmatprep.mubr.bf16.mxu0 %v8339
    %8417 = vmatmul.mubr.bf16.gmra.mrb[0].mxu0 %v3269
    %v8418 = vpop.f32.mrb[0].mxu0
    %v8419 = vadd.f32 %v8376, %v8418
    %v8420 = vpop.f32.mrb[0].mxu0
    %v8421 = vadd.f32 %v8378, %v8420
    %v8422 = vpop.f32.mrb[0].mxu0
    %v8423 = vadd.f32 %v8380, %v8422
    %v8424 = vpop.f32.mrb[0].mxu0
    %v8425 = vadd.f32 %v8382, %v8424
    %8426 = vdwg.mxu0
    %v8427 = vadd.f32 %v7997, %v8419
    %v8428 = vadd.f32 %v7998, %v8421
    %v8429 = vadd.f32 %v7999, %v8423
    %v8430 = vadd.f32 %v8000, %v8425
    %s8431 = scalar_lea.vmem [#allocation4], 5376
    %v8432 = vld [vmem:[%s8431] sm:$0xff]
    %v8433 = vld [vmem:[%s8431 + $0x8] sm:$0xff]
    %v8434 = vld [vmem:[%s8431 + $0x10] sm:$0xff]
    %v8435 = vld [vmem:[%s8431 + $0x18] sm:$0xff]
    %v8436 = vld [vmem:[%s8431 + $0x20] sm:$0xff]
    %v8437 = vld [vmem:[%s8431 + $0x28] sm:$0xff]
    %v8438 = vld [vmem:[%s8431 + $0x30] sm:$0xff]
    %v8439 = vld [vmem:[%s8431 + $0x38] sm:$0xff]
    %v8440 = vld [vmem:[%s8431 + $0x40] sm:$0xff]
    %v8441 = vld [vmem:[%s8431 + $0x48] sm:$0xff]
    %v8442 = vld [vmem:[%s8431 + $0x50] sm:$0xff]
    %v8443 = vld [vmem:[%s8431 + $0x58] sm:$0xff]
    %v8444 = vld [vmem:[%s8431 + $0x60] sm:$0xff]
    %v8445 = vld [vmem:[%s8431 + $0x68] sm:$0xff]
    %v8446 = vld [vmem:[%s8431 + $0x70] sm:$0xff]
    %v8447 = vld [vmem:[%s8431 + $0x78] sm:$0xff]
    %v8448 = vld [vmem:[%s8431 + $0x80] sm:$0xff]
    %v8449 = vld [vmem:[%s8431 + $0x88] sm:$0xff]
    %v8450 = vld [vmem:[%s8431 + $0x90] sm:$0xff]
    %v8451 = vld [vmem:[%s8431 + $0x98] sm:$0xff]
    %v8452 = vld [vmem:[%s8431 + $0xa0] sm:$0xff]
    %v8453 = vld [vmem:[%s8431 + $0xa8] sm:$0xff]
    %v8454 = vld [vmem:[%s8431 + $0xb0] sm:$0xff]
    %v8455 = vld [vmem:[%s8431 + $0xb8] sm:$0xff]
    %v8456 = vld [vmem:[%s8431 + $0xc0] sm:$0xff]
    %v8457 = vld [vmem:[%s8431 + $0xc8] sm:$0xff]
    %v8458 = vld [vmem:[%s8431 + $0xd0] sm:$0xff]
    %v8459 = vld [vmem:[%s8431 + $0xd8] sm:$0xff]
    %v8460 = vld [vmem:[%s8431 + $0xe0] sm:$0xff]
    %v8461 = vld [vmem:[%s8431 + $0xe8] sm:$0xff]
    %v8462 = vld [vmem:[%s8431 + $0xf0] sm:$0xff]
    %v8463 = vld [vmem:[%s8431 + $0xf8] sm:$0xff]
    %v8464 = vld [vmem:[%s8431 + $0x100] sm:$0xff]
    %v8465 = vld [vmem:[%s8431 + $0x108] sm:$0xff]
    %v8466 = vld [vmem:[%s8431 + $0x110] sm:$0xff]
    %v8467 = vld [vmem:[%s8431 + $0x118] sm:$0xff]
    %v8468 = vld [vmem:[%s8431 + $0x120] sm:$0xff]
    %v8469 = vld [vmem:[%s8431 + $0x128] sm:$0xff]
    %v8470 = vld [vmem:[%s8431 + $0x130] sm:$0xff]
    %v8471 = vld [vmem:[%s8431 + $0x138] sm:$0xff]
    %v8472 = vld [vmem:[%s8431 + $0x140] sm:$0xff]
    %v8473 = vld [vmem:[%s8431 + $0x148] sm:$0xff]
    %v8474 = vld [vmem:[%s8431 + $0x150] sm:$0xff]
    %v8475 = vld [vmem:[%s8431 + $0x158] sm:$0xff]
    %v8476 = vld [vmem:[%s8431 + $0x160] sm:$0xff]
    %v8477 = vld [vmem:[%s8431 + $0x168] sm:$0xff]
    %v8478 = vld [vmem:[%s8431 + $0x170] sm:$0xff]
    %v8479 = vld [vmem:[%s8431 + $0x178] sm:$0xff]
    %v8480 = vld [vmem:[%s8431 + $0x180] sm:$0xff]
    %v8481 = vld [vmem:[%s8431 + $0x188] sm:$0xff]
    %v8482 = vld [vmem:[%s8431 + $0x190] sm:$0xff]
    %v8483 = vld [vmem:[%s8431 + $0x198] sm:$0xff]
    %v8484 = vld [vmem:[%s8431 + $0x1a0] sm:$0xff]
    %v8485 = vld [vmem:[%s8431 + $0x1a8] sm:$0xff]
    %v8486 = vld [vmem:[%s8431 + $0x1b0] sm:$0xff]
    %v8487 = vld [vmem:[%s8431 + $0x1b8] sm:$0xff]
    %v8544 = vunpack.c.l.b16 %v8432
    %v8545 = vunpack.c.h.b16 %v8432
    %v8546 = vunpack.c.l.b16 %v8433
    %v8547 = vunpack.c.h.b16 %v8433
    %v8548 = vunpack.c.l.b16 %v8434
    %v8549 = vunpack.c.h.b16 %v8434
    %v8550 = vunpack.c.l.b16 %v8435
    %v8551 = vunpack.c.h.b16 %v8435
    %v8552 = vunpack.c.l.b16 %v8436
    %v8553 = vunpack.c.h.b16 %v8436
    %v8554 = vunpack.c.l.b16 %v8437
    %v8555 = vunpack.c.h.b16 %v8437
    %v8556 = vunpack.c.l.b16 %v8438
    %v8557 = vunpack.c.h.b16 %v8438
    %v8558 = vunpack.c.l.b16 %v8439
    %v8559 = vunpack.c.h.b16 %v8439
    %v8560 = vunpack.c.l.b16 %v8440
    %v8561 = vunpack.c.h.b16 %v8440
    %v8562 = vunpack.c.l.b16 %v8441
    %v8563 = vunpack.c.h.b16 %v8441
    %v8564 = vunpack.c.l.b16 %v8442
    %v8565 = vunpack.c.h.b16 %v8442
    %v8566 = vunpack.c.l.b16 %v8443
    %v8567 = vunpack.c.h.b16 %v8443
    %v8568 = vunpack.c.l.b16 %v8444
    %v8569 = vunpack.c.h.b16 %v8444
    %v8570 = vunpack.c.l.b16 %v8445
    %v8571 = vunpack.c.h.b16 %v8445
    %v8572 = vunpack.c.l.b16 %v8446
    %v8573 = vunpack.c.h.b16 %v8446
    %v8574 = vunpack.c.l.b16 %v8447
    %v8575 = vunpack.c.h.b16 %v8447
    %v8576 = vunpack.c.l.b16 %v8448
    %v8577 = vunpack.c.h.b16 %v8448
    %v8578 = vunpack.c.l.b16 %v8449
    %v8579 = vunpack.c.h.b16 %v8449
    %v8580 = vunpack.c.l.b16 %v8450
    %v8581 = vunpack.c.h.b16 %v8450
    %v8582 = vunpack.c.l.b16 %v8451
    %v8583 = vunpack.c.h.b16 %v8451
    %v8584 = vunpack.c.l.b16 %v8452
    %v8585 = vunpack.c.h.b16 %v8452
    %v8586 = vunpack.c.l.b16 %v8453
    %v8587 = vunpack.c.h.b16 %v8453
    %v8588 = vunpack.c.l.b16 %v8454
    %v8589 = vunpack.c.h.b16 %v8454
    %v8590 = vunpack.c.l.b16 %v8455
    %v8591 = vunpack.c.h.b16 %v8455
    %v8592 = vunpack.c.l.b16 %v8456
    %v8593 = vunpack.c.h.b16 %v8456
    %v8594 = vunpack.c.l.b16 %v8457
    %v8595 = vunpack.c.h.b16 %v8457
    %v8596 = vunpack.c.l.b16 %v8458
    %v8597 = vunpack.c.h.b16 %v8458
    %v8598 = vunpack.c.l.b16 %v8459
    %v8599 = vunpack.c.h.b16 %v8459
    %v8600 = vunpack.c.l.b16 %v8460
    %v8601 = vunpack.c.h.b16 %v8460
    %v8602 = vunpack.c.l.b16 %v8461
    %v8603 = vunpack.c.h.b16 %v8461
    %v8604 = vunpack.c.l.b16 %v8462
    %v8605 = vunpack.c.h.b16 %v8462
    %v8606 = vunpack.c.l.b16 %v8463
    %v8607 = vunpack.c.h.b16 %v8463
    %v8608 = vunpack.c.l.b16 %v8464
    %v8609 = vunpack.c.h.b16 %v8464
    %v8610 = vunpack.c.l.b16 %v8465
    %v8611 = vunpack.c.h.b16 %v8465
    %v8612 = vunpack.c.l.b16 %v8466
    %v8613 = vunpack.c.h.b16 %v8466
    %v8614 = vunpack.c.l.b16 %v8467
    %v8615 = vunpack.c.h.b16 %v8467
    %v8616 = vunpack.c.l.b16 %v8468
    %v8617 = vunpack.c.h.b16 %v8468
    %v8618 = vunpack.c.l.b16 %v8469
    %v8619 = vunpack.c.h.b16 %v8469
    %v8620 = vunpack.c.l.b16 %v8470
    %v8621 = vunpack.c.h.b16 %v8470
    %v8622 = vunpack.c.l.b16 %v8471
    %v8623 = vunpack.c.h.b16 %v8471
    %v8624 = vunpack.c.l.b16 %v8472
    %v8625 = vunpack.c.h.b16 %v8472
    %v8626 = vunpack.c.l.b16 %v8473
    %v8627 = vunpack.c.h.b16 %v8473
    %v8628 = vunpack.c.l.b16 %v8474
    %v8629 = vunpack.c.h.b16 %v8474
    %v8630 = vunpack.c.l.b16 %v8475
    %v8631 = vunpack.c.h.b16 %v8475
    %v8632 = vunpack.c.l.b16 %v8476
    %v8633 = vunpack.c.h.b16 %v8476
    %v8634 = vunpack.c.l.b16 %v8477
    %v8635 = vunpack.c.h.b16 %v8477
    %v8636 = vunpack.c.l.b16 %v8478
    %v8637 = vunpack.c.h.b16 %v8478
    %v8638 = vunpack.c.l.b16 %v8479
    %v8639 = vunpack.c.h.b16 %v8479
    %v8640 = vunpack.c.l.b16 %v8480
    %v8641 = vunpack.c.h.b16 %v8480
    %v8642 = vunpack.c.l.b16 %v8481
    %v8643 = vunpack.c.h.b16 %v8481
    %v8644 = vunpack.c.l.b16 %v8482
    %v8645 = vunpack.c.h.b16 %v8482
    %v8646 = vunpack.c.l.b16 %v8483
    %v8647 = vunpack.c.h.b16 %v8483
    %v8648 = vunpack.c.l.b16 %v8484
    %v8649 = vunpack.c.h.b16 %v8484
    %v8650 = vunpack.c.l.b16 %v8485
    %v8651 = vunpack.c.h.b16 %v8485
    %v8652 = vunpack.c.l.b16 %v8486
    %v8653 = vunpack.c.h.b16 %v8486
    %v8654 = vunpack.c.l.b16 %v8487
    %v8655 = vunpack.c.h.b16 %v8487
    %v8656 = vpack.c.b16 %v8546, %v8544
    %v8657 = vpack.c.b16 %v8547, %v8545
    %v8658 = vpack.c.b16 %v8550, %v8548
    %v8659 = vpack.c.b16 %v8551, %v8549
    %v8660 = vpack.c.b16 %v8554, %v8552
    %v8661 = vpack.c.b16 %v8555, %v8553
    %v8662 = vpack.c.b16 %v8558, %v8556
    %v8663 = vpack.c.b16 %v8559, %v8557
    %v8664 = vpack.c.b16 %v8562, %v8560
    %v8665 = vpack.c.b16 %v8563, %v8561
    %v8666 = vpack.c.b16 %v8566, %v8564
    %v8667 = vpack.c.b16 %v8567, %v8565
    %v8668 = vpack.c.b16 %v8570, %v8568
    %v8669 = vpack.c.b16 %v8571, %v8569
    %v8670 = vpack.c.b16 %v8574, %v8572
    %v8671 = vpack.c.b16 %v8575, %v8573
    %v8672 = vpack.c.b16 %v8578, %v8576
    %v8673 = vpack.c.b16 %v8579, %v8577
    %v8674 = vpack.c.b16 %v8582, %v8580
    %v8675 = vpack.c.b16 %v8583, %v8581
    %v8676 = vpack.c.b16 %v8586, %v8584
    %v8677 = vpack.c.b16 %v8587, %v8585
    %v8678 = vpack.c.b16 %v8590, %v8588
    %v8679 = vpack.c.b16 %v8591, %v8589
    %v8680 = vpack.c.b16 %v8594, %v8592
    %v8681 = vpack.c.b16 %v8595, %v8593
    %v8682 = vpack.c.b16 %v8598, %v8596
    %v8683 = vpack.c.b16 %v8599, %v8597
    %v8684 = vpack.c.b16 %v8602, %v8600
    %v8685 = vpack.c.b16 %v8603, %v8601
    %v8686 = vpack.c.b16 %v8606, %v8604
    %v8687 = vpack.c.b16 %v8607, %v8605
    %v8688 = vpack.c.b16 %v8610, %v8608
    %v8689 = vpack.c.b16 %v8611, %v8609
    %v8690 = vpack.c.b16 %v8614, %v8612
    %v8691 = vpack.c.b16 %v8615, %v8613
    %v8692 = vpack.c.b16 %v8618, %v8616
    %v8693 = vpack.c.b16 %v8619, %v8617
    %v8694 = vpack.c.b16 %v8622, %v8620
    %v8695 = vpack.c.b16 %v8623, %v8621
    %v8696 = vpack.c.b16 %v8626, %v8624
    %v8697 = vpack.c.b16 %v8627, %v8625
    %v8698 = vpack.c.b16 %v8630, %v8628
    %v8699 = vpack.c.b16 %v8631, %v8629
    %v8700 = vpack.c.b16 %v8634, %v8632
    %v8701 = vpack.c.b16 %v8635, %v8633
    %v8702 = vpack.c.b16 %v8638, %v8636
    %v8703 = vpack.c.b16 %v8639, %v8637
    %v8704 = vpack.c.b16 %v8642, %v8640
    %v8705 = vpack.c.b16 %v8643, %v8641
    %v8706 = vpack.c.b16 %v8646, %v8644
    %v8707 = vpack.c.b16 %v8647, %v8645
    %v8708 = vpack.c.b16 %v8650, %v8648
    %v8709 = vpack.c.b16 %v8651, %v8649
    %v8710 = vpack.c.b16 %v8654, %v8652
    %v8711 = vpack.c.b16 %v8655, %v8653
    %v8769 = vsel %vm3672, %v3274, 0
    %8771 = vmatprep.subr.bf16.mxu0 %v8657
    %8772 = vmatpush1.bf16.msra.mxu0 %v8656
    %8773 = vmatprep.subr.bf16.mxu0 %v8659
    %8774 = vmatpush1.bf16.msra.mxu0 %v8658
    %8775 = vmatprep.subr.bf16.mxu0 %v8661
    %8776 = vmatpush1.bf16.msra.mxu0 %v8660
    %8777 = vmatprep.subr.bf16.mxu0 %v8663
    %8778 = vmatpush1.bf16.msra.mxu0 %v8662
    %8779 = vmatprep.subr.bf16.mxu0 %v8665
    %8780 = vmatpush1.bf16.msra.mxu0 %v8664
    %8781 = vmatprep.subr.bf16.mxu0 %v8667
    %8782 = vmatpush1.bf16.msra.mxu0 %v8666
    %8783 = vmatprep.subr.bf16.mxu0 %v8669
    %8784 = vmatpush1.bf16.msra.mxu0 %v8668
    %8785 = vmatprep.subr.bf16.mxu0 %v8671
    %8786 = vmatpush1.bf16.msra.mxu0 %v8670
    %8787 = vmatprep.subr.bf16.mxu0 %v8673
    %8788 = vmatpush1.bf16.msra.mxu0 %v8672
    %8789 = vmatprep.subr.bf16.mxu0 %v8675
    %8790 = vmatpush1.bf16.msra.mxu0 %v8674
    %8791 = vmatprep.subr.bf16.mxu0 %v8677
    %8792 = vmatpush1.bf16.msra.mxu0 %v8676
    %8793 = vmatprep.subr.bf16.mxu0 %v8679
    %8794 = vmatpush1.bf16.msra.mxu0 %v8678
    %8795 = vmatprep.subr.bf16.mxu0 %v8681
    %8796 = vmatpush1.bf16.msra.mxu0 %v8680
    %8797 = vmatprep.subr.bf16.mxu0 %v8683
    %8798 = vmatpush1.bf16.msra.mxu0 %v8682
    %8799 = vmatprep.subr.bf16.mxu0 %v8685
    %8800 = vmatpush1.bf16.msra.mxu0 %v8684
    %8801 = vmatprep.subr.bf16.mxu0 %v8687
    %8802 = vmatpush1.bf16.msra.mxu0 %v8686
    %8803 = vmatprep.mubr.bf16.mxu0 %v3272
    %8804 = vmatmul.mubr.bf16.gmra.mrb[0].mxu0 %v3271
    %v8805 = vpop.f32.mrb[0].mxu0
    %v8806 = vadd.f32 0.0, %v8805
    %v8807 = vpop.f32.mrb[0].mxu0
    %v8808 = vadd.f32 0.0, %v8807
    %v8809 = vpop.f32.mrb[0].mxu0
    %v8810 = vadd.f32 0.0, %v8809
    %v8811 = vpop.f32.mrb[0].mxu0
    %v8812 = vadd.f32 0.0, %v8811
    %8813 = vdwg.mxu0
    %8814 = vmatprep.subr.bf16.mxu0 %v8689
    %8815 = vmatpush1.bf16.msra.mxu0 %v8688
    %8816 = vmatprep.subr.bf16.mxu0 %v8691
    %8817 = vmatpush1.bf16.msra.mxu0 %v8690
    %8818 = vmatprep.subr.bf16.mxu0 %v8693
    %8819 = vmatpush1.bf16.msra.mxu0 %v8692
    %8820 = vmatprep.subr.bf16.mxu0 %v8695
    %8821 = vmatpush1.bf16.msra.mxu0 %v8694
    %8822 = vmatprep.subr.bf16.mxu0 %v8697
    %8823 = vmatpush1.bf16.msra.mxu0 %v8696
    %8824 = vmatprep.subr.bf16.mxu0 %v8699
    %8825 = vmatpush1.bf16.msra.mxu0 %v8698
    %8826 = vmatprep.subr.bf16.mxu0 %v8701
    %8827 = vmatpush1.bf16.msra.mxu0 %v8700
    %8828 = vmatprep.subr.bf16.mxu0 %v8703
    %8829 = vmatpush1.bf16.msra.mxu0 %v8702
    %8830 = vmatprep.subr.bf16.mxu0 %v8705
    %8831 = vmatpush1.bf16.msra.mxu0 %v8704
    %8832 = vmatprep.subr.bf16.mxu0 %v8707
    %8833 = vmatpush1.bf16.msra.mxu0 %v8706
    %8834 = vmatprep.subr.bf16.mxu0 %v8709
    %8835 = vmatpush1.bf16.msra.mxu0 %v8708
    %8836 = vmatprep.subr.bf16.mxu0 %v8711
    %8837 = vmatpush1.bf16.msra.mxu0 %v8710
    %8838 = vmatprep.subr.bf16.mxu0 0
    %8839 = vmatpush1.bf16.msra.mxu0 0
    %8840 = vmatprep.subr.bf16.mxu0 0
    %8841 = vmatpush1.bf16.msra.mxu0 0
    %8842 = vmatprep.subr.bf16.mxu0 0
    %8843 = vmatpush1.bf16.msra.mxu0 0
    %8844 = vmatprep.subr.bf16.mxu0 0
    %8845 = vmatpush1.bf16.msra.mxu0 0
    %8846 = vmatprep.mubr.bf16.mxu0 %v8769
    %8847 = vmatmul.mubr.bf16.gmra.mrb[0].mxu0 %v3273
    %v8848 = vpop.f32.mrb[0].mxu0
    %v8849 = vadd.f32 %v8806, %v8848
    %v8850 = vpop.f32.mrb[0].mxu0
    %v8851 = vadd.f32 %v8808, %v8850
    %v8852 = vpop.f32.mrb[0].mxu0
    %v8853 = vadd.f32 %v8810, %v8852
    %v8854 = vpop.f32.mrb[0].mxu0
    %v8855 = vadd.f32 %v8812, %v8854
    %8856 = vdwg.mxu0
    %v8857 = vadd.f32 %v8427, %v8849
    %v8858 = vadd.f32 %v8428, %v8851
    %v8859 = vadd.f32 %v8429, %v8853
    %v8860 = vadd.f32 %v8430, %v8855
    %s8861 = scalar_lea.vmem [#allocation4], 5824
    %v8862 = vld [vmem:[%s8861] sm:$0xff]
    %v8863 = vld [vmem:[%s8861 + $0x8] sm:$0xff]
    %v8864 = vld [vmem:[%s8861 + $0x10] sm:$0xff]
    %v8865 = vld [vmem:[%s8861 + $0x18] sm:$0xff]
    %v8866 = vld [vmem:[%s8861 + $0x20] sm:$0xff]
    %v8867 = vld [vmem:[%s8861 + $0x28] sm:$0xff]
    %v8868 = vld [vmem:[%s8861 + $0x30] sm:$0xff]
    %v8869 = vld [vmem:[%s8861 + $0x38] sm:$0xff]
    %v8870 = vld [vmem:[%s8861 + $0x40] sm:$0xff]
    %v8871 = vld [vmem:[%s8861 + $0x48] sm:$0xff]
    %v8872 = vld [vmem:[%s8861 + $0x50] sm:$0xff]
    %v8873 = vld [vmem:[%s8861 + $0x58] sm:$0xff]
    %v8874 = vld [vmem:[%s8861 + $0x60] sm:$0xff]
    %v8875 = vld [vmem:[%s8861 + $0x68] sm:$0xff]
    %v8876 = vld [vmem:[%s8861 + $0x70] sm:$0xff]
    %v8877 = vld [vmem:[%s8861 + $0x78] sm:$0xff]
    %v8878 = vld [vmem:[%s8861 + $0x80] sm:$0xff]
    %v8879 = vld [vmem:[%s8861 + $0x88] sm:$0xff]
    %v8880 = vld [vmem:[%s8861 + $0x90] sm:$0xff]
    %v8881 = vld [vmem:[%s8861 + $0x98] sm:$0xff]
    %v8882 = vld [vmem:[%s8861 + $0xa0] sm:$0xff]
    %v8883 = vld [vmem:[%s8861 + $0xa8] sm:$0xff]
    %v8884 = vld [vmem:[%s8861 + $0xb0] sm:$0xff]
    %v8885 = vld [vmem:[%s8861 + $0xb8] sm:$0xff]
    %v8886 = vld [vmem:[%s8861 + $0xc0] sm:$0xff]
    %v8887 = vld [vmem:[%s8861 + $0xc8] sm:$0xff]
    %v8888 = vld [vmem:[%s8861 + $0xd0] sm:$0xff]
    %v8889 = vld [vmem:[%s8861 + $0xd8] sm:$0xff]
    %v8890 = vld [vmem:[%s8861 + $0xe0] sm:$0xff]
    %v8891 = vld [vmem:[%s8861 + $0xe8] sm:$0xff]
    %v8892 = vld [vmem:[%s8861 + $0xf0] sm:$0xff]
    %v8893 = vld [vmem:[%s8861 + $0xf8] sm:$0xff]
    %v8894 = vld [vmem:[%s8861 + $0x100] sm:$0xff]
    %v8895 = vld [vmem:[%s8861 + $0x108] sm:$0xff]
    %v8896 = vld [vmem:[%s8861 + $0x110] sm:$0xff]
    %v8897 = vld [vmem:[%s8861 + $0x118] sm:$0xff]
    %v8898 = vld [vmem:[%s8861 + $0x120] sm:$0xff]
    %v8899 = vld [vmem:[%s8861 + $0x128] sm:$0xff]
    %v8900 = vld [vmem:[%s8861 + $0x130] sm:$0xff]
    %v8901 = vld [vmem:[%s8861 + $0x138] sm:$0xff]
    %v8902 = vld [vmem:[%s8861 + $0x140] sm:$0xff]
    %v8903 = vld [vmem:[%s8861 + $0x148] sm:$0xff]
    %v8904 = vld [vmem:[%s8861 + $0x150] sm:$0xff]
    %v8905 = vld [vmem:[%s8861 + $0x158] sm:$0xff]
    %v8906 = vld [vmem:[%s8861 + $0x160] sm:$0xff]
    %v8907 = vld [vmem:[%s8861 + $0x168] sm:$0xff]
    %v8908 = vld [vmem:[%s8861 + $0x170] sm:$0xff]
    %v8909 = vld [vmem:[%s8861 + $0x178] sm:$0xff]
    %v8910 = vld [vmem:[%s8861 + $0x180] sm:$0xff]
    %v8911 = vld [vmem:[%s8861 + $0x188] sm:$0xff]
    %v8912 = vld [vmem:[%s8861 + $0x190] sm:$0xff]
    %v8913 = vld [vmem:[%s8861 + $0x198] sm:$0xff]
    %v8914 = vld [vmem:[%s8861 + $0x1a0] sm:$0xff]
    %v8915 = vld [vmem:[%s8861 + $0x1a8] sm:$0xff]
    %v8916 = vld [vmem:[%s8861 + $0x1b0] sm:$0xff]
    %v8917 = vld [vmem:[%s8861 + $0x1b8] sm:$0xff]
    %v8974 = vunpack.c.l.b16 %v8862
    %v8975 = vunpack.c.h.b16 %v8862
    %v8976 = vunpack.c.l.b16 %v8863
    %v8977 = vunpack.c.h.b16 %v8863
    %v8978 = vunpack.c.l.b16 %v8864
    %v8979 = vunpack.c.h.b16 %v8864
    %v8980 = vunpack.c.l.b16 %v8865
    %v8981 = vunpack.c.h.b16 %v8865
    %v8982 = vunpack.c.l.b16 %v8866
    %v8983 = vunpack.c.h.b16 %v8866
    %v8984 = vunpack.c.l.b16 %v8867
    %v8985 = vunpack.c.h.b16 %v8867
    %v8986 = vunpack.c.l.b16 %v8868
    %v8987 = vunpack.c.h.b16 %v8868
    %v8988 = vunpack.c.l.b16 %v8869
    %v8989 = vunpack.c.h.b16 %v8869
    %v8990 = vunpack.c.l.b16 %v8870
    %v8991 = vunpack.c.h.b16 %v8870
    %v8992 = vunpack.c.l.b16 %v8871
    %v8993 = vunpack.c.h.b16 %v8871
    %v8994 = vunpack.c.l.b16 %v8872
    %v8995 = vunpack.c.h.b16 %v8872
    %v8996 = vunpack.c.l.b16 %v8873
    %v8997 = vunpack.c.h.b16 %v8873
    %v8998 = vunpack.c.l.b16 %v8874
    %v8999 = vunpack.c.h.b16 %v8874
    %v9000 = vunpack.c.l.b16 %v8875
    %v9001 = vunpack.c.h.b16 %v8875
    %v9002 = vunpack.c.l.b16 %v8876
    %v9003 = vunpack.c.h.b16 %v8876
    %v9004 = vunpack.c.l.b16 %v8877
    %v9005 = vunpack.c.h.b16 %v8877
    %v9006 = vunpack.c.l.b16 %v8878
    %v9007 = vunpack.c.h.b16 %v8878
    %v9008 = vunpack.c.l.b16 %v8879
    %v9009 = vunpack.c.h.b16 %v8879
    %v9010 = vunpack.c.l.b16 %v8880
    %v9011 = vunpack.c.h.b16 %v8880
    %v9012 = vunpack.c.l.b16 %v8881
    %v9013 = vunpack.c.h.b16 %v8881
    %v9014 = vunpack.c.l.b16 %v8882
    %v9015 = vunpack.c.h.b16 %v8882
    %v9016 = vunpack.c.l.b16 %v8883
    %v9017 = vunpack.c.h.b16 %v8883
    %v9018 = vunpack.c.l.b16 %v8884
    %v9019 = vunpack.c.h.b16 %v8884
    %v9020 = vunpack.c.l.b16 %v8885
    %v9021 = vunpack.c.h.b16 %v8885
    %v9022 = vunpack.c.l.b16 %v8886
    %v9023 = vunpack.c.h.b16 %v8886
    %v9024 = vunpack.c.l.b16 %v8887
    %v9025 = vunpack.c.h.b16 %v8887
    %v9026 = vunpack.c.l.b16 %v8888
    %v9027 = vunpack.c.h.b16 %v8888
    %v9028 = vunpack.c.l.b16 %v8889
    %v9029 = vunpack.c.h.b16 %v8889
    %v9030 = vunpack.c.l.b16 %v8890
    %v9031 = vunpack.c.h.b16 %v8890
    %v9032 = vunpack.c.l.b16 %v8891
    %v9033 = vunpack.c.h.b16 %v8891
    %v9034 = vunpack.c.l.b16 %v8892
    %v9035 = vunpack.c.h.b16 %v8892
    %v9036 = vunpack.c.l.b16 %v8893
    %v9037 = vunpack.c.h.b16 %v8893
    %v9038 = vunpack.c.l.b16 %v8894
    %v9039 = vunpack.c.h.b16 %v8894
    %v9040 = vunpack.c.l.b16 %v8895
    %v9041 = vunpack.c.h.b16 %v8895
    %v9042 = vunpack.c.l.b16 %v8896
    %v9043 = vunpack.c.h.b16 %v8896
    %v9044 = vunpack.c.l.b16 %v8897
    %v9045 = vunpack.c.h.b16 %v8897
    %v9046 = vunpack.c.l.b16 %v8898
    %v9047 = vunpack.c.h.b16 %v8898
    %v9048 = vunpack.c.l.b16 %v8899
    %v9049 = vunpack.c.h.b16 %v8899
    %v9050 = vunpack.c.l.b16 %v8900
    %v9051 = vunpack.c.h.b16 %v8900
    %v9052 = vunpack.c.l.b16 %v8901
    %v9053 = vunpack.c.h.b16 %v8901
    %v9054 = vunpack.c.l.b16 %v8902
    %v9055 = vunpack.c.h.b16 %v8902
    %v9056 = vunpack.c.l.b16 %v8903
    %v9057 = vunpack.c.h.b16 %v8903
    %v9058 = vunpack.c.l.b16 %v8904
    %v9059 = vunpack.c.h.b16 %v8904
    %v9060 = vunpack.c.l.b16 %v8905
    %v9061 = vunpack.c.h.b16 %v8905
    %v9062 = vunpack.c.l.b16 %v8906
    %v9063 = vunpack.c.h.b16 %v8906
    %v9064 = vunpack.c.l.b16 %v8907
    %v9065 = vunpack.c.h.b16 %v8907
    %v9066 = vunpack.c.l.b16 %v8908
    %v9067 = vunpack.c.h.b16 %v8908
    %v9068 = vunpack.c.l.b16 %v8909
    %v9069 = vunpack.c.h.b16 %v8909
    %v9070 = vunpack.c.l.b16 %v8910
    %v9071 = vunpack.c.h.b16 %v8910
    %v9072 = vunpack.c.l.b16 %v8911
    %v9073 = vunpack.c.h.b16 %v8911
    %v9074 = vunpack.c.l.b16 %v8912
    %v9075 = vunpack.c.h.b16 %v8912
    %v9076 = vunpack.c.l.b16 %v8913
    %v9077 = vunpack.c.h.b16 %v8913
    %v9078 = vunpack.c.l.b16 %v8914
    %v9079 = vunpack.c.h.b16 %v8914
    %v9080 = vunpack.c.l.b16 %v8915
    %v9081 = vunpack.c.h.b16 %v8915
    %v9082 = vunpack.c.l.b16 %v8916
    %v9083 = vunpack.c.h.b16 %v8916
    %v9084 = vunpack.c.l.b16 %v8917
    %v9085 = vunpack.c.h.b16 %v8917
    %v9086 = vpack.c.b16 %v8976, %v8974
    %v9087 = vpack.c.b16 %v8977, %v8975
    %v9088 = vpack.c.b16 %v8980, %v8978
    %v9089 = vpack.c.b16 %v8981, %v8979
    %v9090 = vpack.c.b16 %v8984, %v8982
    %v9091 = vpack.c.b16 %v8985, %v8983
    %v9092 = vpack.c.b16 %v8988, %v8986
    %v9093 = vpack.c.b16 %v8989, %v8987
    %v9094 = vpack.c.b16 %v8992, %v8990
    %v9095 = vpack.c.b16 %v8993, %v8991
    %v9096 = vpack.c.b16 %v8996, %v8994
    %v9097 = vpack.c.b16 %v8997, %v8995
    %v9098 = vpack.c.b16 %v9000, %v8998
    %v9099 = vpack.c.b16 %v9001, %v8999
    %v9100 = vpack.c.b16 %v9004, %v9002
    %v9101 = vpack.c.b16 %v9005, %v9003
    %v9102 = vpack.c.b16 %v9008, %v9006
    %v9103 = vpack.c.b16 %v9009, %v9007
    %v9104 = vpack.c.b16 %v9012, %v9010
    %v9105 = vpack.c.b16 %v9013, %v9011
    %v9106 = vpack.c.b16 %v9016, %v9014
    %v9107 = vpack.c.b16 %v9017, %v9015
    %v9108 = vpack.c.b16 %v9020, %v9018
    %v9109 = vpack.c.b16 %v9021, %v9019
    %v9110 = vpack.c.b16 %v9024, %v9022
    %v9111 = vpack.c.b16 %v9025, %v9023
    %v9112 = vpack.c.b16 %v9028, %v9026
    %v9113 = vpack.c.b16 %v9029, %v9027
    %v9114 = vpack.c.b16 %v9032, %v9030
    %v9115 = vpack.c.b16 %v9033, %v9031
    %v9116 = vpack.c.b16 %v9036, %v9034
    %v9117 = vpack.c.b16 %v9037, %v9035
    %v9118 = vpack.c.b16 %v9040, %v9038
    %v9119 = vpack.c.b16 %v9041, %v9039
    %v9120 = vpack.c.b16 %v9044, %v9042
    %v9121 = vpack.c.b16 %v9045, %v9043
    %v9122 = vpack.c.b16 %v9048, %v9046
    %v9123 = vpack.c.b16 %v9049, %v9047
    %v9124 = vpack.c.b16 %v9052, %v9050
    %v9125 = vpack.c.b16 %v9053, %v9051
    %v9126 = vpack.c.b16 %v9056, %v9054
    %v9127 = vpack.c.b16 %v9057, %v9055
    %v9128 = vpack.c.b16 %v9060, %v9058
    %v9129 = vpack.c.b16 %v9061, %v9059
    %v9130 = vpack.c.b16 %v9064, %v9062
    %v9131 = vpack.c.b16 %v9065, %v9063
    %v9132 = vpack.c.b16 %v9068, %v9066
    %v9133 = vpack.c.b16 %v9069, %v9067
    %v9134 = vpack.c.b16 %v9072, %v9070
    %v9135 = vpack.c.b16 %v9073, %v9071
    %v9136 = vpack.c.b16 %v9076, %v9074
    %v9137 = vpack.c.b16 %v9077, %v9075
    %v9138 = vpack.c.b16 %v9080, %v9078
    %v9139 = vpack.c.b16 %v9081, %v9079
    %v9140 = vpack.c.b16 %v9084, %v9082
    %v9141 = vpack.c.b16 %v9085, %v9083
    %v9199 = vsel %vm3672, %v3278, 0
    %9201 = vmatprep.subr.bf16.mxu0 %v9087
    %9202 = vmatpush1.bf16.msra.mxu0 %v9086
    %9203 = vmatprep.subr.bf16.mxu0 %v9089
    %9204 = vmatpush1.bf16.msra.mxu0 %v9088
    %9205 = vmatprep.subr.bf16.mxu0 %v9091
    %9206 = vmatpush1.bf16.msra.mxu0 %v9090
    %9207 = vmatprep.subr.bf16.mxu0 %v9093
    %9208 = vmatpush1.bf16.msra.mxu0 %v9092
    %9209 = vmatprep.subr.bf16.mxu0 %v9095
    %9210 = vmatpush1.bf16.msra.mxu0 %v9094
    %9211 = vmatprep.subr.bf16.mxu0 %v9097
    %9212 = vmatpush1.bf16.msra.mxu0 %v9096
    %9213 = vmatprep.subr.bf16.mxu0 %v9099
    %9214 = vmatpush1.bf16.msra.mxu0 %v9098
    %9215 = vmatprep.subr.bf16.mxu0 %v9101
    %9216 = vmatpush1.bf16.msra.mxu0 %v9100
    %9217 = vmatprep.subr.bf16.mxu0 %v9103
    %9218 = vmatpush1.bf16.msra.mxu0 %v9102
    %9219 = vmatprep.subr.bf16.mxu0 %v9105
    %9220 = vmatpush1.bf16.msra.mxu0 %v9104
    %9221 = vmatprep.subr.bf16.mxu0 %v9107
    %9222 = vmatpush1.bf16.msra.mxu0 %v9106
    %9223 = vmatprep.subr.bf16.mxu0 %v9109
    %9224 = vmatpush1.bf16.msra.mxu0 %v9108
    %9225 = vmatprep.subr.bf16.mxu0 %v9111
    %9226 = vmatpush1.bf16.msra.mxu0 %v9110
    %9227 = vmatprep.subr.bf16.mxu0 %v9113
    %9228 = vmatpush1.bf16.msra.mxu0 %v9112
    %9229 = vmatprep.subr.bf16.mxu0 %v9115
    %9230 = vmatpush1.bf16.msra.mxu0 %v9114
    %9231 = vmatprep.subr.bf16.mxu0 %v9117
    %9232 = vmatpush1.bf16.msra.mxu0 %v9116
    %9233 = vmatprep.mubr.bf16.mxu0 %v3276
    %9234 = vmatmul.mubr.bf16.gmra.mrb[0].mxu0 %v3275
    %v9235 = vpop.f32.mrb[0].mxu0
    %v9236 = vadd.f32 0.0, %v9235
    %v9237 = vpop.f32.mrb[0].mxu0
    %v9238 = vadd.f32 0.0, %v9237
    %v9239 = vpop.f32.mrb[0].mxu0
    %v9240 = vadd.f32 0.0, %v9239
    %v9241 = vpop.f32.mrb[0].mxu0
    %v9242 = vadd.f32 0.0, %v9241
    %9243 = vdwg.mxu0
    %9244 = vmatprep.subr.bf16.mxu0 %v9119
    %9245 = vmatpush1.bf16.msra.mxu0 %v9118
    %9246 = vmatprep.subr.bf16.mxu0 %v9121
    %9247 = vmatpush1.bf16.msra.mxu0 %v9120
    %9248 = vmatprep.subr.bf16.mxu0 %v9123
    %9249 = vmatpush1.bf16.msra.mxu0 %v9122
    %9250 = vmatprep.subr.bf16.mxu0 %v9125
    %9251 = vmatpush1.bf16.msra.mxu0 %v9124
    %9252 = vmatprep.subr.bf16.mxu0 %v9127
    %9253 = vmatpush1.bf16.msra.mxu0 %v9126
    %9254 = vmatprep.subr.bf16.mxu0 %v9129
    %9255 = vmatpush1.bf16.msra.mxu0 %v9128
    %9256 = vmatprep.subr.bf16.mxu0 %v9131
    %9257 = vmatpush1.bf16.msra.mxu0 %v9130
    %9258 = vmatprep.subr.bf16.mxu0 %v9133
    %9259 = vmatpush1.bf16.msra.mxu0 %v9132
    %9260 = vmatprep.subr.bf16.mxu0 %v9135
    %9261 = vmatpush1.bf16.msra.mxu0 %v9134
    %9262 = vmatprep.subr.bf16.mxu0 %v9137
    %9263 = vmatpush1.bf16.msra.mxu0 %v9136
    %9264 = vmatprep.subr.bf16.mxu0 %v9139
    %9265 = vmatpush1.bf16.msra.mxu0 %v9138
    %9266 = vmatprep.subr.bf16.mxu0 %v9141
    %9267 = vmatpush1.bf16.msra.mxu0 %v9140
    %9268 = vmatprep.subr.bf16.mxu0 0
    %9269 = vmatpush1.bf16.msra.mxu0 0
    %9270 = vmatprep.subr.bf16.mxu0 0
    %9271 = vmatpush1.bf16.msra.mxu0 0
    %9272 = vmatprep.subr.bf16.mxu0 0
    %9273 = vmatpush1.bf16.msra.mxu0 0
    %9274 = vmatprep.subr.bf16.mxu0 0
    %9275 = vmatpush1.bf16.msra.mxu0 0
    %9276 = vmatprep.mubr.bf16.mxu0 %v9199
    %9277 = vmatmul.mubr.bf16.gmra.mrb[0].mxu0 %v3277
    %v9278 = vpop.f32.mrb[0].mxu0
    %v9279 = vadd.f32 %v9236, %v9278
    %v9280 = vpop.f32.mrb[0].mxu0
    %v9281 = vadd.f32 %v9238, %v9280
    %v9282 = vpop.f32.mrb[0].mxu0
    %v9283 = vadd.f32 %v9240, %v9282
    %v9284 = vpop.f32.mrb[0].mxu0
    %v9285 = vadd.f32 %v9242, %v9284
    %9286 = vdwg.mxu0
    %v9287 = vadd.f32 %v8857, %v9279
    %v9288 = vadd.f32 %v8858, %v9281
    %v9289 = vadd.f32 %v8859, %v9283
    %v9290 = vadd.f32 %v8860, %v9285
    %v9291 = vld [vmem:[#allocation6] sm:$0x3]
    %v9293 = vlaneseq
    %v9294 = vshrl.u32 %v9293, 7
    %v9295 = vsub.s32 0, %v9294
    %v9296 = vrot.slane %v9291, %v9295
    %v9297 = vlaneseq
    %v9298 = vshrl.u32 %v9297, 7
    %v9299 = vsub.s32 1, %v9298
    %v9300 = vrot.slane %v9291, %v9299
    %v9303 = vadd.f32 %v9287, %v9296
    %v9304 = vadd.f32 %v9288, %v9300
    %v9305 = vadd.f32 %v9289, %v9296
    %v9306 = vadd.f32 %v9290, %v9300
    %vm9307 = vcmp.gt.f32.partialorder %v9303, 0.0
    %vm9308 = vcmp.gt.f32.partialorder %v9304, 0.0
    %vm9309 = vcmp.gt.f32.partialorder %v9305, 0.0
    %vm9310 = vcmp.gt.f32.partialorder %v9306, 0.0
    %v9311 = vmul.f32 %v9303, 0.01
    %v9312 = vmul.f32 %v9304, 0.01
    %v9313 = vmul.f32 %v9305, 0.01
    %v9314 = vmul.f32 %v9306, 0.01
    %v9315 = vsel %vm9307, %v9303, %v9311
    %v9316 = vsel %vm9308, %v9304, %v9312
    %v9317 = vsel %vm9309, %v9305, %v9313
    %v9318 = vsel %vm9310, %v9306, %v9314
    %v9319 = vpack.c.bf16 %v9317, %v9315
    %v9320 = vpack.c.bf16 %v9318, %v9316
    %v9321 = vld [vmem:[#allocation7] sm:$0xff]
    %v9322 = vld [vmem:[#allocation7 + $0x8] sm:$0xff]
    %v9323 = vld [vmem:[#allocation7 + $0x10] sm:$0xff]
    %v9324 = vld [vmem:[#allocation7 + $0x18] sm:$0xff]
    %v9325 = vld [vmem:[#allocation7 + $0x20] sm:$0xff]
    %v9326 = vld [vmem:[#allocation7 + $0x28] sm:$0xff]
    %v9327 = vld [vmem:[#allocation7 + $0x30] sm:$0xff]
    %v9328 = vld [vmem:[#allocation7 + $0x38] sm:$0xff]
    %v9329 = vld [vmem:[#allocation7 + $0x40] sm:$0xff]
    %v9330 = vld [vmem:[#allocation7 + $0x48] sm:$0xff]
    %v9331 = vld [vmem:[#allocation7 + $0x50] sm:$0xff]
    %v9332 = vld [vmem:[#allocation7 + $0x58] sm:$0xff]
    %v9333 = vld [vmem:[#allocation7 + $0x60] sm:$0xff]
    %v9334 = vld [vmem:[#allocation7 + $0x68] sm:$0xff]
    %v9335 = vld [vmem:[#allocation7 + $0x70] sm:$0xff]
    %v9336 = vld [vmem:[#allocation7 + $0x78] sm:$0xff]
    %v9337 = vld [vmem:[#allocation7 + $0x80] sm:$0xff]
    %v9338 = vld [vmem:[#allocation7 + $0x88] sm:$0xff]
    %v9339 = vld [vmem:[#allocation7 + $0x90] sm:$0xff]
    %v9340 = vld [vmem:[#allocation7 + $0x98] sm:$0xff]
    %v9341 = vld [vmem:[#allocation7 + $0xa0] sm:$0xff]
    %v9342 = vld [vmem:[#allocation7 + $0xa8] sm:$0xff]
    %v9343 = vld [vmem:[#allocation7 + $0xb0] sm:$0xff]
    %v9344 = vld [vmem:[#allocation7 + $0xb8] sm:$0xff]
    %v9345 = vld [vmem:[#allocation7 + $0xc0] sm:$0xff]
    %v9346 = vld [vmem:[#allocation7 + $0xc8] sm:$0xff]
    %v9347 = vld [vmem:[#allocation7 + $0xd0] sm:$0xff]
    %v9348 = vld [vmem:[#allocation7 + $0xd8] sm:$0xff]
    %v9349 = vld [vmem:[#allocation7 + $0xe0] sm:$0xff]
    %v9350 = vld [vmem:[#allocation7 + $0xe8] sm:$0xff]
    %v9351 = vld [vmem:[#allocation7 + $0xf0] sm:$0xff]
    %v9352 = vld [vmem:[#allocation7 + $0xf8] sm:$0xff]
    %v9353 = vld [vmem:[#allocation9] sm:$0x3]
    %v9355 = vlaneseq
    %v9356 = vshrl.u32 %v9355, 7
    %v9357 = vsub.s32 0, %v9356
    %v9358 = vrot.slane %v9353, %v9357
    %v9359 = vlaneseq
    %v9360 = vshrl.u32 %v9359, 7
    %v9361 = vsub.s32 1, %v9360
    %v9362 = vrot.slane %v9353, %v9361
    %v9397 = vunpack.c.l.b16 %v9321
    %v9398 = vunpack.c.h.b16 %v9321
    %v9399 = vunpack.c.l.b16 %v9322
    %v9400 = vunpack.c.h.b16 %v9322
    %v9401 = vunpack.c.l.b16 %v9323
    %v9402 = vunpack.c.h.b16 %v9323
    %v9403 = vunpack.c.l.b16 %v9324
    %v9404 = vunpack.c.h.b16 %v9324
    %v9405 = vunpack.c.l.b16 %v9325
    %v9406 = vunpack.c.h.b16 %v9325
    %v9407 = vunpack.c.l.b16 %v9326
    %v9408 = vunpack.c.h.b16 %v9326
    %v9409 = vunpack.c.l.b16 %v9327
    %v9410 = vunpack.c.h.b16 %v9327
    %v9411 = vunpack.c.l.b16 %v9328
    %v9412 = vunpack.c.h.b16 %v9328
    %v9413 = vunpack.c.l.b16 %v9329
    %v9414 = vunpack.c.h.b16 %v9329
    %v9415 = vunpack.c.l.b16 %v9330
    %v9416 = vunpack.c.h.b16 %v9330
    %v9417 = vunpack.c.l.b16 %v9331
    %v9418 = vunpack.c.h.b16 %v9331
    %v9419 = vunpack.c.l.b16 %v9332
    %v9420 = vunpack.c.h.b16 %v9332
    %v9421 = vunpack.c.l.b16 %v9333
    %v9422 = vunpack.c.h.b16 %v9333
    %v9423 = vunpack.c.l.b16 %v9334
    %v9424 = vunpack.c.h.b16 %v9334
    %v9425 = vunpack.c.l.b16 %v9335
    %v9426 = vunpack.c.h.b16 %v9335
    %v9427 = vunpack.c.l.b16 %v9336
    %v9428 = vunpack.c.h.b16 %v9336
    %v9429 = vunpack.c.l.b16 %v9337
    %v9430 = vunpack.c.h.b16 %v9337
    %v9431 = vunpack.c.l.b16 %v9338
    %v9432 = vunpack.c.h.b16 %v9338
    %v9433 = vunpack.c.l.b16 %v9339
    %v9434 = vunpack.c.h.b16 %v9339
    %v9435 = vunpack.c.l.b16 %v9340
    %v9436 = vunpack.c.h.b16 %v9340
    %v9437 = vunpack.c.l.b16 %v9341
    %v9438 = vunpack.c.h.b16 %v9341
    %v9439 = vunpack.c.l.b16 %v9342
    %v9440 = vunpack.c.h.b16 %v9342
    %v9441 = vunpack.c.l.b16 %v9343
    %v9442 = vunpack.c.h.b16 %v9343
    %v9443 = vunpack.c.l.b16 %v9344
    %v9444 = vunpack.c.h.b16 %v9344
    %v9445 = vunpack.c.l.b16 %v9345
    %v9446 = vunpack.c.h.b16 %v9345
    %v9447 = vunpack.c.l.b16 %v9346
    %v9448 = vunpack.c.h.b16 %v9346
    %v9449 = vunpack.c.l.b16 %v9347
    %v9450 = vunpack.c.h.b16 %v9347
    %v9451 = vunpack.c.l.b16 %v9348
    %v9452 = vunpack.c.h.b16 %v9348
    %v9453 = vunpack.c.l.b16 %v9349
    %v9454 = vunpack.c.h.b16 %v9349
    %v9455 = vunpack.c.l.b16 %v9350
    %v9456 = vunpack.c.h.b16 %v9350
    %v9457 = vunpack.c.l.b16 %v9351
    %v9458 = vunpack.c.h.b16 %v9351
    %v9459 = vunpack.c.l.b16 %v9352
    %v9460 = vunpack.c.h.b16 %v9352
    %v9461 = vpack.c.b16 %v9399, %v9397
    %v9462 = vpack.c.b16 %v9400, %v9398
    %v9463 = vpack.c.b16 %v9403, %v9401
    %v9464 = vpack.c.b16 %v9404, %v9402
    %v9465 = vpack.c.b16 %v9407, %v9405
    %v9466 = vpack.c.b16 %v9408, %v9406
    %v9467 = vpack.c.b16 %v9411, %v9409
    %v9468 = vpack.c.b16 %v9412, %v9410
    %v9469 = vpack.c.b16 %v9415, %v9413
    %v9470 = vpack.c.b16 %v9416, %v9414
    %v9471 = vpack.c.b16 %v9419, %v9417
    %v9472 = vpack.c.b16 %v9420, %v9418
    %v9473 = vpack.c.b16 %v9423, %v9421
    %v9474 = vpack.c.b16 %v9424, %v9422
    %v9475 = vpack.c.b16 %v9427, %v9425
    %v9476 = vpack.c.b16 %v9428, %v9426
    %v9477 = vpack.c.b16 %v9431, %v9429
    %v9478 = vpack.c.b16 %v9432, %v9430
    %v9479 = vpack.c.b16 %v9435, %v9433
    %v9480 = vpack.c.b16 %v9436, %v9434
    %v9481 = vpack.c.b16 %v9439, %v9437
    %v9482 = vpack.c.b16 %v9440, %v9438
    %v9483 = vpack.c.b16 %v9443, %v9441
    %v9484 = vpack.c.b16 %v9444, %v9442
    %v9485 = vpack.c.b16 %v9447, %v9445
    %v9486 = vpack.c.b16 %v9448, %v9446
    %v9487 = vpack.c.b16 %v9451, %v9449
    %v9488 = vpack.c.b16 %v9452, %v9450
    %v9489 = vpack.c.b16 %v9455, %v9453
    %v9490 = vpack.c.b16 %v9456, %v9454
    %v9491 = vpack.c.b16 %v9459, %v9457
    %v9492 = vpack.c.b16 %v9460, %v9458
    %9525 = vmatprep.subr.bf16.mxu0 %v9462
    %9526 = vmatpush1.bf16.msra.mxu0 %v9461
    %9527 = vmatprep.subr.bf16.mxu0 %v9464
    %9528 = vmatpush1.bf16.msra.mxu0 %v9463
    %9529 = vmatprep.subr.bf16.mxu0 %v9466
    %9530 = vmatpush1.bf16.msra.mxu0 %v9465
    %9531 = vmatprep.subr.bf16.mxu0 %v9468
    %9532 = vmatpush1.bf16.msra.mxu0 %v9467
    %9533 = vmatprep.subr.bf16.mxu0 %v9470
    %9534 = vmatpush1.bf16.msra.mxu0 %v9469
    %9535 = vmatprep.subr.bf16.mxu0 %v9472
    %9536 = vmatpush1.bf16.msra.mxu0 %v9471
    %9537 = vmatprep.subr.bf16.mxu0 %v9474
    %9538 = vmatpush1.bf16.msra.mxu0 %v9473
    %9539 = vmatprep.subr.bf16.mxu0 %v9476
    %9540 = vmatpush1.bf16.msra.mxu0 %v9475
    %9541 = vmatprep.subr.bf16.mxu0 %v9478
    %9542 = vmatpush1.bf16.msra.mxu0 %v9477
    %9543 = vmatprep.subr.bf16.mxu0 %v9480
    %9544 = vmatpush1.bf16.msra.mxu0 %v9479
    %9545 = vmatprep.subr.bf16.mxu0 %v9482
    %9546 = vmatpush1.bf16.msra.mxu0 %v9481
    %9547 = vmatprep.subr.bf16.mxu0 %v9484
    %9548 = vmatpush1.bf16.msra.mxu0 %v9483
    %9549 = vmatprep.subr.bf16.mxu0 %v9486
    %9550 = vmatpush1.bf16.msra.mxu0 %v9485
    %9551 = vmatprep.subr.bf16.mxu0 %v9488
    %9552 = vmatpush1.bf16.msra.mxu0 %v9487
    %9553 = vmatprep.subr.bf16.mxu0 %v9490
    %9554 = vmatpush1.bf16.msra.mxu0 %v9489
    %9555 = vmatprep.subr.bf16.mxu0 %v9492
    %9556 = vmatpush1.bf16.msra.mxu0 %v9491
    %9557 = vmatprep.mubr.bf16.mxu0 %v9320
    %9558 = vmatmul.mubr.bf16.gmra.mrb[0].mxu0 %v9319
    %v9559 = vpop.f32.mrb[0].mxu0
    %v9560 = vadd.f32 %v9358, %v9559
    %v9561 = vpop.f32.mrb[0].mxu0
    %v9562 = vadd.f32 %v9362, %v9561
    %v9563 = vpop.f32.mrb[0].mxu0
    %v9564 = vadd.f32 %v9358, %v9563
    %v9565 = vpop.f32.mrb[0].mxu0
    %v9566 = vadd.f32 %v9362, %v9565
    %9567 = vdwg.mxu0
    %vm9568 = vcmp.gt.f32.partialorder %v9560, 0.0
    %vm9569 = vcmp.gt.f32.partialorder %v9562, 0.0
    %vm9570 = vcmp.gt.f32.partialorder %v9564, 0.0
    %vm9571 = vcmp.gt.f32.partialorder %v9566, 0.0
    %v9572 = vmul.f32 %v9560, 0.01
    %v9573 = vmul.f32 %v9562, 0.01
    %v9574 = vmul.f32 %v9564, 0.01
    %v9575 = vmul.f32 %v9566, 0.01
    %v9576 = vsel %vm9568, %v9560, %v9572
    %v9577 = vsel %vm9569, %v9562, %v9573
    %v9578 = vsel %vm9570, %v9564, %v9574
    %v9579 = vsel %vm9571, %v9566, %v9575
    %v9580 = vpack.c.bf16 %v9578, %v9576
    %v9581 = vpack.c.bf16 %v9579, %v9577
    %v9582 = vld [vmem:[#allocation10] sm:$0xf]
    %v9583 = vld [vmem:[#allocation10 + $0x4] sm:$0xf]
    %v9584 = vld [vmem:[#allocation10 + $0x8] sm:$0xf]
    %v9585 = vld [vmem:[#allocation10 + $0xc] sm:$0xf]
    %v9586 = vld [vmem:[#allocation10 + $0x10] sm:$0xf]
    %v9587 = vld [vmem:[#allocation10 + $0x14] sm:$0xf]
    %v9588 = vld [vmem:[#allocation10 + $0x18] sm:$0xf]
    %v9589 = vld [vmem:[#allocation10 + $0x1c] sm:$0xf]
    %v9590 = vld [vmem:[#allocation10 + $0x20] sm:$0xf]
    %v9591 = vld [vmem:[#allocation10 + $0x24] sm:$0xf]
    %v9592 = vld [vmem:[#allocation10 + $0x28] sm:$0xf]
    %v9593 = vld [vmem:[#allocation10 + $0x2c] sm:$0xf]
    %v9594 = vld [vmem:[#allocation10 + $0x30] sm:$0xf]
    %v9595 = vld [vmem:[#allocation10 + $0x34] sm:$0xf]
    %v9596 = vld [vmem:[#allocation10 + $0x38] sm:$0xf]
    %v9597 = vld [vmem:[#allocation10 + $0x3c] sm:$0xf]
    %v9598 = vld [vmem:[#allocation10 + $0x40] sm:$0xf]
    %v9599 = vld [vmem:[#allocation10 + $0x44] sm:$0xf]
    %v9600 = vld [vmem:[#allocation10 + $0x48] sm:$0xf]
    %v9601 = vld [vmem:[#allocation10 + $0x4c] sm:$0xf]
    %v9602 = vld [vmem:[#allocation10 + $0x50] sm:$0xf]
    %v9603 = vld [vmem:[#allocation10 + $0x54] sm:$0xf]
    %v9604 = vld [vmem:[#allocation10 + $0x58] sm:$0xf]
    %v9605 = vld [vmem:[#allocation10 + $0x5c] sm:$0xf]
    %v9606 = vld [vmem:[#allocation10 + $0x60] sm:$0xf]
    %v9607 = vld [vmem:[#allocation10 + $0x64] sm:$0xf]
    %v9608 = vld [vmem:[#allocation10 + $0x68] sm:$0xf]
    %v9609 = vld [vmem:[#allocation10 + $0x6c] sm:$0xf]
    %v9610 = vld [vmem:[#allocation10 + $0x70] sm:$0xf]
    %v9611 = vld [vmem:[#allocation10 + $0x74] sm:$0xf]
    %v9612 = vld [vmem:[#allocation10 + $0x78] sm:$0xf]
    %v9613 = vld [vmem:[#allocation10 + $0x7c] sm:$0xf]
    %v9614 = vld [vmem:[#allocation12] sm:$0x1]
    %v9616 = vlaneseq
    %v9617 = vshrl.u32 %v9616, 7
    %v9618 = vsub.s32 0, %v9617
    %v9619 = vrot.slane %v9614, %v9618
    %v9653 = vunpack.c.l.b16 %v9582
    %v9654 = vunpack.c.l.b16 %v9583
    %v9655 = vunpack.c.l.b16 %v9584
    %v9656 = vunpack.c.l.b16 %v9585
    %v9657 = vunpack.c.l.b16 %v9586
    %v9658 = vunpack.c.l.b16 %v9587
    %v9659 = vunpack.c.l.b16 %v9588
    %v9660 = vunpack.c.l.b16 %v9589
    %v9661 = vunpack.c.l.b16 %v9590
    %v9662 = vunpack.c.l.b16 %v9591
    %v9663 = vunpack.c.l.b16 %v9592
    %v9664 = vunpack.c.l.b16 %v9593
    %v9665 = vunpack.c.l.b16 %v9594
    %v9666 = vunpack.c.l.b16 %v9595
    %v9667 = vunpack.c.l.b16 %v9596
    %v9668 = vunpack.c.l.b16 %v9597
    %v9669 = vunpack.c.l.b16 %v9598
    %v9670 = vunpack.c.l.b16 %v9599
    %v9671 = vunpack.c.l.b16 %v9600
    %v9672 = vunpack.c.l.b16 %v9601
    %v9673 = vunpack.c.l.b16 %v9602
    %v9674 = vunpack.c.l.b16 %v9603
    %v9675 = vunpack.c.l.b16 %v9604
    %v9676 = vunpack.c.l.b16 %v9605
    %v9677 = vunpack.c.l.b16 %v9606
    %v9678 = vunpack.c.l.b16 %v9607
    %v9679 = vunpack.c.l.b16 %v9608
    %v9680 = vunpack.c.l.b16 %v9609
    %v9681 = vunpack.c.l.b16 %v9610
    %v9682 = vunpack.c.l.b16 %v9611
    %v9683 = vunpack.c.l.b16 %v9612
    %v9684 = vunpack.c.l.b16 %v9613
    %v9685 = vpack.c.b16 %v9654, %v9653
    %v9686 = vpack.c.b16 %v9656, %v9655
    %v9687 = vpack.c.b16 %v9658, %v9657
    %v9688 = vpack.c.b16 %v9660, %v9659
    %v9689 = vpack.c.b16 %v9662, %v9661
    %v9690 = vpack.c.b16 %v9664, %v9663
    %v9691 = vpack.c.b16 %v9666, %v9665
    %v9692 = vpack.c.b16 %v9668, %v9667
    %v9693 = vpack.c.b16 %v9670, %v9669
    %v9694 = vpack.c.b16 %v9672, %v9671
    %v9695 = vpack.c.b16 %v9674, %v9673
    %v9696 = vpack.c.b16 %v9676, %v9675
    %v9697 = vpack.c.b16 %v9678, %v9677
    %v9698 = vpack.c.b16 %v9680, %v9679
    %v9699 = vpack.c.b16 %v9682, %v9681
    %v9700 = vpack.c.b16 %v9684, %v9683
    %9717 = vmatprep.subr.bf16.mxu0 0
    %9718 = vmatpush1.bf16.msra.mxu0 %v9685
    %9719 = vmatprep.subr.bf16.mxu0 0
    %9720 = vmatpush1.bf16.msra.mxu0 %v9686
    %9721 = vmatprep.subr.bf16.mxu0 0
    %9722 = vmatpush1.bf16.msra.mxu0 %v9687
    %9723 = vmatprep.subr.bf16.mxu0 0
    %9724 = vmatpush1.bf16.msra.mxu0 %v9688
    %9725 = vmatprep.subr.bf16.mxu0 0
    %9726 = vmatpush1.bf16.msra.mxu0 %v9689
    %9727 = vmatprep.subr.bf16.mxu0 0
    %9728 = vmatpush1.bf16.msra.mxu0 %v9690
    %9729 = vmatprep.subr.bf16.mxu0 0
    %9730 = vmatpush1.bf16.msra.mxu0 %v9691
    %9731 = vmatprep.subr.bf16.mxu0 0
    %9732 = vmatpush1.bf16.msra.mxu0 %v9692
    %9733 = vmatprep.subr.bf16.mxu0 0
    %9734 = vmatpush1.bf16.msra.mxu0 %v9693
    %9735 = vmatprep.subr.bf16.mxu0 0
    %9736 = vmatpush1.bf16.msra.mxu0 %v9694
    %9737 = vmatprep.subr.bf16.mxu0 0
    %9738 = vmatpush1.bf16.msra.mxu0 %v9695
    %9739 = vmatprep.subr.bf16.mxu0 0
    %9740 = vmatpush1.bf16.msra.mxu0 %v9696
    %9741 = vmatprep.subr.bf16.mxu0 0
    %9742 = vmatpush1.bf16.msra.mxu0 %v9697
    %9743 = vmatprep.subr.bf16.mxu0 0
    %9744 = vmatpush1.bf16.msra.mxu0 %v9698
    %9745 = vmatprep.subr.bf16.mxu0 0
    %9746 = vmatpush1.bf16.msra.mxu0 %v9699
    %9747 = vmatprep.subr.bf16.mxu0 0
    %9748 = vmatpush1.bf16.msra.mxu0 %v9700
    %9749 = vmatprep.mubr.bf16.mxu0 %v9581
    %9750 = vmatmul.mubr.bf16.gmra.mrb[0].mxu0 %v9580
    %v9751 = vpop.f32.mrb[0].mxu0
    %v9752 = vadd.f32 %v9619, %v9751
    %v9753 = vpop.f32.mrb[0].mxu0
    %v9754 = vpop.f32.mrb[0].mxu0
    %v9755 = vadd.f32 %v9619, %v9754
    %v9756 = vpop.f32.mrb[0].mxu0
    %9757 = vdwg.mxu0
    %9758 = vst [vmem:[%s9] sm:$0xff] %v9752
    %9759 = vst [vmem:[%s9 + $0x8] sm:$0xff] %v9755
    // Predicated region
    $region66: #{forward.1} parent=1 // pred_check
      _
    $region67: #{forward.1} parent=1 // pred_check_branch
      %9761 = sbr.rel (0) target = $region69
    $region68: #{forward.1} parent=1 // pred_region
      _
    $region69: #{forward.1} parent=1 // pred_fallthru
      _
    // Predicated region
    $region70: #{forward.1} parent=1 // pred_check
      _
    $region71: #{forward.1} parent=1 // pred_check_branch
      %9763 = sbr.rel (0) target = $region73
    $region72: #{forward.1} parent=1 // pred_region
      _
    $region73: #{forward.1} parent=1 // pred_fallthru
      _
    %9764 = vsyncpa [#allocation3], 1
    %9765 = vsyncpa [#allocation5], 1
    %9766 = vsyncpa [#allocation8], 1
    %9767 = vsyncpa [#allocation11], 1

</llo_original>
